<compile_context>
chip_gen: v7x
topology: tpu7x:2x2x1
jax: 0.10.0
libtpu: 0.0.40
codegen_flags: <defaults>
</compile_context>

<pallas_src>
import functools

import jax
import jax.numpy as jnp
from jax.experimental import pallas as pl
from jax.experimental.pallas import tpu as pltpu

EPS = 1e-5
NEG_SLOPE = 0.2


def _vmem_limit_bytes():
    cap = 64 * 1024 * 1024  # conservative default (v7x per-TC VMEM)
    try:
        cap = int(pltpu.get_tpu_info().vmem_capacity_bytes)
    except Exception:
        pass
    return min((cap * 3) // 4, 96 * 1024 * 1024)


_VMEM_LIMIT = _vmem_limit_bytes()


def _cparams(dims):
    return pltpu.CompilerParams(dimension_semantics=dims,
                                vmem_limit_bytes=_VMEM_LIMIT)


# ---------------------------------------------------------------------------
# Pallas kernels
# ---------------------------------------------------------------------------
def _moments_kernel(x_ref, sum_ref, sq_ref):
    """One-pass per-channel sum / sum-of-squares over M-tiled rows."""
    @pl.when(pl.program_id(0) == 0)
    def _():
        sum_ref[...] = jnp.zeros_like(sum_ref)
        sq_ref[...] = jnp.zeros_like(sq_ref)
    x = x_ref[...]
    sum_ref[...] += jnp.sum(x, axis=0, keepdims=True)
    sq_ref[...] += jnp.sum(x * x, axis=0, keepdims=True)


def _spade_mod_kernel(x_ref, g_ref, b_ref, mean_ref, istd_ref, o_ref, *, slope):
    """Fused param-free BN normalize + SPADE modulation (+ optional LeakyReLU)."""
    xn = (x_ref[...] - mean_ref[...]) * istd_ref[...]
    y = xn * (1.0 + g_ref[...]) + b_ref[...]
    if slope is not None:
        y = jnp.where(y >= 0.0, y, slope * y)
    o_ref[...] = y.astype(o_ref.dtype)


def _conv3x3_kernel(*refs, th, wo, cin, cout, act, has_res):
    """3x3 same-padding conv as one deep-K bf16 matmul + bias (+ReLU) (+residual).

    xp_ref : (1, H+2, W+2, Cin) padded input for the current batch image
    w_ref  : (9*Cin, Cout)      bf16 weights (taps folded into K)
    b_ref  : (1, Cout)          f32 bias
    res_ref: (1, th, W, Cout)   optional residual (fused x_s + dx)
    o_ref  : (1, th, W, Cout)
    """
    if has_res:
        xp_ref, w_ref, b_ref, res_ref, o_ref = refs
    else:
        xp_ref, w_ref, b_ref, o_ref = refs
        res_ref = None

    r0 = pl.multiple_of(pl.program_id(1) * th, th)
    win = xp_ref[0, pl.ds(r0, th + 2), :, :]           # (th+2, W+2, Cin) in VMEM

    taps = []
    for dy in range(3):                                 # static unrolled taps
        for dx in range(3):
            t = win[dy:dy + th, dx:dx + wo, :].reshape(th * wo, cin)
            taps.append(t.astype(jnp.bfloat16))
    slab = jnp.concatenate(taps, axis=-1)               # (th*wo, 9*Cin), deep K

    acc = jnp.dot(slab, w_ref[...], preferred_element_type=jnp.float32)
    y = acc + b_ref[...]
    if act == "relu":
        y = jnp.maximum(y, 0.0)
    y = y.reshape(1, th, wo, cout)
    if has_res:
        y = y + res_ref[...]
    o_ref[...] = y.astype(o_ref.dtype)


def _conv1x1_kernel(x_ref, w_ref, o_ref):
    """1x1 conv (spectral-normed shortcut conv, no bias) as a bf16 matmul."""
    o_ref[...] = jnp.dot(x_ref[...].astype(jnp.bfloat16), w_ref[...],
                         preferred_element_type=jnp.float32).astype(o_ref.dtype)


# ---------------------------------------------------------------------------
# Wrappers
# ---------------------------------------------------------------------------
def _pick_tile(total, want):
    t = min(want, total)
    while total % t:
        t -= 1
    return t


def batch_moments(x_nhwc, tile_m=256):
    """Training-mode (Sync)BatchNorm statistics: per-channel mean, 1/sqrt(var+eps)."""
    N, H, W, C = x_nhwc.shape
    M = N * H * W
    tm = _pick_tile(M, tile_m)
    s, q = pl.pallas_call(
        _moments_kernel,
        out_shape=(jax.ShapeDtypeStruct((1, C), jnp.float32),
                   jax.ShapeDtypeStruct((1, C), jnp.float32)),
        grid=(M // tm,),
        in_specs=[pl.BlockSpec((tm, C), lambda i: (i, 0))],
        out_specs=(pl.BlockSpec((1, C), lambda i: (0, 0)),
                   pl.BlockSpec((1, C), lambda i: (0, 0))),
        compiler_params=_cparams(("arbitrary",)),
    )(x_nhwc.reshape(M, C))
    mean = s / M
    var = q / M - mean * mean            # biased variance (training-mode BN)
    inv_std = jax.lax.rsqrt(var + EPS)
    return mean, inv_std


def spade_modulate(x, gamma, beta, mean, istd, slope, tile_m=256):
    N, H, W, C = x.shape
    M = N * H * W
    tm = _pick_tile(M, tile_m)
    out = pl.pallas_call(
        functools.partial(_spade_mod_kernel, slope=slope),
        out_shape=jax.ShapeDtypeStruct((M, C), jnp.float32),
        grid=(M // tm,),
        in_specs=[pl.BlockSpec((tm, C), lambda i: (i, 0)),
                  pl.BlockSpec((tm, C), lambda i: (i, 0)),
                  pl.BlockSpec((tm, C), lambda i: (i, 0)),
                  pl.BlockSpec((1, C), lambda i: (0, 0)),
                  pl.BlockSpec((1, C), lambda i: (0, 0))],
        out_specs=pl.BlockSpec((tm, C), lambda i: (i, 0)),
        compiler_params=_cparams(("parallel",)),
    )(x.reshape(M, C), gamma.reshape(M, C), beta.reshape(M, C), mean, istd)
    return out.reshape(N, H, W, C)


def conv3x3(x, w, b, *, act=None, residual=None, row_tile=8):
    """x: (N,H,W,Cin) f32; w: (9*Cin,Cout) bf16; b: (1,Cout) f32."""
    N, H, W, Cin = x.shape
    Cout = w.shape[-1]
    th = _pick_tile(H, row_tile)
    xp = jnp.pad(x, ((0, 0), (1, 1), (1, 1), (0, 0)))
    Hp, Wp = H + 2, W + 2

    in_specs = [pl.BlockSpec((1, Hp, Wp, Cin), lambda n, i: (n, 0, 0, 0)),
                pl.BlockSpec((9 * Cin, Cout), lambda n, i: (0, 0)),
                pl.BlockSpec((1, Cout), lambda n, i: (0, 0))]
    args = [xp, w, b]
    if residual is not None:
        in_specs.append(pl.BlockSpec((1, th, W, Cout), lambda n, i: (n, i, 0, 0)))
        args.append(residual)

    flops = 2 * N * H * W * 9 * Cin * Cout
    bytes_accessed = (xp.size * 4 + w.size * 2 + Cout * 4
                      + N * H * W * Cout * 4 * (2 if residual is not None else 1))

    out = pl.pallas_call(
        functools.partial(_conv3x3_kernel, th=th, wo=W, cin=Cin, cout=Cout,
                          act=act, has_res=residual is not None),
        out_shape=jax.ShapeDtypeStruct((N, H, W, Cout), jnp.float32),
        grid=(N, H // th),
        in_specs=in_specs,
        out_specs=pl.BlockSpec((1, th, W, Cout), lambda n, i: (n, i, 0, 0)),
        compiler_params=_cparams(("parallel", "parallel")),
        cost_estimate=pl.CostEstimate(flops=flops, transcendentals=0,
                                      bytes_accessed=bytes_accessed),
    )(*args)
    return out


def conv1x1(x, w, tile_m=256):
    N, H, W, Cin = x.shape
    Cout = w.shape[-1]
    M = N * H * W
    tm = _pick_tile(M, tile_m)
    out = pl.pallas_call(
        _conv1x1_kernel,
        out_shape=jax.ShapeDtypeStruct((M, Cout), jnp.float32),
        grid=(M // tm,),
        in_specs=[pl.BlockSpec((tm, Cin), lambda i: (i, 0)),
                  pl.BlockSpec((Cin, Cout), lambda i: (0, 0))],
        out_specs=pl.BlockSpec((tm, Cout), lambda i: (i, 0)),
        compiler_params=_cparams(("parallel",)),
        cost_estimate=pl.CostEstimate(flops=2 * M * Cin * Cout, transcendentals=0,
                                      bytes_accessed=M * Cin * 4 + Cin * Cout * 2
                                      + M * Cout * 4),
    )(x.reshape(M, Cin), w)
    return out.reshape(N, H, W, Cout)


def spade2(x, fmap, seg, p, slope):
    """SPADE2: param-free BN of x, modulated by gamma/beta from [seg, fmap]."""
    mean, istd = batch_moments(x)
    cond = jnp.concatenate([seg, fmap], axis=-1)
    actv = conv3x3(cond, p["shared"]["w"], p["shared"]["b"], act="relu")
    gamma = conv3x3(actv, p["gamma"]["w"], p["gamma"]["b"], act=None)
    beta = conv3x3(actv, p["beta"]["w"], p["beta"]["b"], act=None)
    return spade_modulate(x, gamma, beta, mean, istd, slope)


def spade_resnet_block_forward(x_nchw, fmap0_nchw, fmap1_nchw, seg_nchw, params):
    to_nhwc = lambda t: jnp.transpose(t, (0, 2, 3, 1))
    x = to_nhwc(x_nchw)
    f0 = to_nhwc(fmap0_nchw)
    f1 = to_nhwc(fmap1_nchw)
    seg = to_nhwc(seg_nchw)

    # shortcut: x_s = conv_s(norm_s(x, fmap0, seg))  (no activation on this path)
    if "conv_s" in params:
        x_s = conv1x1(spade2(x, f0, seg, params["norm_s"], slope=None),
                      params["conv_s"]["w"])
    else:
        x_s = x

    # dx = conv_0(actvn(norm_0(x, fmap0, seg)))
    h = spade2(x, f0, seg, params["norm_0"], slope=NEG_SLOPE)
    dx = conv3x3(h, params["conv_0"]["w"], params["conv_0"]["b"], act=None)

    # out = x_s + conv_1(actvn(norm_1(dx, fmap1, seg)))  (residual fused in-kernel)
    h = spade2(dx, f1, seg, params["norm_1"], slope=NEG_SLOPE)
    out = conv3x3(h, params["conv_1"]["w"], params["conv_1"]["b"], act=None,
                  residual=x_s)

    return jnp.transpose(out, (0, 3, 1, 2))   # back to NCHW


# ---------------------------------------------------------------------------
# Parameter setup (deterministic, synthetic)
# ---------------------------------------------------------------------------
def _spectral_normalize(w_hwio, key, iters=5):
    cout = w_hwio.shape[-1]
    m = w_hwio.reshape(-1, cout).T            # (Cout, K); K-perm is sigma-invariant
    u = jax.random.normal(key, (cout,), jnp.float32)
    u = u / (jnp.linalg.norm(u) + 1e-12)
    v = None
    for _ in range(iters):
        v = m.T @ u
        v = v / (jnp.linalg.norm(v) + 1e-12)
        u = m @ v
        u = u / (jnp.linalg.norm(u) + 1e-12)
    sigma = u @ (m @ v)
    return w_hwio / sigma


def _conv_param(key, ks, cin, cout, *, bias=True, spectral=False):
    kw, kb, ku = (jax.random.fold_in(key, t) for t in range(3))
    w = jax.random.normal(kw, (ks, ks, cin, cout), jnp.float32) * 0.1
    if spectral:
        w = _spectral_normalize(w, ku)
    p = {"w": w.reshape(ks * ks * cin, cout).astype(jnp.bfloat16)}
    if bias:
        p["b"] = jax.random.normal(kb, (1, cout), jnp.float32) * 0.01
    return p


def init_params(key, *, fin, fout, semantic_nc, fmap_nc, nhidden=128):
    fmiddle = min(fin, fout)
    label_nc = semantic_nc + fmap_nc
    learned_shortcut = fin != fout

    conv_defs = [("conv_0", 3, fin, fmiddle, True),
                 ("conv_1", 3, fmiddle, fout, True)]
    if learned_shortcut:
        conv_defs.append(("conv_s", 1, fin, fout, False))

    params = {}
    idx = 0
    for name, ks, ci, co, b in conv_defs:
        params[name] = _conv_param(jax.random.fold_in(key, idx), ks, ci, co,
                                   bias=b, spectral=True)
        idx += 1

    norm_defs = [("norm_0", fin), ("norm_1", fmiddle)]
    if learned_shortcut:
        norm_defs.append(("norm_s", fin))
    for name, nc in norm_defs:
        sub = {}
        for part, ci, co in [("shared", label_nc, nhidden),
                             ("gamma", nhidden, nc),
                             ("beta", nhidden, nc)]:
            sub[part] = _conv_param(jax.random.fold_in(key, idx), 3, ci, co,
                                    bias=True, spectral=False)
            idx += 1
        params[name] = sub
    return params


if __name__ == "__main__":
    key = jax.random.PRNGKey(0)
    N, H, W = 2, 16, 16
    fin, fout = 64, 128               # fin != fout -> learned shortcut path runs
    semantic_nc, fmap_nc = 32, 32

    params = init_params(key, fin=fin, fout=fout,
                         semantic_nc=semantic_nc, fmap_nc=fmap_nc)
    kx, k0, k1, ksg = (jax.random.fold_in(key, 100 + t) for t in range(4))
    x = jax.random.normal(kx, (N, fin, H, W), jnp.float32)
    fmap0 = jax.random.normal(k0, (N, fmap_nc, H, W), jnp.float32)
    fmap1 = jax.random.normal(k1, (N, fmap_nc, H, W), jnp.float32)
    seg = jax.random.normal(ksg, (N, semantic_nc, H, W), jnp.float32)

    fwd = jax.jit(spade_resnet_block_forward)
    out = fwd(x, fmap0, fmap1, seg, params)
    jax.block_until_ready(out)

    assert out.shape == (N, fout, H, W)
    assert bool(jnp.all(jnp.isfinite(out)))
    print("KERNEL_OK")
</pallas_src>

<mosaic_0001>
module attributes {stable_mosaic.version = 11 : i64} {
  func.func @_conv3x3_kernel(%arg0: i32, %arg1: i32, %arg2: memref<1x18x18x64xf32, #tpu.memory_space<vmem>>, %arg3: memref<576x128xbf16, #tpu.memory_space<vmem>>, %arg4: memref<1x128xf32, #tpu.memory_space<vmem>>, %arg5: memref<1x8x16x128xf32, #tpu.memory_space<vmem>>) attributes {dimension_semantics = [#tpu.dimension_semantics<parallel>, #tpu.dimension_semantics<parallel>], iteration_bounds = array<i64: 2, 2>, scalar_prefetch = 0 : i64, scratch_operands = 0 : i64, tpu.core_type = #tpu.core_type<tc>, window_params = [{transform_indices = @transform_0, window_bounds = array<i64: 1, 18, 18, 64>}, {pipeline_mode = #tpu.pipeline_mode<synchronous>, transform_indices = @transform_1, window_bounds = array<i64: 576, 128>}, {pipeline_mode = #tpu.pipeline_mode<synchronous>, transform_indices = @transform_2, window_bounds = array<i64: 1, 128>}, {transform_indices = @transform_3, window_bounds = array<i64: 1, 8, 16, 128>}]} {
    %c8_i32 = arith.constant 8 : i32
    %0 = arith.muli %arg1, %c8_i32 : i32
    %1 = tpu.assume_multiple %0, 8 : i32
    %c0 = arith.constant 0 : index
    %2 = arith.index_cast %1 : i32 to index
    %c0_0 = arith.constant 0 : index
    %c0_1 = arith.constant 0 : index
    %3 = vector.load %arg2[%c0, %2, %c0_0, %c0_1] : memref<1x18x18x64xf32, #tpu.memory_space<vmem>>, vector<1x10x18x64xf32>
    %4 = vector.shape_cast %3 : vector<1x10x18x64xf32> to vector<10x18x64xf32>
    %5 = vector.extract_strided_slice %4 {offsets = [0, 0, 0], sizes = [8, 16, 64], strides = [1, 1, 1]} : vector<10x18x64xf32> to vector<8x16x64xf32>
    %6 = vector.shape_cast %5 : vector<8x16x64xf32> to vector<128x64xf32>
    %7 = arith.truncf %6 : vector<128x64xf32> to vector<128x64xbf16>
    %8 = vector.extract_strided_slice %4 {offsets = [0, 1, 0], sizes = [8, 16, 64], strides = [1, 1, 1]} : vector<10x18x64xf32> to vector<8x16x64xf32>
    %9 = vector.shape_cast %8 : vector<8x16x64xf32> to vector<128x64xf32>
    %10 = arith.truncf %9 : vector<128x64xf32> to vector<128x64xbf16>
    %11 = vector.extract_strided_slice %4 {offsets = [0, 2, 0], sizes = [8, 16, 64], strides = [1, 1, 1]} : vector<10x18x64xf32> to vector<8x16x64xf32>
    %12 = vector.shape_cast %11 : vector<8x16x64xf32> to vector<128x64xf32>
    %13 = arith.truncf %12 : vector<128x64xf32> to vector<128x64xbf16>
    %14 = vector.extract_strided_slice %4 {offsets = [1, 0, 0], sizes = [8, 16, 64], strides = [1, 1, 1]} : vector<10x18x64xf32> to vector<8x16x64xf32>
    %15 = vector.shape_cast %14 : vector<8x16x64xf32> to vector<128x64xf32>
    %16 = arith.truncf %15 : vector<128x64xf32> to vector<128x64xbf16>
    %17 = vector.extract_strided_slice %4 {offsets = [1, 1, 0], sizes = [8, 16, 64], strides = [1, 1, 1]} : vector<10x18x64xf32> to vector<8x16x64xf32>
    %18 = vector.shape_cast %17 : vector<8x16x64xf32> to vector<128x64xf32>
    %19 = arith.truncf %18 : vector<128x64xf32> to vector<128x64xbf16>
    %20 = vector.extract_strided_slice %4 {offsets = [1, 2, 0], sizes = [8, 16, 64], strides = [1, 1, 1]} : vector<10x18x64xf32> to vector<8x16x64xf32>
    %21 = vector.shape_cast %20 : vector<8x16x64xf32> to vector<128x64xf32>
    %22 = arith.truncf %21 : vector<128x64xf32> to vector<128x64xbf16>
    %23 = vector.extract_strided_slice %4 {offsets = [2, 0, 0], sizes = [8, 16, 64], strides = [1, 1, 1]} : vector<10x18x64xf32> to vector<8x16x64xf32>
    %24 = vector.shape_cast %23 : vector<8x16x64xf32> to vector<128x64xf32>
    %25 = arith.truncf %24 : vector<128x64xf32> to vector<128x64xbf16>
    %26 = vector.extract_strided_slice %4 {offsets = [2, 1, 0], sizes = [8, 16, 64], strides = [1, 1, 1]} : vector<10x18x64xf32> to vector<8x16x64xf32>
    %27 = vector.shape_cast %26 : vector<8x16x64xf32> to vector<128x64xf32>
    %28 = arith.truncf %27 : vector<128x64xf32> to vector<128x64xbf16>
    %29 = vector.extract_strided_slice %4 {offsets = [2, 2, 0], sizes = [8, 16, 64], strides = [1, 1, 1]} : vector<10x18x64xf32> to vector<8x16x64xf32>
    %30 = vector.shape_cast %29 : vector<8x16x64xf32> to vector<128x64xf32>
    %31 = arith.truncf %30 : vector<128x64xf32> to vector<128x64xbf16>
    %32 = tpu.concatenate %7, %10, %13, %16, %19, %22, %25, %28, %31 in 1 : vector<128x64xbf16>, vector<128x64xbf16>, vector<128x64xbf16>, vector<128x64xbf16>, vector<128x64xbf16>, vector<128x64xbf16>, vector<128x64xbf16>, vector<128x64xbf16>, vector<128x64xbf16> -> vector<128x576xbf16>
    %c0_2 = arith.constant 0 : index
    %c0_3 = arith.constant 0 : index
    %33 = vector.load %arg3[%c0_2, %c0_3] : memref<576x128xbf16, #tpu.memory_space<vmem>>, vector<576x128xbf16>
    %cst = arith.constant dense<0.000000e+00> : vector<128x128xf32>
    %34 = tpu.matmul %32, %33, %cst {dimension_numbers = #tpu.dot_dimension_numbers<[1], [0], [0], [1], [0, 0, 1, 1], [], []>} : vector<128x576xbf16>, vector<576x128xbf16>, vector<128x128xf32> -> vector<128x128xf32>
    %c0_4 = arith.constant 0 : index
    %c0_5 = arith.constant 0 : index
    %35 = vector.load %arg4[%c0_4, %c0_5] : memref<1x128xf32, #tpu.memory_space<vmem>>, vector<1x128xf32>
    %36 = vector.broadcast %35 : vector<1x128xf32> to vector<128x128xf32>
    %37 = arith.addf %34, %36 : vector<128x128xf32>
    %cst_6 = arith.constant 0.000000e+00 : f32
    %38 = vector.broadcast %cst_6 : f32 to vector<128x128xf32>
    %39 = arith.maximumf %37, %38 : vector<128x128xf32>
    %40 = vector.shape_cast %39 : vector<128x128xf32> to vector<1x8x16x128xf32>
    %c0_7 = arith.constant 0 : index
    %c0_8 = arith.constant 0 : index
    %c0_9 = arith.constant 0 : index
    %c0_10 = arith.constant 0 : index
    %41 = vector.load %arg5[%c0_7, %c0_8, %c0_9, %c0_10] : memref<1x8x16x128xf32, #tpu.memory_space<vmem>>, vector<1x8x16x128xf32>
    tpu.vector_store %arg5[%c0_7, %c0_8, %c0_9, %c0_10], %40 {strides = array<i32>} : memref<1x8x16x128xf32, #tpu.memory_space<vmem>>, vector<1x8x16x128xf32>,
    return
  }
  func.func @transform_0(%arg0: i32, %arg1: i32) -> (i32, i32, i32, i32) {
    %c0_i32 = arith.constant 0 : i32
    %c0_i32_0 = arith.constant 0 : i32
    %c0_i32_1 = arith.constant 0 : i32
    %c0_i32_2 = arith.constant 0 : i32
    return %arg0, %c0_i32, %c0_i32_0, %c0_i32_1 : i32, i32, i32, i32
  }
  func.func @transform_1(%arg0: i32, %arg1: i32) -> (i32, i32) {
    %c0_i32 = arith.constant 0 : i32
    %c0_i32_0 = arith.constant 0 : i32
    %c0_i32_1 = arith.constant 0 : i32
    return %c0_i32, %c0_i32_0 : i32, i32
  }
  func.func @transform_2(%arg0: i32, %arg1: i32) -> (i32, i32) {
    %c0_i32 = arith.constant 0 : i32
    %c0_i32_0 = arith.constant 0 : i32
    %c0_i32_1 = arith.constant 0 : i32
    return %c0_i32, %c0_i32_0 : i32, i32
  }
  func.func @transform_3(%arg0: i32, %arg1: i32) -> (i32, i32, i32, i32) {
    %c0_i32 = arith.constant 0 : i32
    %c0_i32_0 = arith.constant 0 : i32
    %c0_i32_1 = arith.constant 0 : i32
    return %arg0, %arg1, %c0_i32, %c0_i32_0 : i32, i32, i32, i32
  }
}

module attributes {stable_mosaic.version = 11 : i64} {
  func.func @_conv3x3_kernel(%arg0: i32, %arg1: i32, %arg2: memref<1x18x18x128xf32, #tpu.memory_space<vmem>>, %arg3: memref<1152x64xbf16, #tpu.memory_space<vmem>>, %arg4: memref<1x64xf32, #tpu.memory_space<vmem>>, %arg5: memref<1x8x16x64xf32, #tpu.memory_space<vmem>>) attributes {dimension_semantics = [#tpu.dimension_semantics<parallel>, #tpu.dimension_semantics<parallel>], iteration_bounds = array<i64: 2, 2>, scalar_prefetch = 0 : i64, scratch_operands = 0 : i64, tpu.core_type = #tpu.core_type<tc>, window_params = [{transform_indices = @transform_0, window_bounds = array<i64: 1, 18, 18, 128>}, {pipeline_mode = #tpu.pipeline_mode<synchronous>, transform_indices = @transform_1, window_bounds = array<i64: 1152, 64>}, {pipeline_mode = #tpu.pipeline_mode<synchronous>, transform_indices = @transform_2, window_bounds = array<i64: 1, 64>}, {transform_indices = @transform_3, window_bounds = array<i64: 1, 8, 16, 64>}]} {
    %c8_i32 = arith.constant 8 : i32
    %0 = arith.muli %arg1, %c8_i32 : i32
    %1 = tpu.assume_multiple %0, 8 : i32
    %c0 = arith.constant 0 : index
    %2 = arith.index_cast %1 : i32 to index
    %c0_0 = arith.constant 0 : index
    %c0_1 = arith.constant 0 : index
    %3 = vector.load %arg2[%c0, %2, %c0_0, %c0_1] : memref<1x18x18x128xf32, #tpu.memory_space<vmem>>, vector<1x10x18x128xf32>
    %4 = vector.shape_cast %3 : vector<1x10x18x128xf32> to vector<10x18x128xf32>
    %5 = vector.extract_strided_slice %4 {offsets = [0, 0, 0], sizes = [8, 16, 128], strides = [1, 1, 1]} : vector<10x18x128xf32> to vector<8x16x128xf32>
    %6 = vector.shape_cast %5 : vector<8x16x128xf32> to vector<128x128xf32>
    %7 = arith.truncf %6 : vector<128x128xf32> to vector<128x128xbf16>
    %8 = vector.extract_strided_slice %4 {offsets = [0, 1, 0], sizes = [8, 16, 128], strides = [1, 1, 1]} : vector<10x18x128xf32> to vector<8x16x128xf32>
    %9 = vector.shape_cast %8 : vector<8x16x128xf32> to vector<128x128xf32>
    %10 = arith.truncf %9 : vector<128x128xf32> to vector<128x128xbf16>
    %11 = vector.extract_strided_slice %4 {offsets = [0, 2, 0], sizes = [8, 16, 128], strides = [1, 1, 1]} : vector<10x18x128xf32> to vector<8x16x128xf32>
    %12 = vector.shape_cast %11 : vector<8x16x128xf32> to vector<128x128xf32>
    %13 = arith.truncf %12 : vector<128x128xf32> to vector<128x128xbf16>
    %14 = vector.extract_strided_slice %4 {offsets = [1, 0, 0], sizes = [8, 16, 128], strides = [1, 1, 1]} : vector<10x18x128xf32> to vector<8x16x128xf32>
    %15 = vector.shape_cast %14 : vector<8x16x128xf32> to vector<128x128xf32>
    %16 = arith.truncf %15 : vector<128x128xf32> to vector<128x128xbf16>
    %17 = vector.extract_strided_slice %4 {offsets = [1, 1, 0], sizes = [8, 16, 128], strides = [1, 1, 1]} : vector<10x18x128xf32> to vector<8x16x128xf32>
    %18 = vector.shape_cast %17 : vector<8x16x128xf32> to vector<128x128xf32>
    %19 = arith.truncf %18 : vector<128x128xf32> to vector<128x128xbf16>
    %20 = vector.extract_strided_slice %4 {offsets = [1, 2, 0], sizes = [8, 16, 128], strides = [1, 1, 1]} : vector<10x18x128xf32> to vector<8x16x128xf32>
    %21 = vector.shape_cast %20 : vector<8x16x128xf32> to vector<128x128xf32>
    %22 = arith.truncf %21 : vector<128x128xf32> to vector<128x128xbf16>
    %23 = vector.extract_strided_slice %4 {offsets = [2, 0, 0], sizes = [8, 16, 128], strides = [1, 1, 1]} : vector<10x18x128xf32> to vector<8x16x128xf32>
    %24 = vector.shape_cast %23 : vector<8x16x128xf32> to vector<128x128xf32>
    %25 = arith.truncf %24 : vector<128x128xf32> to vector<128x128xbf16>
    %26 = vector.extract_strided_slice %4 {offsets = [2, 1, 0], sizes = [8, 16, 128], strides = [1, 1, 1]} : vector<10x18x128xf32> to vector<8x16x128xf32>
    %27 = vector.shape_cast %26 : vector<8x16x128xf32> to vector<128x128xf32>
    %28 = arith.truncf %27 : vector<128x128xf32> to vector<128x128xbf16>
    %29 = vector.extract_strided_slice %4 {offsets = [2, 2, 0], sizes = [8, 16, 128], strides = [1, 1, 1]} : vector<10x18x128xf32> to vector<8x16x128xf32>
    %30 = vector.shape_cast %29 : vector<8x16x128xf32> to vector<128x128xf32>
    %31 = arith.truncf %30 : vector<128x128xf32> to vector<128x128xbf16>
    %32 = tpu.concatenate %7, %10, %13, %16, %19, %22, %25, %28, %31 in 1 : vector<128x128xbf16>, vector<128x128xbf16>, vector<128x128xbf16>, vector<128x128xbf16>, vector<128x128xbf16>, vector<128x128xbf16>, vector<128x128xbf16>, vector<128x128xbf16>, vector<128x128xbf16> -> vector<128x1152xbf16>
    %c0_2 = arith.constant 0 : index
    %c0_3 = arith.constant 0 : index
    %33 = vector.load %arg3[%c0_2, %c0_3] : memref<1152x64xbf16, #tpu.memory_space<vmem>>, vector<1152x64xbf16>
    %cst = arith.constant dense<0.000000e+00> : vector<128x64xf32>
    %34 = tpu.matmul %32, %33, %cst {dimension_numbers = #tpu.dot_dimension_numbers<[1], [0], [0], [1], [0, 0, 1, 1], [], []>} : vector<128x1152xbf16>, vector<1152x64xbf16>, vector<128x64xf32> -> vector<128x64xf32>
    %c0_4 = arith.constant 0 : index
    %c0_5 = arith.constant 0 : index
    %35 = vector.load %arg4[%c0_4, %c0_5] : memref<1x64xf32, #tpu.memory_space<vmem>>, vector<1x64xf32>
    %36 = vector.broadcast %35 : vector<1x64xf32> to vector<128x64xf32>
    %37 = arith.addf %34, %36 : vector<128x64xf32>
    %38 = vector.shape_cast %37 : vector<128x64xf32> to vector<1x8x16x64xf32>
    %c0_6 = arith.constant 0 : index
    %c0_7 = arith.constant 0 : index
    %c0_8 = arith.constant 0 : index
    %c0_9 = arith.constant 0 : index
    %39 = vector.load %arg5[%c0_6, %c0_7, %c0_8, %c0_9] : memref<1x8x16x64xf32, #tpu.memory_space<vmem>>, vector<1x8x16x64xf32>
    tpu.vector_store %arg5[%c0_6, %c0_7, %c0_8, %c0_9], %38 {strides = array<i32>} : memref<1x8x16x64xf32, #tpu.memory_space<vmem>>, vector<1x8x16x64xf32>,
    return
  }
  func.func @transform_0(%arg0: i32, %arg1: i32) -> (i32, i32, i32, i32) {
    %c0_i32 = arith.constant 0 : i32
    %c0_i32_0 = arith.constant 0 : i32
    %c0_i32_1 = arith.constant 0 : i32
    %c0_i32_2 = arith.constant 0 : i32
    return %arg0, %c0_i32, %c0_i32_0, %c0_i32_1 : i32, i32, i32, i32
  }
  func.func @transform_1(%arg0: i32, %arg1: i32) -> (i32, i32) {
    %c0_i32 = arith.constant 0 : i32
    %c0_i32_0 = arith.constant 0 : i32
    %c0_i32_1 = arith.constant 0 : i32
    return %c0_i32, %c0_i32_0 : i32, i32
  }
  func.func @transform_2(%arg0: i32, %arg1: i32) -> (i32, i32) {
    %c0_i32 = arith.constant 0 : i32
    %c0_i32_0 = arith.constant 0 : i32
    %c0_i32_1 = arith.constant 0 : i32
    return %c0_i32, %c0_i32_0 : i32, i32
  }
  func.func @transform_3(%arg0: i32, %arg1: i32) -> (i32, i32, i32, i32) {
    %c0_i32 = arith.constant 0 : i32
    %c0_i32_0 = arith.constant 0 : i32
    %c0_i32_1 = arith.constant 0 : i32
    return %arg0, %arg1, %c0_i32, %c0_i32_0 : i32, i32, i32, i32
  }
}

module attributes {stable_mosaic.version = 11 : i64} {
  func.func @_moments_kernel(%arg0: i32, %arg1: memref<256x64xf32, #tpu.memory_space<vmem>>, %arg2: memref<1x64xf32, #tpu.memory_space<vmem>>, %arg3: memref<1x64xf32, #tpu.memory_space<vmem>>) attributes {dimension_semantics = [#tpu.dimension_semantics<arbitrary>], iteration_bounds = array<i64: 2>, scalar_prefetch = 0 : i64, scratch_operands = 0 : i64, tpu.core_type = #tpu.core_type<tc>, window_params = [{transform_indices = @transform_0, window_bounds = array<i64: 256, 64>}, {pipeline_mode = #tpu.pipeline_mode<synchronous>, transform_indices = @transform_1, window_bounds = array<i64: 1, 64>}, {pipeline_mode = #tpu.pipeline_mode<synchronous>, transform_indices = @transform_2, window_bounds = array<i64: 1, 64>}]} {
    %c0_i32 = arith.constant 0 : i32
    %0 = arith.cmpi eq, %arg0, %c0_i32 : i32
    %1 = arith.extui %0 : i1 to i32
    %c0_i32_0 = arith.constant 0 : i32
    %2 = arith.cmpi ne, %1, %c0_i32_0 : i32
    scf.if %2 {
      %cst_11 = arith.constant 0.000000e+00 : f32
      %15 = vector.broadcast %cst_11 : f32 to vector<1x64xf32>
      %c0_12 = arith.constant 0 : index
      %c0_13 = arith.constant 0 : index
      %16 = vector.load %arg2[%c0_12, %c0_13] : memref<1x64xf32, #tpu.memory_space<vmem>>, vector<1x64xf32>
      tpu.vector_store %arg2[%c0_12, %c0_13], %15 {strides = array<i32>} : memref<1x64xf32, #tpu.memory_space<vmem>>, vector<1x64xf32>,
      %cst_14 = arith.constant 0.000000e+00 : f32
      %17 = vector.broadcast %cst_14 : f32 to vector<1x64xf32>
      %c0_15 = arith.constant 0 : index
      %c0_16 = arith.constant 0 : index
      %18 = vector.load %arg3[%c0_15, %c0_16] : memref<1x64xf32, #tpu.memory_space<vmem>>, vector<1x64xf32>
      tpu.vector_store %arg3[%c0_15, %c0_16], %17 {strides = array<i32>} : memref<1x64xf32, #tpu.memory_space<vmem>>, vector<1x64xf32>,
    } else {
    }
    %c0 = arith.constant 0 : index
    %c0_1 = arith.constant 0 : index
    %3 = vector.load %arg1[%c0, %c0_1] : memref<256x64xf32, #tpu.memory_space<vmem>>, vector<256x64xf32>
    %c0_2 = arith.constant 0 : index
    %c0_3 = arith.constant 0 : index
    %4 = vector.load %arg2[%c0_2, %c0_3] : memref<1x64xf32, #tpu.memory_space<vmem>>, vector<1x64xf32>
    %cst = arith.constant dense<0.000000e+00> : vector<64xf32>
    %5 = vector.multi_reduction <add>, %3, %cst [0] : vector<256x64xf32> to vector<64xf32>
    %6 = vector.shape_cast %5 : vector<64xf32> to vector<1x64xf32>
    %7 = arith.addf %4, %6 : vector<1x64xf32>
    %c0_4 = arith.constant 0 : index
    %c0_5 = arith.constant 0 : index
    %8 = vector.load %arg2[%c0_4, %c0_5] : memref<1x64xf32, #tpu.memory_space<vmem>>, vector<1x64xf32>
    tpu.vector_store %arg2[%c0_4, %c0_5], %7 {strides = array<i32>} : memref<1x64xf32, #tpu.memory_space<vmem>>, vector<1x64xf32>,
    %c0_6 = arith.constant 0 : index
    %c0_7 = arith.constant 0 : index
    %9 = vector.load %arg3[%c0_6, %c0_7] : memref<1x64xf32, #tpu.memory_space<vmem>>, vector<1x64xf32>
    %10 = arith.mulf %3, %3 : vector<256x64xf32>
    %cst_8 = arith.constant dense<0.000000e+00> : vector<64xf32>
    %11 = vector.multi_reduction <add>, %10, %cst_8 [0] : vector<256x64xf32> to vector<64xf32>
    %12 = vector.shape_cast %11 : vector<64xf32> to vector<1x64xf32>
    %13 = arith.addf %9, %12 : vector<1x64xf32>
    %c0_9 = arith.constant 0 : index
    %c0_10 = arith.constant 0 : index
    %14 = vector.load %arg3[%c0_9, %c0_10] : memref<1x64xf32, #tpu.memory_space<vmem>>, vector<1x64xf32>
    tpu.vector_store %arg3[%c0_9, %c0_10], %13 {strides = array<i32>} : memref<1x64xf32, #tpu.memory_space<vmem>>, vector<1x64xf32>,
    return
  }
  func.func @transform_0(%arg0: i32) -> (i32, i32) {
    %c0_i32 = arith.constant 0 : i32
    %c0_i32_0 = arith.constant 0 : i32
    return %arg0, %c0_i32 : i32, i32
  }
  func.func @transform_1(%arg0: i32) -> (i32, i32) {
    %c0_i32 = arith.constant 0 : i32
    %c0_i32_0 = arith.constant 0 : i32
    %c0_i32_1 = arith.constant 0 : i32
    return %c0_i32, %c0_i32_0 : i32, i32
  }
  func.func @transform_2(%arg0: i32) -> (i32, i32) {
    %c0_i32 = arith.constant 0 : i32
    %c0_i32_0 = arith.constant 0 : i32
    %c0_i32_1 = arith.constant 0 : i32
    return %c0_i32, %c0_i32_0 : i32, i32
  }
}

module attributes {stable_mosaic.version = 11 : i64} {
  func.func @_spade_mod_kernel(%arg0: i32, %arg1: memref<256x64xf32, #tpu.memory_space<vmem>>, %arg2: memref<256x64xf32, #tpu.memory_space<vmem>>, %arg3: memref<256x64xf32, #tpu.memory_space<vmem>>, %arg4: memref<1x64xf32, #tpu.memory_space<vmem>>, %arg5: memref<1x64xf32, #tpu.memory_space<vmem>>, %arg6: memref<256x64xf32, #tpu.memory_space<vmem>>) attributes {dimension_semantics = [#tpu.dimension_semantics<parallel>], iteration_bounds = array<i64: 2>, scalar_prefetch = 0 : i64, scratch_operands = 0 : i64, tpu.core_type = #tpu.core_type<tc>, window_params = [{transform_indices = @transform_0, window_bounds = array<i64: 256, 64>}, {transform_indices = @transform_1, window_bounds = array<i64: 256, 64>}, {transform_indices = @transform_2, window_bounds = array<i64: 256, 64>}, {pipeline_mode = #tpu.pipeline_mode<synchronous>, transform_indices = @transform_3, window_bounds = array<i64: 1, 64>}, {pipeline_mode = #tpu.pipeline_mode<synchronous>, transform_indices = @transform_4, window_bounds = array<i64: 1, 64>}, {transform_indices = @transform_5, window_bounds = array<i64: 256, 64>}]} {
    %c0 = arith.constant 0 : index
    %c0_0 = arith.constant 0 : index
    %0 = vector.load %arg1[%c0, %c0_0] : memref<256x64xf32, #tpu.memory_space<vmem>>, vector<256x64xf32>
    %c0_1 = arith.constant 0 : index
    %c0_2 = arith.constant 0 : index
    %1 = vector.load %arg4[%c0_1, %c0_2] : memref<1x64xf32, #tpu.memory_space<vmem>>, vector<1x64xf32>
    %2 = vector.broadcast %1 : vector<1x64xf32> to vector<256x64xf32>
    %3 = arith.subf %0, %2 : vector<256x64xf32>
    %c0_3 = arith.constant 0 : index
    %c0_4 = arith.constant 0 : index
    %4 = vector.load %arg5[%c0_3, %c0_4] : memref<1x64xf32, #tpu.memory_space<vmem>>, vector<1x64xf32>
    %5 = vector.broadcast %4 : vector<1x64xf32> to vector<256x64xf32>
    %6 = arith.mulf %3, %5 : vector<256x64xf32>
    %c0_5 = arith.constant 0 : index
    %c0_6 = arith.constant 0 : index
    %7 = vector.load %arg2[%c0_5, %c0_6] : memref<256x64xf32, #tpu.memory_space<vmem>>, vector<256x64xf32>
    %cst = arith.constant 1.000000e+00 : f32
    %8 = vector.broadcast %cst : f32 to vector<256x64xf32>
    %9 = arith.addf %8, %7 : vector<256x64xf32>
    %10 = arith.mulf %6, %9 : vector<256x64xf32>
    %c0_7 = arith.constant 0 : index
    %c0_8 = arith.constant 0 : index
    %11 = vector.load %arg3[%c0_7, %c0_8] : memref<256x64xf32, #tpu.memory_space<vmem>>, vector<256x64xf32>
    %12 = arith.addf %10, %11 : vector<256x64xf32>
    %cst_9 = arith.constant 0.000000e+00 : f32
    %13 = vector.broadcast %cst_9 : f32 to vector<256x64xf32>
    %14 = arith.cmpf oge, %12, %13 : vector<256x64xf32>
    %cst_10 = arith.constant 2.000000e-01 : f32
    %15 = vector.broadcast %cst_10 : f32 to vector<256x64xf32>
    %16 = arith.mulf %15, %12 : vector<256x64xf32>
    %17 = arith.select %14, %12, %16 : vector<256x64xi1>, vector<256x64xf32>
    %c0_11 = arith.constant 0 : index
    %c0_12 = arith.constant 0 : index
    %18 = vector.load %arg6[%c0_11, %c0_12] : memref<256x64xf32, #tpu.memory_space<vmem>>, vector<256x64xf32>
    tpu.vector_store %arg6[%c0_11, %c0_12], %17 {strides = array<i32>} : memref<256x64xf32, #tpu.memory_space<vmem>>, vector<256x64xf32>,
    return
  }
  func.func @transform_0(%arg0: i32) -> (i32, i32) {
    %c0_i32 = arith.constant 0 : i32
    %c0_i32_0 = arith.constant 0 : i32
    return %arg0, %c0_i32 : i32, i32
  }
  func.func @transform_1(%arg0: i32) -> (i32, i32) {
    %c0_i32 = arith.constant 0 : i32
    %c0_i32_0 = arith.constant 0 : i32
    return %arg0, %c0_i32 : i32, i32
  }
  func.func @transform_2(%arg0: i32) -> (i32, i32) {
    %c0_i32 = arith.constant 0 : i32
    %c0_i32_0 = arith.constant 0 : i32
    return %arg0, %c0_i32 : i32, i32
  }
  func.func @transform_3(%arg0: i32) -> (i32, i32) {
    %c0_i32 = arith.constant 0 : i32
    %c0_i32_0 = arith.constant 0 : i32
    %c0_i32_1 = arith.constant 0 : i32
    return %c0_i32, %c0_i32_0 : i32, i32
  }
  func.func @transform_4(%arg0: i32) -> (i32, i32) {
    %c0_i32 = arith.constant 0 : i32
    %c0_i32_0 = arith.constant 0 : i32
    %c0_i32_1 = arith.constant 0 : i32
    return %c0_i32, %c0_i32_0 : i32, i32
  }
  func.func @transform_5(%arg0: i32) -> (i32, i32) {
    %c0_i32 = arith.constant 0 : i32
    %c0_i32_0 = arith.constant 0 : i32
    return %arg0, %c0_i32 : i32, i32
  }
}

module attributes {stable_mosaic.version = 11 : i64} {
  func.func @_conv3x3_kernel(%arg0: i32, %arg1: i32, %arg2: memref<1x18x18x64xf32, #tpu.memory_space<vmem>>, %arg3: memref<576x64xbf16, #tpu.memory_space<vmem>>, %arg4: memref<1x64xf32, #tpu.memory_space<vmem>>, %arg5: memref<1x8x16x64xf32, #tpu.memory_space<vmem>>) attributes {dimension_semantics = [#tpu.dimension_semantics<parallel>, #tpu.dimension_semantics<parallel>], iteration_bounds = array<i64: 2, 2>, scalar_prefetch = 0 : i64, scratch_operands = 0 : i64, tpu.core_type = #tpu.core_type<tc>, window_params = [{transform_indices = @transform_0, window_bounds = array<i64: 1, 18, 18, 64>}, {pipeline_mode = #tpu.pipeline_mode<synchronous>, transform_indices = @transform_1, window_bounds = array<i64: 576, 64>}, {pipeline_mode = #tpu.pipeline_mode<synchronous>, transform_indices = @transform_2, window_bounds = array<i64: 1, 64>}, {transform_indices = @transform_3, window_bounds = array<i64: 1, 8, 16, 64>}]} {
    %c8_i32 = arith.constant 8 : i32
    %0 = arith.muli %arg1, %c8_i32 : i32
    %1 = tpu.assume_multiple %0, 8 : i32
    %c0 = arith.constant 0 : index
    %2 = arith.index_cast %1 : i32 to index
    %c0_0 = arith.constant 0 : index
    %c0_1 = arith.constant 0 : index
    %3 = vector.load %arg2[%c0, %2, %c0_0, %c0_1] : memref<1x18x18x64xf32, #tpu.memory_space<vmem>>, vector<1x10x18x64xf32>
    %4 = vector.shape_cast %3 : vector<1x10x18x64xf32> to vector<10x18x64xf32>
    %5 = vector.extract_strided_slice %4 {offsets = [0, 0, 0], sizes = [8, 16, 64], strides = [1, 1, 1]} : vector<10x18x64xf32> to vector<8x16x64xf32>
    %6 = vector.shape_cast %5 : vector<8x16x64xf32> to vector<128x64xf32>
    %7 = arith.truncf %6 : vector<128x64xf32> to vector<128x64xbf16>
    %8 = vector.extract_strided_slice %4 {offsets = [0, 1, 0], sizes = [8, 16, 64], strides = [1, 1, 1]} : vector<10x18x64xf32> to vector<8x16x64xf32>
    %9 = vector.shape_cast %8 : vector<8x16x64xf32> to vector<128x64xf32>
    %10 = arith.truncf %9 : vector<128x64xf32> to vector<128x64xbf16>
    %11 = vector.extract_strided_slice %4 {offsets = [0, 2, 0], sizes = [8, 16, 64], strides = [1, 1, 1]} : vector<10x18x64xf32> to vector<8x16x64xf32>
    %12 = vector.shape_cast %11 : vector<8x16x64xf32> to vector<128x64xf32>
    %13 = arith.truncf %12 : vector<128x64xf32> to vector<128x64xbf16>
    %14 = vector.extract_strided_slice %4 {offsets = [1, 0, 0], sizes = [8, 16, 64], strides = [1, 1, 1]} : vector<10x18x64xf32> to vector<8x16x64xf32>
    %15 = vector.shape_cast %14 : vector<8x16x64xf32> to vector<128x64xf32>
    %16 = arith.truncf %15 : vector<128x64xf32> to vector<128x64xbf16>
    %17 = vector.extract_strided_slice %4 {offsets = [1, 1, 0], sizes = [8, 16, 64], strides = [1, 1, 1]} : vector<10x18x64xf32> to vector<8x16x64xf32>
    %18 = vector.shape_cast %17 : vector<8x16x64xf32> to vector<128x64xf32>
    %19 = arith.truncf %18 : vector<128x64xf32> to vector<128x64xbf16>
    %20 = vector.extract_strided_slice %4 {offsets = [1, 2, 0], sizes = [8, 16, 64], strides = [1, 1, 1]} : vector<10x18x64xf32> to vector<8x16x64xf32>
    %21 = vector.shape_cast %20 : vector<8x16x64xf32> to vector<128x64xf32>
    %22 = arith.truncf %21 : vector<128x64xf32> to vector<128x64xbf16>
    %23 = vector.extract_strided_slice %4 {offsets = [2, 0, 0], sizes = [8, 16, 64], strides = [1, 1, 1]} : vector<10x18x64xf32> to vector<8x16x64xf32>
    %24 = vector.shape_cast %23 : vector<8x16x64xf32> to vector<128x64xf32>
    %25 = arith.truncf %24 : vector<128x64xf32> to vector<128x64xbf16>
    %26 = vector.extract_strided_slice %4 {offsets = [2, 1, 0], sizes = [8, 16, 64], strides = [1, 1, 1]} : vector<10x18x64xf32> to vector<8x16x64xf32>
    %27 = vector.shape_cast %26 : vector<8x16x64xf32> to vector<128x64xf32>
    %28 = arith.truncf %27 : vector<128x64xf32> to vector<128x64xbf16>
    %29 = vector.extract_strided_slice %4 {offsets = [2, 2, 0], sizes = [8, 16, 64], strides = [1, 1, 1]} : vector<10x18x64xf32> to vector<8x16x64xf32>
    %30 = vector.shape_cast %29 : vector<8x16x64xf32> to vector<128x64xf32>
    %31 = arith.truncf %30 : vector<128x64xf32> to vector<128x64xbf16>
    %32 = tpu.concatenate %7, %10, %13, %16, %19, %22, %25, %28, %31 in 1 : vector<128x64xbf16>, vector<128x64xbf16>, vector<128x64xbf16>, vector<128x64xbf16>, vector<128x64xbf16>, vector<128x64xbf16>, vector<128x64xbf16>, vector<128x64xbf16>, vector<128x64xbf16> -> vector<128x576xbf16>
    %c0_2 = arith.constant 0 : index
    %c0_3 = arith.constant 0 : index
    %33 = vector.load %arg3[%c0_2, %c0_3] : memref<576x64xbf16, #tpu.memory_space<vmem>>, vector<576x64xbf16>
    %cst = arith.constant dense<0.000000e+00> : vector<128x64xf32>
    %34 = tpu.matmul %32, %33, %cst {dimension_numbers = #tpu.dot_dimension_numbers<[1], [0], [0], [1], [0, 0, 1, 1], [], []>} : vector<128x576xbf16>, vector<576x64xbf16>, vector<128x64xf32> -> vector<128x64xf32>
    %c0_4 = arith.constant 0 : index
    %c0_5 = arith.constant 0 : index
    %35 = vector.load %arg4[%c0_4, %c0_5] : memref<1x64xf32, #tpu.memory_space<vmem>>, vector<1x64xf32>
    %36 = vector.broadcast %35 : vector<1x64xf32> to vector<128x64xf32>
    %37 = arith.addf %34, %36 : vector<128x64xf32>
    %38 = vector.shape_cast %37 : vector<128x64xf32> to vector<1x8x16x64xf32>
    %c0_6 = arith.constant 0 : index
    %c0_7 = arith.constant 0 : index
    %c0_8 = arith.constant 0 : index
    %c0_9 = arith.constant 0 : index
    %39 = vector.load %arg5[%c0_6, %c0_7, %c0_8, %c0_9] : memref<1x8x16x64xf32, #tpu.memory_space<vmem>>, vector<1x8x16x64xf32>
    tpu.vector_store %arg5[%c0_6, %c0_7, %c0_8, %c0_9], %38 {strides = array<i32>} : memref<1x8x16x64xf32, #tpu.memory_space<vmem>>, vector<1x8x16x64xf32>,
    return
  }
  func.func @transform_0(%arg0: i32, %arg1: i32) -> (i32, i32, i32, i32) {
    %c0_i32 = arith.constant 0 : i32
    %c0_i32_0 = arith.constant 0 : i32
    %c0_i32_1 = arith.constant 0 : i32
    %c0_i32_2 = arith.constant 0 : i32
    return %arg0, %c0_i32, %c0_i32_0, %c0_i32_1 : i32, i32, i32, i32
  }
  func.func @transform_1(%arg0: i32, %arg1: i32) -> (i32, i32) {
    %c0_i32 = arith.constant 0 : i32
    %c0_i32_0 = arith.constant 0 : i32
    %c0_i32_1 = arith.constant 0 : i32
    return %c0_i32, %c0_i32_0 : i32, i32
  }
  func.func @transform_2(%arg0: i32, %arg1: i32) -> (i32, i32) {
    %c0_i32 = arith.constant 0 : i32
    %c0_i32_0 = arith.constant 0 : i32
    %c0_i32_1 = arith.constant 0 : i32
    return %c0_i32, %c0_i32_0 : i32, i32
  }
  func.func @transform_3(%arg0: i32, %arg1: i32) -> (i32, i32, i32, i32) {
    %c0_i32 = arith.constant 0 : i32
    %c0_i32_0 = arith.constant 0 : i32
    %c0_i32_1 = arith.constant 0 : i32
    return %arg0, %arg1, %c0_i32, %c0_i32_0 : i32, i32, i32, i32
  }
}

module attributes {stable_mosaic.version = 11 : i64} {
  func.func @_spade_mod_kernel(%arg0: i32, %arg1: memref<256x64xf32, #tpu.memory_space<vmem>>, %arg2: memref<256x64xf32, #tpu.memory_space<vmem>>, %arg3: memref<256x64xf32, #tpu.memory_space<vmem>>, %arg4: memref<1x64xf32, #tpu.memory_space<vmem>>, %arg5: memref<1x64xf32, #tpu.memory_space<vmem>>, %arg6: memref<256x64xf32, #tpu.memory_space<vmem>>) attributes {dimension_semantics = [#tpu.dimension_semantics<parallel>], iteration_bounds = array<i64: 2>, scalar_prefetch = 0 : i64, scratch_operands = 0 : i64, tpu.core_type = #tpu.core_type<tc>, window_params = [{transform_indices = @transform_0, window_bounds = array<i64: 256, 64>}, {transform_indices = @transform_1, window_bounds = array<i64: 256, 64>}, {transform_indices = @transform_2, window_bounds = array<i64: 256, 64>}, {pipeline_mode = #tpu.pipeline_mode<synchronous>, transform_indices = @transform_3, window_bounds = array<i64: 1, 64>}, {pipeline_mode = #tpu.pipeline_mode<synchronous>, transform_indices = @transform_4, window_bounds = array<i64: 1, 64>}, {transform_indices = @transform_5, window_bounds = array<i64: 256, 64>}]} {
    %c0 = arith.constant 0 : index
    %c0_0 = arith.constant 0 : index
    %0 = vector.load %arg1[%c0, %c0_0] : memref<256x64xf32, #tpu.memory_space<vmem>>, vector<256x64xf32>
    %c0_1 = arith.constant 0 : index
    %c0_2 = arith.constant 0 : index
    %1 = vector.load %arg4[%c0_1, %c0_2] : memref<1x64xf32, #tpu.memory_space<vmem>>, vector<1x64xf32>
    %2 = vector.broadcast %1 : vector<1x64xf32> to vector<256x64xf32>
    %3 = arith.subf %0, %2 : vector<256x64xf32>
    %c0_3 = arith.constant 0 : index
    %c0_4 = arith.constant 0 : index
    %4 = vector.load %arg5[%c0_3, %c0_4] : memref<1x64xf32, #tpu.memory_space<vmem>>, vector<1x64xf32>
    %5 = vector.broadcast %4 : vector<1x64xf32> to vector<256x64xf32>
    %6 = arith.mulf %3, %5 : vector<256x64xf32>
    %c0_5 = arith.constant 0 : index
    %c0_6 = arith.constant 0 : index
    %7 = vector.load %arg2[%c0_5, %c0_6] : memref<256x64xf32, #tpu.memory_space<vmem>>, vector<256x64xf32>
    %cst = arith.constant 1.000000e+00 : f32
    %8 = vector.broadcast %cst : f32 to vector<256x64xf32>
    %9 = arith.addf %8, %7 : vector<256x64xf32>
    %10 = arith.mulf %6, %9 : vector<256x64xf32>
    %c0_7 = arith.constant 0 : index
    %c0_8 = arith.constant 0 : index
    %11 = vector.load %arg3[%c0_7, %c0_8] : memref<256x64xf32, #tpu.memory_space<vmem>>, vector<256x64xf32>
    %12 = arith.addf %10, %11 : vector<256x64xf32>
    %c0_9 = arith.constant 0 : index
    %c0_10 = arith.constant 0 : index
    %13 = vector.load %arg6[%c0_9, %c0_10] : memref<256x64xf32, #tpu.memory_space<vmem>>, vector<256x64xf32>
    tpu.vector_store %arg6[%c0_9, %c0_10], %12 {strides = array<i32>} : memref<256x64xf32, #tpu.memory_space<vmem>>, vector<256x64xf32>,
    return
  }
  func.func @transform_0(%arg0: i32) -> (i32, i32) {
    %c0_i32 = arith.constant 0 : i32
    %c0_i32_0 = arith.constant 0 : i32
    return %arg0, %c0_i32 : i32, i32
  }
  func.func @transform_1(%arg0: i32) -> (i32, i32) {
    %c0_i32 = arith.constant 0 : i32
    %c0_i32_0 = arith.constant 0 : i32
    return %arg0, %c0_i32 : i32, i32
  }
  func.func @transform_2(%arg0: i32) -> (i32, i32) {
    %c0_i32 = arith.constant 0 : i32
    %c0_i32_0 = arith.constant 0 : i32
    return %arg0, %c0_i32 : i32, i32
  }
  func.func @transform_3(%arg0: i32) -> (i32, i32) {
    %c0_i32 = arith.constant 0 : i32
    %c0_i32_0 = arith.constant 0 : i32
    %c0_i32_1 = arith.constant 0 : i32
    return %c0_i32, %c0_i32_0 : i32, i32
  }
  func.func @transform_4(%arg0: i32) -> (i32, i32) {
    %c0_i32 = arith.constant 0 : i32
    %c0_i32_0 = arith.constant 0 : i32
    %c0_i32_1 = arith.constant 0 : i32
    return %c0_i32, %c0_i32_0 : i32, i32
  }
  func.func @transform_5(%arg0: i32) -> (i32, i32) {
    %c0_i32 = arith.constant 0 : i32
    %c0_i32_0 = arith.constant 0 : i32
    return %arg0, %c0_i32 : i32, i32
  }
}

module attributes {stable_mosaic.version = 11 : i64} {
  func.func @_conv1x1_kernel(%arg0: i32, %arg1: memref<256x64xf32, #tpu.memory_space<vmem>>, %arg2: memref<64x128xbf16, #tpu.memory_space<vmem>>, %arg3: memref<256x128xf32, #tpu.memory_space<vmem>>) attributes {dimension_semantics = [#tpu.dimension_semantics<parallel>], iteration_bounds = array<i64: 2>, scalar_prefetch = 0 : i64, scratch_operands = 0 : i64, tpu.core_type = #tpu.core_type<tc>, window_params = [{transform_indices = @transform_0, window_bounds = array<i64: 256, 64>}, {pipeline_mode = #tpu.pipeline_mode<synchronous>, transform_indices = @transform_1, window_bounds = array<i64: 64, 128>}, {transform_indices = @transform_2, window_bounds = array<i64: 256, 128>}]} {
    %c0 = arith.constant 0 : index
    %c0_0 = arith.constant 0 : index
    %0 = vector.load %arg1[%c0, %c0_0] : memref<256x64xf32, #tpu.memory_space<vmem>>, vector<256x64xf32>
    %1 = arith.truncf %0 : vector<256x64xf32> to vector<256x64xbf16>
    %c0_1 = arith.constant 0 : index
    %c0_2 = arith.constant 0 : index
    %2 = vector.load %arg2[%c0_1, %c0_2] : memref<64x128xbf16, #tpu.memory_space<vmem>>, vector<64x128xbf16>
    %cst = arith.constant dense<0.000000e+00> : vector<256x128xf32>
    %3 = tpu.matmul %1, %2, %cst {dimension_numbers = #tpu.dot_dimension_numbers<[1], [0], [0], [1], [0, 0, 1, 1], [], []>} : vector<256x64xbf16>, vector<64x128xbf16>, vector<256x128xf32> -> vector<256x128xf32>
    %c0_3 = arith.constant 0 : index
    %c0_4 = arith.constant 0 : index
    %4 = vector.load %arg3[%c0_3, %c0_4] : memref<256x128xf32, #tpu.memory_space<vmem>>, vector<256x128xf32>
    tpu.vector_store %arg3[%c0_3, %c0_4], %3 {strides = array<i32>} : memref<256x128xf32, #tpu.memory_space<vmem>>, vector<256x128xf32>,
    return
  }
  func.func @transform_0(%arg0: i32) -> (i32, i32) {
    %c0_i32 = arith.constant 0 : i32
    %c0_i32_0 = arith.constant 0 : i32
    return %arg0, %c0_i32 : i32, i32
  }
  func.func @transform_1(%arg0: i32) -> (i32, i32) {
    %c0_i32 = arith.constant 0 : i32
    %c0_i32_0 = arith.constant 0 : i32
    %c0_i32_1 = arith.constant 0 : i32
    return %c0_i32, %c0_i32_0 : i32, i32
  }
  func.func @transform_2(%arg0: i32) -> (i32, i32) {
    %c0_i32 = arith.constant 0 : i32
    %c0_i32_0 = arith.constant 0 : i32
    return %arg0, %c0_i32 : i32, i32
  }
}

module attributes {stable_mosaic.version = 11 : i64} {
  func.func @_conv3x3_kernel(%arg0: i32, %arg1: i32, %arg2: memref<1x18x18x64xf32, #tpu.memory_space<vmem>>, %arg3: memref<576x128xbf16, #tpu.memory_space<vmem>>, %arg4: memref<1x128xf32, #tpu.memory_space<vmem>>, %arg5: memref<1x8x16x128xf32, #tpu.memory_space<vmem>>, %arg6: memref<1x8x16x128xf32, #tpu.memory_space<vmem>>) attributes {dimension_semantics = [#tpu.dimension_semantics<parallel>, #tpu.dimension_semantics<parallel>], iteration_bounds = array<i64: 2, 2>, scalar_prefetch = 0 : i64, scratch_operands = 0 : i64, tpu.core_type = #tpu.core_type<tc>, window_params = [{transform_indices = @transform_0, window_bounds = array<i64: 1, 18, 18, 64>}, {pipeline_mode = #tpu.pipeline_mode<synchronous>, transform_indices = @transform_1, window_bounds = array<i64: 576, 128>}, {pipeline_mode = #tpu.pipeline_mode<synchronous>, transform_indices = @transform_2, window_bounds = array<i64: 1, 128>}, {transform_indices = @transform_3, window_bounds = array<i64: 1, 8, 16, 128>}, {transform_indices = @transform_4, window_bounds = array<i64: 1, 8, 16, 128>}]} {
    %c8_i32 = arith.constant 8 : i32
    %0 = arith.muli %arg1, %c8_i32 : i32
    %1 = tpu.assume_multiple %0, 8 : i32
    %c0 = arith.constant 0 : index
    %2 = arith.index_cast %1 : i32 to index
    %c0_0 = arith.constant 0 : index
    %c0_1 = arith.constant 0 : index
    %3 = vector.load %arg2[%c0, %2, %c0_0, %c0_1] : memref<1x18x18x64xf32, #tpu.memory_space<vmem>>, vector<1x10x18x64xf32>
    %4 = vector.shape_cast %3 : vector<1x10x18x64xf32> to vector<10x18x64xf32>
    %5 = vector.extract_strided_slice %4 {offsets = [0, 0, 0], sizes = [8, 16, 64], strides = [1, 1, 1]} : vector<10x18x64xf32> to vector<8x16x64xf32>
    %6 = vector.shape_cast %5 : vector<8x16x64xf32> to vector<128x64xf32>
    %7 = arith.truncf %6 : vector<128x64xf32> to vector<128x64xbf16>
    %8 = vector.extract_strided_slice %4 {offsets = [0, 1, 0], sizes = [8, 16, 64], strides = [1, 1, 1]} : vector<10x18x64xf32> to vector<8x16x64xf32>
    %9 = vector.shape_cast %8 : vector<8x16x64xf32> to vector<128x64xf32>
    %10 = arith.truncf %9 : vector<128x64xf32> to vector<128x64xbf16>
    %11 = vector.extract_strided_slice %4 {offsets = [0, 2, 0], sizes = [8, 16, 64], strides = [1, 1, 1]} : vector<10x18x64xf32> to vector<8x16x64xf32>
    %12 = vector.shape_cast %11 : vector<8x16x64xf32> to vector<128x64xf32>
    %13 = arith.truncf %12 : vector<128x64xf32> to vector<128x64xbf16>
    %14 = vector.extract_strided_slice %4 {offsets = [1, 0, 0], sizes = [8, 16, 64], strides = [1, 1, 1]} : vector<10x18x64xf32> to vector<8x16x64xf32>
    %15 = vector.shape_cast %14 : vector<8x16x64xf32> to vector<128x64xf32>
    %16 = arith.truncf %15 : vector<128x64xf32> to vector<128x64xbf16>
    %17 = vector.extract_strided_slice %4 {offsets = [1, 1, 0], sizes = [8, 16, 64], strides = [1, 1, 1]} : vector<10x18x64xf32> to vector<8x16x64xf32>
    %18 = vector.shape_cast %17 : vector<8x16x64xf32> to vector<128x64xf32>
    %19 = arith.truncf %18 : vector<128x64xf32> to vector<128x64xbf16>
    %20 = vector.extract_strided_slice %4 {offsets = [1, 2, 0], sizes = [8, 16, 64], strides = [1, 1, 1]} : vector<10x18x64xf32> to vector<8x16x64xf32>
    %21 = vector.shape_cast %20 : vector<8x16x64xf32> to vector<128x64xf32>
    %22 = arith.truncf %21 : vector<128x64xf32> to vector<128x64xbf16>
    %23 = vector.extract_strided_slice %4 {offsets = [2, 0, 0], sizes = [8, 16, 64], strides = [1, 1, 1]} : vector<10x18x64xf32> to vector<8x16x64xf32>
    %24 = vector.shape_cast %23 : vector<8x16x64xf32> to vector<128x64xf32>
    %25 = arith.truncf %24 : vector<128x64xf32> to vector<128x64xbf16>
    %26 = vector.extract_strided_slice %4 {offsets = [2, 1, 0], sizes = [8, 16, 64], strides = [1, 1, 1]} : vector<10x18x64xf32> to vector<8x16x64xf32>
    %27 = vector.shape_cast %26 : vector<8x16x64xf32> to vector<128x64xf32>
    %28 = arith.truncf %27 : vector<128x64xf32> to vector<128x64xbf16>
    %29 = vector.extract_strided_slice %4 {offsets = [2, 2, 0], sizes = [8, 16, 64], strides = [1, 1, 1]} : vector<10x18x64xf32> to vector<8x16x64xf32>
    %30 = vector.shape_cast %29 : vector<8x16x64xf32> to vector<128x64xf32>
    %31 = arith.truncf %30 : vector<128x64xf32> to vector<128x64xbf16>
    %32 = tpu.concatenate %7, %10, %13, %16, %19, %22, %25, %28, %31 in 1 : vector<128x64xbf16>, vector<128x64xbf16>, vector<128x64xbf16>, vector<128x64xbf16>, vector<128x64xbf16>, vector<128x64xbf16>, vector<128x64xbf16>, vector<128x64xbf16>, vector<128x64xbf16> -> vector<128x576xbf16>
    %c0_2 = arith.constant 0 : index
    %c0_3 = arith.constant 0 : index
    %33 = vector.load %arg3[%c0_2, %c0_3] : memref<576x128xbf16, #tpu.memory_space<vmem>>, vector<576x128xbf16>
    %cst = arith.constant dense<0.000000e+00> : vector<128x128xf32>
    %34 = tpu.matmul %32, %33, %cst {dimension_numbers = #tpu.dot_dimension_numbers<[1], [0], [0], [1], [0, 0, 1, 1], [], []>} : vector<128x576xbf16>, vector<576x128xbf16>, vector<128x128xf32> -> vector<128x128xf32>
    %c0_4 = arith.constant 0 : index
    %c0_5 = arith.constant 0 : index
    %35 = vector.load %arg4[%c0_4, %c0_5] : memref<1x128xf32, #tpu.memory_space<vmem>>, vector<1x128xf32>
    %36 = vector.broadcast %35 : vector<1x128xf32> to vector<128x128xf32>
    %37 = arith.addf %34, %36 : vector<128x128xf32>
    %38 = vector.shape_cast %37 : vector<128x128xf32> to vector<1x8x16x128xf32>
    %c0_6 = arith.constant 0 : index
    %c0_7 = arith.constant 0 : index
    %c0_8 = arith.constant 0 : index
    %c0_9 = arith.constant 0 : index
    %39 = vector.load %arg5[%c0_6, %c0_7, %c0_8, %c0_9] : memref<1x8x16x128xf32, #tpu.memory_space<vmem>>, vector<1x8x16x128xf32>
    %40 = arith.addf %38, %39 : vector<1x8x16x128xf32>
    %c0_10 = arith.constant 0 : index
    %c0_11 = arith.constant 0 : index
    %c0_12 = arith.constant 0 : index
    %c0_13 = arith.constant 0 : index
    %41 = vector.load %arg6[%c0_10, %c0_11, %c0_12, %c0_13] : memref<1x8x16x128xf32, #tpu.memory_space<vmem>>, vector<1x8x16x128xf32>
    tpu.vector_store %arg6[%c0_10, %c0_11, %c0_12, %c0_13], %40 {strides = array<i32>} : memref<1x8x16x128xf32, #tpu.memory_space<vmem>>, vector<1x8x16x128xf32>,
    return
  }
  func.func @transform_0(%arg0: i32, %arg1: i32) -> (i32, i32, i32, i32) {
    %c0_i32 = arith.constant 0 : i32
    %c0_i32_0 = arith.constant 0 : i32
    %c0_i32_1 = arith.constant 0 : i32
    %c0_i32_2 = arith.constant 0 : i32
    return %arg0, %c0_i32, %c0_i32_0, %c0_i32_1 : i32, i32, i32, i32
  }
  func.func @transform_1(%arg0: i32, %arg1: i32) -> (i32, i32) {
    %c0_i32 = arith.constant 0 : i32
    %c0_i32_0 = arith.constant 0 : i32
    %c0_i32_1 = arith.constant 0 : i32
    return %c0_i32, %c0_i32_0 : i32, i32
  }
  func.func @transform_2(%arg0: i32, %arg1: i32) -> (i32, i32) {
    %c0_i32 = arith.constant 0 : i32
    %c0_i32_0 = arith.constant 0 : i32
    %c0_i32_1 = arith.constant 0 : i32
    return %c0_i32, %c0_i32_0 : i32, i32
  }
  func.func @transform_3(%arg0: i32, %arg1: i32) -> (i32, i32, i32, i32) {
    %c0_i32 = arith.constant 0 : i32
    %c0_i32_0 = arith.constant 0 : i32
    %c0_i32_1 = arith.constant 0 : i32
    return %arg0, %arg1, %c0_i32, %c0_i32_0 : i32, i32, i32, i32
  }
  func.func @transform_4(%arg0: i32, %arg1: i32) -> (i32, i32, i32, i32) {
    %c0_i32 = arith.constant 0 : i32
    %c0_i32_0 = arith.constant 0 : i32
    %c0_i32_1 = arith.constant 0 : i32
    return %arg0, %arg1, %c0_i32, %c0_i32_0 : i32, i32, i32, i32
  }
}

</mosaic_0001>

<llo_original>
// kernel: spade_resnet_block_forward.24
$region0: #{spade_resnet_block_forward.24}
  #allocation0 [shape = 'u32[]', space=smem, size = 0x4, offset = 0x4, fixed_abs, tag = 'smem constant byte address 0x4 - core index']
  #allocation1 [shape = 'u32[144,128]{1,0:T(1,128)}', space=vmem, size = 0x12000, scoped, tag = 'internal scratch']
  %s0 = inlined_call_operand.vmem [shape: f32[2,18,18,64], index: 0, kind: input, shape index: {}]
  %s1 = inlined_call_operand.vmem [shape: bf16[576,128], index: 1, kind: input, shape index: {}]
  %s2 = inlined_call_operand.vmem [shape: f32[1,128], index: 2, kind: input, shape index: {}]
  %s3 = inlined_call_operand.vmem [shape: f32[2,16,16,128], index: 3, kind: output, shape index: {}]
  %s4 = sld [smem:[#allocation0]]
  $region45: #{spade_resnet_block_forward.24} parent=0
    _
  %s6 = ssub.s32 1, %s4
  %s7 = scalar_select 0, %s6, %s4
  loop: start=0, step=1, limit=6
  $region2: #{spade_resnet_block_forward.24} parent=0 // loop_pre_header
    _
  $region3: #{spade_resnet_block_forward.24} parent=0 // loop_header
    %s9 = sphi 0, %s13
    %p10 = scmp.ge.s32.totalorder %s9, 6
    %s16 = sphi 0, %s28
    %s17 = sphi 0, %s24
    %s18 = sphi 0, %s16
    %s19 = sphi 0, %s17
    %s20 = sphi 0, %s18
    %s21 = sphi 0, %s19
    %s31 = sphi 0, %s33
    %s34 = sphi 0, %s31
    %s35 = sphi 0, %s34
    %s51 = sphi 0, %s35
    %s55 = sphi 0, %s55
    %s57 = sphi 0, %s55
    %s58 = sphi 0, %s57
    %s72 = sphi 0, %s58
    %s76 = sphi 0, %s76
    %s78 = sphi 0, %s76
    %s79 = sphi 0, %s78
    %s93 = sphi 0, %s79
    %s101 = sphi 0, %s103
    %s104 = sphi 0, %s101
    %s105 = sphi 0, %s104
    %s121 = sphi 0, %s105
  $region4: #{spade_resnet_block_forward.24} parent=0 // loop_header_branch
    %12 = sbr.rel (%p10) target = $region8
  $region5: #{spade_resnet_block_forward.24} parent=0 // loop_body
    %s14 = ssub.s32 %s9, 1
    %s15 = ssub.s32 %s9, 2
    %s22 = sadd.s32 1, %s17
    %p23 = scmp.ge.s32.totalorder %s22, 2
    %s24 = scalar_select %p23, 0, %s22
    %s25 = sadd.s32 1, %s16
    %s26 = scalar_select %p23, %s25, %s16
    %p27 = scmp.ge.s32.totalorder %s26, 2
    %s28 = scalar_select %p27, 0, %s26
    %s29 = ssub.s32 %s16, %s28
    %p30 = scmp.eq.s32.totalorder %s29, 0
    %s32 = sadd.s32 %s31, 1
    %s33 = scalar_select %p30, %s31, %s32
    %p36 = pneg %p30
    %p37 = scmp.eq.s32.totalorder %s9, 3
    %p38 = por %p36, %p37
    %p39 = scmp.ne.s32.totalorder %s31, %s34
    %p40 = scmp.eq.s32.totalorder %s9, 0
    %p41 = por %p39, %p40
    %p42 = scmp.ne.s32.totalorder %s31, %s34
    %p43 = scmp.eq.s32.totalorder %s14, 3
    %p44 = por %p42, %p43
    %p45 = scmp.ne.s32.totalorder %s34, %s35
    %p46 = scmp.eq.s32.totalorder %s14, 0
    %p47 = por %p45, %p46
    %p48 = scmp.ne.s32.totalorder %s34, %s35
    %p49 = scmp.eq.s32.totalorder %s15, 3
    %p50 = por %p48, %p49
    %p52 = scmp.ne.s32.totalorder %s35, %s51
    %p53 = scmp.eq.s32.totalorder %s15, 0
    %p54 = por %p52, %p53
    %s56 = sadd.s32 %s55, 1
    %p59 = scmp.eq.s32.totalorder %s9, 3
    %p60 = scmp.ne.s32.totalorder %s55, %s57
    %p61 = scmp.eq.s32.totalorder %s9, 0
    %p62 = por %p60, %p61
    %p63 = scmp.ne.s32.totalorder %s55, %s57
    %p64 = scmp.eq.s32.totalorder %s14, 3
    %p65 = por %p63, %p64
    %p66 = scmp.ne.s32.totalorder %s57, %s58
    %p67 = scmp.eq.s32.totalorder %s14, 0
    %p68 = por %p66, %p67
    %p69 = scmp.ne.s32.totalorder %s57, %s58
    %p70 = scmp.eq.s32.totalorder %s15, 3
    %p71 = por %p69, %p70
    %p73 = scmp.ne.s32.totalorder %s58, %s72
    %p74 = scmp.eq.s32.totalorder %s15, 0
    %p75 = por %p73, %p74
    %s77 = sadd.s32 %s76, 1
    %p80 = scmp.eq.s32.totalorder %s9, 3
    %p81 = scmp.ne.s32.totalorder %s76, %s78
    %p82 = scmp.eq.s32.totalorder %s9, 0
    %p83 = por %p81, %p82
    %p84 = scmp.ne.s32.totalorder %s76, %s78
    %p85 = scmp.eq.s32.totalorder %s14, 3
    %p86 = por %p84, %p85
    %p87 = scmp.ne.s32.totalorder %s78, %s79
    %p88 = scmp.eq.s32.totalorder %s14, 0
    %p89 = por %p87, %p88
    %p90 = scmp.ne.s32.totalorder %s78, %s79
    %p91 = scmp.eq.s32.totalorder %s15, 3
    %p92 = por %p90, %p91
    %p94 = scmp.ne.s32.totalorder %s79, %s93
    %p95 = scmp.eq.s32.totalorder %s15, 0
    %p96 = por %p94, %p95
    %s97 = ssub.s32 %s16, %s28
    %s98 = ssub.s32 %s17, %s24
    %s99 = sor.u32 %s97, %s98
    %p100 = scmp.eq.s32.totalorder %s99, 0
    %s102 = sadd.s32 %s101, 1
    %s103 = scalar_select %p100, %s101, %s102
    %p106 = pneg %p100
    %p107 = scmp.eq.s32.totalorder %s9, 3
    %p108 = por %p106, %p107
    %p109 = scmp.ne.s32.totalorder %s101, %s104
    %p110 = scmp.eq.s32.totalorder %s9, 0
    %p111 = por %p109, %p110
    %p112 = scmp.ne.s32.totalorder %s101, %s104
    %p113 = scmp.eq.s32.totalorder %s14, 3
    %p114 = por %p112, %p113
    %p115 = scmp.ne.s32.totalorder %s104, %s105
    %p116 = scmp.eq.s32.totalorder %s14, 0
    %p117 = por %p115, %p116
    %p118 = scmp.ne.s32.totalorder %s104, %s105
    %p119 = scmp.eq.s32.totalorder %s15, 3
    %p120 = por %p118, %p119
    %p122 = scmp.ne.s32.totalorder %s105, %s121
    %p123 = scmp.eq.s32.totalorder %s15, 0
    %p124 = por %p122, %p123
    %p125 = scmp.le.s32.totalorder 1, %s9
    %p126 = scmp.lt.s32.totalorder %s9, 5
    %p127 = pnand %p125, %p126
    %p128 = pneg %p127
    // Predicated region
    $region9: #{spade_resnet_block_forward.24} parent=5 // pred_check
      _
    $region10: #{spade_resnet_block_forward.24} parent=5 // pred_check_branch
      %130 = sbr.rel (%p127) target = $region12
    $region11: #{spade_resnet_block_forward.24} parent=5 // pred_region
      %s131 = ssub.s32 %s9, 1
      // Predicated region
      $region13: #{spade_resnet_block_forward.24} parent=11 // pred_check
        %p132 = pneg %p68
      $region14: #{spade_resnet_block_forward.24} parent=11 // pred_check_branch
        %134 = sbr.rel (%p132) target = $region16
      $region15: #{spade_resnet_block_forward.24} parent=11 // pred_region
        _
      $region16: #{spade_resnet_block_forward.24} parent=11 // pred_fallthru
        _
      // Predicated region
      $region17: #{spade_resnet_block_forward.24} parent=11 // pred_check
        %p135 = pneg %p89
      $region18: #{spade_resnet_block_forward.24} parent=11 // pred_check_branch
        %137 = sbr.rel (%p135) target = $region20
      $region19: #{spade_resnet_block_forward.24} parent=11 // pred_region
        _
      $region20: #{spade_resnet_block_forward.24} parent=11 // pred_fallthru
        _
    $region12: #{spade_resnet_block_forward.24} parent=5 // pred_fallthru
      _
    %p138 = scmp.lt.s32.totalorder %s9, 4
    // Predicated region
    $region21: #{spade_resnet_block_forward.24} parent=5 // pred_check
      %p139 = pneg %p138
    $region22: #{spade_resnet_block_forward.24} parent=5 // pred_check_branch
      %141 = sbr.rel (%p139) target = $region24
    $region23: #{spade_resnet_block_forward.24} parent=5 // pred_region
      // Predicated region
      $region25: #{spade_resnet_block_forward.24} parent=23 // pred_check
        %p142 = pneg %p41
      $region26: #{spade_resnet_block_forward.24} parent=23 // pred_check_branch
        %144 = sbr.rel (%p142) target = $region28
      $region27: #{spade_resnet_block_forward.24} parent=23 // pred_region
        %p145 = scmp.lt.s32.totalorder %s16, 1
        %s146 = scalar_select %p145, %s16, 1
        %s147 = smul.addr %s146, 54
        %s148 = smul.addr %s147, 8
        %s149 = scalar_lea.vmem %s0, %s148
      $region28: #{spade_resnet_block_forward.24} parent=23 // pred_fallthru
        _
    $region24: #{spade_resnet_block_forward.24} parent=5 // pred_fallthru
      _
    %p150 = scmp.le.s32.totalorder 1, %s9
    %p151 = scmp.lt.s32.totalorder %s9, 5
    %p152 = pnand %p150, %p151
    %p153 = pneg %p152
    // Predicated region
    $region29: #{spade_resnet_block_forward.24} parent=5 // pred_check
      _
    $region30: #{spade_resnet_block_forward.24} parent=5 // pred_check_branch
      %155 = sbr.rel (%p152) target = $region32
    $region31: #{spade_resnet_block_forward.24} parent=5 // pred_region
      %s156 = ssub.s32 %s9, 1
      %p157 = scmp.lt.s32.totalorder %s18, 1
      %s158 = scalar_select %p157, %s18, 1
      %s159 = smul.addr %s158, 54
      %s160 = smul.addr %s159, 8
      %s161 = scalar_lea.vmem %s0, %s160
      %p162 = pneg %p47
      %p163 = pneg %p44
      %p164 = pneg %p68
      %p165 = pneg %p65
      %p166 = pneg %p89
      %p167 = pneg %p86
      %p168 = pneg %p117
      %p169 = pneg %p114
      %s170 = smul.u32 8, %s19
      %p171 = scmp.lt.s32.totalorder %s18, 1
      %s172 = scalar_select %p171, %s18, 1
      %p173 = scmp.lt.s32.totalorder %s170, 15
      %s174 = scalar_select %p173, %s170, 15
      %s175 = smul.addr %s174, 2
      %s176 = smul.addr %s172, 32
      %s177 = sadd.s32 %s175, %s176
      %s178 = smul.addr %s177, 8
      %s179 = scalar_lea.vmem %s3, %s178
      %p180 = scmp.lt.s32.totalorder %s18, 1
      %s181 = scalar_select %p180, %s18, 1
      %s182 = smul.addr %s181, 54
      %s183 = smul.addr %s182, 8
      %s184 = scalar_lea.vmem %s0, %s183
      %s185 = smul.u32 8, %s19
      %p186 = scmp.lt.s32.totalorder %s18, 1
      %s187 = scalar_select %p186, %s18, 1
      %p188 = scmp.lt.s32.totalorder %s185, 15
      %s189 = scalar_select %p188, %s185, 15
      %s190 = smul.addr %s189, 2
      %s191 = smul.addr %s187, 32
      %s192 = sadd.s32 %s190, %s191
      %s193 = smul.addr %s192, 8
      %s194 = scalar_lea.vmem %s3, %s193
      %s195 = smul.u32 8, %s19
      %s197 = smul.u32 %s19, 8
      %s198 = smul.u32 %s197, 24
      %s199 = scalar_lea.vmem %s184, %s198
      %v200 = vld [vmem:[%s199] sm:$0xff]
      %v201 = vld [vmem:[%s199 + $0x8] sm:$0xff]
      %v202 = vld [vmem:[%s199 + $0x10] sm:$0x3]
      %v203 = vld [vmem:[%s199 + $0x18] sm:$0xff]
      %v204 = vld [vmem:[%s199 + $0x20] sm:$0xff]
      %v205 = vld [vmem:[%s199 + $0x28] sm:$0x3]
      %v206 = vld [vmem:[%s199 + $0x30] sm:$0xff]
      %v207 = vld [vmem:[%s199 + $0x38] sm:$0xff]
      %v208 = vld [vmem:[%s199 + $0x40] sm:$0x3]
      %v209 = vld [vmem:[%s199 + $0x48] sm:$0xff]
      %v210 = vld [vmem:[%s199 + $0x50] sm:$0xff]
      %v211 = vld [vmem:[%s199 + $0x58] sm:$0x3]
      %v212 = vld [vmem:[%s199 + $0x60] sm:$0xff]
      %v213 = vld [vmem:[%s199 + $0x68] sm:$0xff]
      %v214 = vld [vmem:[%s199 + $0x70] sm:$0x3]
      %v215 = vld [vmem:[%s199 + $0x78] sm:$0xff]
      %v216 = vld [vmem:[%s199 + $0x80] sm:$0xff]
      %v217 = vld [vmem:[%s199 + $0x88] sm:$0x3]
      %v218 = vld [vmem:[%s199 + $0x90] sm:$0xff]
      %v219 = vld [vmem:[%s199 + $0x98] sm:$0xff]
      %v220 = vld [vmem:[%s199 + $0xa0] sm:$0x3]
      %v221 = vld [vmem:[%s199 + $0xa8] sm:$0xff]
      %v222 = vld [vmem:[%s199 + $0xb0] sm:$0xff]
      %v223 = vld [vmem:[%s199 + $0xb8] sm:$0x3]
      %v224 = vld [vmem:[%s199 + $0xc0] sm:$0xff]
      %v225 = vld [vmem:[%s199 + $0xc8] sm:$0xff]
      %v226 = vld [vmem:[%s199 + $0xd0] sm:$0x3]
      %v227 = vld [vmem:[%s199 + $0xd8] sm:$0xff]
      %v228 = vld [vmem:[%s199 + $0xe0] sm:$0xff]
      %v229 = vld [vmem:[%s199 + $0xe8] sm:$0x3]
      %v230 = vpack.c.bf16 %v201, %v200
      %v231 = vpack.c.bf16 %v204, %v203
      %v232 = vpack.c.bf16 %v207, %v206
      %v233 = vpack.c.bf16 %v210, %v209
      %v234 = vpack.c.bf16 %v213, %v212
      %v235 = vpack.c.bf16 %v216, %v215
      %v236 = vpack.c.bf16 %v219, %v218
      %v237 = vpack.c.bf16 %v222, %v221
      %vm262 = vcmask 1046528
      %v263 = vrot.slane %v200, 1
      %v264 = vrot.slane %v201, 1
      %v265 = vsel %vm262, %v263, %v264
      %v266 = vrot.slane %v202, 1
      %v267 = vsel %vm262, %v264, %v266
      %v268 = vrot.slane %v203, 1
      %v269 = vrot.slane %v204, 1
      %v270 = vsel %vm262, %v268, %v269
      %v271 = vrot.slane %v205, 1
      %v272 = vsel %vm262, %v269, %v271
      %v273 = vrot.slane %v206, 1
      %v274 = vrot.slane %v207, 1
      %v275 = vsel %vm262, %v273, %v274
      %v276 = vrot.slane %v208, 1
      %v277 = vsel %vm262, %v274, %v276
      %v278 = vrot.slane %v209, 1
      %v279 = vrot.slane %v210, 1
      %v280 = vsel %vm262, %v278, %v279
      %v281 = vrot.slane %v211, 1
      %v282 = vsel %vm262, %v279, %v281
      %v283 = vrot.slane %v212, 1
      %v284 = vrot.slane %v213, 1
      %v285 = vsel %vm262, %v283, %v284
      %v286 = vrot.slane %v214, 1
      %v287 = vsel %vm262, %v284, %v286
      %v288 = vrot.slane %v215, 1
      %v289 = vrot.slane %v216, 1
      %v290 = vsel %vm262, %v288, %v289
      %v291 = vrot.slane %v217, 1
      %v292 = vsel %vm262, %v289, %v291
      %v293 = vrot.slane %v218, 1
      %v294 = vrot.slane %v219, 1
      %v295 = vsel %vm262, %v293, %v294
      %v296 = vrot.slane %v220, 1
      %v297 = vsel %vm262, %v294, %v296
      %v298 = vrot.slane %v221, 1
      %v299 = vrot.slane %v222, 1
      %v300 = vsel %vm262, %v298, %v299
      %v301 = vrot.slane %v223, 1
      %v302 = vsel %vm262, %v299, %v301
      %v319 = vpack.c.bf16 %v267, %v265
      %v320 = vpack.c.bf16 %v272, %v270
      %v321 = vpack.c.bf16 %v277, %v275
      %v322 = vpack.c.bf16 %v282, %v280
      %v323 = vpack.c.bf16 %v287, %v285
      %v324 = vpack.c.bf16 %v292, %v290
      %v325 = vpack.c.bf16 %v297, %v295
      %v326 = vpack.c.bf16 %v302, %v300
      %vm327 = vcmask 1045504
      %v328 = vrot.slane %v200, 2
      %v329 = vrot.slane %v201, 2
      %v330 = vsel %vm327, %v328, %v329
      %v331 = vrot.slane %v202, 2
      %v332 = vsel %vm327, %v329, %v331
      %v333 = vrot.slane %v203, 2
      %v334 = vrot.slane %v204, 2
      %v335 = vsel %vm327, %v333, %v334
      %v336 = vrot.slane %v205, 2
      %v337 = vsel %vm327, %v334, %v336
      %v338 = vrot.slane %v206, 2
      %v339 = vrot.slane %v207, 2
      %v340 = vsel %vm327, %v338, %v339
      %v341 = vrot.slane %v208, 2
      %v342 = vsel %vm327, %v339, %v341
      %v343 = vrot.slane %v209, 2
      %v344 = vrot.slane %v210, 2
      %v345 = vsel %vm327, %v343, %v344
      %v346 = vrot.slane %v211, 2
      %v347 = vsel %vm327, %v344, %v346
      %v348 = vrot.slane %v212, 2
      %v349 = vrot.slane %v213, 2
      %v350 = vsel %vm327, %v348, %v349
      %v351 = vrot.slane %v214, 2
      %v352 = vsel %vm327, %v349, %v351
      %v353 = vrot.slane %v215, 2
      %v354 = vrot.slane %v216, 2
      %v355 = vsel %vm327, %v353, %v354
      %v356 = vrot.slane %v217, 2
      %v357 = vsel %vm327, %v354, %v356
      %v358 = vrot.slane %v218, 2
      %v359 = vrot.slane %v219, 2
      %v360 = vsel %vm327, %v358, %v359
      %v361 = vrot.slane %v220, 2
      %v362 = vsel %vm327, %v359, %v361
      %v363 = vrot.slane %v221, 2
      %v364 = vrot.slane %v222, 2
      %v365 = vsel %vm327, %v363, %v364
      %v366 = vrot.slane %v223, 2
      %v367 = vsel %vm327, %v364, %v366
      %v384 = vpack.c.bf16 %v332, %v330
      %v385 = vpack.c.bf16 %v337, %v335
      %v386 = vpack.c.bf16 %v342, %v340
      %v387 = vpack.c.bf16 %v347, %v345
      %v388 = vpack.c.bf16 %v352, %v350
      %v389 = vpack.c.bf16 %v357, %v355
      %v390 = vpack.c.bf16 %v362, %v360
      %v391 = vpack.c.bf16 %v367, %v365
      %v392 = vpack.c.bf16 %v225, %v224
      %v396 = vrot.slane %v224, 1
      %v397 = vrot.slane %v225, 1
      %v398 = vsel %vm262, %v396, %v397
      %v399 = vrot.slane %v226, 1
      %v400 = vsel %vm262, %v397, %v399
      %v403 = vpack.c.bf16 %v400, %v398
      %v404 = vrot.slane %v224, 2
      %v405 = vrot.slane %v225, 2
      %v406 = vsel %vm327, %v404, %v405
      %v407 = vrot.slane %v226, 2
      %v408 = vsel %vm327, %v405, %v407
      %v411 = vpack.c.bf16 %v408, %v406
      %v412 = vpack.c.bf16 %v228, %v227
      %v416 = vrot.slane %v227, 1
      %v417 = vrot.slane %v228, 1
      %v418 = vsel %vm262, %v416, %v417
      %v419 = vrot.slane %v229, 1
      %v420 = vsel %vm262, %v417, %v419
      %v423 = vpack.c.bf16 %v420, %v418
      %v424 = vrot.slane %v227, 2
      %v425 = vrot.slane %v228, 2
      %v426 = vsel %vm327, %v424, %v425
      %v427 = vrot.slane %v229, 2
      %v428 = vsel %vm327, %v425, %v427
      %v431 = vpack.c.bf16 %v428, %v426
      %440 = vrot.lane.b32.xlu0 %v319, 64
      %v441 = vpop.permute.xlu0 %440
      %442 = vrot.lane.b32.xlu0 %v320, 64
      %v443 = vpop.permute.xlu0 %442
      %444 = vrot.lane.b32.xlu0 %v321, 64
      %v445 = vpop.permute.xlu0 %444
      %446 = vrot.lane.b32.xlu0 %v322, 64
      %v447 = vpop.permute.xlu0 %446
      %448 = vrot.lane.b32.xlu0 %v323, 64
      %v449 = vpop.permute.xlu0 %448
      %450 = vrot.lane.b32.xlu0 %v324, 64
      %v451 = vpop.permute.xlu0 %450
      %452 = vrot.lane.b32.xlu0 %v325, 64
      %v453 = vpop.permute.xlu0 %452
      %454 = vrot.lane.b32.xlu0 %v326, 64
      %v455 = vpop.permute.xlu0 %454
      %464 = vrot.lane.b32.xlu0 %v231, 64
      %v465 = vpop.permute.xlu0 %464
      %466 = vrot.lane.b32.xlu0 %v232, 64
      %v467 = vpop.permute.xlu0 %466
      %468 = vrot.lane.b32.xlu0 %v233, 64
      %v469 = vpop.permute.xlu0 %468
      %470 = vrot.lane.b32.xlu0 %v234, 64
      %v471 = vpop.permute.xlu0 %470
      %472 = vrot.lane.b32.xlu0 %v235, 64
      %v473 = vpop.permute.xlu0 %472
      %474 = vrot.lane.b32.xlu0 %v236, 64
      %v475 = vpop.permute.xlu0 %474
      %476 = vrot.lane.b32.xlu0 %v237, 64
      %v477 = vpop.permute.xlu0 %476
      %478 = vrot.lane.b32.xlu0 %v392, 64
      %v479 = vpop.permute.xlu0 %478
      %488 = vrot.lane.b32.xlu0 %v385, 64
      %v489 = vpop.permute.xlu0 %488
      %490 = vrot.lane.b32.xlu0 %v386, 64
      %v491 = vpop.permute.xlu0 %490
      %492 = vrot.lane.b32.xlu0 %v387, 64
      %v493 = vpop.permute.xlu0 %492
      %494 = vrot.lane.b32.xlu0 %v388, 64
      %v495 = vpop.permute.xlu0 %494
      %496 = vrot.lane.b32.xlu0 %v389, 64
      %v497 = vpop.permute.xlu0 %496
      %498 = vrot.lane.b32.xlu0 %v390, 64
      %v499 = vpop.permute.xlu0 %498
      %500 = vrot.lane.b32.xlu0 %v391, 64
      %v501 = vpop.permute.xlu0 %500
      %502 = vrot.lane.b32.xlu0 %v411, 64
      %v503 = vpop.permute.xlu0 %502
      %506 = vrot.lane.b32.xlu0 %v403, 64
      %v507 = vpop.permute.xlu0 %506
      %508 = vrot.lane.b32.xlu0 %v423, 64
      %v509 = vpop.permute.xlu0 %508
      %vm510 = vcmask 523264
      %v513 = vsel %vm510, %v230, %v441
      %v517 = vsel %vm510, %v231, %v443
      %v521 = vsel %vm510, %v232, %v445
      %v525 = vsel %vm510, %v233, %v447
      %v529 = vsel %vm510, %v234, %v449
      %v533 = vsel %vm510, %v235, %v451
      %v537 = vsel %vm510, %v236, %v453
      %v541 = vsel %vm510, %v237, %v455
      %v545 = vsel %vm510, %v384, %v465
      %v549 = vsel %vm510, %v385, %v467
      %v553 = vsel %vm510, %v386, %v469
      %v557 = vsel %vm510, %v387, %v471
      %v561 = vsel %vm510, %v388, %v473
      %v565 = vsel %vm510, %v389, %v475
      %v569 = vsel %vm510, %v390, %v477
      %v573 = vsel %vm510, %v391, %v479
      %v577 = vsel %vm510, %v320, %v489
      %v581 = vsel %vm510, %v321, %v491
      %v585 = vsel %vm510, %v322, %v493
      %v589 = vsel %vm510, %v323, %v495
      %v593 = vsel %vm510, %v324, %v497
      %v597 = vsel %vm510, %v325, %v499
      %v601 = vsel %vm510, %v326, %v501
      %v605 = vsel %vm510, %v403, %v503
      %v609 = vsel %vm510, %v392, %v507
      %v613 = vsel %vm510, %v412, %v509
      %v615 = vld [vmem:[%s1] sm:$0xf]
      %v616 = vld [vmem:[%s1 + $0x4] sm:$0xf]
      %v617 = vld [vmem:[%s1 + $0x8] sm:$0xf]
      %v618 = vld [vmem:[%s1 + $0xc] sm:$0xf]
      %v619 = vld [vmem:[%s1 + $0x10] sm:$0xf]
      %v620 = vld [vmem:[%s1 + $0x14] sm:$0xf]
      %v621 = vld [vmem:[%s1 + $0x18] sm:$0xf]
      %v622 = vld [vmem:[%s1 + $0x1c] sm:$0xf]
      %v623 = vld [vmem:[%s1 + $0x20] sm:$0xf]
      %v624 = vld [vmem:[%s1 + $0x24] sm:$0xf]
      %v625 = vld [vmem:[%s1 + $0x28] sm:$0xf]
      %v626 = vld [vmem:[%s1 + $0x2c] sm:$0xf]
      %v627 = vld [vmem:[%s1 + $0x30] sm:$0xf]
      %v628 = vld [vmem:[%s1 + $0x34] sm:$0xf]
      %v629 = vld [vmem:[%s1 + $0x38] sm:$0xf]
      %v630 = vld [vmem:[%s1 + $0x3c] sm:$0xf]
      %v631 = vld [vmem:[%s1 + $0x40] sm:$0xf]
      %v632 = vld [vmem:[%s1 + $0x44] sm:$0xf]
      %v633 = vld [vmem:[%s1 + $0x48] sm:$0xf]
      %v634 = vld [vmem:[%s1 + $0x4c] sm:$0xf]
      %v635 = vld [vmem:[%s1 + $0x50] sm:$0xf]
      %v636 = vld [vmem:[%s1 + $0x54] sm:$0xf]
      %v637 = vld [vmem:[%s1 + $0x58] sm:$0xf]
      %v638 = vld [vmem:[%s1 + $0x5c] sm:$0xf]
      %v639 = vld [vmem:[%s1 + $0x60] sm:$0xf]
      %v640 = vld [vmem:[%s1 + $0x64] sm:$0xf]
      %v641 = vld [vmem:[%s1 + $0x68] sm:$0xf]
      %v642 = vld [vmem:[%s1 + $0x6c] sm:$0xf]
      %v643 = vld [vmem:[%s1 + $0x70] sm:$0xf]
      %v644 = vld [vmem:[%s1 + $0x74] sm:$0xf]
      %v645 = vld [vmem:[%s1 + $0x78] sm:$0xf]
      %v646 = vld [vmem:[%s1 + $0x7c] sm:$0xf]
      %v647 = vld [vmem:[%s1 + $0x80] sm:$0xf]
      %v648 = vld [vmem:[%s1 + $0x84] sm:$0xf]
      %v649 = vld [vmem:[%s1 + $0x88] sm:$0xf]
      %v650 = vld [vmem:[%s1 + $0x8c] sm:$0xf]
      %v651 = vld [vmem:[%s1 + $0x90] sm:$0xf]
      %v652 = vld [vmem:[%s1 + $0x94] sm:$0xf]
      %v653 = vld [vmem:[%s1 + $0x98] sm:$0xf]
      %v654 = vld [vmem:[%s1 + $0x9c] sm:$0xf]
      %v655 = vld [vmem:[%s1 + $0xa0] sm:$0xf]
      %v656 = vld [vmem:[%s1 + $0xa4] sm:$0xf]
      %v657 = vld [vmem:[%s1 + $0xa8] sm:$0xf]
      %v658 = vld [vmem:[%s1 + $0xac] sm:$0xf]
      %v659 = vld [vmem:[%s1 + $0xb0] sm:$0xf]
      %v660 = vld [vmem:[%s1 + $0xb4] sm:$0xf]
      %v661 = vld [vmem:[%s1 + $0xb8] sm:$0xf]
      %v662 = vld [vmem:[%s1 + $0xbc] sm:$0xf]
      %v663 = vld [vmem:[%s1 + $0xc0] sm:$0xf]
      %v664 = vld [vmem:[%s1 + $0xc4] sm:$0xf]
      %v665 = vld [vmem:[%s1 + $0xc8] sm:$0xf]
      %v666 = vld [vmem:[%s1 + $0xcc] sm:$0xf]
      %v667 = vld [vmem:[%s1 + $0xd0] sm:$0xf]
      %v668 = vld [vmem:[%s1 + $0xd4] sm:$0xf]
      %v669 = vld [vmem:[%s1 + $0xd8] sm:$0xf]
      %v670 = vld [vmem:[%s1 + $0xdc] sm:$0xf]
      %v671 = vld [vmem:[%s1 + $0xe0] sm:$0xf]
      %v672 = vld [vmem:[%s1 + $0xe4] sm:$0xf]
      %v673 = vld [vmem:[%s1 + $0xe8] sm:$0xf]
      %v674 = vld [vmem:[%s1 + $0xec] sm:$0xf]
      %v675 = vld [vmem:[%s1 + $0xf0] sm:$0xf]
      %v676 = vld [vmem:[%s1 + $0xf4] sm:$0xf]
      %v677 = vld [vmem:[%s1 + $0xf8] sm:$0xf]
      %v678 = vld [vmem:[%s1 + $0xfc] sm:$0xf]
      %v679 = vld [vmem:[%s1 + $0x100] sm:$0xf]
      %v680 = vld [vmem:[%s1 + $0x104] sm:$0xf]
      %v681 = vld [vmem:[%s1 + $0x108] sm:$0xf]
      %v682 = vld [vmem:[%s1 + $0x10c] sm:$0xf]
      %v683 = vld [vmem:[%s1 + $0x110] sm:$0xf]
      %v684 = vld [vmem:[%s1 + $0x114] sm:$0xf]
      %v685 = vld [vmem:[%s1 + $0x118] sm:$0xf]
      %v686 = vld [vmem:[%s1 + $0x11c] sm:$0xf]
      %v687 = vld [vmem:[%s2] sm:$0x1]
      %v689 = vlaneseq
      %v690 = vshrl.u32 %v689, 7
      %v691 = vsub.s32 0, %v690
      %v692 = vrot.slane %v687, %v691
      %v766 = vunpack.c.l.b16 %v615
      %v767 = vunpack.c.l.b16 %v616
      %v768 = vunpack.c.l.b16 %v617
      %v769 = vunpack.c.l.b16 %v618
      %v770 = vunpack.c.l.b16 %v619
      %v771 = vunpack.c.l.b16 %v620
      %v772 = vunpack.c.l.b16 %v621
      %v773 = vunpack.c.l.b16 %v622
      %v774 = vunpack.c.l.b16 %v623
      %v775 = vunpack.c.l.b16 %v624
      %v776 = vunpack.c.l.b16 %v625
      %v777 = vunpack.c.l.b16 %v626
      %v778 = vunpack.c.l.b16 %v627
      %v779 = vunpack.c.l.b16 %v628
      %v780 = vunpack.c.l.b16 %v629
      %v781 = vunpack.c.l.b16 %v630
      %v782 = vunpack.c.l.b16 %v631
      %v783 = vunpack.c.l.b16 %v632
      %v784 = vunpack.c.l.b16 %v633
      %v785 = vunpack.c.l.b16 %v634
      %v786 = vunpack.c.l.b16 %v635
      %v787 = vunpack.c.l.b16 %v636
      %v788 = vunpack.c.l.b16 %v637
      %v789 = vunpack.c.l.b16 %v638
      %v790 = vunpack.c.l.b16 %v639
      %v791 = vunpack.c.l.b16 %v640
      %v792 = vunpack.c.l.b16 %v641
      %v793 = vunpack.c.l.b16 %v642
      %v794 = vunpack.c.l.b16 %v643
      %v795 = vunpack.c.l.b16 %v644
      %v796 = vunpack.c.l.b16 %v645
      %v797 = vunpack.c.l.b16 %v646
      %v798 = vunpack.c.l.b16 %v647
      %v799 = vunpack.c.l.b16 %v648
      %v800 = vunpack.c.l.b16 %v649
      %v801 = vunpack.c.l.b16 %v650
      %v802 = vunpack.c.l.b16 %v651
      %v803 = vunpack.c.l.b16 %v652
      %v804 = vunpack.c.l.b16 %v653
      %v805 = vunpack.c.l.b16 %v654
      %v806 = vunpack.c.l.b16 %v655
      %v807 = vunpack.c.l.b16 %v656
      %v808 = vunpack.c.l.b16 %v657
      %v809 = vunpack.c.l.b16 %v658
      %v810 = vunpack.c.l.b16 %v659
      %v811 = vunpack.c.l.b16 %v660
      %v812 = vunpack.c.l.b16 %v661
      %v813 = vunpack.c.l.b16 %v662
      %v814 = vunpack.c.l.b16 %v663
      %v815 = vunpack.c.l.b16 %v664
      %v816 = vunpack.c.l.b16 %v665
      %v817 = vunpack.c.l.b16 %v666
      %v818 = vunpack.c.l.b16 %v667
      %v819 = vunpack.c.l.b16 %v668
      %v820 = vunpack.c.l.b16 %v669
      %v821 = vunpack.c.l.b16 %v670
      %v822 = vunpack.c.l.b16 %v671
      %v823 = vunpack.c.l.b16 %v672
      %v824 = vunpack.c.l.b16 %v673
      %v825 = vunpack.c.l.b16 %v674
      %v826 = vunpack.c.l.b16 %v675
      %v827 = vunpack.c.l.b16 %v676
      %v828 = vunpack.c.l.b16 %v677
      %v829 = vunpack.c.l.b16 %v678
      %v830 = vunpack.c.l.b16 %v679
      %v831 = vunpack.c.l.b16 %v680
      %v832 = vunpack.c.l.b16 %v681
      %v833 = vunpack.c.l.b16 %v682
      %v834 = vunpack.c.l.b16 %v683
      %v835 = vunpack.c.l.b16 %v684
      %v836 = vunpack.c.l.b16 %v685
      %v837 = vunpack.c.l.b16 %v686
      %v838 = vpack.c.b16 %v767, %v766
      %v839 = vpack.c.b16 %v769, %v768
      %v840 = vpack.c.b16 %v771, %v770
      %v841 = vpack.c.b16 %v773, %v772
      %v842 = vpack.c.b16 %v775, %v774
      %v843 = vpack.c.b16 %v777, %v776
      %v844 = vpack.c.b16 %v779, %v778
      %v845 = vpack.c.b16 %v781, %v780
      %v846 = vpack.c.b16 %v783, %v782
      %v847 = vpack.c.b16 %v785, %v784
      %v848 = vpack.c.b16 %v787, %v786
      %v849 = vpack.c.b16 %v789, %v788
      %v850 = vpack.c.b16 %v791, %v790
      %v851 = vpack.c.b16 %v793, %v792
      %v852 = vpack.c.b16 %v795, %v794
      %v853 = vpack.c.b16 %v797, %v796
      %v854 = vpack.c.b16 %v799, %v798
      %v855 = vpack.c.b16 %v801, %v800
      %v856 = vpack.c.b16 %v803, %v802
      %v857 = vpack.c.b16 %v805, %v804
      %v858 = vpack.c.b16 %v807, %v806
      %v859 = vpack.c.b16 %v809, %v808
      %v860 = vpack.c.b16 %v811, %v810
      %v861 = vpack.c.b16 %v813, %v812
      %v862 = vpack.c.b16 %v815, %v814
      %v863 = vpack.c.b16 %v817, %v816
      %v864 = vpack.c.b16 %v819, %v818
      %v865 = vpack.c.b16 %v821, %v820
      %v866 = vpack.c.b16 %v823, %v822
      %v867 = vpack.c.b16 %v825, %v824
      %v868 = vpack.c.b16 %v827, %v826
      %v869 = vpack.c.b16 %v829, %v828
      %v870 = vpack.c.b16 %v831, %v830
      %v871 = vpack.c.b16 %v833, %v832
      %v872 = vpack.c.b16 %v835, %v834
      %v873 = vpack.c.b16 %v837, %v836
      %v910 = vsel %vm510, %v386, 0
      %v912 = vsel %vm510, %v387, 0
      %v914 = vsel %vm510, %v388, 0
      %v916 = vsel %vm510, %v389, 0
      %v918 = vsel %vm510, %v390, 0
      %v920 = vsel %vm510, %v391, 0
      %v923 = vsel %vm510, %v411, 0
      %v926 = vsel %vm510, %v431, 0
      %928 = vmatprep.subr.bf16.mxu0 0
      %929 = vmatpush1.bf16.msra.mxu0 %v838
      %930 = vmatprep.subr.bf16.mxu0 0
      %931 = vmatpush1.bf16.msra.mxu0 %v839
      %932 = vmatprep.subr.bf16.mxu0 0
      %933 = vmatpush1.bf16.msra.mxu0 %v840
      %934 = vmatprep.subr.bf16.mxu0 0
      %935 = vmatpush1.bf16.msra.mxu0 %v841
      %936 = vmatprep.subr.bf16.mxu0 0
      %937 = vmatpush1.bf16.msra.mxu0 %v842
      %938 = vmatprep.subr.bf16.mxu0 0
      %939 = vmatpush1.bf16.msra.mxu0 %v843
      %940 = vmatprep.subr.bf16.mxu0 0
      %941 = vmatpush1.bf16.msra.mxu0 %v844
      %942 = vmatprep.subr.bf16.mxu0 0
      %943 = vmatpush1.bf16.msra.mxu0 %v845
      %944 = vmatprep.subr.bf16.mxu0 0
      %945 = vmatpush1.bf16.msra.mxu0 %v846
      %946 = vmatprep.subr.bf16.mxu0 0
      %947 = vmatpush1.bf16.msra.mxu0 %v847
      %948 = vmatprep.subr.bf16.mxu0 0
      %949 = vmatpush1.bf16.msra.mxu0 %v848
      %950 = vmatprep.subr.bf16.mxu0 0
      %951 = vmatpush1.bf16.msra.mxu0 %v849
      %952 = vmatprep.subr.bf16.mxu0 0
      %953 = vmatpush1.bf16.msra.mxu0 %v850
      %954 = vmatprep.subr.bf16.mxu0 0
      %955 = vmatpush1.bf16.msra.mxu0 %v851
      %956 = vmatprep.subr.bf16.mxu0 0
      %957 = vmatpush1.bf16.msra.mxu0 %v852
      %958 = vmatprep.subr.bf16.mxu0 0
      %959 = vmatpush1.bf16.msra.mxu0 %v853
      %960 = vmatprep.mubr.bf16.mxu0 %v545
      %961 = vmatmul.mubr.bf16.gmra.mrb[0].mxu0 %v513
      %v962 = vpop.f32.mrb[0].mxu0
      %v963 = vadd.f32 %v692, %v962
      %v964 = vpop.f32.mrb[0].mxu0
      %v965 = vpop.f32.mrb[0].mxu0
      %v966 = vadd.f32 %v692, %v965
      %v967 = vpop.f32.mrb[0].mxu0
      %968 = vmatprep.mubr.bf16.mxu0 %v549
      %969 = vmatmul.mubr.bf16.gmra.mrb[0].mxu0 %v517
      %v970 = vpop.f32.mrb[0].mxu0
      %v971 = vadd.f32 %v692, %v970
      %v972 = vpop.f32.mrb[0].mxu0
      %v973 = vpop.f32.mrb[0].mxu0
      %v974 = vadd.f32 %v692, %v973
      %v975 = vpop.f32.mrb[0].mxu0
      %976 = vmatprep.mubr.bf16.mxu0 %v553
      %977 = vmatmul.mubr.bf16.gmra.mrb[0].mxu0 %v521
      %v978 = vpop.f32.mrb[0].mxu0
      %v979 = vadd.f32 %v692, %v978
      %v980 = vpop.f32.mrb[0].mxu0
      %v981 = vpop.f32.mrb[0].mxu0
      %v982 = vadd.f32 %v692, %v981
      %v983 = vpop.f32.mrb[0].mxu0
      %984 = vmatprep.mubr.bf16.mxu0 %v557
      %985 = vmatmul.mubr.bf16.gmra.mrb[0].mxu0 %v525
      %v986 = vpop.f32.mrb[0].mxu0
      %v987 = vadd.f32 %v692, %v986
      %v988 = vpop.f32.mrb[0].mxu0
      %v989 = vpop.f32.mrb[0].mxu0
      %v990 = vadd.f32 %v692, %v989
      %v991 = vpop.f32.mrb[0].mxu0
      %992 = vmatprep.mubr.bf16.mxu0 %v561
      %993 = vmatmul.mubr.bf16.gmra.mrb[0].mxu0 %v529
      %v994 = vpop.f32.mrb[0].mxu0
      %v995 = vadd.f32 %v692, %v994
      %v996 = vpop.f32.mrb[0].mxu0
      %v997 = vpop.f32.mrb[0].mxu0
      %v998 = vadd.f32 %v692, %v997
      %v999 = vpop.f32.mrb[0].mxu0
      %1000 = vmatprep.mubr.bf16.mxu0 %v565
      %1001 = vmatmul.mubr.bf16.gmra.mrb[0].mxu0 %v533
      %v1002 = vpop.f32.mrb[0].mxu0
      %v1003 = vadd.f32 %v692, %v1002
      %v1004 = vpop.f32.mrb[0].mxu0
      %v1005 = vpop.f32.mrb[0].mxu0
      %v1006 = vadd.f32 %v692, %v1005
      %v1007 = vpop.f32.mrb[0].mxu0
      %1008 = vmatprep.mubr.bf16.mxu0 %v569
      %1009 = vmatmul.mubr.bf16.gmra.mrb[0].mxu0 %v537
      %v1010 = vpop.f32.mrb[0].mxu0
      %v1011 = vadd.f32 %v692, %v1010
      %v1012 = vpop.f32.mrb[0].mxu0
      %v1013 = vpop.f32.mrb[0].mxu0
      %v1014 = vadd.f32 %v692, %v1013
      %v1015 = vpop.f32.mrb[0].mxu0
      %1016 = vmatprep.mubr.bf16.mxu0 %v573
      %1017 = vmatmul.mubr.bf16.gmra.mrb[0].mxu0 %v541
      %v1018 = vpop.f32.mrb[0].mxu0
      %v1019 = vadd.f32 %v692, %v1018
      %v1020 = vpop.f32.mrb[0].mxu0
      %v1021 = vpop.f32.mrb[0].mxu0
      %v1022 = vadd.f32 %v692, %v1021
      %v1023 = vpop.f32.mrb[0].mxu0
      %1024 = vdwg.mxu0
      %1025 = vmatprep.subr.bf16.mxu0 0
      %1026 = vmatpush1.bf16.msra.mxu0 %v854
      %1027 = vmatprep.subr.bf16.mxu0 0
      %1028 = vmatpush1.bf16.msra.mxu0 %v855
      %1029 = vmatprep.subr.bf16.mxu0 0
      %1030 = vmatpush1.bf16.msra.mxu0 %v856
      %1031 = vmatprep.subr.bf16.mxu0 0
      %1032 = vmatpush1.bf16.msra.mxu0 %v857
      %1033 = vmatprep.subr.bf16.mxu0 0
      %1034 = vmatpush1.bf16.msra.mxu0 %v858
      %1035 = vmatprep.subr.bf16.mxu0 0
      %1036 = vmatpush1.bf16.msra.mxu0 %v859
      %1037 = vmatprep.subr.bf16.mxu0 0
      %1038 = vmatpush1.bf16.msra.mxu0 %v860
      %1039 = vmatprep.subr.bf16.mxu0 0
      %1040 = vmatpush1.bf16.msra.mxu0 %v861
      %1041 = vmatprep.subr.bf16.mxu0 0
      %1042 = vmatpush1.bf16.msra.mxu0 %v862
      %1043 = vmatprep.subr.bf16.mxu0 0
      %1044 = vmatpush1.bf16.msra.mxu0 %v863
      %1045 = vmatprep.subr.bf16.mxu0 0
      %1046 = vmatpush1.bf16.msra.mxu0 %v864
      %1047 = vmatprep.subr.bf16.mxu0 0
      %1048 = vmatpush1.bf16.msra.mxu0 %v865
      %1049 = vmatprep.subr.bf16.mxu0 0
      %1050 = vmatpush1.bf16.msra.mxu0 %v866
      %1051 = vmatprep.subr.bf16.mxu0 0
      %1052 = vmatpush1.bf16.msra.mxu0 %v867
      %1053 = vmatprep.subr.bf16.mxu0 0
      %1054 = vmatpush1.bf16.msra.mxu0 %v868
      %1055 = vmatprep.subr.bf16.mxu0 0
      %1056 = vmatpush1.bf16.msra.mxu0 %v869
      %1057 = vmatprep.mubr.bf16.mxu0 %v521
      %1058 = vmatmul.mubr.bf16.gmra.mrb[0].mxu0 %v577
      %v1059 = vpop.f32.mrb[0].mxu0
      %v1060 = vadd.f32 %v963, %v1059
      %v1061 = vpop.f32.mrb[0].mxu0
      %v1062 = vpop.f32.mrb[0].mxu0
      %v1063 = vadd.f32 %v966, %v1062
      %v1064 = vpop.f32.mrb[0].mxu0
      %1065 = vmatprep.mubr.bf16.mxu0 %v525
      %1066 = vmatmul.mubr.bf16.gmra.mrb[0].mxu0 %v581
      %v1067 = vpop.f32.mrb[0].mxu0
      %v1068 = vadd.f32 %v971, %v1067
      %v1069 = vpop.f32.mrb[0].mxu0
      %v1070 = vpop.f32.mrb[0].mxu0
      %v1071 = vadd.f32 %v974, %v1070
      %v1072 = vpop.f32.mrb[0].mxu0
      %1073 = vmatprep.mubr.bf16.mxu0 %v529
      %1074 = vmatmul.mubr.bf16.gmra.mrb[0].mxu0 %v585
      %v1075 = vpop.f32.mrb[0].mxu0
      %v1076 = vadd.f32 %v979, %v1075
      %v1077 = vpop.f32.mrb[0].mxu0
      %v1078 = vpop.f32.mrb[0].mxu0
      %v1079 = vadd.f32 %v982, %v1078
      %v1080 = vpop.f32.mrb[0].mxu0
      %1081 = vmatprep.mubr.bf16.mxu0 %v533
      %1082 = vmatmul.mubr.bf16.gmra.mrb[0].mxu0 %v589
      %v1083 = vpop.f32.mrb[0].mxu0
      %v1084 = vadd.f32 %v987, %v1083
      %v1085 = vpop.f32.mrb[0].mxu0
      %v1086 = vpop.f32.mrb[0].mxu0
      %v1087 = vadd.f32 %v990, %v1086
      %v1088 = vpop.f32.mrb[0].mxu0
      %1089 = vmatprep.mubr.bf16.mxu0 %v537
      %1090 = vmatmul.mubr.bf16.gmra.mrb[0].mxu0 %v593
      %v1091 = vpop.f32.mrb[0].mxu0
      %v1092 = vadd.f32 %v995, %v1091
      %v1093 = vpop.f32.mrb[0].mxu0
      %v1094 = vpop.f32.mrb[0].mxu0
      %v1095 = vadd.f32 %v998, %v1094
      %v1096 = vpop.f32.mrb[0].mxu0
      %1097 = vmatprep.mubr.bf16.mxu0 %v541
      %1098 = vmatmul.mubr.bf16.gmra.mrb[0].mxu0 %v597
      %v1099 = vpop.f32.mrb[0].mxu0
      %v1100 = vadd.f32 %v1003, %v1099
      %v1101 = vpop.f32.mrb[0].mxu0
      %v1102 = vpop.f32.mrb[0].mxu0
      %v1103 = vadd.f32 %v1006, %v1102
      %v1104 = vpop.f32.mrb[0].mxu0
      %1105 = vmatprep.mubr.bf16.mxu0 %v609
      %1106 = vmatmul.mubr.bf16.gmra.mrb[0].mxu0 %v601
      %v1107 = vpop.f32.mrb[0].mxu0
      %v1108 = vadd.f32 %v1011, %v1107
      %v1109 = vpop.f32.mrb[0].mxu0
      %v1110 = vpop.f32.mrb[0].mxu0
      %v1111 = vadd.f32 %v1014, %v1110
      %v1112 = vpop.f32.mrb[0].mxu0
      %1113 = vmatprep.mubr.bf16.mxu0 %v613
      %1114 = vmatmul.mubr.bf16.gmra.mrb[0].mxu0 %v605
      %v1115 = vpop.f32.mrb[0].mxu0
      %v1116 = vadd.f32 %v1019, %v1115
      %v1117 = vpop.f32.mrb[0].mxu0
      %v1118 = vpop.f32.mrb[0].mxu0
      %v1119 = vadd.f32 %v1022, %v1118
      %v1120 = vpop.f32.mrb[0].mxu0
      %1121 = vdwg.mxu0
      %1122 = vmatprep.subr.bf16.mxu0 0
      %1123 = vmatpush1.bf16.msra.mxu0 %v870
      %1124 = vmatprep.subr.bf16.mxu0 0
      %1125 = vmatpush1.bf16.msra.mxu0 %v871
      %1126 = vmatprep.subr.bf16.mxu0 0
      %1127 = vmatpush1.bf16.msra.mxu0 %v872
      %1128 = vmatprep.subr.bf16.mxu0 0
      %1129 = vmatpush1.bf16.msra.mxu0 %v873
      %1130 = vmatprep.subr.bf16.mxu0 0
      %1131 = vmatpush1.bf16.msra.mxu0 0
      %1132 = vmatprep.subr.bf16.mxu0 0
      %1133 = vmatpush1.bf16.msra.mxu0 0
      %1134 = vmatprep.subr.bf16.mxu0 0
      %1135 = vmatpush1.bf16.msra.mxu0 0
      %1136 = vmatprep.subr.bf16.mxu0 0
      %1137 = vmatpush1.bf16.msra.mxu0 0
      %1138 = vmatprep.subr.bf16.mxu0 0
      %1139 = vmatpush1.bf16.msra.mxu0 0
      %1140 = vmatprep.subr.bf16.mxu0 0
      %1141 = vmatpush1.bf16.msra.mxu0 0
      %1142 = vmatprep.subr.bf16.mxu0 0
      %1143 = vmatpush1.bf16.msra.mxu0 0
      %1144 = vmatprep.subr.bf16.mxu0 0
      %1145 = vmatpush1.bf16.msra.mxu0 0
      %1146 = vmatprep.subr.bf16.mxu0 0
      %1147 = vmatpush1.bf16.msra.mxu0 0
      %1148 = vmatprep.subr.bf16.mxu0 0
      %1149 = vmatpush1.bf16.msra.mxu0 0
      %1150 = vmatprep.subr.bf16.mxu0 0
      %1151 = vmatpush1.bf16.msra.mxu0 0
      %1152 = vmatprep.subr.bf16.mxu0 0
      %1153 = vmatpush1.bf16.msra.mxu0 0
      %1154 = vmatprep.mubr.bf16.mxu0 0
      %1155 = vmatmul.mubr.bf16.gmra.mrb[0].mxu0 %v910
      %v1156 = vpop.f32.mrb[0].mxu0
      %v1157 = vadd.f32 %v1060, %v1156
      %v1158 = vpop.f32.mrb[0].mxu0
      %v1159 = vpop.f32.mrb[0].mxu0
      %v1160 = vadd.f32 %v1063, %v1159
      %v1161 = vpop.f32.mrb[0].mxu0
      %1162 = vmatprep.mubr.bf16.mxu0 0
      %1163 = vmatmul.mubr.bf16.gmra.mrb[0].mxu0 %v912
      %v1164 = vpop.f32.mrb[0].mxu0
      %v1165 = vadd.f32 %v1068, %v1164
      %v1166 = vpop.f32.mrb[0].mxu0
      %v1167 = vpop.f32.mrb[0].mxu0
      %v1168 = vadd.f32 %v1071, %v1167
      %v1169 = vpop.f32.mrb[0].mxu0
      %1170 = vmatprep.mubr.bf16.mxu0 0
      %1171 = vmatmul.mubr.bf16.gmra.mrb[0].mxu0 %v914
      %v1172 = vpop.f32.mrb[0].mxu0
      %v1173 = vadd.f32 %v1076, %v1172
      %v1174 = vpop.f32.mrb[0].mxu0
      %v1175 = vpop.f32.mrb[0].mxu0
      %v1176 = vadd.f32 %v1079, %v1175
      %v1177 = vpop.f32.mrb[0].mxu0
      %1178 = vmatprep.mubr.bf16.mxu0 0
      %1179 = vmatmul.mubr.bf16.gmra.mrb[0].mxu0 %v916
      %v1180 = vpop.f32.mrb[0].mxu0
      %v1181 = vadd.f32 %v1084, %v1180
      %v1182 = vpop.f32.mrb[0].mxu0
      %v1183 = vpop.f32.mrb[0].mxu0
      %v1184 = vadd.f32 %v1087, %v1183
      %v1185 = vpop.f32.mrb[0].mxu0
      %1186 = vmatprep.mubr.bf16.mxu0 0
      %1187 = vmatmul.mubr.bf16.gmra.mrb[0].mxu0 %v918
      %v1188 = vpop.f32.mrb[0].mxu0
      %v1189 = vadd.f32 %v1092, %v1188
      %v1190 = vpop.f32.mrb[0].mxu0
      %v1191 = vpop.f32.mrb[0].mxu0
      %v1192 = vadd.f32 %v1095, %v1191
      %v1193 = vpop.f32.mrb[0].mxu0
      %1194 = vmatprep.mubr.bf16.mxu0 0
      %1195 = vmatmul.mubr.bf16.gmra.mrb[0].mxu0 %v920
      %v1196 = vpop.f32.mrb[0].mxu0
      %v1197 = vadd.f32 %v1100, %v1196
      %v1198 = vpop.f32.mrb[0].mxu0
      %v1199 = vpop.f32.mrb[0].mxu0
      %v1200 = vadd.f32 %v1103, %v1199
      %v1201 = vpop.f32.mrb[0].mxu0
      %1202 = vmatprep.mubr.bf16.mxu0 0
      %1203 = vmatmul.mubr.bf16.gmra.mrb[0].mxu0 %v923
      %v1204 = vpop.f32.mrb[0].mxu0
      %v1205 = vadd.f32 %v1108, %v1204
      %v1206 = vpop.f32.mrb[0].mxu0
      %v1207 = vpop.f32.mrb[0].mxu0
      %v1208 = vadd.f32 %v1111, %v1207
      %v1209 = vpop.f32.mrb[0].mxu0
      %1210 = vmatprep.mubr.bf16.mxu0 0
      %1211 = vmatmul.mubr.bf16.gmra.mrb[0].mxu0 %v926
      %v1212 = vpop.f32.mrb[0].mxu0
      %v1213 = vadd.f32 %v1116, %v1212
      %v1214 = vpop.f32.mrb[0].mxu0
      %v1215 = vpop.f32.mrb[0].mxu0
      %v1216 = vadd.f32 %v1119, %v1215
      %v1217 = vpop.f32.mrb[0].mxu0
      %1218 = vdwg.mxu0
      %v1219 = vmax.f32 %v1157, 0.0
      %v1220 = vmax.f32 %v1160, 0.0
      %v1221 = vmax.f32 %v1165, 0.0
      %v1222 = vmax.f32 %v1168, 0.0
      %v1223 = vmax.f32 %v1173, 0.0
      %v1224 = vmax.f32 %v1176, 0.0
      %v1225 = vmax.f32 %v1181, 0.0
      %v1226 = vmax.f32 %v1184, 0.0
      %v1227 = vmax.f32 %v1189, 0.0
      %v1228 = vmax.f32 %v1192, 0.0
      %v1229 = vmax.f32 %v1197, 0.0
      %v1230 = vmax.f32 %v1200, 0.0
      %v1231 = vmax.f32 %v1205, 0.0
      %v1232 = vmax.f32 %v1208, 0.0
      %v1233 = vmax.f32 %v1213, 0.0
      %v1234 = vmax.f32 %v1216, 0.0
      %1235 = vst [vmem:[%s194] sm:$0xff] %v1219
      %1236 = vst [vmem:[%s194 + $0x8] sm:$0xff] %v1220
      %1237 = vst [vmem:[%s194 + $0x10] sm:$0xff] %v1221
      %1238 = vst [vmem:[%s194 + $0x18] sm:$0xff] %v1222
      %1239 = vst [vmem:[%s194 + $0x20] sm:$0xff] %v1223
      %1240 = vst [vmem:[%s194 + $0x28] sm:$0xff] %v1224
      %1241 = vst [vmem:[%s194 + $0x30] sm:$0xff] %v1225
      %1242 = vst [vmem:[%s194 + $0x38] sm:$0xff] %v1226
      %1243 = vst [vmem:[%s194 + $0x40] sm:$0xff] %v1227
      %1244 = vst [vmem:[%s194 + $0x48] sm:$0xff] %v1228
      %1245 = vst [vmem:[%s194 + $0x50] sm:$0xff] %v1229
      %1246 = vst [vmem:[%s194 + $0x58] sm:$0xff] %v1230
      %1247 = vst [vmem:[%s194 + $0x60] sm:$0xff] %v1231
      %1248 = vst [vmem:[%s194 + $0x68] sm:$0xff] %v1232
      %1249 = vst [vmem:[%s194 + $0x70] sm:$0xff] %v1233
      %1250 = vst [vmem:[%s194 + $0x78] sm:$0xff] %v1234
      %s1251 = smul.u32 8, %s19
      %p1252 = scmp.lt.s32.totalorder %s18, 1
      %s1253 = scalar_select %p1252, %s18, 1
      %p1254 = scmp.lt.s32.totalorder %s1251, 15
      %s1255 = scalar_select %p1254, %s1251, 15
      %s1256 = smul.addr %s1255, 2
      %s1257 = smul.addr %s1253, 32
      %s1258 = sadd.s32 %s1256, %s1257
      %s1259 = smul.addr %s1258, 8
      %s1260 = scalar_lea.vmem %s3, %s1259
      // Predicated region
      $region33: #{spade_resnet_block_forward.24} parent=31 // pred_check
        %p1261 = pneg %p114
      $region34: #{spade_resnet_block_forward.24} parent=31 // pred_check_branch
        %1263 = sbr.rel (%p1261) target = $region36
      $region35: #{spade_resnet_block_forward.24} parent=31 // pred_region
        %s1264 = smul.u32 8, %s19
      $region36: #{spade_resnet_block_forward.24} parent=31 // pred_fallthru
        _
    $region32: #{spade_resnet_block_forward.24} parent=5 // pred_fallthru
      _
    %p1265 = scmp.le.s32.totalorder 2, %s9
    // Predicated region
    $region37: #{spade_resnet_block_forward.24} parent=5 // pred_check
      %p1266 = pneg %p1265
    $region38: #{spade_resnet_block_forward.24} parent=5 // pred_check_branch
      %1268 = sbr.rel (%p1266) target = $region40
    $region39: #{spade_resnet_block_forward.24} parent=5 // pred_region
      %s1269 = ssub.s32 %s9, 2
      // Predicated region
      $region41: #{spade_resnet_block_forward.24} parent=39 // pred_check
        %p1270 = pneg %p120
      $region42: #{spade_resnet_block_forward.24} parent=39 // pred_check_branch
        %1272 = sbr.rel (%p1270) target = $region44
      $region43: #{spade_resnet_block_forward.24} parent=39 // pred_region
        %s1273 = smul.u32 8, %s21
        %p1274 = scmp.lt.s32.totalorder %s20, 1
        %s1275 = scalar_select %p1274, %s20, 1
        %p1276 = scmp.lt.s32.totalorder %s1273, 15
        %s1277 = scalar_select %p1276, %s1273, 15
        %s1278 = smul.addr %s1277, 2
        %s1279 = smul.addr %s1275, 32
        %s1280 = sadd.s32 %s1278, %s1279
        %s1281 = smul.addr %s1280, 8
        %s1282 = scalar_lea.vmem %s3, %s1281
      $region44: #{spade_resnet_block_forward.24} parent=39 // pred_fallthru
        _
    $region40: #{spade_resnet_block_forward.24} parent=5 // pred_fallthru
      _
  $region6: #{spade_resnet_block_forward.24} parent=0 // loop_footer
    %s13 = sadd.s32 1, %s9
  $region7: #{spade_resnet_block_forward.24} parent=0 // loop_footer_branch
    %8 = sbr.rel target = $region3
  $region8: #{spade_resnet_block_forward.24} parent=0 // loop_exit
    _

// kernel: spade_resnet_block_forward.23
$region0: #{spade_resnet_block_forward.23}
  #allocation0 [shape = 'u32[]', space=smem, size = 0x4, offset = 0x4, fixed_abs, tag = 'smem constant byte address 0x4 - core index']
  #allocation1 [shape = 'u32[144,128]{1,0:T(1,128)}', space=vmem, size = 0x12000, scoped, tag = 'internal scratch']
  %s0 = inlined_call_operand.vmem [shape: f32[512,64], index: 0, kind: input, shape index: {}]
  %s1 = inlined_call_operand.vmem [shape: f32[1,64], index: 1, kind: output, shape index: {0}]
  %s2 = inlined_call_operand.vmem [shape: f32[1,64], index: 2, kind: output, shape index: {1}]
  %3 = xla_tuple %s1, %s2
  %s4 = sld [smem:[#allocation0]]
  $region49: #{spade_resnet_block_forward.23} parent=0
    _
  %s6 = ssub.s32 1, %s4
  %s7 = scalar_select 0, %s6, %s4
  loop: start=0, step=1, limit=4
  $region2: #{spade_resnet_block_forward.23} parent=0 // loop_pre_header
    _
  $region3: #{spade_resnet_block_forward.23} parent=0 // loop_header
    %s9 = sphi 0, %s13
    %p10 = scmp.ge.s32.totalorder %s9, 4
    %s19 = sphi 0, %s21
    %s22 = sphi 0, %s19
    %s23 = sphi 0, %s22
    %s39 = sphi 0, %s23
    %s43 = sphi 0, %s43
    %s45 = sphi 0, %s43
    %s46 = sphi 0, %s45
    %s60 = sphi 0, %s46
    %s64 = sphi 0, %s64
    %s66 = sphi 0, %s64
    %s67 = sphi 0, %s66
    %s81 = sphi 0, %s67
  $region4: #{spade_resnet_block_forward.23} parent=0 // loop_header_branch
    %12 = sbr.rel (%p10) target = $region8
  $region5: #{spade_resnet_block_forward.23} parent=0 // loop_body
    %s14 = ssub.s32 %s9, 1
    %s15 = ssub.s32 %s9, 2
    %s16 = sadd.s32 %s9, 1
    %s17 = ssub.s32 %s9, %s16
    %p18 = scmp.eq.s32.totalorder %s17, 0
    %s20 = sadd.s32 %s19, 1
    %s21 = scalar_select %p18, %s19, %s20
    %p24 = pneg %p18
    %p25 = scmp.eq.s32.totalorder %s9, 1
    %p26 = por %p24, %p25
    %p27 = scmp.ne.s32.totalorder %s19, %s22
    %p28 = scmp.eq.s32.totalorder %s9, 0
    %p29 = por %p27, %p28
    %p30 = scmp.ne.s32.totalorder %s19, %s22
    %p31 = scmp.eq.s32.totalorder %s14, 1
    %p32 = por %p30, %p31
    %p33 = scmp.ne.s32.totalorder %s22, %s23
    %p34 = scmp.eq.s32.totalorder %s14, 0
    %p35 = por %p33, %p34
    %p36 = scmp.ne.s32.totalorder %s22, %s23
    %p37 = scmp.eq.s32.totalorder %s15, 1
    %p38 = por %p36, %p37
    %p40 = scmp.ne.s32.totalorder %s23, %s39
    %p41 = scmp.eq.s32.totalorder %s15, 0
    %p42 = por %p40, %p41
    %s44 = sadd.s32 %s43, 1
    %p47 = scmp.eq.s32.totalorder %s9, 1
    %p48 = scmp.ne.s32.totalorder %s43, %s45
    %p49 = scmp.eq.s32.totalorder %s9, 0
    %p50 = por %p48, %p49
    %p51 = scmp.ne.s32.totalorder %s43, %s45
    %p52 = scmp.eq.s32.totalorder %s14, 1
    %p53 = por %p51, %p52
    %p54 = scmp.ne.s32.totalorder %s45, %s46
    %p55 = scmp.eq.s32.totalorder %s14, 0
    %p56 = por %p54, %p55
    %p57 = scmp.ne.s32.totalorder %s45, %s46
    %p58 = scmp.eq.s32.totalorder %s15, 1
    %p59 = por %p57, %p58
    %p61 = scmp.ne.s32.totalorder %s46, %s60
    %p62 = scmp.eq.s32.totalorder %s15, 0
    %p63 = por %p61, %p62
    %s65 = sadd.s32 %s64, 1
    %p68 = scmp.eq.s32.totalorder %s9, 1
    %p69 = scmp.ne.s32.totalorder %s64, %s66
    %p70 = scmp.eq.s32.totalorder %s9, 0
    %p71 = por %p69, %p70
    %p72 = scmp.ne.s32.totalorder %s64, %s66
    %p73 = scmp.eq.s32.totalorder %s14, 1
    %p74 = por %p72, %p73
    %p75 = scmp.ne.s32.totalorder %s66, %s67
    %p76 = scmp.eq.s32.totalorder %s14, 0
    %p77 = por %p75, %p76
    %p78 = scmp.ne.s32.totalorder %s66, %s67
    %p79 = scmp.eq.s32.totalorder %s15, 1
    %p80 = por %p78, %p79
    %p82 = scmp.ne.s32.totalorder %s67, %s81
    %p83 = scmp.eq.s32.totalorder %s15, 0
    %p84 = por %p82, %p83
    %p85 = scmp.le.s32.totalorder 1, %s9
    %p86 = scmp.lt.s32.totalorder %s9, 3
    %p87 = pnand %p85, %p86
    %p88 = pneg %p87
    // Predicated region
    $region9: #{spade_resnet_block_forward.23} parent=5 // pred_check
      _
    $region10: #{spade_resnet_block_forward.23} parent=5 // pred_check_branch
      %90 = sbr.rel (%p87) target = $region12
    $region11: #{spade_resnet_block_forward.23} parent=5 // pred_region
      %s91 = ssub.s32 %s9, 1
    $region12: #{spade_resnet_block_forward.23} parent=5 // pred_fallthru
      _
    %p92 = scmp.lt.s32.totalorder %s9, 2
    // Predicated region
    $region13: #{spade_resnet_block_forward.23} parent=5 // pred_check
      %p93 = pneg %p92
    $region14: #{spade_resnet_block_forward.23} parent=5 // pred_check_branch
      %95 = sbr.rel (%p93) target = $region16
    $region15: #{spade_resnet_block_forward.23} parent=5 // pred_region
      // Predicated region
      $region17: #{spade_resnet_block_forward.23} parent=15 // pred_check
        %p96 = pneg %p29
      $region18: #{spade_resnet_block_forward.23} parent=15 // pred_check_branch
        %98 = sbr.rel (%p96) target = $region20
      $region19: #{spade_resnet_block_forward.23} parent=15 // pred_region
        %s99 = smul.u32 32, %s9
        %p100 = scmp.lt.s32.totalorder %s99, 63
        %s101 = scalar_select %p100, %s99, 63
        %s102 = smul.addr %s101, 8
        %s103 = scalar_lea.vmem %s0, %s102
        %s104 = smul.u32 32, %s9
      $region20: #{spade_resnet_block_forward.23} parent=15 // pred_fallthru
        _
    $region16: #{spade_resnet_block_forward.23} parent=5 // pred_fallthru
      _
    %p105 = scmp.le.s32.totalorder 1, %s9
    %p106 = scmp.lt.s32.totalorder %s9, 3
    %p107 = pnand %p105, %p106
    %p108 = pneg %p107
    // Predicated region
    $region21: #{spade_resnet_block_forward.23} parent=5 // pred_check
      _
    $region22: #{spade_resnet_block_forward.23} parent=5 // pred_check_branch
      %110 = sbr.rel (%p107) target = $region24
    $region23: #{spade_resnet_block_forward.23} parent=5 // pred_region
      %s111 = ssub.s32 %s9, 1
      %s112 = smul.u32 32, %s14
      %p113 = scmp.lt.s32.totalorder %s112, 63
      %s114 = scalar_select %p113, %s112, 63
      %s115 = smul.addr %s114, 8
      %s116 = scalar_lea.vmem %s0, %s115
      %p117 = pneg %p35
      %p118 = pneg %p32
      %p119 = pneg %p56
      %p120 = pneg %p53
      %p121 = pneg %p77
      %p122 = pneg %p74
      %s123 = smul.u32 32, %s14
      %p124 = scmp.lt.s32.totalorder %s123, 63
      %s125 = scalar_select %p124, %s123, 63
      %s126 = smul.addr %s125, 8
      %s127 = scalar_lea.vmem %s0, %s126
      %s128 = smul.u32 32, %s14
      %p129 = scmp.eq.s32.totalorder %s14, 0
      // Predicated region
      $region25: #{spade_resnet_block_forward.23} parent=23 // pred_check
        %p130 = pneg %p129
      $region26: #{spade_resnet_block_forward.23} parent=23 // pred_check_branch
        %132 = sbr.rel (%p130) target = $region28
      $region27: #{spade_resnet_block_forward.23} parent=23 // pred_region
        %vm133 = vcmask 516096
        %134 = vst.msk [vmem:[%s1] sm:$0x1] %vm133, 0.0
        %135 = vst.msk [vmem:[%s2] sm:$0x1] %vm133, 0.0
      $region28: #{spade_resnet_block_forward.23} parent=23 // pred_fallthru
        _
      %v136 = vld [vmem:[%s127] sm:$0xff]
      %v137 = vld [vmem:[%s127 + $0x8] sm:$0xff]
      %v138 = vld [vmem:[%s127 + $0x10] sm:$0xff]
      %v139 = vld [vmem:[%s127 + $0x18] sm:$0xff]
      %v140 = vld [vmem:[%s127 + $0x20] sm:$0xff]
      %v141 = vld [vmem:[%s127 + $0x28] sm:$0xff]
      %v142 = vld [vmem:[%s127 + $0x30] sm:$0xff]
      %v143 = vld [vmem:[%s127 + $0x38] sm:$0xff]
      %v144 = vld [vmem:[%s127 + $0x40] sm:$0xff]
      %v145 = vld [vmem:[%s127 + $0x48] sm:$0xff]
      %v146 = vld [vmem:[%s127 + $0x50] sm:$0xff]
      %v147 = vld [vmem:[%s127 + $0x58] sm:$0xff]
      %v148 = vld [vmem:[%s127 + $0x60] sm:$0xff]
      %v149 = vld [vmem:[%s127 + $0x68] sm:$0xff]
      %v150 = vld [vmem:[%s127 + $0x70] sm:$0xff]
      %v151 = vld [vmem:[%s127 + $0x78] sm:$0xff]
      %v152 = vld [vmem:[%s127 + $0x80] sm:$0xff]
      %v153 = vld [vmem:[%s127 + $0x88] sm:$0xff]
      %v154 = vld [vmem:[%s127 + $0x90] sm:$0xff]
      %v155 = vld [vmem:[%s127 + $0x98] sm:$0xff]
      %v156 = vld [vmem:[%s127 + $0xa0] sm:$0xff]
      %v157 = vld [vmem:[%s127 + $0xa8] sm:$0xff]
      %v158 = vld [vmem:[%s127 + $0xb0] sm:$0xff]
      %v159 = vld [vmem:[%s127 + $0xb8] sm:$0xff]
      %v160 = vld [vmem:[%s127 + $0xc0] sm:$0xff]
      %v161 = vld [vmem:[%s127 + $0xc8] sm:$0xff]
      %v162 = vld [vmem:[%s127 + $0xd0] sm:$0xff]
      %v163 = vld [vmem:[%s127 + $0xd8] sm:$0xff]
      %v164 = vld [vmem:[%s127 + $0xe0] sm:$0xff]
      %v165 = vld [vmem:[%s127 + $0xe8] sm:$0xff]
      %v166 = vld [vmem:[%s127 + $0xf0] sm:$0xff]
      %v167 = vld [vmem:[%s127 + $0xf8] sm:$0xff]
      %v168 = vld [vmem:[%s1] sm:$0x1]
      %vm169 = vcmask 523264
      %v170 = vsel %vm169, %v136, 0.0
      %v171 = vsel %vm169, %v137, 0.0
      %v172 = vadd.f32 %v170, %v171
      %v173 = vsel %vm169, %v138, 0.0
      %v174 = vadd.f32 %v172, %v173
      %v175 = vsel %vm169, %v139, 0.0
      %v176 = vadd.f32 %v174, %v175
      %v177 = vsel %vm169, %v140, 0.0
      %v178 = vadd.f32 %v176, %v177
      %v179 = vsel %vm169, %v141, 0.0
      %v180 = vadd.f32 %v178, %v179
      %v181 = vsel %vm169, %v142, 0.0
      %v182 = vadd.f32 %v180, %v181
      %v183 = vsel %vm169, %v143, 0.0
      %v184 = vadd.f32 %v182, %v183
      %v185 = vsel %vm169, %v144, 0.0
      %v186 = vadd.f32 %v184, %v185
      %v187 = vsel %vm169, %v145, 0.0
      %v188 = vadd.f32 %v186, %v187
      %v189 = vsel %vm169, %v146, 0.0
      %v190 = vadd.f32 %v188, %v189
      %v191 = vsel %vm169, %v147, 0.0
      %v192 = vadd.f32 %v190, %v191
      %v193 = vsel %vm169, %v148, 0.0
      %v194 = vadd.f32 %v192, %v193
      %v195 = vsel %vm169, %v149, 0.0
      %v196 = vadd.f32 %v194, %v195
      %v197 = vsel %vm169, %v150, 0.0
      %v198 = vadd.f32 %v196, %v197
      %v199 = vsel %vm169, %v151, 0.0
      %v200 = vadd.f32 %v198, %v199
      %v201 = vsel %vm169, %v152, 0.0
      %v202 = vadd.f32 %v200, %v201
      %v203 = vsel %vm169, %v153, 0.0
      %v204 = vadd.f32 %v202, %v203
      %v205 = vsel %vm169, %v154, 0.0
      %v206 = vadd.f32 %v204, %v205
      %v207 = vsel %vm169, %v155, 0.0
      %v208 = vadd.f32 %v206, %v207
      %v209 = vsel %vm169, %v156, 0.0
      %v210 = vadd.f32 %v208, %v209
      %v211 = vsel %vm169, %v157, 0.0
      %v212 = vadd.f32 %v210, %v211
      %v213 = vsel %vm169, %v158, 0.0
      %v214 = vadd.f32 %v212, %v213
      %v215 = vsel %vm169, %v159, 0.0
      %v216 = vadd.f32 %v214, %v215
      %v217 = vsel %vm169, %v160, 0.0
      %v218 = vadd.f32 %v216, %v217
      %v219 = vsel %vm169, %v161, 0.0
      %v220 = vadd.f32 %v218, %v219
      %v221 = vsel %vm169, %v162, 0.0
      %v222 = vadd.f32 %v220, %v221
      %v223 = vsel %vm169, %v163, 0.0
      %v224 = vadd.f32 %v222, %v223
      %v225 = vsel %vm169, %v164, 0.0
      %v226 = vadd.f32 %v224, %v225
      %v227 = vsel %vm169, %v165, 0.0
      %v228 = vadd.f32 %v226, %v227
      %v229 = vsel %vm169, %v166, 0.0
      %v230 = vadd.f32 %v228, %v229
      %v231 = vsel %vm169, %v167, 0.0
      %v232 = vadd.f32 %v230, %v231
      %v233 = vrot.slane %v232, 4
      %v234 = vadd.f32 %v232, %v233
      %v235 = vrot.slane %v234, 2
      %v236 = vadd.f32 %v234, %v235
      %v237 = vrot.slane %v236, 1
      %v238 = vadd.f32 %v236, %v237
      %v239 = vadd.f32 %v168, %v238
      %vm240 = vcmask 516096
      %241 = vst.msk [vmem:[%s1] sm:$0x1] %vm240, %v239
      %v242 = vld [vmem:[%s2] sm:$0x1]
      %v243 = vmul.f32 %v136, %v136
      %v244 = vmul.f32 %v137, %v137
      %v245 = vmul.f32 %v138, %v138
      %v246 = vmul.f32 %v139, %v139
      %v247 = vmul.f32 %v140, %v140
      %v248 = vmul.f32 %v141, %v141
      %v249 = vmul.f32 %v142, %v142
      %v250 = vmul.f32 %v143, %v143
      %v251 = vmul.f32 %v144, %v144
      %v252 = vmul.f32 %v145, %v145
      %v253 = vmul.f32 %v146, %v146
      %v254 = vmul.f32 %v147, %v147
      %v255 = vmul.f32 %v148, %v148
      %v256 = vmul.f32 %v149, %v149
      %v257 = vmul.f32 %v150, %v150
      %v258 = vmul.f32 %v151, %v151
      %v259 = vmul.f32 %v152, %v152
      %v260 = vmul.f32 %v153, %v153
      %v261 = vmul.f32 %v154, %v154
      %v262 = vmul.f32 %v155, %v155
      %v263 = vmul.f32 %v156, %v156
      %v264 = vmul.f32 %v157, %v157
      %v265 = vmul.f32 %v158, %v158
      %v266 = vmul.f32 %v159, %v159
      %v267 = vmul.f32 %v160, %v160
      %v268 = vmul.f32 %v161, %v161
      %v269 = vmul.f32 %v162, %v162
      %v270 = vmul.f32 %v163, %v163
      %v271 = vmul.f32 %v164, %v164
      %v272 = vmul.f32 %v165, %v165
      %v273 = vmul.f32 %v166, %v166
      %v274 = vmul.f32 %v167, %v167
      %v275 = vsel %vm169, %v243, 0.0
      %v276 = vsel %vm169, %v244, 0.0
      %v277 = vadd.f32 %v275, %v276
      %v278 = vsel %vm169, %v245, 0.0
      %v279 = vadd.f32 %v277, %v278
      %v280 = vsel %vm169, %v246, 0.0
      %v281 = vadd.f32 %v279, %v280
      %v282 = vsel %vm169, %v247, 0.0
      %v283 = vadd.f32 %v281, %v282
      %v284 = vsel %vm169, %v248, 0.0
      %v285 = vadd.f32 %v283, %v284
      %v286 = vsel %vm169, %v249, 0.0
      %v287 = vadd.f32 %v285, %v286
      %v288 = vsel %vm169, %v250, 0.0
      %v289 = vadd.f32 %v287, %v288
      %v290 = vsel %vm169, %v251, 0.0
      %v291 = vadd.f32 %v289, %v290
      %v292 = vsel %vm169, %v252, 0.0
      %v293 = vadd.f32 %v291, %v292
      %v294 = vsel %vm169, %v253, 0.0
      %v295 = vadd.f32 %v293, %v294
      %v296 = vsel %vm169, %v254, 0.0
      %v297 = vadd.f32 %v295, %v296
      %v298 = vsel %vm169, %v255, 0.0
      %v299 = vadd.f32 %v297, %v298
      %v300 = vsel %vm169, %v256, 0.0
      %v301 = vadd.f32 %v299, %v300
      %v302 = vsel %vm169, %v257, 0.0
      %v303 = vadd.f32 %v301, %v302
      %v304 = vsel %vm169, %v258, 0.0
      %v305 = vadd.f32 %v303, %v304
      %v306 = vsel %vm169, %v259, 0.0
      %v307 = vadd.f32 %v305, %v306
      %v308 = vsel %vm169, %v260, 0.0
      %v309 = vadd.f32 %v307, %v308
      %v310 = vsel %vm169, %v261, 0.0
      %v311 = vadd.f32 %v309, %v310
      %v312 = vsel %vm169, %v262, 0.0
      %v313 = vadd.f32 %v311, %v312
      %v314 = vsel %vm169, %v263, 0.0
      %v315 = vadd.f32 %v313, %v314
      %v316 = vsel %vm169, %v264, 0.0
      %v317 = vadd.f32 %v315, %v316
      %v318 = vsel %vm169, %v265, 0.0
      %v319 = vadd.f32 %v317, %v318
      %v320 = vsel %vm169, %v266, 0.0
      %v321 = vadd.f32 %v319, %v320
      %v322 = vsel %vm169, %v267, 0.0
      %v323 = vadd.f32 %v321, %v322
      %v324 = vsel %vm169, %v268, 0.0
      %v325 = vadd.f32 %v323, %v324
      %v326 = vsel %vm169, %v269, 0.0
      %v327 = vadd.f32 %v325, %v326
      %v328 = vsel %vm169, %v270, 0.0
      %v329 = vadd.f32 %v327, %v328
      %v330 = vsel %vm169, %v271, 0.0
      %v331 = vadd.f32 %v329, %v330
      %v332 = vsel %vm169, %v272, 0.0
      %v333 = vadd.f32 %v331, %v332
      %v334 = vsel %vm169, %v273, 0.0
      %v335 = vadd.f32 %v333, %v334
      %v336 = vsel %vm169, %v274, 0.0
      %v337 = vadd.f32 %v335, %v336
      %v338 = vrot.slane %v337, 4
      %v339 = vadd.f32 %v337, %v338
      %v340 = vrot.slane %v339, 2
      %v341 = vadd.f32 %v339, %v340
      %v342 = vrot.slane %v341, 1
      %v343 = vadd.f32 %v341, %v342
      %v344 = vadd.f32 %v242, %v343
      %345 = vst.msk [vmem:[%s2] sm:$0x1] %vm240, %v344
      // Predicated region
      $region29: #{spade_resnet_block_forward.23} parent=23 // pred_check
        %p346 = pneg %p53
      $region30: #{spade_resnet_block_forward.23} parent=23 // pred_check_branch
        %348 = sbr.rel (%p346) target = $region32
      $region31: #{spade_resnet_block_forward.23} parent=23 // pred_region
        _
      $region32: #{spade_resnet_block_forward.23} parent=23 // pred_fallthru
        _
      // Predicated region
      $region33: #{spade_resnet_block_forward.23} parent=23 // pred_check
        %p349 = pneg %p74
      $region34: #{spade_resnet_block_forward.23} parent=23 // pred_check_branch
        %351 = sbr.rel (%p349) target = $region36
      $region35: #{spade_resnet_block_forward.23} parent=23 // pred_region
        _
      $region36: #{spade_resnet_block_forward.23} parent=23 // pred_fallthru
        _
      // Predicated region
      $region37: #{spade_resnet_block_forward.23} parent=23 // pred_check
        %p352 = pneg %p53
      $region38: #{spade_resnet_block_forward.23} parent=23 // pred_check_branch
        %354 = sbr.rel (%p352) target = $region40
      $region39: #{spade_resnet_block_forward.23} parent=23 // pred_region
        _
      $region40: #{spade_resnet_block_forward.23} parent=23 // pred_fallthru
        _
      // Predicated region
      $region41: #{spade_resnet_block_forward.23} parent=23 // pred_check
        %p355 = pneg %p74
      $region42: #{spade_resnet_block_forward.23} parent=23 // pred_check_branch
        %357 = sbr.rel (%p355) target = $region44
      $region43: #{spade_resnet_block_forward.23} parent=23 // pred_region
        _
      $region44: #{spade_resnet_block_forward.23} parent=23 // pred_fallthru
        _
    $region24: #{spade_resnet_block_forward.23} parent=5 // pred_fallthru
      _
    %p358 = scmp.le.s32.totalorder 2, %s9
    // Predicated region
    $region45: #{spade_resnet_block_forward.23} parent=5 // pred_check
      %p359 = pneg %p358
    $region46: #{spade_resnet_block_forward.23} parent=5 // pred_check_branch
      %361 = sbr.rel (%p359) target = $region48
    $region47: #{spade_resnet_block_forward.23} parent=5 // pred_region
      %s362 = ssub.s32 %s9, 2
    $region48: #{spade_resnet_block_forward.23} parent=5 // pred_fallthru
      _
  $region6: #{spade_resnet_block_forward.23} parent=0 // loop_footer
    %s13 = sadd.s32 1, %s9
  $region7: #{spade_resnet_block_forward.23} parent=0 // loop_footer_branch
    %8 = sbr.rel target = $region3
  $region8: #{spade_resnet_block_forward.23} parent=0 // loop_exit
    _

// kernel: spade_resnet_block_forward.25
$region0: #{spade_resnet_block_forward.25}
  #allocation0 [shape = 'u32[]', space=smem, size = 0x4, offset = 0x4, fixed_abs, tag = 'smem constant byte address 0x4 - core index']
  #allocation1 [shape = 'u32[144,128]{1,0:T(1,128)}', space=vmem, size = 0x12000, scoped, tag = 'internal scratch']
  %s0 = inlined_call_operand.vmem [shape: f32[2,18,18,128], index: 0, kind: input, shape index: {}]
  %s1 = inlined_call_operand.vmem [shape: bf16[1152,64], index: 1, kind: input, shape index: {}]
  %s2 = inlined_call_operand.vmem [shape: f32[1,64], index: 2, kind: input, shape index: {}]
  %s3 = inlined_call_operand.vmem [shape: f32[2,16,16,64], index: 3, kind: output, shape index: {}]
  %s4 = sld [smem:[#allocation0]]
  $region45: #{spade_resnet_block_forward.25} parent=0
    _
  %s6 = ssub.s32 1, %s4
  %s7 = scalar_select 0, %s6, %s4
  loop: start=0, step=1, limit=6
  $region2: #{spade_resnet_block_forward.25} parent=0 // loop_pre_header
    _
  $region3: #{spade_resnet_block_forward.25} parent=0 // loop_header
    %s9 = sphi 0, %s13
    %p10 = scmp.ge.s32.totalorder %s9, 6
    %s16 = sphi 0, %s28
    %s17 = sphi 0, %s24
    %s18 = sphi 0, %s16
    %s19 = sphi 0, %s17
    %s20 = sphi 0, %s18
    %s21 = sphi 0, %s19
    %s31 = sphi 0, %s33
    %s34 = sphi 0, %s31
    %s35 = sphi 0, %s34
    %s51 = sphi 0, %s35
    %s55 = sphi 0, %s55
    %s57 = sphi 0, %s55
    %s58 = sphi 0, %s57
    %s72 = sphi 0, %s58
    %s76 = sphi 0, %s76
    %s78 = sphi 0, %s76
    %s79 = sphi 0, %s78
    %s93 = sphi 0, %s79
    %s101 = sphi 0, %s103
    %s104 = sphi 0, %s101
    %s105 = sphi 0, %s104
    %s121 = sphi 0, %s105
  $region4: #{spade_resnet_block_forward.25} parent=0 // loop_header_branch
    %12 = sbr.rel (%p10) target = $region8
  $region5: #{spade_resnet_block_forward.25} parent=0 // loop_body
    %s14 = ssub.s32 %s9, 1
    %s15 = ssub.s32 %s9, 2
    %s22 = sadd.s32 1, %s17
    %p23 = scmp.ge.s32.totalorder %s22, 2
    %s24 = scalar_select %p23, 0, %s22
    %s25 = sadd.s32 1, %s16
    %s26 = scalar_select %p23, %s25, %s16
    %p27 = scmp.ge.s32.totalorder %s26, 2
    %s28 = scalar_select %p27, 0, %s26
    %s29 = ssub.s32 %s16, %s28
    %p30 = scmp.eq.s32.totalorder %s29, 0
    %s32 = sadd.s32 %s31, 1
    %s33 = scalar_select %p30, %s31, %s32
    %p36 = pneg %p30
    %p37 = scmp.eq.s32.totalorder %s9, 3
    %p38 = por %p36, %p37
    %p39 = scmp.ne.s32.totalorder %s31, %s34
    %p40 = scmp.eq.s32.totalorder %s9, 0
    %p41 = por %p39, %p40
    %p42 = scmp.ne.s32.totalorder %s31, %s34
    %p43 = scmp.eq.s32.totalorder %s14, 3
    %p44 = por %p42, %p43
    %p45 = scmp.ne.s32.totalorder %s34, %s35
    %p46 = scmp.eq.s32.totalorder %s14, 0
    %p47 = por %p45, %p46
    %p48 = scmp.ne.s32.totalorder %s34, %s35
    %p49 = scmp.eq.s32.totalorder %s15, 3
    %p50 = por %p48, %p49
    %p52 = scmp.ne.s32.totalorder %s35, %s51
    %p53 = scmp.eq.s32.totalorder %s15, 0
    %p54 = por %p52, %p53
    %s56 = sadd.s32 %s55, 1
    %p59 = scmp.eq.s32.totalorder %s9, 3
    %p60 = scmp.ne.s32.totalorder %s55, %s57
    %p61 = scmp.eq.s32.totalorder %s9, 0
    %p62 = por %p60, %p61
    %p63 = scmp.ne.s32.totalorder %s55, %s57
    %p64 = scmp.eq.s32.totalorder %s14, 3
    %p65 = por %p63, %p64
    %p66 = scmp.ne.s32.totalorder %s57, %s58
    %p67 = scmp.eq.s32.totalorder %s14, 0
    %p68 = por %p66, %p67
    %p69 = scmp.ne.s32.totalorder %s57, %s58
    %p70 = scmp.eq.s32.totalorder %s15, 3
    %p71 = por %p69, %p70
    %p73 = scmp.ne.s32.totalorder %s58, %s72
    %p74 = scmp.eq.s32.totalorder %s15, 0
    %p75 = por %p73, %p74
    %s77 = sadd.s32 %s76, 1
    %p80 = scmp.eq.s32.totalorder %s9, 3
    %p81 = scmp.ne.s32.totalorder %s76, %s78
    %p82 = scmp.eq.s32.totalorder %s9, 0
    %p83 = por %p81, %p82
    %p84 = scmp.ne.s32.totalorder %s76, %s78
    %p85 = scmp.eq.s32.totalorder %s14, 3
    %p86 = por %p84, %p85
    %p87 = scmp.ne.s32.totalorder %s78, %s79
    %p88 = scmp.eq.s32.totalorder %s14, 0
    %p89 = por %p87, %p88
    %p90 = scmp.ne.s32.totalorder %s78, %s79
    %p91 = scmp.eq.s32.totalorder %s15, 3
    %p92 = por %p90, %p91
    %p94 = scmp.ne.s32.totalorder %s79, %s93
    %p95 = scmp.eq.s32.totalorder %s15, 0
    %p96 = por %p94, %p95
    %s97 = ssub.s32 %s16, %s28
    %s98 = ssub.s32 %s17, %s24
    %s99 = sor.u32 %s97, %s98
    %p100 = scmp.eq.s32.totalorder %s99, 0
    %s102 = sadd.s32 %s101, 1
    %s103 = scalar_select %p100, %s101, %s102
    %p106 = pneg %p100
    %p107 = scmp.eq.s32.totalorder %s9, 3
    %p108 = por %p106, %p107
    %p109 = scmp.ne.s32.totalorder %s101, %s104
    %p110 = scmp.eq.s32.totalorder %s9, 0
    %p111 = por %p109, %p110
    %p112 = scmp.ne.s32.totalorder %s101, %s104
    %p113 = scmp.eq.s32.totalorder %s14, 3
    %p114 = por %p112, %p113
    %p115 = scmp.ne.s32.totalorder %s104, %s105
    %p116 = scmp.eq.s32.totalorder %s14, 0
    %p117 = por %p115, %p116
    %p118 = scmp.ne.s32.totalorder %s104, %s105
    %p119 = scmp.eq.s32.totalorder %s15, 3
    %p120 = por %p118, %p119
    %p122 = scmp.ne.s32.totalorder %s105, %s121
    %p123 = scmp.eq.s32.totalorder %s15, 0
    %p124 = por %p122, %p123
    %p125 = scmp.le.s32.totalorder 1, %s9
    %p126 = scmp.lt.s32.totalorder %s9, 5
    %p127 = pnand %p125, %p126
    %p128 = pneg %p127
    // Predicated region
    $region9: #{spade_resnet_block_forward.25} parent=5 // pred_check
      _
    $region10: #{spade_resnet_block_forward.25} parent=5 // pred_check_branch
      %130 = sbr.rel (%p127) target = $region12
    $region11: #{spade_resnet_block_forward.25} parent=5 // pred_region
      %s131 = ssub.s32 %s9, 1
      // Predicated region
      $region13: #{spade_resnet_block_forward.25} parent=11 // pred_check
        %p132 = pneg %p68
      $region14: #{spade_resnet_block_forward.25} parent=11 // pred_check_branch
        %134 = sbr.rel (%p132) target = $region16
      $region15: #{spade_resnet_block_forward.25} parent=11 // pred_region
        _
      $region16: #{spade_resnet_block_forward.25} parent=11 // pred_fallthru
        _
      // Predicated region
      $region17: #{spade_resnet_block_forward.25} parent=11 // pred_check
        %p135 = pneg %p89
      $region18: #{spade_resnet_block_forward.25} parent=11 // pred_check_branch
        %137 = sbr.rel (%p135) target = $region20
      $region19: #{spade_resnet_block_forward.25} parent=11 // pred_region
        _
      $region20: #{spade_resnet_block_forward.25} parent=11 // pred_fallthru
        _
    $region12: #{spade_resnet_block_forward.25} parent=5 // pred_fallthru
      _
    %p138 = scmp.lt.s32.totalorder %s9, 4
    // Predicated region
    $region21: #{spade_resnet_block_forward.25} parent=5 // pred_check
      %p139 = pneg %p138
    $region22: #{spade_resnet_block_forward.25} parent=5 // pred_check_branch
      %141 = sbr.rel (%p139) target = $region24
    $region23: #{spade_resnet_block_forward.25} parent=5 // pred_region
      // Predicated region
      $region25: #{spade_resnet_block_forward.25} parent=23 // pred_check
        %p142 = pneg %p41
      $region26: #{spade_resnet_block_forward.25} parent=23 // pred_check_branch
        %144 = sbr.rel (%p142) target = $region28
      $region27: #{spade_resnet_block_forward.25} parent=23 // pred_region
        %p145 = scmp.lt.s32.totalorder %s16, 1
        %s146 = scalar_select %p145, %s16, 1
        %s147 = smul.addr %s146, 54
        %s148 = smul.addr %s147, 8
        %s149 = scalar_lea.vmem %s0, %s148
      $region28: #{spade_resnet_block_forward.25} parent=23 // pred_fallthru
        _
    $region24: #{spade_resnet_block_forward.25} parent=5 // pred_fallthru
      _
    %p150 = scmp.le.s32.totalorder 1, %s9
    %p151 = scmp.lt.s32.totalorder %s9, 5
    %p152 = pnand %p150, %p151
    %p153 = pneg %p152
    // Predicated region
    $region29: #{spade_resnet_block_forward.25} parent=5 // pred_check
      _
    $region30: #{spade_resnet_block_forward.25} parent=5 // pred_check_branch
      %155 = sbr.rel (%p152) target = $region32
    $region31: #{spade_resnet_block_forward.25} parent=5 // pred_region
      %s156 = ssub.s32 %s9, 1
      %p157 = scmp.lt.s32.totalorder %s18, 1
      %s158 = scalar_select %p157, %s18, 1
      %s159 = smul.addr %s158, 54
      %s160 = smul.addr %s159, 8
      %s161 = scalar_lea.vmem %s0, %s160
      %p162 = pneg %p47
      %p163 = pneg %p44
      %p164 = pneg %p68
      %p165 = pneg %p65
      %p166 = pneg %p89
      %p167 = pneg %p86
      %p168 = pneg %p117
      %p169 = pneg %p114
      %s170 = smul.u32 8, %s19
      %p171 = scmp.lt.s32.totalorder %s18, 1
      %s172 = scalar_select %p171, %s18, 1
      %p173 = scmp.lt.s32.totalorder %s170, 15
      %s174 = scalar_select %p173, %s170, 15
      %s175 = smul.addr %s174, 2
      %s176 = smul.addr %s172, 32
      %s177 = sadd.s32 %s175, %s176
      %s178 = smul.addr %s177, 8
      %s179 = scalar_lea.vmem %s3, %s178
      %p180 = scmp.lt.s32.totalorder %s18, 1
      %s181 = scalar_select %p180, %s18, 1
      %s182 = smul.addr %s181, 54
      %s183 = smul.addr %s182, 8
      %s184 = scalar_lea.vmem %s0, %s183
      %s185 = smul.u32 8, %s19
      %p186 = scmp.lt.s32.totalorder %s18, 1
      %s187 = scalar_select %p186, %s18, 1
      %p188 = scmp.lt.s32.totalorder %s185, 15
      %s189 = scalar_select %p188, %s185, 15
      %s190 = smul.addr %s189, 2
      %s191 = smul.addr %s187, 32
      %s192 = sadd.s32 %s190, %s191
      %s193 = smul.addr %s192, 8
      %s194 = scalar_lea.vmem %s3, %s193
      %s195 = smul.u32 8, %s19
      %s197 = smul.u32 %s19, 8
      %s198 = smul.u32 %s197, 24
      %s199 = scalar_lea.vmem %s184, %s198
      %v200 = vld [vmem:[%s199] sm:$0xff]
      %v201 = vld [vmem:[%s199 + $0x8] sm:$0xff]
      %v202 = vld [vmem:[%s199 + $0x10] sm:$0x3]
      %v203 = vld [vmem:[%s199 + $0x18] sm:$0xff]
      %v204 = vld [vmem:[%s199 + $0x20] sm:$0xff]
      %v205 = vld [vmem:[%s199 + $0x28] sm:$0x3]
      %v206 = vld [vmem:[%s199 + $0x30] sm:$0xff]
      %v207 = vld [vmem:[%s199 + $0x38] sm:$0xff]
      %v208 = vld [vmem:[%s199 + $0x40] sm:$0x3]
      %v209 = vld [vmem:[%s199 + $0x48] sm:$0xff]
      %v210 = vld [vmem:[%s199 + $0x50] sm:$0xff]
      %v211 = vld [vmem:[%s199 + $0x58] sm:$0x3]
      %v212 = vld [vmem:[%s199 + $0x60] sm:$0xff]
      %v213 = vld [vmem:[%s199 + $0x68] sm:$0xff]
      %v214 = vld [vmem:[%s199 + $0x70] sm:$0x3]
      %v215 = vld [vmem:[%s199 + $0x78] sm:$0xff]
      %v216 = vld [vmem:[%s199 + $0x80] sm:$0xff]
      %v217 = vld [vmem:[%s199 + $0x88] sm:$0x3]
      %v218 = vld [vmem:[%s199 + $0x90] sm:$0xff]
      %v219 = vld [vmem:[%s199 + $0x98] sm:$0xff]
      %v220 = vld [vmem:[%s199 + $0xa0] sm:$0x3]
      %v221 = vld [vmem:[%s199 + $0xa8] sm:$0xff]
      %v222 = vld [vmem:[%s199 + $0xb0] sm:$0xff]
      %v223 = vld [vmem:[%s199 + $0xb8] sm:$0x3]
      %v224 = vld [vmem:[%s199 + $0xc0] sm:$0xff]
      %v225 = vld [vmem:[%s199 + $0xc8] sm:$0xff]
      %v226 = vld [vmem:[%s199 + $0xd0] sm:$0x3]
      %v227 = vld [vmem:[%s199 + $0xd8] sm:$0xff]
      %v228 = vld [vmem:[%s199 + $0xe0] sm:$0xff]
      %v229 = vld [vmem:[%s199 + $0xe8] sm:$0x3]
      %v230 = vpack.c.bf16 %v201, %v200
      %v231 = vpack.c.bf16 %v204, %v203
      %v232 = vpack.c.bf16 %v207, %v206
      %v233 = vpack.c.bf16 %v210, %v209
      %v234 = vpack.c.bf16 %v213, %v212
      %v235 = vpack.c.bf16 %v216, %v215
      %v236 = vpack.c.bf16 %v219, %v218
      %v237 = vpack.c.bf16 %v222, %v221
      %vm262 = vcmask 1046528
      %v263 = vrot.slane %v200, 1
      %v264 = vrot.slane %v201, 1
      %v265 = vsel %vm262, %v263, %v264
      %v266 = vrot.slane %v202, 1
      %v267 = vsel %vm262, %v264, %v266
      %v268 = vrot.slane %v203, 1
      %v269 = vrot.slane %v204, 1
      %v270 = vsel %vm262, %v268, %v269
      %v271 = vrot.slane %v205, 1
      %v272 = vsel %vm262, %v269, %v271
      %v273 = vrot.slane %v206, 1
      %v274 = vrot.slane %v207, 1
      %v275 = vsel %vm262, %v273, %v274
      %v276 = vrot.slane %v208, 1
      %v277 = vsel %vm262, %v274, %v276
      %v278 = vrot.slane %v209, 1
      %v279 = vrot.slane %v210, 1
      %v280 = vsel %vm262, %v278, %v279
      %v281 = vrot.slane %v211, 1
      %v282 = vsel %vm262, %v279, %v281
      %v283 = vrot.slane %v212, 1
      %v284 = vrot.slane %v213, 1
      %v285 = vsel %vm262, %v283, %v284
      %v286 = vrot.slane %v214, 1
      %v287 = vsel %vm262, %v284, %v286
      %v288 = vrot.slane %v215, 1
      %v289 = vrot.slane %v216, 1
      %v290 = vsel %vm262, %v288, %v289
      %v291 = vrot.slane %v217, 1
      %v292 = vsel %vm262, %v289, %v291
      %v293 = vrot.slane %v218, 1
      %v294 = vrot.slane %v219, 1
      %v295 = vsel %vm262, %v293, %v294
      %v296 = vrot.slane %v220, 1
      %v297 = vsel %vm262, %v294, %v296
      %v298 = vrot.slane %v221, 1
      %v299 = vrot.slane %v222, 1
      %v300 = vsel %vm262, %v298, %v299
      %v301 = vrot.slane %v223, 1
      %v302 = vsel %vm262, %v299, %v301
      %v319 = vpack.c.bf16 %v267, %v265
      %v320 = vpack.c.bf16 %v272, %v270
      %v321 = vpack.c.bf16 %v277, %v275
      %v322 = vpack.c.bf16 %v282, %v280
      %v323 = vpack.c.bf16 %v287, %v285
      %v324 = vpack.c.bf16 %v292, %v290
      %v325 = vpack.c.bf16 %v297, %v295
      %v326 = vpack.c.bf16 %v302, %v300
      %vm327 = vcmask 1045504
      %v328 = vrot.slane %v200, 2
      %v329 = vrot.slane %v201, 2
      %v330 = vsel %vm327, %v328, %v329
      %v331 = vrot.slane %v202, 2
      %v332 = vsel %vm327, %v329, %v331
      %v333 = vrot.slane %v203, 2
      %v334 = vrot.slane %v204, 2
      %v335 = vsel %vm327, %v333, %v334
      %v336 = vrot.slane %v205, 2
      %v337 = vsel %vm327, %v334, %v336
      %v338 = vrot.slane %v206, 2
      %v339 = vrot.slane %v207, 2
      %v340 = vsel %vm327, %v338, %v339
      %v341 = vrot.slane %v208, 2
      %v342 = vsel %vm327, %v339, %v341
      %v343 = vrot.slane %v209, 2
      %v344 = vrot.slane %v210, 2
      %v345 = vsel %vm327, %v343, %v344
      %v346 = vrot.slane %v211, 2
      %v347 = vsel %vm327, %v344, %v346
      %v348 = vrot.slane %v212, 2
      %v349 = vrot.slane %v213, 2
      %v350 = vsel %vm327, %v348, %v349
      %v351 = vrot.slane %v214, 2
      %v352 = vsel %vm327, %v349, %v351
      %v353 = vrot.slane %v215, 2
      %v354 = vrot.slane %v216, 2
      %v355 = vsel %vm327, %v353, %v354
      %v356 = vrot.slane %v217, 2
      %v357 = vsel %vm327, %v354, %v356
      %v358 = vrot.slane %v218, 2
      %v359 = vrot.slane %v219, 2
      %v360 = vsel %vm327, %v358, %v359
      %v361 = vrot.slane %v220, 2
      %v362 = vsel %vm327, %v359, %v361
      %v363 = vrot.slane %v221, 2
      %v364 = vrot.slane %v222, 2
      %v365 = vsel %vm327, %v363, %v364
      %v366 = vrot.slane %v223, 2
      %v367 = vsel %vm327, %v364, %v366
      %v384 = vpack.c.bf16 %v332, %v330
      %v385 = vpack.c.bf16 %v337, %v335
      %v386 = vpack.c.bf16 %v342, %v340
      %v387 = vpack.c.bf16 %v347, %v345
      %v388 = vpack.c.bf16 %v352, %v350
      %v389 = vpack.c.bf16 %v357, %v355
      %v390 = vpack.c.bf16 %v362, %v360
      %v391 = vpack.c.bf16 %v367, %v365
      %v392 = vpack.c.bf16 %v225, %v224
      %v396 = vrot.slane %v224, 1
      %v397 = vrot.slane %v225, 1
      %v398 = vsel %vm262, %v396, %v397
      %v399 = vrot.slane %v226, 1
      %v400 = vsel %vm262, %v397, %v399
      %v403 = vpack.c.bf16 %v400, %v398
      %v404 = vrot.slane %v224, 2
      %v405 = vrot.slane %v225, 2
      %v406 = vsel %vm327, %v404, %v405
      %v407 = vrot.slane %v226, 2
      %v408 = vsel %vm327, %v405, %v407
      %v411 = vpack.c.bf16 %v408, %v406
      %v412 = vpack.c.bf16 %v228, %v227
      %v416 = vrot.slane %v227, 1
      %v417 = vrot.slane %v228, 1
      %v418 = vsel %vm262, %v416, %v417
      %v419 = vrot.slane %v229, 1
      %v420 = vsel %vm262, %v417, %v419
      %v423 = vpack.c.bf16 %v420, %v418
      %v424 = vrot.slane %v227, 2
      %v425 = vrot.slane %v228, 2
      %v426 = vsel %vm327, %v424, %v425
      %v427 = vrot.slane %v229, 2
      %v428 = vsel %vm327, %v425, %v427
      %v431 = vpack.c.bf16 %v428, %v426
      %v432 = vld [vmem:[%s1] sm:$0xf]
      %v433 = vld [vmem:[%s1 + $0x4] sm:$0xf]
      %v434 = vld [vmem:[%s1 + $0x8] sm:$0xf]
      %v435 = vld [vmem:[%s1 + $0xc] sm:$0xf]
      %v436 = vld [vmem:[%s1 + $0x10] sm:$0xf]
      %v437 = vld [vmem:[%s1 + $0x14] sm:$0xf]
      %v438 = vld [vmem:[%s1 + $0x18] sm:$0xf]
      %v439 = vld [vmem:[%s1 + $0x1c] sm:$0xf]
      %v440 = vld [vmem:[%s1 + $0x20] sm:$0xf]
      %v441 = vld [vmem:[%s1 + $0x24] sm:$0xf]
      %v442 = vld [vmem:[%s1 + $0x28] sm:$0xf]
      %v443 = vld [vmem:[%s1 + $0x2c] sm:$0xf]
      %v444 = vld [vmem:[%s1 + $0x30] sm:$0xf]
      %v445 = vld [vmem:[%s1 + $0x34] sm:$0xf]
      %v446 = vld [vmem:[%s1 + $0x38] sm:$0xf]
      %v447 = vld [vmem:[%s1 + $0x3c] sm:$0xf]
      %v448 = vld [vmem:[%s1 + $0x40] sm:$0xf]
      %v449 = vld [vmem:[%s1 + $0x44] sm:$0xf]
      %v450 = vld [vmem:[%s1 + $0x48] sm:$0xf]
      %v451 = vld [vmem:[%s1 + $0x4c] sm:$0xf]
      %v452 = vld [vmem:[%s1 + $0x50] sm:$0xf]
      %v453 = vld [vmem:[%s1 + $0x54] sm:$0xf]
      %v454 = vld [vmem:[%s1 + $0x58] sm:$0xf]
      %v455 = vld [vmem:[%s1 + $0x5c] sm:$0xf]
      %v456 = vld [vmem:[%s1 + $0x60] sm:$0xf]
      %v457 = vld [vmem:[%s1 + $0x64] sm:$0xf]
      %v458 = vld [vmem:[%s1 + $0x68] sm:$0xf]
      %v459 = vld [vmem:[%s1 + $0x6c] sm:$0xf]
      %v460 = vld [vmem:[%s1 + $0x70] sm:$0xf]
      %v461 = vld [vmem:[%s1 + $0x74] sm:$0xf]
      %v462 = vld [vmem:[%s1 + $0x78] sm:$0xf]
      %v463 = vld [vmem:[%s1 + $0x7c] sm:$0xf]
      %v464 = vld [vmem:[%s1 + $0x80] sm:$0xf]
      %v465 = vld [vmem:[%s1 + $0x84] sm:$0xf]
      %v466 = vld [vmem:[%s1 + $0x88] sm:$0xf]
      %v467 = vld [vmem:[%s1 + $0x8c] sm:$0xf]
      %v468 = vld [vmem:[%s1 + $0x90] sm:$0xf]
      %v469 = vld [vmem:[%s1 + $0x94] sm:$0xf]
      %v470 = vld [vmem:[%s1 + $0x98] sm:$0xf]
      %v471 = vld [vmem:[%s1 + $0x9c] sm:$0xf]
      %v472 = vld [vmem:[%s1 + $0xa0] sm:$0xf]
      %v473 = vld [vmem:[%s1 + $0xa4] sm:$0xf]
      %v474 = vld [vmem:[%s1 + $0xa8] sm:$0xf]
      %v475 = vld [vmem:[%s1 + $0xac] sm:$0xf]
      %v476 = vld [vmem:[%s1 + $0xb0] sm:$0xf]
      %v477 = vld [vmem:[%s1 + $0xb4] sm:$0xf]
      %v478 = vld [vmem:[%s1 + $0xb8] sm:$0xf]
      %v479 = vld [vmem:[%s1 + $0xbc] sm:$0xf]
      %v480 = vld [vmem:[%s1 + $0xc0] sm:$0xf]
      %v481 = vld [vmem:[%s1 + $0xc4] sm:$0xf]
      %v482 = vld [vmem:[%s1 + $0xc8] sm:$0xf]
      %v483 = vld [vmem:[%s1 + $0xcc] sm:$0xf]
      %v484 = vld [vmem:[%s1 + $0xd0] sm:$0xf]
      %v485 = vld [vmem:[%s1 + $0xd4] sm:$0xf]
      %v486 = vld [vmem:[%s1 + $0xd8] sm:$0xf]
      %v487 = vld [vmem:[%s1 + $0xdc] sm:$0xf]
      %v488 = vld [vmem:[%s1 + $0xe0] sm:$0xf]
      %v489 = vld [vmem:[%s1 + $0xe4] sm:$0xf]
      %v490 = vld [vmem:[%s1 + $0xe8] sm:$0xf]
      %v491 = vld [vmem:[%s1 + $0xec] sm:$0xf]
      %v492 = vld [vmem:[%s1 + $0xf0] sm:$0xf]
      %v493 = vld [vmem:[%s1 + $0xf4] sm:$0xf]
      %v494 = vld [vmem:[%s1 + $0xf8] sm:$0xf]
      %v495 = vld [vmem:[%s1 + $0xfc] sm:$0xf]
      %v496 = vld [vmem:[%s1 + $0x100] sm:$0xf]
      %v497 = vld [vmem:[%s1 + $0x104] sm:$0xf]
      %v498 = vld [vmem:[%s1 + $0x108] sm:$0xf]
      %v499 = vld [vmem:[%s1 + $0x10c] sm:$0xf]
      %v500 = vld [vmem:[%s1 + $0x110] sm:$0xf]
      %v501 = vld [vmem:[%s1 + $0x114] sm:$0xf]
      %v502 = vld [vmem:[%s1 + $0x118] sm:$0xf]
      %v503 = vld [vmem:[%s1 + $0x11c] sm:$0xf]
      %v504 = vld [vmem:[%s1 + $0x120] sm:$0xf]
      %v505 = vld [vmem:[%s1 + $0x124] sm:$0xf]
      %v506 = vld [vmem:[%s1 + $0x128] sm:$0xf]
      %v507 = vld [vmem:[%s1 + $0x12c] sm:$0xf]
      %v508 = vld [vmem:[%s1 + $0x130] sm:$0xf]
      %v509 = vld [vmem:[%s1 + $0x134] sm:$0xf]
      %v510 = vld [vmem:[%s1 + $0x138] sm:$0xf]
      %v511 = vld [vmem:[%s1 + $0x13c] sm:$0xf]
      %v512 = vld [vmem:[%s1 + $0x140] sm:$0xf]
      %v513 = vld [vmem:[%s1 + $0x144] sm:$0xf]
      %v514 = vld [vmem:[%s1 + $0x148] sm:$0xf]
      %v515 = vld [vmem:[%s1 + $0x14c] sm:$0xf]
      %v516 = vld [vmem:[%s1 + $0x150] sm:$0xf]
      %v517 = vld [vmem:[%s1 + $0x154] sm:$0xf]
      %v518 = vld [vmem:[%s1 + $0x158] sm:$0xf]
      %v519 = vld [vmem:[%s1 + $0x15c] sm:$0xf]
      %v520 = vld [vmem:[%s1 + $0x160] sm:$0xf]
      %v521 = vld [vmem:[%s1 + $0x164] sm:$0xf]
      %v522 = vld [vmem:[%s1 + $0x168] sm:$0xf]
      %v523 = vld [vmem:[%s1 + $0x16c] sm:$0xf]
      %v524 = vld [vmem:[%s1 + $0x170] sm:$0xf]
      %v525 = vld [vmem:[%s1 + $0x174] sm:$0xf]
      %v526 = vld [vmem:[%s1 + $0x178] sm:$0xf]
      %v527 = vld [vmem:[%s1 + $0x17c] sm:$0xf]
      %v528 = vld [vmem:[%s1 + $0x180] sm:$0xf]
      %v529 = vld [vmem:[%s1 + $0x184] sm:$0xf]
      %v530 = vld [vmem:[%s1 + $0x188] sm:$0xf]
      %v531 = vld [vmem:[%s1 + $0x18c] sm:$0xf]
      %v532 = vld [vmem:[%s1 + $0x190] sm:$0xf]
      %v533 = vld [vmem:[%s1 + $0x194] sm:$0xf]
      %v534 = vld [vmem:[%s1 + $0x198] sm:$0xf]
      %v535 = vld [vmem:[%s1 + $0x19c] sm:$0xf]
      %v536 = vld [vmem:[%s1 + $0x1a0] sm:$0xf]
      %v537 = vld [vmem:[%s1 + $0x1a4] sm:$0xf]
      %v538 = vld [vmem:[%s1 + $0x1a8] sm:$0xf]
      %v539 = vld [vmem:[%s1 + $0x1ac] sm:$0xf]
      %v540 = vld [vmem:[%s1 + $0x1b0] sm:$0xf]
      %v541 = vld [vmem:[%s1 + $0x1b4] sm:$0xf]
      %v542 = vld [vmem:[%s1 + $0x1b8] sm:$0xf]
      %v543 = vld [vmem:[%s1 + $0x1bc] sm:$0xf]
      %v544 = vld [vmem:[%s1 + $0x1c0] sm:$0xf]
      %v545 = vld [vmem:[%s1 + $0x1c4] sm:$0xf]
      %v546 = vld [vmem:[%s1 + $0x1c8] sm:$0xf]
      %v547 = vld [vmem:[%s1 + $0x1cc] sm:$0xf]
      %v548 = vld [vmem:[%s1 + $0x1d0] sm:$0xf]
      %v549 = vld [vmem:[%s1 + $0x1d4] sm:$0xf]
      %v550 = vld [vmem:[%s1 + $0x1d8] sm:$0xf]
      %v551 = vld [vmem:[%s1 + $0x1dc] sm:$0xf]
      %v552 = vld [vmem:[%s1 + $0x1e0] sm:$0xf]
      %v553 = vld [vmem:[%s1 + $0x1e4] sm:$0xf]
      %v554 = vld [vmem:[%s1 + $0x1e8] sm:$0xf]
      %v555 = vld [vmem:[%s1 + $0x1ec] sm:$0xf]
      %v556 = vld [vmem:[%s1 + $0x1f0] sm:$0xf]
      %v557 = vld [vmem:[%s1 + $0x1f4] sm:$0xf]
      %v558 = vld [vmem:[%s1 + $0x1f8] sm:$0xf]
      %v559 = vld [vmem:[%s1 + $0x1fc] sm:$0xf]
      %v560 = vld [vmem:[%s1 + $0x200] sm:$0xf]
      %v561 = vld [vmem:[%s1 + $0x204] sm:$0xf]
      %v562 = vld [vmem:[%s1 + $0x208] sm:$0xf]
      %v563 = vld [vmem:[%s1 + $0x20c] sm:$0xf]
      %v564 = vld [vmem:[%s1 + $0x210] sm:$0xf]
      %v565 = vld [vmem:[%s1 + $0x214] sm:$0xf]
      %v566 = vld [vmem:[%s1 + $0x218] sm:$0xf]
      %v567 = vld [vmem:[%s1 + $0x21c] sm:$0xf]
      %v568 = vld [vmem:[%s1 + $0x220] sm:$0xf]
      %v569 = vld [vmem:[%s1 + $0x224] sm:$0xf]
      %v570 = vld [vmem:[%s1 + $0x228] sm:$0xf]
      %v571 = vld [vmem:[%s1 + $0x22c] sm:$0xf]
      %v572 = vld [vmem:[%s1 + $0x230] sm:$0xf]
      %v573 = vld [vmem:[%s1 + $0x234] sm:$0xf]
      %v574 = vld [vmem:[%s1 + $0x238] sm:$0xf]
      %v575 = vld [vmem:[%s1 + $0x23c] sm:$0xf]
      %v576 = vld [vmem:[%s2] sm:$0x1]
      %v578 = vlaneseq
      %v579 = vshrl.u32 %v578, 7
      %v580 = vsub.s32 0, %v579
      %v581 = vrot.slane %v576, %v580
      %v727 = vunpack.c.l.b16 %v432
      %v728 = vunpack.c.l.b16 %v433
      %v729 = vunpack.c.l.b16 %v434
      %v730 = vunpack.c.l.b16 %v435
      %v731 = vunpack.c.l.b16 %v436
      %v732 = vunpack.c.l.b16 %v437
      %v733 = vunpack.c.l.b16 %v438
      %v734 = vunpack.c.l.b16 %v439
      %v735 = vunpack.c.l.b16 %v440
      %v736 = vunpack.c.l.b16 %v441
      %v737 = vunpack.c.l.b16 %v442
      %v738 = vunpack.c.l.b16 %v443
      %v739 = vunpack.c.l.b16 %v444
      %v740 = vunpack.c.l.b16 %v445
      %v741 = vunpack.c.l.b16 %v446
      %v742 = vunpack.c.l.b16 %v447
      %v743 = vunpack.c.l.b16 %v448
      %v744 = vunpack.c.l.b16 %v449
      %v745 = vunpack.c.l.b16 %v450
      %v746 = vunpack.c.l.b16 %v451
      %v747 = vunpack.c.l.b16 %v452
      %v748 = vunpack.c.l.b16 %v453
      %v749 = vunpack.c.l.b16 %v454
      %v750 = vunpack.c.l.b16 %v455
      %v751 = vunpack.c.l.b16 %v456
      %v752 = vunpack.c.l.b16 %v457
      %v753 = vunpack.c.l.b16 %v458
      %v754 = vunpack.c.l.b16 %v459
      %v755 = vunpack.c.l.b16 %v460
      %v756 = vunpack.c.l.b16 %v461
      %v757 = vunpack.c.l.b16 %v462
      %v758 = vunpack.c.l.b16 %v463
      %v759 = vunpack.c.l.b16 %v464
      %v760 = vunpack.c.l.b16 %v465
      %v761 = vunpack.c.l.b16 %v466
      %v762 = vunpack.c.l.b16 %v467
      %v763 = vunpack.c.l.b16 %v468
      %v764 = vunpack.c.l.b16 %v469
      %v765 = vunpack.c.l.b16 %v470
      %v766 = vunpack.c.l.b16 %v471
      %v767 = vunpack.c.l.b16 %v472
      %v768 = vunpack.c.l.b16 %v473
      %v769 = vunpack.c.l.b16 %v474
      %v770 = vunpack.c.l.b16 %v475
      %v771 = vunpack.c.l.b16 %v476
      %v772 = vunpack.c.l.b16 %v477
      %v773 = vunpack.c.l.b16 %v478
      %v774 = vunpack.c.l.b16 %v479
      %v775 = vunpack.c.l.b16 %v480
      %v776 = vunpack.c.l.b16 %v481
      %v777 = vunpack.c.l.b16 %v482
      %v778 = vunpack.c.l.b16 %v483
      %v779 = vunpack.c.l.b16 %v484
      %v780 = vunpack.c.l.b16 %v485
      %v781 = vunpack.c.l.b16 %v486
      %v782 = vunpack.c.l.b16 %v487
      %v783 = vunpack.c.l.b16 %v488
      %v784 = vunpack.c.l.b16 %v489
      %v785 = vunpack.c.l.b16 %v490
      %v786 = vunpack.c.l.b16 %v491
      %v787 = vunpack.c.l.b16 %v492
      %v788 = vunpack.c.l.b16 %v493
      %v789 = vunpack.c.l.b16 %v494
      %v790 = vunpack.c.l.b16 %v495
      %v791 = vunpack.c.l.b16 %v496
      %v792 = vunpack.c.l.b16 %v497
      %v793 = vunpack.c.l.b16 %v498
      %v794 = vunpack.c.l.b16 %v499
      %v795 = vunpack.c.l.b16 %v500
      %v796 = vunpack.c.l.b16 %v501
      %v797 = vunpack.c.l.b16 %v502
      %v798 = vunpack.c.l.b16 %v503
      %v799 = vunpack.c.l.b16 %v504
      %v800 = vunpack.c.l.b16 %v505
      %v801 = vunpack.c.l.b16 %v506
      %v802 = vunpack.c.l.b16 %v507
      %v803 = vunpack.c.l.b16 %v508
      %v804 = vunpack.c.l.b16 %v509
      %v805 = vunpack.c.l.b16 %v510
      %v806 = vunpack.c.l.b16 %v511
      %v807 = vunpack.c.l.b16 %v512
      %v808 = vunpack.c.l.b16 %v513
      %v809 = vunpack.c.l.b16 %v514
      %v810 = vunpack.c.l.b16 %v515
      %v811 = vunpack.c.l.b16 %v516
      %v812 = vunpack.c.l.b16 %v517
      %v813 = vunpack.c.l.b16 %v518
      %v814 = vunpack.c.l.b16 %v519
      %v815 = vunpack.c.l.b16 %v520
      %v816 = vunpack.c.l.b16 %v521
      %v817 = vunpack.c.l.b16 %v522
      %v818 = vunpack.c.l.b16 %v523
      %v819 = vunpack.c.l.b16 %v524
      %v820 = vunpack.c.l.b16 %v525
      %v821 = vunpack.c.l.b16 %v526
      %v822 = vunpack.c.l.b16 %v527
      %v823 = vunpack.c.l.b16 %v528
      %v824 = vunpack.c.l.b16 %v529
      %v825 = vunpack.c.l.b16 %v530
      %v826 = vunpack.c.l.b16 %v531
      %v827 = vunpack.c.l.b16 %v532
      %v828 = vunpack.c.l.b16 %v533
      %v829 = vunpack.c.l.b16 %v534
      %v830 = vunpack.c.l.b16 %v535
      %v831 = vunpack.c.l.b16 %v536
      %v832 = vunpack.c.l.b16 %v537
      %v833 = vunpack.c.l.b16 %v538
      %v834 = vunpack.c.l.b16 %v539
      %v835 = vunpack.c.l.b16 %v540
      %v836 = vunpack.c.l.b16 %v541
      %v837 = vunpack.c.l.b16 %v542
      %v838 = vunpack.c.l.b16 %v543
      %v839 = vunpack.c.l.b16 %v544
      %v840 = vunpack.c.l.b16 %v545
      %v841 = vunpack.c.l.b16 %v546
      %v842 = vunpack.c.l.b16 %v547
      %v843 = vunpack.c.l.b16 %v548
      %v844 = vunpack.c.l.b16 %v549
      %v845 = vunpack.c.l.b16 %v550
      %v846 = vunpack.c.l.b16 %v551
      %v847 = vunpack.c.l.b16 %v552
      %v848 = vunpack.c.l.b16 %v553
      %v849 = vunpack.c.l.b16 %v554
      %v850 = vunpack.c.l.b16 %v555
      %v851 = vunpack.c.l.b16 %v556
      %v852 = vunpack.c.l.b16 %v557
      %v853 = vunpack.c.l.b16 %v558
      %v854 = vunpack.c.l.b16 %v559
      %v855 = vunpack.c.l.b16 %v560
      %v856 = vunpack.c.l.b16 %v561
      %v857 = vunpack.c.l.b16 %v562
      %v858 = vunpack.c.l.b16 %v563
      %v859 = vunpack.c.l.b16 %v564
      %v860 = vunpack.c.l.b16 %v565
      %v861 = vunpack.c.l.b16 %v566
      %v862 = vunpack.c.l.b16 %v567
      %v863 = vunpack.c.l.b16 %v568
      %v864 = vunpack.c.l.b16 %v569
      %v865 = vunpack.c.l.b16 %v570
      %v866 = vunpack.c.l.b16 %v571
      %v867 = vunpack.c.l.b16 %v572
      %v868 = vunpack.c.l.b16 %v573
      %v869 = vunpack.c.l.b16 %v574
      %v870 = vunpack.c.l.b16 %v575
      %v871 = vpack.c.b16 %v728, %v727
      %v872 = vpack.c.b16 %v730, %v729
      %v873 = vpack.c.b16 %v732, %v731
      %v874 = vpack.c.b16 %v734, %v733
      %v875 = vpack.c.b16 %v736, %v735
      %v876 = vpack.c.b16 %v738, %v737
      %v877 = vpack.c.b16 %v740, %v739
      %v878 = vpack.c.b16 %v742, %v741
      %v879 = vpack.c.b16 %v744, %v743
      %v880 = vpack.c.b16 %v746, %v745
      %v881 = vpack.c.b16 %v748, %v747
      %v882 = vpack.c.b16 %v750, %v749
      %v883 = vpack.c.b16 %v752, %v751
      %v884 = vpack.c.b16 %v754, %v753
      %v885 = vpack.c.b16 %v756, %v755
      %v886 = vpack.c.b16 %v758, %v757
      %v887 = vpack.c.b16 %v760, %v759
      %v888 = vpack.c.b16 %v762, %v761
      %v889 = vpack.c.b16 %v764, %v763
      %v890 = vpack.c.b16 %v766, %v765
      %v891 = vpack.c.b16 %v768, %v767
      %v892 = vpack.c.b16 %v770, %v769
      %v893 = vpack.c.b16 %v772, %v771
      %v894 = vpack.c.b16 %v774, %v773
      %v895 = vpack.c.b16 %v776, %v775
      %v896 = vpack.c.b16 %v778, %v777
      %v897 = vpack.c.b16 %v780, %v779
      %v898 = vpack.c.b16 %v782, %v781
      %v899 = vpack.c.b16 %v784, %v783
      %v900 = vpack.c.b16 %v786, %v785
      %v901 = vpack.c.b16 %v788, %v787
      %v902 = vpack.c.b16 %v790, %v789
      %v903 = vpack.c.b16 %v792, %v791
      %v904 = vpack.c.b16 %v794, %v793
      %v905 = vpack.c.b16 %v796, %v795
      %v906 = vpack.c.b16 %v798, %v797
      %v907 = vpack.c.b16 %v800, %v799
      %v908 = vpack.c.b16 %v802, %v801
      %v909 = vpack.c.b16 %v804, %v803
      %v910 = vpack.c.b16 %v806, %v805
      %v911 = vpack.c.b16 %v808, %v807
      %v912 = vpack.c.b16 %v810, %v809
      %v913 = vpack.c.b16 %v812, %v811
      %v914 = vpack.c.b16 %v814, %v813
      %v915 = vpack.c.b16 %v816, %v815
      %v916 = vpack.c.b16 %v818, %v817
      %v917 = vpack.c.b16 %v820, %v819
      %v918 = vpack.c.b16 %v822, %v821
      %v919 = vpack.c.b16 %v824, %v823
      %v920 = vpack.c.b16 %v826, %v825
      %v921 = vpack.c.b16 %v828, %v827
      %v922 = vpack.c.b16 %v830, %v829
      %v923 = vpack.c.b16 %v832, %v831
      %v924 = vpack.c.b16 %v834, %v833
      %v925 = vpack.c.b16 %v836, %v835
      %v926 = vpack.c.b16 %v838, %v837
      %v927 = vpack.c.b16 %v840, %v839
      %v928 = vpack.c.b16 %v842, %v841
      %v929 = vpack.c.b16 %v844, %v843
      %v930 = vpack.c.b16 %v846, %v845
      %v931 = vpack.c.b16 %v848, %v847
      %v932 = vpack.c.b16 %v850, %v849
      %v933 = vpack.c.b16 %v852, %v851
      %v934 = vpack.c.b16 %v854, %v853
      %v935 = vpack.c.b16 %v856, %v855
      %v936 = vpack.c.b16 %v858, %v857
      %v937 = vpack.c.b16 %v860, %v859
      %v938 = vpack.c.b16 %v862, %v861
      %v939 = vpack.c.b16 %v864, %v863
      %v940 = vpack.c.b16 %v866, %v865
      %v941 = vpack.c.b16 %v868, %v867
      %v942 = vpack.c.b16 %v870, %v869
      %1015 = vmatprep.subr.bf16.mxu0 0
      %1016 = vmatpush1.bf16.msra.mxu0 %v871
      %1017 = vmatprep.subr.bf16.mxu0 0
      %1018 = vmatpush1.bf16.msra.mxu0 %v872
      %1019 = vmatprep.subr.bf16.mxu0 0
      %1020 = vmatpush1.bf16.msra.mxu0 %v873
      %1021 = vmatprep.subr.bf16.mxu0 0
      %1022 = vmatpush1.bf16.msra.mxu0 %v874
      %1023 = vmatprep.subr.bf16.mxu0 0
      %1024 = vmatpush1.bf16.msra.mxu0 %v875
      %1025 = vmatprep.subr.bf16.mxu0 0
      %1026 = vmatpush1.bf16.msra.mxu0 %v876
      %1027 = vmatprep.subr.bf16.mxu0 0
      %1028 = vmatpush1.bf16.msra.mxu0 %v877
      %1029 = vmatprep.subr.bf16.mxu0 0
      %1030 = vmatpush1.bf16.msra.mxu0 %v878
      %1031 = vmatprep.subr.bf16.mxu0 0
      %1032 = vmatpush1.bf16.msra.mxu0 %v879
      %1033 = vmatprep.subr.bf16.mxu0 0
      %1034 = vmatpush1.bf16.msra.mxu0 %v880
      %1035 = vmatprep.subr.bf16.mxu0 0
      %1036 = vmatpush1.bf16.msra.mxu0 %v881
      %1037 = vmatprep.subr.bf16.mxu0 0
      %1038 = vmatpush1.bf16.msra.mxu0 %v882
      %1039 = vmatprep.subr.bf16.mxu0 0
      %1040 = vmatpush1.bf16.msra.mxu0 %v883
      %1041 = vmatprep.subr.bf16.mxu0 0
      %1042 = vmatpush1.bf16.msra.mxu0 %v884
      %1043 = vmatprep.subr.bf16.mxu0 0
      %1044 = vmatpush1.bf16.msra.mxu0 %v885
      %1045 = vmatprep.subr.bf16.mxu0 0
      %1046 = vmatpush1.bf16.msra.mxu0 %v886
      %1047 = vmatprep.mubr.bf16.mxu0 %v319
      %1048 = vmatmul.mubr.bf16.gmra.mrb[0].mxu0 %v230
      %v1049 = vpop.f32.mrb[0].mxu0
      %v1050 = vadd.f32 %v581, %v1049
      %v1051 = vpop.f32.mrb[0].mxu0
      %v1052 = vpop.f32.mrb[0].mxu0
      %v1053 = vadd.f32 %v581, %v1052
      %v1054 = vpop.f32.mrb[0].mxu0
      %1055 = vmatprep.mubr.bf16.mxu0 %v320
      %1056 = vmatmul.mubr.bf16.gmra.mrb[0].mxu0 %v231
      %v1057 = vpop.f32.mrb[0].mxu0
      %v1058 = vadd.f32 %v581, %v1057
      %v1059 = vpop.f32.mrb[0].mxu0
      %v1060 = vpop.f32.mrb[0].mxu0
      %v1061 = vadd.f32 %v581, %v1060
      %v1062 = vpop.f32.mrb[0].mxu0
      %1063 = vmatprep.mubr.bf16.mxu0 %v321
      %1064 = vmatmul.mubr.bf16.gmra.mrb[0].mxu0 %v232
      %v1065 = vpop.f32.mrb[0].mxu0
      %v1066 = vadd.f32 %v581, %v1065
      %v1067 = vpop.f32.mrb[0].mxu0
      %v1068 = vpop.f32.mrb[0].mxu0
      %v1069 = vadd.f32 %v581, %v1068
      %v1070 = vpop.f32.mrb[0].mxu0
      %1071 = vmatprep.mubr.bf16.mxu0 %v322
      %1072 = vmatmul.mubr.bf16.gmra.mrb[0].mxu0 %v233
      %v1073 = vpop.f32.mrb[0].mxu0
      %v1074 = vadd.f32 %v581, %v1073
      %v1075 = vpop.f32.mrb[0].mxu0
      %v1076 = vpop.f32.mrb[0].mxu0
      %v1077 = vadd.f32 %v581, %v1076
      %v1078 = vpop.f32.mrb[0].mxu0
      %1079 = vmatprep.mubr.bf16.mxu0 %v323
      %1080 = vmatmul.mubr.bf16.gmra.mrb[0].mxu0 %v234
      %v1081 = vpop.f32.mrb[0].mxu0
      %v1082 = vadd.f32 %v581, %v1081
      %v1083 = vpop.f32.mrb[0].mxu0
      %v1084 = vpop.f32.mrb[0].mxu0
      %v1085 = vadd.f32 %v581, %v1084
      %v1086 = vpop.f32.mrb[0].mxu0
      %1087 = vmatprep.mubr.bf16.mxu0 %v324
      %1088 = vmatmul.mubr.bf16.gmra.mrb[0].mxu0 %v235
      %v1089 = vpop.f32.mrb[0].mxu0
      %v1090 = vadd.f32 %v581, %v1089
      %v1091 = vpop.f32.mrb[0].mxu0
      %v1092 = vpop.f32.mrb[0].mxu0
      %v1093 = vadd.f32 %v581, %v1092
      %v1094 = vpop.f32.mrb[0].mxu0
      %1095 = vmatprep.mubr.bf16.mxu0 %v325
      %1096 = vmatmul.mubr.bf16.gmra.mrb[0].mxu0 %v236
      %v1097 = vpop.f32.mrb[0].mxu0
      %v1098 = vadd.f32 %v581, %v1097
      %v1099 = vpop.f32.mrb[0].mxu0
      %v1100 = vpop.f32.mrb[0].mxu0
      %v1101 = vadd.f32 %v581, %v1100
      %v1102 = vpop.f32.mrb[0].mxu0
      %1103 = vmatprep.mubr.bf16.mxu0 %v326
      %1104 = vmatmul.mubr.bf16.gmra.mrb[0].mxu0 %v237
      %v1105 = vpop.f32.mrb[0].mxu0
      %v1106 = vadd.f32 %v581, %v1105
      %v1107 = vpop.f32.mrb[0].mxu0
      %v1108 = vpop.f32.mrb[0].mxu0
      %v1109 = vadd.f32 %v581, %v1108
      %v1110 = vpop.f32.mrb[0].mxu0
      %1111 = vdwg.mxu0
      %1112 = vmatprep.subr.bf16.mxu0 0
      %1113 = vmatpush1.bf16.msra.mxu0 %v887
      %1114 = vmatprep.subr.bf16.mxu0 0
      %1115 = vmatpush1.bf16.msra.mxu0 %v888
      %1116 = vmatprep.subr.bf16.mxu0 0
      %1117 = vmatpush1.bf16.msra.mxu0 %v889
      %1118 = vmatprep.subr.bf16.mxu0 0
      %1119 = vmatpush1.bf16.msra.mxu0 %v890
      %1120 = vmatprep.subr.bf16.mxu0 0
      %1121 = vmatpush1.bf16.msra.mxu0 %v891
      %1122 = vmatprep.subr.bf16.mxu0 0
      %1123 = vmatpush1.bf16.msra.mxu0 %v892
      %1124 = vmatprep.subr.bf16.mxu0 0
      %1125 = vmatpush1.bf16.msra.mxu0 %v893
      %1126 = vmatprep.subr.bf16.mxu0 0
      %1127 = vmatpush1.bf16.msra.mxu0 %v894
      %1128 = vmatprep.subr.bf16.mxu0 0
      %1129 = vmatpush1.bf16.msra.mxu0 %v895
      %1130 = vmatprep.subr.bf16.mxu0 0
      %1131 = vmatpush1.bf16.msra.mxu0 %v896
      %1132 = vmatprep.subr.bf16.mxu0 0
      %1133 = vmatpush1.bf16.msra.mxu0 %v897
      %1134 = vmatprep.subr.bf16.mxu0 0
      %1135 = vmatpush1.bf16.msra.mxu0 %v898
      %1136 = vmatprep.subr.bf16.mxu0 0
      %1137 = vmatpush1.bf16.msra.mxu0 %v899
      %1138 = vmatprep.subr.bf16.mxu0 0
      %1139 = vmatpush1.bf16.msra.mxu0 %v900
      %1140 = vmatprep.subr.bf16.mxu0 0
      %1141 = vmatpush1.bf16.msra.mxu0 %v901
      %1142 = vmatprep.subr.bf16.mxu0 0
      %1143 = vmatpush1.bf16.msra.mxu0 %v902
      %1144 = vmatprep.mubr.bf16.mxu0 %v231
      %1145 = vmatmul.mubr.bf16.gmra.mrb[0].mxu0 %v384
      %v1146 = vpop.f32.mrb[0].mxu0
      %v1147 = vadd.f32 %v1050, %v1146
      %v1148 = vpop.f32.mrb[0].mxu0
      %v1149 = vpop.f32.mrb[0].mxu0
      %v1150 = vadd.f32 %v1053, %v1149
      %v1151 = vpop.f32.mrb[0].mxu0
      %1152 = vmatprep.mubr.bf16.mxu0 %v232
      %1153 = vmatmul.mubr.bf16.gmra.mrb[0].mxu0 %v385
      %v1154 = vpop.f32.mrb[0].mxu0
      %v1155 = vadd.f32 %v1058, %v1154
      %v1156 = vpop.f32.mrb[0].mxu0
      %v1157 = vpop.f32.mrb[0].mxu0
      %v1158 = vadd.f32 %v1061, %v1157
      %v1159 = vpop.f32.mrb[0].mxu0
      %1160 = vmatprep.mubr.bf16.mxu0 %v233
      %1161 = vmatmul.mubr.bf16.gmra.mrb[0].mxu0 %v386
      %v1162 = vpop.f32.mrb[0].mxu0
      %v1163 = vadd.f32 %v1066, %v1162
      %v1164 = vpop.f32.mrb[0].mxu0
      %v1165 = vpop.f32.mrb[0].mxu0
      %v1166 = vadd.f32 %v1069, %v1165
      %v1167 = vpop.f32.mrb[0].mxu0
      %1168 = vmatprep.mubr.bf16.mxu0 %v234
      %1169 = vmatmul.mubr.bf16.gmra.mrb[0].mxu0 %v387
      %v1170 = vpop.f32.mrb[0].mxu0
      %v1171 = vadd.f32 %v1074, %v1170
      %v1172 = vpop.f32.mrb[0].mxu0
      %v1173 = vpop.f32.mrb[0].mxu0
      %v1174 = vadd.f32 %v1077, %v1173
      %v1175 = vpop.f32.mrb[0].mxu0
      %1176 = vmatprep.mubr.bf16.mxu0 %v235
      %1177 = vmatmul.mubr.bf16.gmra.mrb[0].mxu0 %v388
      %v1178 = vpop.f32.mrb[0].mxu0
      %v1179 = vadd.f32 %v1082, %v1178
      %v1180 = vpop.f32.mrb[0].mxu0
      %v1181 = vpop.f32.mrb[0].mxu0
      %v1182 = vadd.f32 %v1085, %v1181
      %v1183 = vpop.f32.mrb[0].mxu0
      %1184 = vmatprep.mubr.bf16.mxu0 %v236
      %1185 = vmatmul.mubr.bf16.gmra.mrb[0].mxu0 %v389
      %v1186 = vpop.f32.mrb[0].mxu0
      %v1187 = vadd.f32 %v1090, %v1186
      %v1188 = vpop.f32.mrb[0].mxu0
      %v1189 = vpop.f32.mrb[0].mxu0
      %v1190 = vadd.f32 %v1093, %v1189
      %v1191 = vpop.f32.mrb[0].mxu0
      %1192 = vmatprep.mubr.bf16.mxu0 %v237
      %1193 = vmatmul.mubr.bf16.gmra.mrb[0].mxu0 %v390
      %v1194 = vpop.f32.mrb[0].mxu0
      %v1195 = vadd.f32 %v1098, %v1194
      %v1196 = vpop.f32.mrb[0].mxu0
      %v1197 = vpop.f32.mrb[0].mxu0
      %v1198 = vadd.f32 %v1101, %v1197
      %v1199 = vpop.f32.mrb[0].mxu0
      %1200 = vmatprep.mubr.bf16.mxu0 %v392
      %1201 = vmatmul.mubr.bf16.gmra.mrb[0].mxu0 %v391
      %v1202 = vpop.f32.mrb[0].mxu0
      %v1203 = vadd.f32 %v1106, %v1202
      %v1204 = vpop.f32.mrb[0].mxu0
      %v1205 = vpop.f32.mrb[0].mxu0
      %v1206 = vadd.f32 %v1109, %v1205
      %v1207 = vpop.f32.mrb[0].mxu0
      %1208 = vdwg.mxu0
      %1209 = vmatprep.subr.bf16.mxu0 0
      %1210 = vmatpush1.bf16.msra.mxu0 %v903
      %1211 = vmatprep.subr.bf16.mxu0 0
      %1212 = vmatpush1.bf16.msra.mxu0 %v904
      %1213 = vmatprep.subr.bf16.mxu0 0
      %1214 = vmatpush1.bf16.msra.mxu0 %v905
      %1215 = vmatprep.subr.bf16.mxu0 0
      %1216 = vmatpush1.bf16.msra.mxu0 %v906
      %1217 = vmatprep.subr.bf16.mxu0 0
      %1218 = vmatpush1.bf16.msra.mxu0 %v907
      %1219 = vmatprep.subr.bf16.mxu0 0
      %1220 = vmatpush1.bf16.msra.mxu0 %v908
      %1221 = vmatprep.subr.bf16.mxu0 0
      %1222 = vmatpush1.bf16.msra.mxu0 %v909
      %1223 = vmatprep.subr.bf16.mxu0 0
      %1224 = vmatpush1.bf16.msra.mxu0 %v910
      %1225 = vmatprep.subr.bf16.mxu0 0
      %1226 = vmatpush1.bf16.msra.mxu0 %v911
      %1227 = vmatprep.subr.bf16.mxu0 0
      %1228 = vmatpush1.bf16.msra.mxu0 %v912
      %1229 = vmatprep.subr.bf16.mxu0 0
      %1230 = vmatpush1.bf16.msra.mxu0 %v913
      %1231 = vmatprep.subr.bf16.mxu0 0
      %1232 = vmatpush1.bf16.msra.mxu0 %v914
      %1233 = vmatprep.subr.bf16.mxu0 0
      %1234 = vmatpush1.bf16.msra.mxu0 %v915
      %1235 = vmatprep.subr.bf16.mxu0 0
      %1236 = vmatpush1.bf16.msra.mxu0 %v916
      %1237 = vmatprep.subr.bf16.mxu0 0
      %1238 = vmatpush1.bf16.msra.mxu0 %v917
      %1239 = vmatprep.subr.bf16.mxu0 0
      %1240 = vmatpush1.bf16.msra.mxu0 %v918
      %1241 = vmatprep.mubr.bf16.mxu0 %v385
      %1242 = vmatmul.mubr.bf16.gmra.mrb[0].mxu0 %v320
      %v1243 = vpop.f32.mrb[0].mxu0
      %v1244 = vadd.f32 %v1147, %v1243
      %v1245 = vpop.f32.mrb[0].mxu0
      %v1246 = vpop.f32.mrb[0].mxu0
      %v1247 = vadd.f32 %v1150, %v1246
      %v1248 = vpop.f32.mrb[0].mxu0
      %1249 = vmatprep.mubr.bf16.mxu0 %v386
      %1250 = vmatmul.mubr.bf16.gmra.mrb[0].mxu0 %v321
      %v1251 = vpop.f32.mrb[0].mxu0
      %v1252 = vadd.f32 %v1155, %v1251
      %v1253 = vpop.f32.mrb[0].mxu0
      %v1254 = vpop.f32.mrb[0].mxu0
      %v1255 = vadd.f32 %v1158, %v1254
      %v1256 = vpop.f32.mrb[0].mxu0
      %1257 = vmatprep.mubr.bf16.mxu0 %v387
      %1258 = vmatmul.mubr.bf16.gmra.mrb[0].mxu0 %v322
      %v1259 = vpop.f32.mrb[0].mxu0
      %v1260 = vadd.f32 %v1163, %v1259
      %v1261 = vpop.f32.mrb[0].mxu0
      %v1262 = vpop.f32.mrb[0].mxu0
      %v1263 = vadd.f32 %v1166, %v1262
      %v1264 = vpop.f32.mrb[0].mxu0
      %1265 = vmatprep.mubr.bf16.mxu0 %v388
      %1266 = vmatmul.mubr.bf16.gmra.mrb[0].mxu0 %v323
      %v1267 = vpop.f32.mrb[0].mxu0
      %v1268 = vadd.f32 %v1171, %v1267
      %v1269 = vpop.f32.mrb[0].mxu0
      %v1270 = vpop.f32.mrb[0].mxu0
      %v1271 = vadd.f32 %v1174, %v1270
      %v1272 = vpop.f32.mrb[0].mxu0
      %1273 = vmatprep.mubr.bf16.mxu0 %v389
      %1274 = vmatmul.mubr.bf16.gmra.mrb[0].mxu0 %v324
      %v1275 = vpop.f32.mrb[0].mxu0
      %v1276 = vadd.f32 %v1179, %v1275
      %v1277 = vpop.f32.mrb[0].mxu0
      %v1278 = vpop.f32.mrb[0].mxu0
      %v1279 = vadd.f32 %v1182, %v1278
      %v1280 = vpop.f32.mrb[0].mxu0
      %1281 = vmatprep.mubr.bf16.mxu0 %v390
      %1282 = vmatmul.mubr.bf16.gmra.mrb[0].mxu0 %v325
      %v1283 = vpop.f32.mrb[0].mxu0
      %v1284 = vadd.f32 %v1187, %v1283
      %v1285 = vpop.f32.mrb[0].mxu0
      %v1286 = vpop.f32.mrb[0].mxu0
      %v1287 = vadd.f32 %v1190, %v1286
      %v1288 = vpop.f32.mrb[0].mxu0
      %1289 = vmatprep.mubr.bf16.mxu0 %v391
      %1290 = vmatmul.mubr.bf16.gmra.mrb[0].mxu0 %v326
      %v1291 = vpop.f32.mrb[0].mxu0
      %v1292 = vadd.f32 %v1195, %v1291
      %v1293 = vpop.f32.mrb[0].mxu0
      %v1294 = vpop.f32.mrb[0].mxu0
      %v1295 = vadd.f32 %v1198, %v1294
      %v1296 = vpop.f32.mrb[0].mxu0
      %1297 = vmatprep.mubr.bf16.mxu0 %v411
      %1298 = vmatmul.mubr.bf16.gmra.mrb[0].mxu0 %v403
      %v1299 = vpop.f32.mrb[0].mxu0
      %v1300 = vadd.f32 %v1203, %v1299
      %v1301 = vpop.f32.mrb[0].mxu0
      %v1302 = vpop.f32.mrb[0].mxu0
      %v1303 = vadd.f32 %v1206, %v1302
      %v1304 = vpop.f32.mrb[0].mxu0
      %1305 = vdwg.mxu0
      %1306 = vmatprep.subr.bf16.mxu0 0
      %1307 = vmatpush1.bf16.msra.mxu0 %v919
      %1308 = vmatprep.subr.bf16.mxu0 0
      %1309 = vmatpush1.bf16.msra.mxu0 %v920
      %1310 = vmatprep.subr.bf16.mxu0 0
      %1311 = vmatpush1.bf16.msra.mxu0 %v921
      %1312 = vmatprep.subr.bf16.mxu0 0
      %1313 = vmatpush1.bf16.msra.mxu0 %v922
      %1314 = vmatprep.subr.bf16.mxu0 0
      %1315 = vmatpush1.bf16.msra.mxu0 %v923
      %1316 = vmatprep.subr.bf16.mxu0 0
      %1317 = vmatpush1.bf16.msra.mxu0 %v924
      %1318 = vmatprep.subr.bf16.mxu0 0
      %1319 = vmatpush1.bf16.msra.mxu0 %v925
      %1320 = vmatprep.subr.bf16.mxu0 0
      %1321 = vmatpush1.bf16.msra.mxu0 %v926
      %1322 = vmatprep.subr.bf16.mxu0 0
      %1323 = vmatpush1.bf16.msra.mxu0 %v927
      %1324 = vmatprep.subr.bf16.mxu0 0
      %1325 = vmatpush1.bf16.msra.mxu0 %v928
      %1326 = vmatprep.subr.bf16.mxu0 0
      %1327 = vmatpush1.bf16.msra.mxu0 %v929
      %1328 = vmatprep.subr.bf16.mxu0 0
      %1329 = vmatpush1.bf16.msra.mxu0 %v930
      %1330 = vmatprep.subr.bf16.mxu0 0
      %1331 = vmatpush1.bf16.msra.mxu0 %v931
      %1332 = vmatprep.subr.bf16.mxu0 0
      %1333 = vmatpush1.bf16.msra.mxu0 %v932
      %1334 = vmatprep.subr.bf16.mxu0 0
      %1335 = vmatpush1.bf16.msra.mxu0 %v933
      %1336 = vmatprep.subr.bf16.mxu0 0
      %1337 = vmatpush1.bf16.msra.mxu0 %v934
      %1338 = vmatprep.mubr.bf16.mxu0 %v321
      %1339 = vmatmul.mubr.bf16.gmra.mrb[0].mxu0 %v232
      %v1340 = vpop.f32.mrb[0].mxu0
      %v1341 = vadd.f32 %v1244, %v1340
      %v1342 = vpop.f32.mrb[0].mxu0
      %v1343 = vpop.f32.mrb[0].mxu0
      %v1344 = vadd.f32 %v1247, %v1343
      %v1345 = vpop.f32.mrb[0].mxu0
      %1346 = vmatprep.mubr.bf16.mxu0 %v322
      %1347 = vmatmul.mubr.bf16.gmra.mrb[0].mxu0 %v233
      %v1348 = vpop.f32.mrb[0].mxu0
      %v1349 = vadd.f32 %v1252, %v1348
      %v1350 = vpop.f32.mrb[0].mxu0
      %v1351 = vpop.f32.mrb[0].mxu0
      %v1352 = vadd.f32 %v1255, %v1351
      %v1353 = vpop.f32.mrb[0].mxu0
      %1354 = vmatprep.mubr.bf16.mxu0 %v323
      %1355 = vmatmul.mubr.bf16.gmra.mrb[0].mxu0 %v234
      %v1356 = vpop.f32.mrb[0].mxu0
      %v1357 = vadd.f32 %v1260, %v1356
      %v1358 = vpop.f32.mrb[0].mxu0
      %v1359 = vpop.f32.mrb[0].mxu0
      %v1360 = vadd.f32 %v1263, %v1359
      %v1361 = vpop.f32.mrb[0].mxu0
      %1362 = vmatprep.mubr.bf16.mxu0 %v324
      %1363 = vmatmul.mubr.bf16.gmra.mrb[0].mxu0 %v235
      %v1364 = vpop.f32.mrb[0].mxu0
      %v1365 = vadd.f32 %v1268, %v1364
      %v1366 = vpop.f32.mrb[0].mxu0
      %v1367 = vpop.f32.mrb[0].mxu0
      %v1368 = vadd.f32 %v1271, %v1367
      %v1369 = vpop.f32.mrb[0].mxu0
      %1370 = vmatprep.mubr.bf16.mxu0 %v325
      %1371 = vmatmul.mubr.bf16.gmra.mrb[0].mxu0 %v236
      %v1372 = vpop.f32.mrb[0].mxu0
      %v1373 = vadd.f32 %v1276, %v1372
      %v1374 = vpop.f32.mrb[0].mxu0
      %v1375 = vpop.f32.mrb[0].mxu0
      %v1376 = vadd.f32 %v1279, %v1375
      %v1377 = vpop.f32.mrb[0].mxu0
      %1378 = vmatprep.mubr.bf16.mxu0 %v326
      %1379 = vmatmul.mubr.bf16.gmra.mrb[0].mxu0 %v237
      %v1380 = vpop.f32.mrb[0].mxu0
      %v1381 = vadd.f32 %v1284, %v1380
      %v1382 = vpop.f32.mrb[0].mxu0
      %v1383 = vpop.f32.mrb[0].mxu0
      %v1384 = vadd.f32 %v1287, %v1383
      %v1385 = vpop.f32.mrb[0].mxu0
      %1386 = vmatprep.mubr.bf16.mxu0 %v403
      %1387 = vmatmul.mubr.bf16.gmra.mrb[0].mxu0 %v392
      %v1388 = vpop.f32.mrb[0].mxu0
      %v1389 = vadd.f32 %v1292, %v1388
      %v1390 = vpop.f32.mrb[0].mxu0
      %v1391 = vpop.f32.mrb[0].mxu0
      %v1392 = vadd.f32 %v1295, %v1391
      %v1393 = vpop.f32.mrb[0].mxu0
      %1394 = vmatprep.mubr.bf16.mxu0 %v423
      %1395 = vmatmul.mubr.bf16.gmra.mrb[0].mxu0 %v412
      %v1396 = vpop.f32.mrb[0].mxu0
      %v1397 = vadd.f32 %v1300, %v1396
      %v1398 = vpop.f32.mrb[0].mxu0
      %v1399 = vpop.f32.mrb[0].mxu0
      %v1400 = vadd.f32 %v1303, %v1399
      %v1401 = vpop.f32.mrb[0].mxu0
      %1402 = vdwg.mxu0
      %1403 = vmatprep.subr.bf16.mxu0 0
      %1404 = vmatpush1.bf16.msra.mxu0 %v935
      %1405 = vmatprep.subr.bf16.mxu0 0
      %1406 = vmatpush1.bf16.msra.mxu0 %v936
      %1407 = vmatprep.subr.bf16.mxu0 0
      %1408 = vmatpush1.bf16.msra.mxu0 %v937
      %1409 = vmatprep.subr.bf16.mxu0 0
      %1410 = vmatpush1.bf16.msra.mxu0 %v938
      %1411 = vmatprep.subr.bf16.mxu0 0
      %1412 = vmatpush1.bf16.msra.mxu0 %v939
      %1413 = vmatprep.subr.bf16.mxu0 0
      %1414 = vmatpush1.bf16.msra.mxu0 %v940
      %1415 = vmatprep.subr.bf16.mxu0 0
      %1416 = vmatpush1.bf16.msra.mxu0 %v941
      %1417 = vmatprep.subr.bf16.mxu0 0
      %1418 = vmatpush1.bf16.msra.mxu0 %v942
      %1419 = vmatprep.subr.bf16.mxu0 0
      %1420 = vmatpush1.bf16.msra.mxu0 0
      %1421 = vmatprep.subr.bf16.mxu0 0
      %1422 = vmatpush1.bf16.msra.mxu0 0
      %1423 = vmatprep.subr.bf16.mxu0 0
      %1424 = vmatpush1.bf16.msra.mxu0 0
      %1425 = vmatprep.subr.bf16.mxu0 0
      %1426 = vmatpush1.bf16.msra.mxu0 0
      %1427 = vmatprep.subr.bf16.mxu0 0
      %1428 = vmatpush1.bf16.msra.mxu0 0
      %1429 = vmatprep.subr.bf16.mxu0 0
      %1430 = vmatpush1.bf16.msra.mxu0 0
      %1431 = vmatprep.subr.bf16.mxu0 0
      %1432 = vmatpush1.bf16.msra.mxu0 0
      %1433 = vmatprep.subr.bf16.mxu0 0
      %1434 = vmatpush1.bf16.msra.mxu0 0
      %1435 = vmatprep.mubr.bf16.mxu0 0
      %1436 = vmatmul.mubr.bf16.gmra.mrb[0].mxu0 %v386
      %v1437 = vpop.f32.mrb[0].mxu0
      %v1438 = vadd.f32 %v1341, %v1437
      %v1439 = vpop.f32.mrb[0].mxu0
      %v1440 = vpop.f32.mrb[0].mxu0
      %v1441 = vadd.f32 %v1344, %v1440
      %v1442 = vpop.f32.mrb[0].mxu0
      %1443 = vmatprep.mubr.bf16.mxu0 0
      %1444 = vmatmul.mubr.bf16.gmra.mrb[0].mxu0 %v387
      %v1445 = vpop.f32.mrb[0].mxu0
      %v1446 = vadd.f32 %v1349, %v1445
      %v1447 = vpop.f32.mrb[0].mxu0
      %v1448 = vpop.f32.mrb[0].mxu0
      %v1449 = vadd.f32 %v1352, %v1448
      %v1450 = vpop.f32.mrb[0].mxu0
      %1451 = vmatprep.mubr.bf16.mxu0 0
      %1452 = vmatmul.mubr.bf16.gmra.mrb[0].mxu0 %v388
      %v1453 = vpop.f32.mrb[0].mxu0
      %v1454 = vadd.f32 %v1357, %v1453
      %v1455 = vpop.f32.mrb[0].mxu0
      %v1456 = vpop.f32.mrb[0].mxu0
      %v1457 = vadd.f32 %v1360, %v1456
      %v1458 = vpop.f32.mrb[0].mxu0
      %1459 = vmatprep.mubr.bf16.mxu0 0
      %1460 = vmatmul.mubr.bf16.gmra.mrb[0].mxu0 %v389
      %v1461 = vpop.f32.mrb[0].mxu0
      %v1462 = vadd.f32 %v1365, %v1461
      %v1463 = vpop.f32.mrb[0].mxu0
      %v1464 = vpop.f32.mrb[0].mxu0
      %v1465 = vadd.f32 %v1368, %v1464
      %v1466 = vpop.f32.mrb[0].mxu0
      %1467 = vmatprep.mubr.bf16.mxu0 0
      %1468 = vmatmul.mubr.bf16.gmra.mrb[0].mxu0 %v390
      %v1469 = vpop.f32.mrb[0].mxu0
      %v1470 = vadd.f32 %v1373, %v1469
      %v1471 = vpop.f32.mrb[0].mxu0
      %v1472 = vpop.f32.mrb[0].mxu0
      %v1473 = vadd.f32 %v1376, %v1472
      %v1474 = vpop.f32.mrb[0].mxu0
      %1475 = vmatprep.mubr.bf16.mxu0 0
      %1476 = vmatmul.mubr.bf16.gmra.mrb[0].mxu0 %v391
      %v1477 = vpop.f32.mrb[0].mxu0
      %v1478 = vadd.f32 %v1381, %v1477
      %v1479 = vpop.f32.mrb[0].mxu0
      %v1480 = vpop.f32.mrb[0].mxu0
      %v1481 = vadd.f32 %v1384, %v1480
      %v1482 = vpop.f32.mrb[0].mxu0
      %1483 = vmatprep.mubr.bf16.mxu0 0
      %1484 = vmatmul.mubr.bf16.gmra.mrb[0].mxu0 %v411
      %v1485 = vpop.f32.mrb[0].mxu0
      %v1486 = vadd.f32 %v1389, %v1485
      %v1487 = vpop.f32.mrb[0].mxu0
      %v1488 = vpop.f32.mrb[0].mxu0
      %v1489 = vadd.f32 %v1392, %v1488
      %v1490 = vpop.f32.mrb[0].mxu0
      %1491 = vmatprep.mubr.bf16.mxu0 0
      %1492 = vmatmul.mubr.bf16.gmra.mrb[0].mxu0 %v431
      %v1493 = vpop.f32.mrb[0].mxu0
      %v1494 = vadd.f32 %v1397, %v1493
      %v1495 = vpop.f32.mrb[0].mxu0
      %v1496 = vpop.f32.mrb[0].mxu0
      %v1497 = vadd.f32 %v1400, %v1496
      %v1498 = vpop.f32.mrb[0].mxu0
      %1499 = vdwg.mxu0
      %vm1500 = vcmask 523264
      %1501 = vst.msk [vmem:[%s194] sm:$0xff] %vm1500, %v1438
      %1502 = vst.msk [vmem:[%s194 + $0x8] sm:$0xff] %vm1500, %v1441
      %1503 = vst.msk [vmem:[%s194 + $0x10] sm:$0xff] %vm1500, %v1446
      %1504 = vst.msk [vmem:[%s194 + $0x18] sm:$0xff] %vm1500, %v1449
      %1505 = vst.msk [vmem:[%s194 + $0x20] sm:$0xff] %vm1500, %v1454
      %1506 = vst.msk [vmem:[%s194 + $0x28] sm:$0xff] %vm1500, %v1457
      %1507 = vst.msk [vmem:[%s194 + $0x30] sm:$0xff] %vm1500, %v1462
      %1508 = vst.msk [vmem:[%s194 + $0x38] sm:$0xff] %vm1500, %v1465
      %1509 = vst.msk [vmem:[%s194 + $0x40] sm:$0xff] %vm1500, %v1470
      %1510 = vst.msk [vmem:[%s194 + $0x48] sm:$0xff] %vm1500, %v1473
      %1511 = vst.msk [vmem:[%s194 + $0x50] sm:$0xff] %vm1500, %v1478
      %1512 = vst.msk [vmem:[%s194 + $0x58] sm:$0xff] %vm1500, %v1481
      %1513 = vst.msk [vmem:[%s194 + $0x60] sm:$0xff] %vm1500, %v1486
      %1514 = vst.msk [vmem:[%s194 + $0x68] sm:$0xff] %vm1500, %v1489
      %1515 = vst.msk [vmem:[%s194 + $0x70] sm:$0xff] %vm1500, %v1494
      %1516 = vst.msk [vmem:[%s194 + $0x78] sm:$0xff] %vm1500, %v1497
      %s1517 = smul.u32 8, %s19
      %p1518 = scmp.lt.s32.totalorder %s18, 1
      %s1519 = scalar_select %p1518, %s18, 1
      %p1520 = scmp.lt.s32.totalorder %s1517, 15
      %s1521 = scalar_select %p1520, %s1517, 15
      %s1522 = smul.addr %s1521, 2
      %s1523 = smul.addr %s1519, 32
      %s1524 = sadd.s32 %s1522, %s1523
      %s1525 = smul.addr %s1524, 8
      %s1526 = scalar_lea.vmem %s3, %s1525
      // Predicated region
      $region33: #{spade_resnet_block_forward.25} parent=31 // pred_check
        %p1527 = pneg %p114
      $region34: #{spade_resnet_block_forward.25} parent=31 // pred_check_branch
        %1529 = sbr.rel (%p1527) target = $region36
      $region35: #{spade_resnet_block_forward.25} parent=31 // pred_region
        %s1530 = smul.u32 8, %s19
      $region36: #{spade_resnet_block_forward.25} parent=31 // pred_fallthru
        _
    $region32: #{spade_resnet_block_forward.25} parent=5 // pred_fallthru
      _
    %p1531 = scmp.le.s32.totalorder 2, %s9
    // Predicated region
    $region37: #{spade_resnet_block_forward.25} parent=5 // pred_check
      %p1532 = pneg %p1531
    $region38: #{spade_resnet_block_forward.25} parent=5 // pred_check_branch
      %1534 = sbr.rel (%p1532) target = $region40
    $region39: #{spade_resnet_block_forward.25} parent=5 // pred_region
      %s1535 = ssub.s32 %s9, 2
      // Predicated region
      $region41: #{spade_resnet_block_forward.25} parent=39 // pred_check
        %p1536 = pneg %p120
      $region42: #{spade_resnet_block_forward.25} parent=39 // pred_check_branch
        %1538 = sbr.rel (%p1536) target = $region44
      $region43: #{spade_resnet_block_forward.25} parent=39 // pred_region
        %s1539 = smul.u32 8, %s21
        %p1540 = scmp.lt.s32.totalorder %s20, 1
        %s1541 = scalar_select %p1540, %s20, 1
        %p1542 = scmp.lt.s32.totalorder %s1539, 15
        %s1543 = scalar_select %p1542, %s1539, 15
        %s1544 = smul.addr %s1543, 2
        %s1545 = smul.addr %s1541, 32
        %s1546 = sadd.s32 %s1544, %s1545
        %s1547 = smul.addr %s1546, 8
        %s1548 = scalar_lea.vmem %s3, %s1547
      $region44: #{spade_resnet_block_forward.25} parent=39 // pred_fallthru
        _
    $region40: #{spade_resnet_block_forward.25} parent=5 // pred_fallthru
      _
  $region6: #{spade_resnet_block_forward.25} parent=0 // loop_footer
    %s13 = sadd.s32 1, %s9
  $region7: #{spade_resnet_block_forward.25} parent=0 // loop_footer_branch
    %8 = sbr.rel target = $region3
  $region8: #{spade_resnet_block_forward.25} parent=0 // loop_exit
    _

// kernel: spade_resnet_block_forward.27
$region0: #{spade_resnet_block_forward.27}
  #allocation0 [shape = 'u32[]', space=smem, size = 0x4, offset = 0x4, fixed_abs, tag = 'smem constant byte address 0x4 - core index']
  #allocation1 [shape = 'u32[144,128]{1,0:T(1,128)}', space=vmem, size = 0x12000, scoped, tag = 'internal scratch']
  %s0 = inlined_call_operand.vmem [shape: f32[512,64], index: 0, kind: input, shape index: {}]
  %s1 = inlined_call_operand.vmem [shape: f32[512,64], index: 1, kind: input, shape index: {}]
  %s2 = inlined_call_operand.vmem [shape: f32[512,64], index: 2, kind: input, shape index: {}]
  %s3 = inlined_call_operand.vmem [shape: f32[1,64], index: 3, kind: input, shape index: {}]
  %s4 = inlined_call_operand.vmem [shape: f32[1,64], index: 4, kind: input, shape index: {}]
  %s5 = inlined_call_operand.vmem [shape: f32[512,64], index: 5, kind: output, shape index: {}]
  %s6 = sld [smem:[#allocation0]]
  $region53: #{spade_resnet_block_forward.27} parent=0
    _
  %s8 = ssub.s32 1, %s6
  %s9 = scalar_select 0, %s8, %s6
  loop: start=0, step=1, limit=4
  $region2: #{spade_resnet_block_forward.27} parent=0 // loop_pre_header
    _
  $region3: #{spade_resnet_block_forward.27} parent=0 // loop_header
    %s11 = sphi 0, %s15
    %p12 = scmp.ge.s32.totalorder %s11, 4
    %s21 = sphi 0, %s23
    %s24 = sphi 0, %s21
    %s25 = sphi 0, %s24
    %s41 = sphi 0, %s25
    %s47 = sphi 0, %s49
    %s50 = sphi 0, %s47
    %s51 = sphi 0, %s50
    %s67 = sphi 0, %s51
    %s73 = sphi 0, %s75
    %s76 = sphi 0, %s73
    %s77 = sphi 0, %s76
    %s93 = sphi 0, %s77
    %s97 = sphi 0, %s97
    %s99 = sphi 0, %s97
    %s100 = sphi 0, %s99
    %s114 = sphi 0, %s100
    %s118 = sphi 0, %s118
    %s120 = sphi 0, %s118
    %s121 = sphi 0, %s120
    %s135 = sphi 0, %s121
    %s141 = sphi 0, %s143
    %s144 = sphi 0, %s141
    %s145 = sphi 0, %s144
    %s161 = sphi 0, %s145
  $region4: #{spade_resnet_block_forward.27} parent=0 // loop_header_branch
    %14 = sbr.rel (%p12) target = $region8
  $region5: #{spade_resnet_block_forward.27} parent=0 // loop_body
    %s16 = ssub.s32 %s11, 1
    %s17 = ssub.s32 %s11, 2
    %s18 = sadd.s32 %s11, 1
    %s19 = ssub.s32 %s11, %s18
    %p20 = scmp.eq.s32.totalorder %s19, 0
    %s22 = sadd.s32 %s21, 1
    %s23 = scalar_select %p20, %s21, %s22
    %p26 = pneg %p20
    %p27 = scmp.eq.s32.totalorder %s11, 1
    %p28 = por %p26, %p27
    %p29 = scmp.ne.s32.totalorder %s21, %s24
    %p30 = scmp.eq.s32.totalorder %s11, 0
    %p31 = por %p29, %p30
    %p32 = scmp.ne.s32.totalorder %s21, %s24
    %p33 = scmp.eq.s32.totalorder %s16, 1
    %p34 = por %p32, %p33
    %p35 = scmp.ne.s32.totalorder %s24, %s25
    %p36 = scmp.eq.s32.totalorder %s16, 0
    %p37 = por %p35, %p36
    %p38 = scmp.ne.s32.totalorder %s24, %s25
    %p39 = scmp.eq.s32.totalorder %s17, 1
    %p40 = por %p38, %p39
    %p42 = scmp.ne.s32.totalorder %s25, %s41
    %p43 = scmp.eq.s32.totalorder %s17, 0
    %p44 = por %p42, %p43
    %s45 = ssub.s32 %s11, %s18
    %p46 = scmp.eq.s32.totalorder %s45, 0
    %s48 = sadd.s32 %s47, 1
    %s49 = scalar_select %p46, %s47, %s48
    %p52 = pneg %p46
    %p53 = scmp.eq.s32.totalorder %s11, 1
    %p54 = por %p52, %p53
    %p55 = scmp.ne.s32.totalorder %s47, %s50
    %p56 = scmp.eq.s32.totalorder %s11, 0
    %p57 = por %p55, %p56
    %p58 = scmp.ne.s32.totalorder %s47, %s50
    %p59 = scmp.eq.s32.totalorder %s16, 1
    %p60 = por %p58, %p59
    %p61 = scmp.ne.s32.totalorder %s50, %s51
    %p62 = scmp.eq.s32.totalorder %s16, 0
    %p63 = por %p61, %p62
    %p64 = scmp.ne.s32.totalorder %s50, %s51
    %p65 = scmp.eq.s32.totalorder %s17, 1
    %p66 = por %p64, %p65
    %p68 = scmp.ne.s32.totalorder %s51, %s67
    %p69 = scmp.eq.s32.totalorder %s17, 0
    %p70 = por %p68, %p69
    %s71 = ssub.s32 %s11, %s18
    %p72 = scmp.eq.s32.totalorder %s71, 0
    %s74 = sadd.s32 %s73, 1
    %s75 = scalar_select %p72, %s73, %s74
    %p78 = pneg %p72
    %p79 = scmp.eq.s32.totalorder %s11, 1
    %p80 = por %p78, %p79
    %p81 = scmp.ne.s32.totalorder %s73, %s76
    %p82 = scmp.eq.s32.totalorder %s11, 0
    %p83 = por %p81, %p82
    %p84 = scmp.ne.s32.totalorder %s73, %s76
    %p85 = scmp.eq.s32.totalorder %s16, 1
    %p86 = por %p84, %p85
    %p87 = scmp.ne.s32.totalorder %s76, %s77
    %p88 = scmp.eq.s32.totalorder %s16, 0
    %p89 = por %p87, %p88
    %p90 = scmp.ne.s32.totalorder %s76, %s77
    %p91 = scmp.eq.s32.totalorder %s17, 1
    %p92 = por %p90, %p91
    %p94 = scmp.ne.s32.totalorder %s77, %s93
    %p95 = scmp.eq.s32.totalorder %s17, 0
    %p96 = por %p94, %p95
    %s98 = sadd.s32 %s97, 1
    %p101 = scmp.eq.s32.totalorder %s11, 1
    %p102 = scmp.ne.s32.totalorder %s97, %s99
    %p103 = scmp.eq.s32.totalorder %s11, 0
    %p104 = por %p102, %p103
    %p105 = scmp.ne.s32.totalorder %s97, %s99
    %p106 = scmp.eq.s32.totalorder %s16, 1
    %p107 = por %p105, %p106
    %p108 = scmp.ne.s32.totalorder %s99, %s100
    %p109 = scmp.eq.s32.totalorder %s16, 0
    %p110 = por %p108, %p109
    %p111 = scmp.ne.s32.totalorder %s99, %s100
    %p112 = scmp.eq.s32.totalorder %s17, 1
    %p113 = por %p111, %p112
    %p115 = scmp.ne.s32.totalorder %s100, %s114
    %p116 = scmp.eq.s32.totalorder %s17, 0
    %p117 = por %p115, %p116
    %s119 = sadd.s32 %s118, 1
    %p122 = scmp.eq.s32.totalorder %s11, 1
    %p123 = scmp.ne.s32.totalorder %s118, %s120
    %p124 = scmp.eq.s32.totalorder %s11, 0
    %p125 = por %p123, %p124
    %p126 = scmp.ne.s32.totalorder %s118, %s120
    %p127 = scmp.eq.s32.totalorder %s16, 1
    %p128 = por %p126, %p127
    %p129 = scmp.ne.s32.totalorder %s120, %s121
    %p130 = scmp.eq.s32.totalorder %s16, 0
    %p131 = por %p129, %p130
    %p132 = scmp.ne.s32.totalorder %s120, %s121
    %p133 = scmp.eq.s32.totalorder %s17, 1
    %p134 = por %p132, %p133
    %p136 = scmp.ne.s32.totalorder %s121, %s135
    %p137 = scmp.eq.s32.totalorder %s17, 0
    %p138 = por %p136, %p137
    %s139 = ssub.s32 %s11, %s18
    %p140 = scmp.eq.s32.totalorder %s139, 0
    %s142 = sadd.s32 %s141, 1
    %s143 = scalar_select %p140, %s141, %s142
    %p146 = pneg %p140
    %p147 = scmp.eq.s32.totalorder %s11, 1
    %p148 = por %p146, %p147
    %p149 = scmp.ne.s32.totalorder %s141, %s144
    %p150 = scmp.eq.s32.totalorder %s11, 0
    %p151 = por %p149, %p150
    %p152 = scmp.ne.s32.totalorder %s141, %s144
    %p153 = scmp.eq.s32.totalorder %s16, 1
    %p154 = por %p152, %p153
    %p155 = scmp.ne.s32.totalorder %s144, %s145
    %p156 = scmp.eq.s32.totalorder %s16, 0
    %p157 = por %p155, %p156
    %p158 = scmp.ne.s32.totalorder %s144, %s145
    %p159 = scmp.eq.s32.totalorder %s17, 1
    %p160 = por %p158, %p159
    %p162 = scmp.ne.s32.totalorder %s145, %s161
    %p163 = scmp.eq.s32.totalorder %s17, 0
    %p164 = por %p162, %p163
    %p165 = scmp.le.s32.totalorder 1, %s11
    %p166 = scmp.lt.s32.totalorder %s11, 3
    %p167 = pnand %p165, %p166
    %p168 = pneg %p167
    // Predicated region
    $region9: #{spade_resnet_block_forward.27} parent=5 // pred_check
      _
    $region10: #{spade_resnet_block_forward.27} parent=5 // pred_check_branch
      %170 = sbr.rel (%p167) target = $region12
    $region11: #{spade_resnet_block_forward.27} parent=5 // pred_region
      %s171 = ssub.s32 %s11, 1
      // Predicated region
      $region13: #{spade_resnet_block_forward.27} parent=11 // pred_check
        %p172 = pneg %p110
      $region14: #{spade_resnet_block_forward.27} parent=11 // pred_check_branch
        %174 = sbr.rel (%p172) target = $region16
      $region15: #{spade_resnet_block_forward.27} parent=11 // pred_region
        _
      $region16: #{spade_resnet_block_forward.27} parent=11 // pred_fallthru
        _
      // Predicated region
      $region17: #{spade_resnet_block_forward.27} parent=11 // pred_check
        %p175 = pneg %p131
      $region18: #{spade_resnet_block_forward.27} parent=11 // pred_check_branch
        %177 = sbr.rel (%p175) target = $region20
      $region19: #{spade_resnet_block_forward.27} parent=11 // pred_region
        _
      $region20: #{spade_resnet_block_forward.27} parent=11 // pred_fallthru
        _
    $region12: #{spade_resnet_block_forward.27} parent=5 // pred_fallthru
      _
    %p178 = scmp.lt.s32.totalorder %s11, 2
    // Predicated region
    $region21: #{spade_resnet_block_forward.27} parent=5 // pred_check
      %p179 = pneg %p178
    $region22: #{spade_resnet_block_forward.27} parent=5 // pred_check_branch
      %181 = sbr.rel (%p179) target = $region24
    $region23: #{spade_resnet_block_forward.27} parent=5 // pred_region
      // Predicated region
      $region25: #{spade_resnet_block_forward.27} parent=23 // pred_check
        %p182 = pneg %p31
      $region26: #{spade_resnet_block_forward.27} parent=23 // pred_check_branch
        %184 = sbr.rel (%p182) target = $region28
      $region27: #{spade_resnet_block_forward.27} parent=23 // pred_region
        %s185 = smul.u32 32, %s11
        %p186 = scmp.lt.s32.totalorder %s185, 63
        %s187 = scalar_select %p186, %s185, 63
        %s188 = smul.addr %s187, 8
        %s189 = scalar_lea.vmem %s0, %s188
        %s190 = smul.u32 32, %s11
      $region28: #{spade_resnet_block_forward.27} parent=23 // pred_fallthru
        _
      // Predicated region
      $region29: #{spade_resnet_block_forward.27} parent=23 // pred_check
        %p191 = pneg %p57
      $region30: #{spade_resnet_block_forward.27} parent=23 // pred_check_branch
        %193 = sbr.rel (%p191) target = $region32
      $region31: #{spade_resnet_block_forward.27} parent=23 // pred_region
        %s194 = smul.u32 32, %s11
        %p195 = scmp.lt.s32.totalorder %s194, 63
        %s196 = scalar_select %p195, %s194, 63
        %s197 = smul.addr %s196, 8
        %s198 = scalar_lea.vmem %s1, %s197
        %s199 = smul.u32 32, %s11
      $region32: #{spade_resnet_block_forward.27} parent=23 // pred_fallthru
        _
      // Predicated region
      $region33: #{spade_resnet_block_forward.27} parent=23 // pred_check
        %p200 = pneg %p83
      $region34: #{spade_resnet_block_forward.27} parent=23 // pred_check_branch
        %202 = sbr.rel (%p200) target = $region36
      $region35: #{spade_resnet_block_forward.27} parent=23 // pred_region
        %s203 = smul.u32 32, %s11
        %p204 = scmp.lt.s32.totalorder %s203, 63
        %s205 = scalar_select %p204, %s203, 63
        %s206 = smul.addr %s205, 8
        %s207 = scalar_lea.vmem %s2, %s206
        %s208 = smul.u32 32, %s11
      $region36: #{spade_resnet_block_forward.27} parent=23 // pred_fallthru
        _
    $region24: #{spade_resnet_block_forward.27} parent=5 // pred_fallthru
      _
    %p209 = scmp.le.s32.totalorder 1, %s11
    %p210 = scmp.lt.s32.totalorder %s11, 3
    %p211 = pnand %p209, %p210
    %p212 = pneg %p211
    // Predicated region
    $region37: #{spade_resnet_block_forward.27} parent=5 // pred_check
      _
    $region38: #{spade_resnet_block_forward.27} parent=5 // pred_check_branch
      %214 = sbr.rel (%p211) target = $region40
    $region39: #{spade_resnet_block_forward.27} parent=5 // pred_region
      %s215 = ssub.s32 %s11, 1
      %s216 = smul.u32 32, %s16
      %p217 = scmp.lt.s32.totalorder %s216, 63
      %s218 = scalar_select %p217, %s216, 63
      %s219 = smul.addr %s218, 8
      %s220 = scalar_lea.vmem %s0, %s219
      %p221 = pneg %p37
      %p222 = pneg %p34
      %s223 = smul.u32 32, %s16
      %p224 = scmp.lt.s32.totalorder %s223, 63
      %s225 = scalar_select %p224, %s223, 63
      %s226 = smul.addr %s225, 8
      %s227 = scalar_lea.vmem %s1, %s226
      %p228 = pneg %p63
      %p229 = pneg %p60
      %s230 = smul.u32 32, %s16
      %p231 = scmp.lt.s32.totalorder %s230, 63
      %s232 = scalar_select %p231, %s230, 63
      %s233 = smul.addr %s232, 8
      %s234 = scalar_lea.vmem %s2, %s233
      %p235 = pneg %p89
      %p236 = pneg %p86
      %p237 = pneg %p110
      %p238 = pneg %p107
      %p239 = pneg %p131
      %p240 = pneg %p128
      %p241 = pneg %p157
      %p242 = pneg %p154
      %s243 = smul.u32 32, %s16
      %p244 = scmp.lt.s32.totalorder %s243, 63
      %s245 = scalar_select %p244, %s243, 63
      %s246 = smul.addr %s245, 8
      %s247 = scalar_lea.vmem %s5, %s246
      %s248 = smul.u32 32, %s16
      %p249 = scmp.lt.s32.totalorder %s248, 63
      %s250 = scalar_select %p249, %s248, 63
      %s251 = smul.addr %s250, 8
      %s252 = scalar_lea.vmem %s0, %s251
      %s253 = smul.u32 32, %s16
      %s254 = smul.u32 32, %s16
      %p255 = scmp.lt.s32.totalorder %s254, 63
      %s256 = scalar_select %p255, %s254, 63
      %s257 = smul.addr %s256, 8
      %s258 = scalar_lea.vmem %s1, %s257
      %s259 = smul.u32 32, %s16
      %s260 = smul.u32 32, %s16
      %p261 = scmp.lt.s32.totalorder %s260, 63
      %s262 = scalar_select %p261, %s260, 63
      %s263 = smul.addr %s262, 8
      %s264 = scalar_lea.vmem %s2, %s263
      %s265 = smul.u32 32, %s16
      %s266 = smul.u32 32, %s16
      %p267 = scmp.lt.s32.totalorder %s266, 63
      %s268 = scalar_select %p267, %s266, 63
      %s269 = smul.addr %s268, 8
      %s270 = scalar_lea.vmem %s5, %s269
      %s271 = smul.u32 32, %s16
      %v272 = vld [vmem:[%s252] sm:$0xff]
      %v273 = vld [vmem:[%s252 + $0x8] sm:$0xff]
      %v274 = vld [vmem:[%s252 + $0x10] sm:$0xff]
      %v275 = vld [vmem:[%s252 + $0x18] sm:$0xff]
      %v276 = vld [vmem:[%s252 + $0x20] sm:$0xff]
      %v277 = vld [vmem:[%s252 + $0x28] sm:$0xff]
      %v278 = vld [vmem:[%s252 + $0x30] sm:$0xff]
      %v279 = vld [vmem:[%s252 + $0x38] sm:$0xff]
      %v280 = vld [vmem:[%s252 + $0x40] sm:$0xff]
      %v281 = vld [vmem:[%s252 + $0x48] sm:$0xff]
      %v282 = vld [vmem:[%s252 + $0x50] sm:$0xff]
      %v283 = vld [vmem:[%s252 + $0x58] sm:$0xff]
      %v284 = vld [vmem:[%s252 + $0x60] sm:$0xff]
      %v285 = vld [vmem:[%s252 + $0x68] sm:$0xff]
      %v286 = vld [vmem:[%s252 + $0x70] sm:$0xff]
      %v287 = vld [vmem:[%s252 + $0x78] sm:$0xff]
      %v288 = vld [vmem:[%s252 + $0x80] sm:$0xff]
      %v289 = vld [vmem:[%s252 + $0x88] sm:$0xff]
      %v290 = vld [vmem:[%s252 + $0x90] sm:$0xff]
      %v291 = vld [vmem:[%s252 + $0x98] sm:$0xff]
      %v292 = vld [vmem:[%s252 + $0xa0] sm:$0xff]
      %v293 = vld [vmem:[%s252 + $0xa8] sm:$0xff]
      %v294 = vld [vmem:[%s252 + $0xb0] sm:$0xff]
      %v295 = vld [vmem:[%s252 + $0xb8] sm:$0xff]
      %v296 = vld [vmem:[%s252 + $0xc0] sm:$0xff]
      %v297 = vld [vmem:[%s252 + $0xc8] sm:$0xff]
      %v298 = vld [vmem:[%s252 + $0xd0] sm:$0xff]
      %v299 = vld [vmem:[%s252 + $0xd8] sm:$0xff]
      %v300 = vld [vmem:[%s252 + $0xe0] sm:$0xff]
      %v301 = vld [vmem:[%s252 + $0xe8] sm:$0xff]
      %v302 = vld [vmem:[%s252 + $0xf0] sm:$0xff]
      %v303 = vld [vmem:[%s252 + $0xf8] sm:$0xff]
      %v304 = vld [vmem:[%s3] sm:$0x1]
      %v306 = vlaneseq
      %v307 = vshrl.u32 %v306, 7
      %v308 = vsub.s32 0, %v307
      %v309 = vrot.slane %v304, %v308
      %v311 = vsub.f32 %v272, %v309
      %v312 = vsub.f32 %v273, %v309
      %v313 = vsub.f32 %v274, %v309
      %v314 = vsub.f32 %v275, %v309
      %v315 = vsub.f32 %v276, %v309
      %v316 = vsub.f32 %v277, %v309
      %v317 = vsub.f32 %v278, %v309
      %v318 = vsub.f32 %v279, %v309
      %v319 = vsub.f32 %v280, %v309
      %v320 = vsub.f32 %v281, %v309
      %v321 = vsub.f32 %v282, %v309
      %v322 = vsub.f32 %v283, %v309
      %v323 = vsub.f32 %v284, %v309
      %v324 = vsub.f32 %v285, %v309
      %v325 = vsub.f32 %v286, %v309
      %v326 = vsub.f32 %v287, %v309
      %v327 = vsub.f32 %v288, %v309
      %v328 = vsub.f32 %v289, %v309
      %v329 = vsub.f32 %v290, %v309
      %v330 = vsub.f32 %v291, %v309
      %v331 = vsub.f32 %v292, %v309
      %v332 = vsub.f32 %v293, %v309
      %v333 = vsub.f32 %v294, %v309
      %v334 = vsub.f32 %v295, %v309
      %v335 = vsub.f32 %v296, %v309
      %v336 = vsub.f32 %v297, %v309
      %v337 = vsub.f32 %v298, %v309
      %v338 = vsub.f32 %v299, %v309
      %v339 = vsub.f32 %v300, %v309
      %v340 = vsub.f32 %v301, %v309
      %v341 = vsub.f32 %v302, %v309
      %v342 = vsub.f32 %v303, %v309
      %v343 = vld [vmem:[%s4] sm:$0x1]
      %v345 = vlaneseq
      %v346 = vshrl.u32 %v345, 7
      %v347 = vsub.s32 0, %v346
      %v348 = vrot.slane %v343, %v347
      %v350 = vmul.f32 %v311, %v348
      %v351 = vmul.f32 %v312, %v348
      %v352 = vmul.f32 %v313, %v348
      %v353 = vmul.f32 %v314, %v348
      %v354 = vmul.f32 %v315, %v348
      %v355 = vmul.f32 %v316, %v348
      %v356 = vmul.f32 %v317, %v348
      %v357 = vmul.f32 %v318, %v348
      %v358 = vmul.f32 %v319, %v348
      %v359 = vmul.f32 %v320, %v348
      %v360 = vmul.f32 %v321, %v348
      %v361 = vmul.f32 %v322, %v348
      %v362 = vmul.f32 %v323, %v348
      %v363 = vmul.f32 %v324, %v348
      %v364 = vmul.f32 %v325, %v348
      %v365 = vmul.f32 %v326, %v348
      %v366 = vmul.f32 %v327, %v348
      %v367 = vmul.f32 %v328, %v348
      %v368 = vmul.f32 %v329, %v348
      %v369 = vmul.f32 %v330, %v348
      %v370 = vmul.f32 %v331, %v348
      %v371 = vmul.f32 %v332, %v348
      %v372 = vmul.f32 %v333, %v348
      %v373 = vmul.f32 %v334, %v348
      %v374 = vmul.f32 %v335, %v348
      %v375 = vmul.f32 %v336, %v348
      %v376 = vmul.f32 %v337, %v348
      %v377 = vmul.f32 %v338, %v348
      %v378 = vmul.f32 %v339, %v348
      %v379 = vmul.f32 %v340, %v348
      %v380 = vmul.f32 %v341, %v348
      %v381 = vmul.f32 %v342, %v348
      %v382 = vld [vmem:[%s258] sm:$0xff]
      %v383 = vld [vmem:[%s258 + $0x8] sm:$0xff]
      %v384 = vld [vmem:[%s258 + $0x10] sm:$0xff]
      %v385 = vld [vmem:[%s258 + $0x18] sm:$0xff]
      %v386 = vld [vmem:[%s258 + $0x20] sm:$0xff]
      %v387 = vld [vmem:[%s258 + $0x28] sm:$0xff]
      %v388 = vld [vmem:[%s258 + $0x30] sm:$0xff]
      %v389 = vld [vmem:[%s258 + $0x38] sm:$0xff]
      %v390 = vld [vmem:[%s258 + $0x40] sm:$0xff]
      %v391 = vld [vmem:[%s258 + $0x48] sm:$0xff]
      %v392 = vld [vmem:[%s258 + $0x50] sm:$0xff]
      %v393 = vld [vmem:[%s258 + $0x58] sm:$0xff]
      %v394 = vld [vmem:[%s258 + $0x60] sm:$0xff]
      %v395 = vld [vmem:[%s258 + $0x68] sm:$0xff]
      %v396 = vld [vmem:[%s258 + $0x70] sm:$0xff]
      %v397 = vld [vmem:[%s258 + $0x78] sm:$0xff]
      %v398 = vld [vmem:[%s258 + $0x80] sm:$0xff]
      %v399 = vld [vmem:[%s258 + $0x88] sm:$0xff]
      %v400 = vld [vmem:[%s258 + $0x90] sm:$0xff]
      %v401 = vld [vmem:[%s258 + $0x98] sm:$0xff]
      %v402 = vld [vmem:[%s258 + $0xa0] sm:$0xff]
      %v403 = vld [vmem:[%s258 + $0xa8] sm:$0xff]
      %v404 = vld [vmem:[%s258 + $0xb0] sm:$0xff]
      %v405 = vld [vmem:[%s258 + $0xb8] sm:$0xff]
      %v406 = vld [vmem:[%s258 + $0xc0] sm:$0xff]
      %v407 = vld [vmem:[%s258 + $0xc8] sm:$0xff]
      %v408 = vld [vmem:[%s258 + $0xd0] sm:$0xff]
      %v409 = vld [vmem:[%s258 + $0xd8] sm:$0xff]
      %v410 = vld [vmem:[%s258 + $0xe0] sm:$0xff]
      %v411 = vld [vmem:[%s258 + $0xe8] sm:$0xff]
      %v412 = vld [vmem:[%s258 + $0xf0] sm:$0xff]
      %v413 = vld [vmem:[%s258 + $0xf8] sm:$0xff]
      %v414 = vadd.f32 %v382, 1.0
      %v415 = vadd.f32 %v383, 1.0
      %v416 = vadd.f32 %v384, 1.0
      %v417 = vadd.f32 %v385, 1.0
      %v418 = vadd.f32 %v386, 1.0
      %v419 = vadd.f32 %v387, 1.0
      %v420 = vadd.f32 %v388, 1.0
      %v421 = vadd.f32 %v389, 1.0
      %v422 = vadd.f32 %v390, 1.0
      %v423 = vadd.f32 %v391, 1.0
      %v424 = vadd.f32 %v392, 1.0
      %v425 = vadd.f32 %v393, 1.0
      %v426 = vadd.f32 %v394, 1.0
      %v427 = vadd.f32 %v395, 1.0
      %v428 = vadd.f32 %v396, 1.0
      %v429 = vadd.f32 %v397, 1.0
      %v430 = vadd.f32 %v398, 1.0
      %v431 = vadd.f32 %v399, 1.0
      %v432 = vadd.f32 %v400, 1.0
      %v433 = vadd.f32 %v401, 1.0
      %v434 = vadd.f32 %v402, 1.0
      %v435 = vadd.f32 %v403, 1.0
      %v436 = vadd.f32 %v404, 1.0
      %v437 = vadd.f32 %v405, 1.0
      %v438 = vadd.f32 %v406, 1.0
      %v439 = vadd.f32 %v407, 1.0
      %v440 = vadd.f32 %v408, 1.0
      %v441 = vadd.f32 %v409, 1.0
      %v442 = vadd.f32 %v410, 1.0
      %v443 = vadd.f32 %v411, 1.0
      %v444 = vadd.f32 %v412, 1.0
      %v445 = vadd.f32 %v413, 1.0
      %v446 = vmul.f32 %v350, %v414
      %v447 = vmul.f32 %v351, %v415
      %v448 = vmul.f32 %v352, %v416
      %v449 = vmul.f32 %v353, %v417
      %v450 = vmul.f32 %v354, %v418
      %v451 = vmul.f32 %v355, %v419
      %v452 = vmul.f32 %v356, %v420
      %v453 = vmul.f32 %v357, %v421
      %v454 = vmul.f32 %v358, %v422
      %v455 = vmul.f32 %v359, %v423
      %v456 = vmul.f32 %v360, %v424
      %v457 = vmul.f32 %v361, %v425
      %v458 = vmul.f32 %v362, %v426
      %v459 = vmul.f32 %v363, %v427
      %v460 = vmul.f32 %v364, %v428
      %v461 = vmul.f32 %v365, %v429
      %v462 = vmul.f32 %v366, %v430
      %v463 = vmul.f32 %v367, %v431
      %v464 = vmul.f32 %v368, %v432
      %v465 = vmul.f32 %v369, %v433
      %v466 = vmul.f32 %v370, %v434
      %v467 = vmul.f32 %v371, %v435
      %v468 = vmul.f32 %v372, %v436
      %v469 = vmul.f32 %v373, %v437
      %v470 = vmul.f32 %v374, %v438
      %v471 = vmul.f32 %v375, %v439
      %v472 = vmul.f32 %v376, %v440
      %v473 = vmul.f32 %v377, %v441
      %v474 = vmul.f32 %v378, %v442
      %v475 = vmul.f32 %v379, %v443
      %v476 = vmul.f32 %v380, %v444
      %v477 = vmul.f32 %v381, %v445
      %v478 = vld [vmem:[%s264] sm:$0xff]
      %v479 = vld [vmem:[%s264 + $0x8] sm:$0xff]
      %v480 = vld [vmem:[%s264 + $0x10] sm:$0xff]
      %v481 = vld [vmem:[%s264 + $0x18] sm:$0xff]
      %v482 = vld [vmem:[%s264 + $0x20] sm:$0xff]
      %v483 = vld [vmem:[%s264 + $0x28] sm:$0xff]
      %v484 = vld [vmem:[%s264 + $0x30] sm:$0xff]
      %v485 = vld [vmem:[%s264 + $0x38] sm:$0xff]
      %v486 = vld [vmem:[%s264 + $0x40] sm:$0xff]
      %v487 = vld [vmem:[%s264 + $0x48] sm:$0xff]
      %v488 = vld [vmem:[%s264 + $0x50] sm:$0xff]
      %v489 = vld [vmem:[%s264 + $0x58] sm:$0xff]
      %v490 = vld [vmem:[%s264 + $0x60] sm:$0xff]
      %v491 = vld [vmem:[%s264 + $0x68] sm:$0xff]
      %v492 = vld [vmem:[%s264 + $0x70] sm:$0xff]
      %v493 = vld [vmem:[%s264 + $0x78] sm:$0xff]
      %v494 = vld [vmem:[%s264 + $0x80] sm:$0xff]
      %v495 = vld [vmem:[%s264 + $0x88] sm:$0xff]
      %v496 = vld [vmem:[%s264 + $0x90] sm:$0xff]
      %v497 = vld [vmem:[%s264 + $0x98] sm:$0xff]
      %v498 = vld [vmem:[%s264 + $0xa0] sm:$0xff]
      %v499 = vld [vmem:[%s264 + $0xa8] sm:$0xff]
      %v500 = vld [vmem:[%s264 + $0xb0] sm:$0xff]
      %v501 = vld [vmem:[%s264 + $0xb8] sm:$0xff]
      %v502 = vld [vmem:[%s264 + $0xc0] sm:$0xff]
      %v503 = vld [vmem:[%s264 + $0xc8] sm:$0xff]
      %v504 = vld [vmem:[%s264 + $0xd0] sm:$0xff]
      %v505 = vld [vmem:[%s264 + $0xd8] sm:$0xff]
      %v506 = vld [vmem:[%s264 + $0xe0] sm:$0xff]
      %v507 = vld [vmem:[%s264 + $0xe8] sm:$0xff]
      %v508 = vld [vmem:[%s264 + $0xf0] sm:$0xff]
      %v509 = vld [vmem:[%s264 + $0xf8] sm:$0xff]
      %v510 = vadd.f32 %v446, %v478
      %v511 = vadd.f32 %v447, %v479
      %v512 = vadd.f32 %v448, %v480
      %v513 = vadd.f32 %v449, %v481
      %v514 = vadd.f32 %v450, %v482
      %v515 = vadd.f32 %v451, %v483
      %v516 = vadd.f32 %v452, %v484
      %v517 = vadd.f32 %v453, %v485
      %v518 = vadd.f32 %v454, %v486
      %v519 = vadd.f32 %v455, %v487
      %v520 = vadd.f32 %v456, %v488
      %v521 = vadd.f32 %v457, %v489
      %v522 = vadd.f32 %v458, %v490
      %v523 = vadd.f32 %v459, %v491
      %v524 = vadd.f32 %v460, %v492
      %v525 = vadd.f32 %v461, %v493
      %v526 = vadd.f32 %v462, %v494
      %v527 = vadd.f32 %v463, %v495
      %v528 = vadd.f32 %v464, %v496
      %v529 = vadd.f32 %v465, %v497
      %v530 = vadd.f32 %v466, %v498
      %v531 = vadd.f32 %v467, %v499
      %v532 = vadd.f32 %v468, %v500
      %v533 = vadd.f32 %v469, %v501
      %v534 = vadd.f32 %v470, %v502
      %v535 = vadd.f32 %v471, %v503
      %v536 = vadd.f32 %v472, %v504
      %v537 = vadd.f32 %v473, %v505
      %v538 = vadd.f32 %v474, %v506
      %v539 = vadd.f32 %v475, %v507
      %v540 = vadd.f32 %v476, %v508
      %v541 = vadd.f32 %v477, %v509
      %vm542 = vcmp.ge.f32.partialorder %v510, 0.0
      %vm543 = vcmp.ge.f32.partialorder %v511, 0.0
      %vm544 = vcmp.ge.f32.partialorder %v512, 0.0
      %vm545 = vcmp.ge.f32.partialorder %v513, 0.0
      %vm546 = vcmp.ge.f32.partialorder %v514, 0.0
      %vm547 = vcmp.ge.f32.partialorder %v515, 0.0
      %vm548 = vcmp.ge.f32.partialorder %v516, 0.0
      %vm549 = vcmp.ge.f32.partialorder %v517, 0.0
      %vm550 = vcmp.ge.f32.partialorder %v518, 0.0
      %vm551 = vcmp.ge.f32.partialorder %v519, 0.0
      %vm552 = vcmp.ge.f32.partialorder %v520, 0.0
      %vm553 = vcmp.ge.f32.partialorder %v521, 0.0
      %vm554 = vcmp.ge.f32.partialorder %v522, 0.0
      %vm555 = vcmp.ge.f32.partialorder %v523, 0.0
      %vm556 = vcmp.ge.f32.partialorder %v524, 0.0
      %vm557 = vcmp.ge.f32.partialorder %v525, 0.0
      %vm558 = vcmp.ge.f32.partialorder %v526, 0.0
      %vm559 = vcmp.ge.f32.partialorder %v527, 0.0
      %vm560 = vcmp.ge.f32.partialorder %v528, 0.0
      %vm561 = vcmp.ge.f32.partialorder %v529, 0.0
      %vm562 = vcmp.ge.f32.partialorder %v530, 0.0
      %vm563 = vcmp.ge.f32.partialorder %v531, 0.0
      %vm564 = vcmp.ge.f32.partialorder %v532, 0.0
      %vm565 = vcmp.ge.f32.partialorder %v533, 0.0
      %vm566 = vcmp.ge.f32.partialorder %v534, 0.0
      %vm567 = vcmp.ge.f32.partialorder %v535, 0.0
      %vm568 = vcmp.ge.f32.partialorder %v536, 0.0
      %vm569 = vcmp.ge.f32.partialorder %v537, 0.0
      %vm570 = vcmp.ge.f32.partialorder %v538, 0.0
      %vm571 = vcmp.ge.f32.partialorder %v539, 0.0
      %vm572 = vcmp.ge.f32.partialorder %v540, 0.0
      %vm573 = vcmp.ge.f32.partialorder %v541, 0.0
      %v574 = vmul.f32 %v510, 0.2
      %v575 = vmul.f32 %v511, 0.2
      %v576 = vmul.f32 %v512, 0.2
      %v577 = vmul.f32 %v513, 0.2
      %v578 = vmul.f32 %v514, 0.2
      %v579 = vmul.f32 %v515, 0.2
      %v580 = vmul.f32 %v516, 0.2
      %v581 = vmul.f32 %v517, 0.2
      %v582 = vmul.f32 %v518, 0.2
      %v583 = vmul.f32 %v519, 0.2
      %v584 = vmul.f32 %v520, 0.2
      %v585 = vmul.f32 %v521, 0.2
      %v586 = vmul.f32 %v522, 0.2
      %v587 = vmul.f32 %v523, 0.2
      %v588 = vmul.f32 %v524, 0.2
      %v589 = vmul.f32 %v525, 0.2
      %v590 = vmul.f32 %v526, 0.2
      %v591 = vmul.f32 %v527, 0.2
      %v592 = vmul.f32 %v528, 0.2
      %v593 = vmul.f32 %v529, 0.2
      %v594 = vmul.f32 %v530, 0.2
      %v595 = vmul.f32 %v531, 0.2
      %v596 = vmul.f32 %v532, 0.2
      %v597 = vmul.f32 %v533, 0.2
      %v598 = vmul.f32 %v534, 0.2
      %v599 = vmul.f32 %v535, 0.2
      %v600 = vmul.f32 %v536, 0.2
      %v601 = vmul.f32 %v537, 0.2
      %v602 = vmul.f32 %v538, 0.2
      %v603 = vmul.f32 %v539, 0.2
      %v604 = vmul.f32 %v540, 0.2
      %v605 = vmul.f32 %v541, 0.2
      %v606 = vsel %vm542, %v510, %v574
      %v607 = vsel %vm543, %v511, %v575
      %v608 = vsel %vm544, %v512, %v576
      %v609 = vsel %vm545, %v513, %v577
      %v610 = vsel %vm546, %v514, %v578
      %v611 = vsel %vm547, %v515, %v579
      %v612 = vsel %vm548, %v516, %v580
      %v613 = vsel %vm549, %v517, %v581
      %v614 = vsel %vm550, %v518, %v582
      %v615 = vsel %vm551, %v519, %v583
      %v616 = vsel %vm552, %v520, %v584
      %v617 = vsel %vm553, %v521, %v585
      %v618 = vsel %vm554, %v522, %v586
      %v619 = vsel %vm555, %v523, %v587
      %v620 = vsel %vm556, %v524, %v588
      %v621 = vsel %vm557, %v525, %v589
      %v622 = vsel %vm558, %v526, %v590
      %v623 = vsel %vm559, %v527, %v591
      %v624 = vsel %vm560, %v528, %v592
      %v625 = vsel %vm561, %v529, %v593
      %v626 = vsel %vm562, %v530, %v594
      %v627 = vsel %vm563, %v531, %v595
      %v628 = vsel %vm564, %v532, %v596
      %v629 = vsel %vm565, %v533, %v597
      %v630 = vsel %vm566, %v534, %v598
      %v631 = vsel %vm567, %v535, %v599
      %v632 = vsel %vm568, %v536, %v600
      %v633 = vsel %vm569, %v537, %v601
      %v634 = vsel %vm570, %v538, %v602
      %v635 = vsel %vm571, %v539, %v603
      %v636 = vsel %vm572, %v540, %v604
      %v637 = vsel %vm573, %v541, %v605
      %vm638 = vcmask 523264
      %639 = vst.msk [vmem:[%s270] sm:$0xff] %vm638, %v606
      %640 = vst.msk [vmem:[%s270 + $0x8] sm:$0xff] %vm638, %v607
      %641 = vst.msk [vmem:[%s270 + $0x10] sm:$0xff] %vm638, %v608
      %642 = vst.msk [vmem:[%s270 + $0x18] sm:$0xff] %vm638, %v609
      %643 = vst.msk [vmem:[%s270 + $0x20] sm:$0xff] %vm638, %v610
      %644 = vst.msk [vmem:[%s270 + $0x28] sm:$0xff] %vm638, %v611
      %645 = vst.msk [vmem:[%s270 + $0x30] sm:$0xff] %vm638, %v612
      %646 = vst.msk [vmem:[%s270 + $0x38] sm:$0xff] %vm638, %v613
      %647 = vst.msk [vmem:[%s270 + $0x40] sm:$0xff] %vm638, %v614
      %648 = vst.msk [vmem:[%s270 + $0x48] sm:$0xff] %vm638, %v615
      %649 = vst.msk [vmem:[%s270 + $0x50] sm:$0xff] %vm638, %v616
      %650 = vst.msk [vmem:[%s270 + $0x58] sm:$0xff] %vm638, %v617
      %651 = vst.msk [vmem:[%s270 + $0x60] sm:$0xff] %vm638, %v618
      %652 = vst.msk [vmem:[%s270 + $0x68] sm:$0xff] %vm638, %v619
      %653 = vst.msk [vmem:[%s270 + $0x70] sm:$0xff] %vm638, %v620
      %654 = vst.msk [vmem:[%s270 + $0x78] sm:$0xff] %vm638, %v621
      %655 = vst.msk [vmem:[%s270 + $0x80] sm:$0xff] %vm638, %v622
      %656 = vst.msk [vmem:[%s270 + $0x88] sm:$0xff] %vm638, %v623
      %657 = vst.msk [vmem:[%s270 + $0x90] sm:$0xff] %vm638, %v624
      %658 = vst.msk [vmem:[%s270 + $0x98] sm:$0xff] %vm638, %v625
      %659 = vst.msk [vmem:[%s270 + $0xa0] sm:$0xff] %vm638, %v626
      %660 = vst.msk [vmem:[%s270 + $0xa8] sm:$0xff] %vm638, %v627
      %661 = vst.msk [vmem:[%s270 + $0xb0] sm:$0xff] %vm638, %v628
      %662 = vst.msk [vmem:[%s270 + $0xb8] sm:$0xff] %vm638, %v629
      %663 = vst.msk [vmem:[%s270 + $0xc0] sm:$0xff] %vm638, %v630
      %664 = vst.msk [vmem:[%s270 + $0xc8] sm:$0xff] %vm638, %v631
      %665 = vst.msk [vmem:[%s270 + $0xd0] sm:$0xff] %vm638, %v632
      %666 = vst.msk [vmem:[%s270 + $0xd8] sm:$0xff] %vm638, %v633
      %667 = vst.msk [vmem:[%s270 + $0xe0] sm:$0xff] %vm638, %v634
      %668 = vst.msk [vmem:[%s270 + $0xe8] sm:$0xff] %vm638, %v635
      %669 = vst.msk [vmem:[%s270 + $0xf0] sm:$0xff] %vm638, %v636
      %670 = vst.msk [vmem:[%s270 + $0xf8] sm:$0xff] %vm638, %v637
      %s671 = smul.u32 32, %s16
      %p672 = scmp.lt.s32.totalorder %s671, 63
      %s673 = scalar_select %p672, %s671, 63
      %s674 = smul.addr %s673, 8
      %s675 = scalar_lea.vmem %s5, %s674
      // Predicated region
      $region41: #{spade_resnet_block_forward.27} parent=39 // pred_check
        %p676 = pneg %p154
      $region42: #{spade_resnet_block_forward.27} parent=39 // pred_check_branch
        %678 = sbr.rel (%p676) target = $region44
      $region43: #{spade_resnet_block_forward.27} parent=39 // pred_region
        %s679 = smul.u32 32, %s16
      $region44: #{spade_resnet_block_forward.27} parent=39 // pred_fallthru
        _
    $region40: #{spade_resnet_block_forward.27} parent=5 // pred_fallthru
      _
    %p680 = scmp.le.s32.totalorder 2, %s11
    // Predicated region
    $region45: #{spade_resnet_block_forward.27} parent=5 // pred_check
      %p681 = pneg %p680
    $region46: #{spade_resnet_block_forward.27} parent=5 // pred_check_branch
      %683 = sbr.rel (%p681) target = $region48
    $region47: #{spade_resnet_block_forward.27} parent=5 // pred_region
      %s684 = ssub.s32 %s11, 2
      // Predicated region
      $region49: #{spade_resnet_block_forward.27} parent=47 // pred_check
        %p685 = pneg %p160
      $region50: #{spade_resnet_block_forward.27} parent=47 // pred_check_branch
        %687 = sbr.rel (%p685) target = $region52
      $region51: #{spade_resnet_block_forward.27} parent=47 // pred_region
        %s688 = smul.u32 32, %s17
        %p689 = scmp.lt.s32.totalorder %s688, 63
        %s690 = scalar_select %p689, %s688, 63
        %s691 = smul.addr %s690, 8
        %s692 = scalar_lea.vmem %s5, %s691
      $region52: #{spade_resnet_block_forward.27} parent=47 // pred_fallthru
        _
    $region48: #{spade_resnet_block_forward.27} parent=5 // pred_fallthru
      _
  $region6: #{spade_resnet_block_forward.27} parent=0 // loop_footer
    %s15 = sadd.s32 1, %s11
  $region7: #{spade_resnet_block_forward.27} parent=0 // loop_footer_branch
    %10 = sbr.rel target = $region3
  $region8: #{spade_resnet_block_forward.27} parent=0 // loop_exit
    _

// kernel: spade_resnet_block_forward.21
$region0: #{spade_resnet_block_forward.21}
  #allocation0 [shape = 'u32[]', space=smem, size = 0x4, offset = 0x4, fixed_abs, tag = 'smem constant byte address 0x4 - core index']
  #allocation1 [shape = 'u32[144,128]{1,0:T(1,128)}', space=vmem, size = 0x12000, scoped, tag = 'internal scratch']
  %s0 = inlined_call_operand.vmem [shape: f32[512,64], index: 0, kind: input, shape index: {}]
  %s1 = inlined_call_operand.vmem [shape: f32[512,64], index: 1, kind: input, shape index: {}]
  %s2 = inlined_call_operand.vmem [shape: f32[512,64], index: 2, kind: input, shape index: {}]
  %s3 = inlined_call_operand.vmem [shape: f32[1,64], index: 3, kind: input, shape index: {}]
  %s4 = inlined_call_operand.vmem [shape: f32[1,64], index: 4, kind: input, shape index: {}]
  %s5 = inlined_call_operand.vmem [shape: f32[512,64], index: 5, kind: output, shape index: {}]
  %s6 = sld [smem:[#allocation0]]
  $region53: #{spade_resnet_block_forward.21} parent=0
    _
  %s8 = ssub.s32 1, %s6
  %s9 = scalar_select 0, %s8, %s6
  loop: start=0, step=1, limit=4
  $region2: #{spade_resnet_block_forward.21} parent=0 // loop_pre_header
    _
  $region3: #{spade_resnet_block_forward.21} parent=0 // loop_header
    %s11 = sphi 0, %s15
    %p12 = scmp.ge.s32.totalorder %s11, 4
    %s21 = sphi 0, %s23
    %s24 = sphi 0, %s21
    %s25 = sphi 0, %s24
    %s41 = sphi 0, %s25
    %s47 = sphi 0, %s49
    %s50 = sphi 0, %s47
    %s51 = sphi 0, %s50
    %s67 = sphi 0, %s51
    %s73 = sphi 0, %s75
    %s76 = sphi 0, %s73
    %s77 = sphi 0, %s76
    %s93 = sphi 0, %s77
    %s97 = sphi 0, %s97
    %s99 = sphi 0, %s97
    %s100 = sphi 0, %s99
    %s114 = sphi 0, %s100
    %s118 = sphi 0, %s118
    %s120 = sphi 0, %s118
    %s121 = sphi 0, %s120
    %s135 = sphi 0, %s121
    %s141 = sphi 0, %s143
    %s144 = sphi 0, %s141
    %s145 = sphi 0, %s144
    %s161 = sphi 0, %s145
  $region4: #{spade_resnet_block_forward.21} parent=0 // loop_header_branch
    %14 = sbr.rel (%p12) target = $region8
  $region5: #{spade_resnet_block_forward.21} parent=0 // loop_body
    %s16 = ssub.s32 %s11, 1
    %s17 = ssub.s32 %s11, 2
    %s18 = sadd.s32 %s11, 1
    %s19 = ssub.s32 %s11, %s18
    %p20 = scmp.eq.s32.totalorder %s19, 0
    %s22 = sadd.s32 %s21, 1
    %s23 = scalar_select %p20, %s21, %s22
    %p26 = pneg %p20
    %p27 = scmp.eq.s32.totalorder %s11, 1
    %p28 = por %p26, %p27
    %p29 = scmp.ne.s32.totalorder %s21, %s24
    %p30 = scmp.eq.s32.totalorder %s11, 0
    %p31 = por %p29, %p30
    %p32 = scmp.ne.s32.totalorder %s21, %s24
    %p33 = scmp.eq.s32.totalorder %s16, 1
    %p34 = por %p32, %p33
    %p35 = scmp.ne.s32.totalorder %s24, %s25
    %p36 = scmp.eq.s32.totalorder %s16, 0
    %p37 = por %p35, %p36
    %p38 = scmp.ne.s32.totalorder %s24, %s25
    %p39 = scmp.eq.s32.totalorder %s17, 1
    %p40 = por %p38, %p39
    %p42 = scmp.ne.s32.totalorder %s25, %s41
    %p43 = scmp.eq.s32.totalorder %s17, 0
    %p44 = por %p42, %p43
    %s45 = ssub.s32 %s11, %s18
    %p46 = scmp.eq.s32.totalorder %s45, 0
    %s48 = sadd.s32 %s47, 1
    %s49 = scalar_select %p46, %s47, %s48
    %p52 = pneg %p46
    %p53 = scmp.eq.s32.totalorder %s11, 1
    %p54 = por %p52, %p53
    %p55 = scmp.ne.s32.totalorder %s47, %s50
    %p56 = scmp.eq.s32.totalorder %s11, 0
    %p57 = por %p55, %p56
    %p58 = scmp.ne.s32.totalorder %s47, %s50
    %p59 = scmp.eq.s32.totalorder %s16, 1
    %p60 = por %p58, %p59
    %p61 = scmp.ne.s32.totalorder %s50, %s51
    %p62 = scmp.eq.s32.totalorder %s16, 0
    %p63 = por %p61, %p62
    %p64 = scmp.ne.s32.totalorder %s50, %s51
    %p65 = scmp.eq.s32.totalorder %s17, 1
    %p66 = por %p64, %p65
    %p68 = scmp.ne.s32.totalorder %s51, %s67
    %p69 = scmp.eq.s32.totalorder %s17, 0
    %p70 = por %p68, %p69
    %s71 = ssub.s32 %s11, %s18
    %p72 = scmp.eq.s32.totalorder %s71, 0
    %s74 = sadd.s32 %s73, 1
    %s75 = scalar_select %p72, %s73, %s74
    %p78 = pneg %p72
    %p79 = scmp.eq.s32.totalorder %s11, 1
    %p80 = por %p78, %p79
    %p81 = scmp.ne.s32.totalorder %s73, %s76
    %p82 = scmp.eq.s32.totalorder %s11, 0
    %p83 = por %p81, %p82
    %p84 = scmp.ne.s32.totalorder %s73, %s76
    %p85 = scmp.eq.s32.totalorder %s16, 1
    %p86 = por %p84, %p85
    %p87 = scmp.ne.s32.totalorder %s76, %s77
    %p88 = scmp.eq.s32.totalorder %s16, 0
    %p89 = por %p87, %p88
    %p90 = scmp.ne.s32.totalorder %s76, %s77
    %p91 = scmp.eq.s32.totalorder %s17, 1
    %p92 = por %p90, %p91
    %p94 = scmp.ne.s32.totalorder %s77, %s93
    %p95 = scmp.eq.s32.totalorder %s17, 0
    %p96 = por %p94, %p95
    %s98 = sadd.s32 %s97, 1
    %p101 = scmp.eq.s32.totalorder %s11, 1
    %p102 = scmp.ne.s32.totalorder %s97, %s99
    %p103 = scmp.eq.s32.totalorder %s11, 0
    %p104 = por %p102, %p103
    %p105 = scmp.ne.s32.totalorder %s97, %s99
    %p106 = scmp.eq.s32.totalorder %s16, 1
    %p107 = por %p105, %p106
    %p108 = scmp.ne.s32.totalorder %s99, %s100
    %p109 = scmp.eq.s32.totalorder %s16, 0
    %p110 = por %p108, %p109
    %p111 = scmp.ne.s32.totalorder %s99, %s100
    %p112 = scmp.eq.s32.totalorder %s17, 1
    %p113 = por %p111, %p112
    %p115 = scmp.ne.s32.totalorder %s100, %s114
    %p116 = scmp.eq.s32.totalorder %s17, 0
    %p117 = por %p115, %p116
    %s119 = sadd.s32 %s118, 1
    %p122 = scmp.eq.s32.totalorder %s11, 1
    %p123 = scmp.ne.s32.totalorder %s118, %s120
    %p124 = scmp.eq.s32.totalorder %s11, 0
    %p125 = por %p123, %p124
    %p126 = scmp.ne.s32.totalorder %s118, %s120
    %p127 = scmp.eq.s32.totalorder %s16, 1
    %p128 = por %p126, %p127
    %p129 = scmp.ne.s32.totalorder %s120, %s121
    %p130 = scmp.eq.s32.totalorder %s16, 0
    %p131 = por %p129, %p130
    %p132 = scmp.ne.s32.totalorder %s120, %s121
    %p133 = scmp.eq.s32.totalorder %s17, 1
    %p134 = por %p132, %p133
    %p136 = scmp.ne.s32.totalorder %s121, %s135
    %p137 = scmp.eq.s32.totalorder %s17, 0
    %p138 = por %p136, %p137
    %s139 = ssub.s32 %s11, %s18
    %p140 = scmp.eq.s32.totalorder %s139, 0
    %s142 = sadd.s32 %s141, 1
    %s143 = scalar_select %p140, %s141, %s142
    %p146 = pneg %p140
    %p147 = scmp.eq.s32.totalorder %s11, 1
    %p148 = por %p146, %p147
    %p149 = scmp.ne.s32.totalorder %s141, %s144
    %p150 = scmp.eq.s32.totalorder %s11, 0
    %p151 = por %p149, %p150
    %p152 = scmp.ne.s32.totalorder %s141, %s144
    %p153 = scmp.eq.s32.totalorder %s16, 1
    %p154 = por %p152, %p153
    %p155 = scmp.ne.s32.totalorder %s144, %s145
    %p156 = scmp.eq.s32.totalorder %s16, 0
    %p157 = por %p155, %p156
    %p158 = scmp.ne.s32.totalorder %s144, %s145
    %p159 = scmp.eq.s32.totalorder %s17, 1
    %p160 = por %p158, %p159
    %p162 = scmp.ne.s32.totalorder %s145, %s161
    %p163 = scmp.eq.s32.totalorder %s17, 0
    %p164 = por %p162, %p163
    %p165 = scmp.le.s32.totalorder 1, %s11
    %p166 = scmp.lt.s32.totalorder %s11, 3
    %p167 = pnand %p165, %p166
    %p168 = pneg %p167
    // Predicated region
    $region9: #{spade_resnet_block_forward.21} parent=5 // pred_check
      _
    $region10: #{spade_resnet_block_forward.21} parent=5 // pred_check_branch
      %170 = sbr.rel (%p167) target = $region12
    $region11: #{spade_resnet_block_forward.21} parent=5 // pred_region
      %s171 = ssub.s32 %s11, 1
      // Predicated region
      $region13: #{spade_resnet_block_forward.21} parent=11 // pred_check
        %p172 = pneg %p110
      $region14: #{spade_resnet_block_forward.21} parent=11 // pred_check_branch
        %174 = sbr.rel (%p172) target = $region16
      $region15: #{spade_resnet_block_forward.21} parent=11 // pred_region
        _
      $region16: #{spade_resnet_block_forward.21} parent=11 // pred_fallthru
        _
      // Predicated region
      $region17: #{spade_resnet_block_forward.21} parent=11 // pred_check
        %p175 = pneg %p131
      $region18: #{spade_resnet_block_forward.21} parent=11 // pred_check_branch
        %177 = sbr.rel (%p175) target = $region20
      $region19: #{spade_resnet_block_forward.21} parent=11 // pred_region
        _
      $region20: #{spade_resnet_block_forward.21} parent=11 // pred_fallthru
        _
    $region12: #{spade_resnet_block_forward.21} parent=5 // pred_fallthru
      _
    %p178 = scmp.lt.s32.totalorder %s11, 2
    // Predicated region
    $region21: #{spade_resnet_block_forward.21} parent=5 // pred_check
      %p179 = pneg %p178
    $region22: #{spade_resnet_block_forward.21} parent=5 // pred_check_branch
      %181 = sbr.rel (%p179) target = $region24
    $region23: #{spade_resnet_block_forward.21} parent=5 // pred_region
      // Predicated region
      $region25: #{spade_resnet_block_forward.21} parent=23 // pred_check
        %p182 = pneg %p31
      $region26: #{spade_resnet_block_forward.21} parent=23 // pred_check_branch
        %184 = sbr.rel (%p182) target = $region28
      $region27: #{spade_resnet_block_forward.21} parent=23 // pred_region
        %s185 = smul.u32 32, %s11
        %p186 = scmp.lt.s32.totalorder %s185, 63
        %s187 = scalar_select %p186, %s185, 63
        %s188 = smul.addr %s187, 8
        %s189 = scalar_lea.vmem %s0, %s188
        %s190 = smul.u32 32, %s11
      $region28: #{spade_resnet_block_forward.21} parent=23 // pred_fallthru
        _
      // Predicated region
      $region29: #{spade_resnet_block_forward.21} parent=23 // pred_check
        %p191 = pneg %p57
      $region30: #{spade_resnet_block_forward.21} parent=23 // pred_check_branch
        %193 = sbr.rel (%p191) target = $region32
      $region31: #{spade_resnet_block_forward.21} parent=23 // pred_region
        %s194 = smul.u32 32, %s11
        %p195 = scmp.lt.s32.totalorder %s194, 63
        %s196 = scalar_select %p195, %s194, 63
        %s197 = smul.addr %s196, 8
        %s198 = scalar_lea.vmem %s1, %s197
        %s199 = smul.u32 32, %s11
      $region32: #{spade_resnet_block_forward.21} parent=23 // pred_fallthru
        _
      // Predicated region
      $region33: #{spade_resnet_block_forward.21} parent=23 // pred_check
        %p200 = pneg %p83
      $region34: #{spade_resnet_block_forward.21} parent=23 // pred_check_branch
        %202 = sbr.rel (%p200) target = $region36
      $region35: #{spade_resnet_block_forward.21} parent=23 // pred_region
        %s203 = smul.u32 32, %s11
        %p204 = scmp.lt.s32.totalorder %s203, 63
        %s205 = scalar_select %p204, %s203, 63
        %s206 = smul.addr %s205, 8
        %s207 = scalar_lea.vmem %s2, %s206
        %s208 = smul.u32 32, %s11
      $region36: #{spade_resnet_block_forward.21} parent=23 // pred_fallthru
        _
    $region24: #{spade_resnet_block_forward.21} parent=5 // pred_fallthru
      _
    %p209 = scmp.le.s32.totalorder 1, %s11
    %p210 = scmp.lt.s32.totalorder %s11, 3
    %p211 = pnand %p209, %p210
    %p212 = pneg %p211
    // Predicated region
    $region37: #{spade_resnet_block_forward.21} parent=5 // pred_check
      _
    $region38: #{spade_resnet_block_forward.21} parent=5 // pred_check_branch
      %214 = sbr.rel (%p211) target = $region40
    $region39: #{spade_resnet_block_forward.21} parent=5 // pred_region
      %s215 = ssub.s32 %s11, 1
      %s216 = smul.u32 32, %s16
      %p217 = scmp.lt.s32.totalorder %s216, 63
      %s218 = scalar_select %p217, %s216, 63
      %s219 = smul.addr %s218, 8
      %s220 = scalar_lea.vmem %s0, %s219
      %p221 = pneg %p37
      %p222 = pneg %p34
      %s223 = smul.u32 32, %s16
      %p224 = scmp.lt.s32.totalorder %s223, 63
      %s225 = scalar_select %p224, %s223, 63
      %s226 = smul.addr %s225, 8
      %s227 = scalar_lea.vmem %s1, %s226
      %p228 = pneg %p63
      %p229 = pneg %p60
      %s230 = smul.u32 32, %s16
      %p231 = scmp.lt.s32.totalorder %s230, 63
      %s232 = scalar_select %p231, %s230, 63
      %s233 = smul.addr %s232, 8
      %s234 = scalar_lea.vmem %s2, %s233
      %p235 = pneg %p89
      %p236 = pneg %p86
      %p237 = pneg %p110
      %p238 = pneg %p107
      %p239 = pneg %p131
      %p240 = pneg %p128
      %p241 = pneg %p157
      %p242 = pneg %p154
      %s243 = smul.u32 32, %s16
      %p244 = scmp.lt.s32.totalorder %s243, 63
      %s245 = scalar_select %p244, %s243, 63
      %s246 = smul.addr %s245, 8
      %s247 = scalar_lea.vmem %s5, %s246
      %s248 = smul.u32 32, %s16
      %p249 = scmp.lt.s32.totalorder %s248, 63
      %s250 = scalar_select %p249, %s248, 63
      %s251 = smul.addr %s250, 8
      %s252 = scalar_lea.vmem %s0, %s251
      %s253 = smul.u32 32, %s16
      %s254 = smul.u32 32, %s16
      %p255 = scmp.lt.s32.totalorder %s254, 63
      %s256 = scalar_select %p255, %s254, 63
      %s257 = smul.addr %s256, 8
      %s258 = scalar_lea.vmem %s1, %s257
      %s259 = smul.u32 32, %s16
      %s260 = smul.u32 32, %s16
      %p261 = scmp.lt.s32.totalorder %s260, 63
      %s262 = scalar_select %p261, %s260, 63
      %s263 = smul.addr %s262, 8
      %s264 = scalar_lea.vmem %s2, %s263
      %s265 = smul.u32 32, %s16
      %s266 = smul.u32 32, %s16
      %p267 = scmp.lt.s32.totalorder %s266, 63
      %s268 = scalar_select %p267, %s266, 63
      %s269 = smul.addr %s268, 8
      %s270 = scalar_lea.vmem %s5, %s269
      %s271 = smul.u32 32, %s16
      %v272 = vld [vmem:[%s252] sm:$0xff]
      %v273 = vld [vmem:[%s252 + $0x8] sm:$0xff]
      %v274 = vld [vmem:[%s252 + $0x10] sm:$0xff]
      %v275 = vld [vmem:[%s252 + $0x18] sm:$0xff]
      %v276 = vld [vmem:[%s252 + $0x20] sm:$0xff]
      %v277 = vld [vmem:[%s252 + $0x28] sm:$0xff]
      %v278 = vld [vmem:[%s252 + $0x30] sm:$0xff]
      %v279 = vld [vmem:[%s252 + $0x38] sm:$0xff]
      %v280 = vld [vmem:[%s252 + $0x40] sm:$0xff]
      %v281 = vld [vmem:[%s252 + $0x48] sm:$0xff]
      %v282 = vld [vmem:[%s252 + $0x50] sm:$0xff]
      %v283 = vld [vmem:[%s252 + $0x58] sm:$0xff]
      %v284 = vld [vmem:[%s252 + $0x60] sm:$0xff]
      %v285 = vld [vmem:[%s252 + $0x68] sm:$0xff]
      %v286 = vld [vmem:[%s252 + $0x70] sm:$0xff]
      %v287 = vld [vmem:[%s252 + $0x78] sm:$0xff]
      %v288 = vld [vmem:[%s252 + $0x80] sm:$0xff]
      %v289 = vld [vmem:[%s252 + $0x88] sm:$0xff]
      %v290 = vld [vmem:[%s252 + $0x90] sm:$0xff]
      %v291 = vld [vmem:[%s252 + $0x98] sm:$0xff]
      %v292 = vld [vmem:[%s252 + $0xa0] sm:$0xff]
      %v293 = vld [vmem:[%s252 + $0xa8] sm:$0xff]
      %v294 = vld [vmem:[%s252 + $0xb0] sm:$0xff]
      %v295 = vld [vmem:[%s252 + $0xb8] sm:$0xff]
      %v296 = vld [vmem:[%s252 + $0xc0] sm:$0xff]
      %v297 = vld [vmem:[%s252 + $0xc8] sm:$0xff]
      %v298 = vld [vmem:[%s252 + $0xd0] sm:$0xff]
      %v299 = vld [vmem:[%s252 + $0xd8] sm:$0xff]
      %v300 = vld [vmem:[%s252 + $0xe0] sm:$0xff]
      %v301 = vld [vmem:[%s252 + $0xe8] sm:$0xff]
      %v302 = vld [vmem:[%s252 + $0xf0] sm:$0xff]
      %v303 = vld [vmem:[%s252 + $0xf8] sm:$0xff]
      %v304 = vld [vmem:[%s3] sm:$0x1]
      %v306 = vlaneseq
      %v307 = vshrl.u32 %v306, 7
      %v308 = vsub.s32 0, %v307
      %v309 = vrot.slane %v304, %v308
      %v311 = vsub.f32 %v272, %v309
      %v312 = vsub.f32 %v273, %v309
      %v313 = vsub.f32 %v274, %v309
      %v314 = vsub.f32 %v275, %v309
      %v315 = vsub.f32 %v276, %v309
      %v316 = vsub.f32 %v277, %v309
      %v317 = vsub.f32 %v278, %v309
      %v318 = vsub.f32 %v279, %v309
      %v319 = vsub.f32 %v280, %v309
      %v320 = vsub.f32 %v281, %v309
      %v321 = vsub.f32 %v282, %v309
      %v322 = vsub.f32 %v283, %v309
      %v323 = vsub.f32 %v284, %v309
      %v324 = vsub.f32 %v285, %v309
      %v325 = vsub.f32 %v286, %v309
      %v326 = vsub.f32 %v287, %v309
      %v327 = vsub.f32 %v288, %v309
      %v328 = vsub.f32 %v289, %v309
      %v329 = vsub.f32 %v290, %v309
      %v330 = vsub.f32 %v291, %v309
      %v331 = vsub.f32 %v292, %v309
      %v332 = vsub.f32 %v293, %v309
      %v333 = vsub.f32 %v294, %v309
      %v334 = vsub.f32 %v295, %v309
      %v335 = vsub.f32 %v296, %v309
      %v336 = vsub.f32 %v297, %v309
      %v337 = vsub.f32 %v298, %v309
      %v338 = vsub.f32 %v299, %v309
      %v339 = vsub.f32 %v300, %v309
      %v340 = vsub.f32 %v301, %v309
      %v341 = vsub.f32 %v302, %v309
      %v342 = vsub.f32 %v303, %v309
      %v343 = vld [vmem:[%s4] sm:$0x1]
      %v345 = vlaneseq
      %v346 = vshrl.u32 %v345, 7
      %v347 = vsub.s32 0, %v346
      %v348 = vrot.slane %v343, %v347
      %v350 = vmul.f32 %v311, %v348
      %v351 = vmul.f32 %v312, %v348
      %v352 = vmul.f32 %v313, %v348
      %v353 = vmul.f32 %v314, %v348
      %v354 = vmul.f32 %v315, %v348
      %v355 = vmul.f32 %v316, %v348
      %v356 = vmul.f32 %v317, %v348
      %v357 = vmul.f32 %v318, %v348
      %v358 = vmul.f32 %v319, %v348
      %v359 = vmul.f32 %v320, %v348
      %v360 = vmul.f32 %v321, %v348
      %v361 = vmul.f32 %v322, %v348
      %v362 = vmul.f32 %v323, %v348
      %v363 = vmul.f32 %v324, %v348
      %v364 = vmul.f32 %v325, %v348
      %v365 = vmul.f32 %v326, %v348
      %v366 = vmul.f32 %v327, %v348
      %v367 = vmul.f32 %v328, %v348
      %v368 = vmul.f32 %v329, %v348
      %v369 = vmul.f32 %v330, %v348
      %v370 = vmul.f32 %v331, %v348
      %v371 = vmul.f32 %v332, %v348
      %v372 = vmul.f32 %v333, %v348
      %v373 = vmul.f32 %v334, %v348
      %v374 = vmul.f32 %v335, %v348
      %v375 = vmul.f32 %v336, %v348
      %v376 = vmul.f32 %v337, %v348
      %v377 = vmul.f32 %v338, %v348
      %v378 = vmul.f32 %v339, %v348
      %v379 = vmul.f32 %v340, %v348
      %v380 = vmul.f32 %v341, %v348
      %v381 = vmul.f32 %v342, %v348
      %v382 = vld [vmem:[%s258] sm:$0xff]
      %v383 = vld [vmem:[%s258 + $0x8] sm:$0xff]
      %v384 = vld [vmem:[%s258 + $0x10] sm:$0xff]
      %v385 = vld [vmem:[%s258 + $0x18] sm:$0xff]
      %v386 = vld [vmem:[%s258 + $0x20] sm:$0xff]
      %v387 = vld [vmem:[%s258 + $0x28] sm:$0xff]
      %v388 = vld [vmem:[%s258 + $0x30] sm:$0xff]
      %v389 = vld [vmem:[%s258 + $0x38] sm:$0xff]
      %v390 = vld [vmem:[%s258 + $0x40] sm:$0xff]
      %v391 = vld [vmem:[%s258 + $0x48] sm:$0xff]
      %v392 = vld [vmem:[%s258 + $0x50] sm:$0xff]
      %v393 = vld [vmem:[%s258 + $0x58] sm:$0xff]
      %v394 = vld [vmem:[%s258 + $0x60] sm:$0xff]
      %v395 = vld [vmem:[%s258 + $0x68] sm:$0xff]
      %v396 = vld [vmem:[%s258 + $0x70] sm:$0xff]
      %v397 = vld [vmem:[%s258 + $0x78] sm:$0xff]
      %v398 = vld [vmem:[%s258 + $0x80] sm:$0xff]
      %v399 = vld [vmem:[%s258 + $0x88] sm:$0xff]
      %v400 = vld [vmem:[%s258 + $0x90] sm:$0xff]
      %v401 = vld [vmem:[%s258 + $0x98] sm:$0xff]
      %v402 = vld [vmem:[%s258 + $0xa0] sm:$0xff]
      %v403 = vld [vmem:[%s258 + $0xa8] sm:$0xff]
      %v404 = vld [vmem:[%s258 + $0xb0] sm:$0xff]
      %v405 = vld [vmem:[%s258 + $0xb8] sm:$0xff]
      %v406 = vld [vmem:[%s258 + $0xc0] sm:$0xff]
      %v407 = vld [vmem:[%s258 + $0xc8] sm:$0xff]
      %v408 = vld [vmem:[%s258 + $0xd0] sm:$0xff]
      %v409 = vld [vmem:[%s258 + $0xd8] sm:$0xff]
      %v410 = vld [vmem:[%s258 + $0xe0] sm:$0xff]
      %v411 = vld [vmem:[%s258 + $0xe8] sm:$0xff]
      %v412 = vld [vmem:[%s258 + $0xf0] sm:$0xff]
      %v413 = vld [vmem:[%s258 + $0xf8] sm:$0xff]
      %v414 = vadd.f32 %v382, 1.0
      %v415 = vadd.f32 %v383, 1.0
      %v416 = vadd.f32 %v384, 1.0
      %v417 = vadd.f32 %v385, 1.0
      %v418 = vadd.f32 %v386, 1.0
      %v419 = vadd.f32 %v387, 1.0
      %v420 = vadd.f32 %v388, 1.0
      %v421 = vadd.f32 %v389, 1.0
      %v422 = vadd.f32 %v390, 1.0
      %v423 = vadd.f32 %v391, 1.0
      %v424 = vadd.f32 %v392, 1.0
      %v425 = vadd.f32 %v393, 1.0
      %v426 = vadd.f32 %v394, 1.0
      %v427 = vadd.f32 %v395, 1.0
      %v428 = vadd.f32 %v396, 1.0
      %v429 = vadd.f32 %v397, 1.0
      %v430 = vadd.f32 %v398, 1.0
      %v431 = vadd.f32 %v399, 1.0
      %v432 = vadd.f32 %v400, 1.0
      %v433 = vadd.f32 %v401, 1.0
      %v434 = vadd.f32 %v402, 1.0
      %v435 = vadd.f32 %v403, 1.0
      %v436 = vadd.f32 %v404, 1.0
      %v437 = vadd.f32 %v405, 1.0
      %v438 = vadd.f32 %v406, 1.0
      %v439 = vadd.f32 %v407, 1.0
      %v440 = vadd.f32 %v408, 1.0
      %v441 = vadd.f32 %v409, 1.0
      %v442 = vadd.f32 %v410, 1.0
      %v443 = vadd.f32 %v411, 1.0
      %v444 = vadd.f32 %v412, 1.0
      %v445 = vadd.f32 %v413, 1.0
      %v446 = vmul.f32 %v350, %v414
      %v447 = vmul.f32 %v351, %v415
      %v448 = vmul.f32 %v352, %v416
      %v449 = vmul.f32 %v353, %v417
      %v450 = vmul.f32 %v354, %v418
      %v451 = vmul.f32 %v355, %v419
      %v452 = vmul.f32 %v356, %v420
      %v453 = vmul.f32 %v357, %v421
      %v454 = vmul.f32 %v358, %v422
      %v455 = vmul.f32 %v359, %v423
      %v456 = vmul.f32 %v360, %v424
      %v457 = vmul.f32 %v361, %v425
      %v458 = vmul.f32 %v362, %v426
      %v459 = vmul.f32 %v363, %v427
      %v460 = vmul.f32 %v364, %v428
      %v461 = vmul.f32 %v365, %v429
      %v462 = vmul.f32 %v366, %v430
      %v463 = vmul.f32 %v367, %v431
      %v464 = vmul.f32 %v368, %v432
      %v465 = vmul.f32 %v369, %v433
      %v466 = vmul.f32 %v370, %v434
      %v467 = vmul.f32 %v371, %v435
      %v468 = vmul.f32 %v372, %v436
      %v469 = vmul.f32 %v373, %v437
      %v470 = vmul.f32 %v374, %v438
      %v471 = vmul.f32 %v375, %v439
      %v472 = vmul.f32 %v376, %v440
      %v473 = vmul.f32 %v377, %v441
      %v474 = vmul.f32 %v378, %v442
      %v475 = vmul.f32 %v379, %v443
      %v476 = vmul.f32 %v380, %v444
      %v477 = vmul.f32 %v381, %v445
      %v478 = vld [vmem:[%s264] sm:$0xff]
      %v479 = vld [vmem:[%s264 + $0x8] sm:$0xff]
      %v480 = vld [vmem:[%s264 + $0x10] sm:$0xff]
      %v481 = vld [vmem:[%s264 + $0x18] sm:$0xff]
      %v482 = vld [vmem:[%s264 + $0x20] sm:$0xff]
      %v483 = vld [vmem:[%s264 + $0x28] sm:$0xff]
      %v484 = vld [vmem:[%s264 + $0x30] sm:$0xff]
      %v485 = vld [vmem:[%s264 + $0x38] sm:$0xff]
      %v486 = vld [vmem:[%s264 + $0x40] sm:$0xff]
      %v487 = vld [vmem:[%s264 + $0x48] sm:$0xff]
      %v488 = vld [vmem:[%s264 + $0x50] sm:$0xff]
      %v489 = vld [vmem:[%s264 + $0x58] sm:$0xff]
      %v490 = vld [vmem:[%s264 + $0x60] sm:$0xff]
      %v491 = vld [vmem:[%s264 + $0x68] sm:$0xff]
      %v492 = vld [vmem:[%s264 + $0x70] sm:$0xff]
      %v493 = vld [vmem:[%s264 + $0x78] sm:$0xff]
      %v494 = vld [vmem:[%s264 + $0x80] sm:$0xff]
      %v495 = vld [vmem:[%s264 + $0x88] sm:$0xff]
      %v496 = vld [vmem:[%s264 + $0x90] sm:$0xff]
      %v497 = vld [vmem:[%s264 + $0x98] sm:$0xff]
      %v498 = vld [vmem:[%s264 + $0xa0] sm:$0xff]
      %v499 = vld [vmem:[%s264 + $0xa8] sm:$0xff]
      %v500 = vld [vmem:[%s264 + $0xb0] sm:$0xff]
      %v501 = vld [vmem:[%s264 + $0xb8] sm:$0xff]
      %v502 = vld [vmem:[%s264 + $0xc0] sm:$0xff]
      %v503 = vld [vmem:[%s264 + $0xc8] sm:$0xff]
      %v504 = vld [vmem:[%s264 + $0xd0] sm:$0xff]
      %v505 = vld [vmem:[%s264 + $0xd8] sm:$0xff]
      %v506 = vld [vmem:[%s264 + $0xe0] sm:$0xff]
      %v507 = vld [vmem:[%s264 + $0xe8] sm:$0xff]
      %v508 = vld [vmem:[%s264 + $0xf0] sm:$0xff]
      %v509 = vld [vmem:[%s264 + $0xf8] sm:$0xff]
      %v510 = vadd.f32 %v446, %v478
      %v511 = vadd.f32 %v447, %v479
      %v512 = vadd.f32 %v448, %v480
      %v513 = vadd.f32 %v449, %v481
      %v514 = vadd.f32 %v450, %v482
      %v515 = vadd.f32 %v451, %v483
      %v516 = vadd.f32 %v452, %v484
      %v517 = vadd.f32 %v453, %v485
      %v518 = vadd.f32 %v454, %v486
      %v519 = vadd.f32 %v455, %v487
      %v520 = vadd.f32 %v456, %v488
      %v521 = vadd.f32 %v457, %v489
      %v522 = vadd.f32 %v458, %v490
      %v523 = vadd.f32 %v459, %v491
      %v524 = vadd.f32 %v460, %v492
      %v525 = vadd.f32 %v461, %v493
      %v526 = vadd.f32 %v462, %v494
      %v527 = vadd.f32 %v463, %v495
      %v528 = vadd.f32 %v464, %v496
      %v529 = vadd.f32 %v465, %v497
      %v530 = vadd.f32 %v466, %v498
      %v531 = vadd.f32 %v467, %v499
      %v532 = vadd.f32 %v468, %v500
      %v533 = vadd.f32 %v469, %v501
      %v534 = vadd.f32 %v470, %v502
      %v535 = vadd.f32 %v471, %v503
      %v536 = vadd.f32 %v472, %v504
      %v537 = vadd.f32 %v473, %v505
      %v538 = vadd.f32 %v474, %v506
      %v539 = vadd.f32 %v475, %v507
      %v540 = vadd.f32 %v476, %v508
      %v541 = vadd.f32 %v477, %v509
      %vm542 = vcmask 523264
      %543 = vst.msk [vmem:[%s270] sm:$0xff] %vm542, %v510
      %544 = vst.msk [vmem:[%s270 + $0x8] sm:$0xff] %vm542, %v511
      %545 = vst.msk [vmem:[%s270 + $0x10] sm:$0xff] %vm542, %v512
      %546 = vst.msk [vmem:[%s270 + $0x18] sm:$0xff] %vm542, %v513
      %547 = vst.msk [vmem:[%s270 + $0x20] sm:$0xff] %vm542, %v514
      %548 = vst.msk [vmem:[%s270 + $0x28] sm:$0xff] %vm542, %v515
      %549 = vst.msk [vmem:[%s270 + $0x30] sm:$0xff] %vm542, %v516
      %550 = vst.msk [vmem:[%s270 + $0x38] sm:$0xff] %vm542, %v517
      %551 = vst.msk [vmem:[%s270 + $0x40] sm:$0xff] %vm542, %v518
      %552 = vst.msk [vmem:[%s270 + $0x48] sm:$0xff] %vm542, %v519
      %553 = vst.msk [vmem:[%s270 + $0x50] sm:$0xff] %vm542, %v520
      %554 = vst.msk [vmem:[%s270 + $0x58] sm:$0xff] %vm542, %v521
      %555 = vst.msk [vmem:[%s270 + $0x60] sm:$0xff] %vm542, %v522
      %556 = vst.msk [vmem:[%s270 + $0x68] sm:$0xff] %vm542, %v523
      %557 = vst.msk [vmem:[%s270 + $0x70] sm:$0xff] %vm542, %v524
      %558 = vst.msk [vmem:[%s270 + $0x78] sm:$0xff] %vm542, %v525
      %559 = vst.msk [vmem:[%s270 + $0x80] sm:$0xff] %vm542, %v526
      %560 = vst.msk [vmem:[%s270 + $0x88] sm:$0xff] %vm542, %v527
      %561 = vst.msk [vmem:[%s270 + $0x90] sm:$0xff] %vm542, %v528
      %562 = vst.msk [vmem:[%s270 + $0x98] sm:$0xff] %vm542, %v529
      %563 = vst.msk [vmem:[%s270 + $0xa0] sm:$0xff] %vm542, %v530
      %564 = vst.msk [vmem:[%s270 + $0xa8] sm:$0xff] %vm542, %v531
      %565 = vst.msk [vmem:[%s270 + $0xb0] sm:$0xff] %vm542, %v532
      %566 = vst.msk [vmem:[%s270 + $0xb8] sm:$0xff] %vm542, %v533
      %567 = vst.msk [vmem:[%s270 + $0xc0] sm:$0xff] %vm542, %v534
      %568 = vst.msk [vmem:[%s270 + $0xc8] sm:$0xff] %vm542, %v535
      %569 = vst.msk [vmem:[%s270 + $0xd0] sm:$0xff] %vm542, %v536
      %570 = vst.msk [vmem:[%s270 + $0xd8] sm:$0xff] %vm542, %v537
      %571 = vst.msk [vmem:[%s270 + $0xe0] sm:$0xff] %vm542, %v538
      %572 = vst.msk [vmem:[%s270 + $0xe8] sm:$0xff] %vm542, %v539
      %573 = vst.msk [vmem:[%s270 + $0xf0] sm:$0xff] %vm542, %v540
      %574 = vst.msk [vmem:[%s270 + $0xf8] sm:$0xff] %vm542, %v541
      %s575 = smul.u32 32, %s16
      %p576 = scmp.lt.s32.totalorder %s575, 63
      %s577 = scalar_select %p576, %s575, 63
      %s578 = smul.addr %s577, 8
      %s579 = scalar_lea.vmem %s5, %s578
      // Predicated region
      $region41: #{spade_resnet_block_forward.21} parent=39 // pred_check
        %p580 = pneg %p154
      $region42: #{spade_resnet_block_forward.21} parent=39 // pred_check_branch
        %582 = sbr.rel (%p580) target = $region44
      $region43: #{spade_resnet_block_forward.21} parent=39 // pred_region
        %s583 = smul.u32 32, %s16
      $region44: #{spade_resnet_block_forward.21} parent=39 // pred_fallthru
        _
    $region40: #{spade_resnet_block_forward.21} parent=5 // pred_fallthru
      _
    %p584 = scmp.le.s32.totalorder 2, %s11
    // Predicated region
    $region45: #{spade_resnet_block_forward.21} parent=5 // pred_check
      %p585 = pneg %p584
    $region46: #{spade_resnet_block_forward.21} parent=5 // pred_check_branch
      %587 = sbr.rel (%p585) target = $region48
    $region47: #{spade_resnet_block_forward.21} parent=5 // pred_region
      %s588 = ssub.s32 %s11, 2
      // Predicated region
      $region49: #{spade_resnet_block_forward.21} parent=47 // pred_check
        %p589 = pneg %p160
      $region50: #{spade_resnet_block_forward.21} parent=47 // pred_check_branch
        %591 = sbr.rel (%p589) target = $region52
      $region51: #{spade_resnet_block_forward.21} parent=47 // pred_region
        %s592 = smul.u32 32, %s17
        %p593 = scmp.lt.s32.totalorder %s592, 63
        %s594 = scalar_select %p593, %s592, 63
        %s595 = smul.addr %s594, 8
        %s596 = scalar_lea.vmem %s5, %s595
      $region52: #{spade_resnet_block_forward.21} parent=47 // pred_fallthru
        _
    $region48: #{spade_resnet_block_forward.21} parent=5 // pred_fallthru
      _
  $region6: #{spade_resnet_block_forward.21} parent=0 // loop_footer
    %s15 = sadd.s32 1, %s11
  $region7: #{spade_resnet_block_forward.21} parent=0 // loop_footer_branch
    %10 = sbr.rel target = $region3
  $region8: #{spade_resnet_block_forward.21} parent=0 // loop_exit
    _

// kernel: spade_resnet_block_forward.28
$region0: #{spade_resnet_block_forward.28}
  #allocation0 [shape = 'u32[]', space=smem, size = 0x4, offset = 0x4, fixed_abs, tag = 'smem constant byte address 0x4 - core index']
  #allocation1 [shape = 'u32[144,128]{1,0:T(1,128)}', space=vmem, size = 0x12000, scoped, tag = 'internal scratch']
  %s0 = inlined_call_operand.vmem [shape: f32[2,18,18,64], index: 0, kind: input, shape index: {}]
  %s1 = inlined_call_operand.vmem [shape: bf16[576,64], index: 1, kind: input, shape index: {}]
  %s2 = inlined_call_operand.vmem [shape: f32[1,64], index: 2, kind: input, shape index: {}]
  %s3 = inlined_call_operand.vmem [shape: f32[2,16,16,64], index: 3, kind: output, shape index: {}]
  %s4 = sld [smem:[#allocation0]]
  $region45: #{spade_resnet_block_forward.28} parent=0
    _
  %s6 = ssub.s32 1, %s4
  %s7 = scalar_select 0, %s6, %s4
  loop: start=0, step=1, limit=6
  $region2: #{spade_resnet_block_forward.28} parent=0 // loop_pre_header
    _
  $region3: #{spade_resnet_block_forward.28} parent=0 // loop_header
    %s9 = sphi 0, %s13
    %p10 = scmp.ge.s32.totalorder %s9, 6
    %s16 = sphi 0, %s28
    %s17 = sphi 0, %s24
    %s18 = sphi 0, %s16
    %s19 = sphi 0, %s17
    %s20 = sphi 0, %s18
    %s21 = sphi 0, %s19
    %s31 = sphi 0, %s33
    %s34 = sphi 0, %s31
    %s35 = sphi 0, %s34
    %s51 = sphi 0, %s35
    %s55 = sphi 0, %s55
    %s57 = sphi 0, %s55
    %s58 = sphi 0, %s57
    %s72 = sphi 0, %s58
    %s76 = sphi 0, %s76
    %s78 = sphi 0, %s76
    %s79 = sphi 0, %s78
    %s93 = sphi 0, %s79
    %s101 = sphi 0, %s103
    %s104 = sphi 0, %s101
    %s105 = sphi 0, %s104
    %s121 = sphi 0, %s105
  $region4: #{spade_resnet_block_forward.28} parent=0 // loop_header_branch
    %12 = sbr.rel (%p10) target = $region8
  $region5: #{spade_resnet_block_forward.28} parent=0 // loop_body
    %s14 = ssub.s32 %s9, 1
    %s15 = ssub.s32 %s9, 2
    %s22 = sadd.s32 1, %s17
    %p23 = scmp.ge.s32.totalorder %s22, 2
    %s24 = scalar_select %p23, 0, %s22
    %s25 = sadd.s32 1, %s16
    %s26 = scalar_select %p23, %s25, %s16
    %p27 = scmp.ge.s32.totalorder %s26, 2
    %s28 = scalar_select %p27, 0, %s26
    %s29 = ssub.s32 %s16, %s28
    %p30 = scmp.eq.s32.totalorder %s29, 0
    %s32 = sadd.s32 %s31, 1
    %s33 = scalar_select %p30, %s31, %s32
    %p36 = pneg %p30
    %p37 = scmp.eq.s32.totalorder %s9, 3
    %p38 = por %p36, %p37
    %p39 = scmp.ne.s32.totalorder %s31, %s34
    %p40 = scmp.eq.s32.totalorder %s9, 0
    %p41 = por %p39, %p40
    %p42 = scmp.ne.s32.totalorder %s31, %s34
    %p43 = scmp.eq.s32.totalorder %s14, 3
    %p44 = por %p42, %p43
    %p45 = scmp.ne.s32.totalorder %s34, %s35
    %p46 = scmp.eq.s32.totalorder %s14, 0
    %p47 = por %p45, %p46
    %p48 = scmp.ne.s32.totalorder %s34, %s35
    %p49 = scmp.eq.s32.totalorder %s15, 3
    %p50 = por %p48, %p49
    %p52 = scmp.ne.s32.totalorder %s35, %s51
    %p53 = scmp.eq.s32.totalorder %s15, 0
    %p54 = por %p52, %p53
    %s56 = sadd.s32 %s55, 1
    %p59 = scmp.eq.s32.totalorder %s9, 3
    %p60 = scmp.ne.s32.totalorder %s55, %s57
    %p61 = scmp.eq.s32.totalorder %s9, 0
    %p62 = por %p60, %p61
    %p63 = scmp.ne.s32.totalorder %s55, %s57
    %p64 = scmp.eq.s32.totalorder %s14, 3
    %p65 = por %p63, %p64
    %p66 = scmp.ne.s32.totalorder %s57, %s58
    %p67 = scmp.eq.s32.totalorder %s14, 0
    %p68 = por %p66, %p67
    %p69 = scmp.ne.s32.totalorder %s57, %s58
    %p70 = scmp.eq.s32.totalorder %s15, 3
    %p71 = por %p69, %p70
    %p73 = scmp.ne.s32.totalorder %s58, %s72
    %p74 = scmp.eq.s32.totalorder %s15, 0
    %p75 = por %p73, %p74
    %s77 = sadd.s32 %s76, 1
    %p80 = scmp.eq.s32.totalorder %s9, 3
    %p81 = scmp.ne.s32.totalorder %s76, %s78
    %p82 = scmp.eq.s32.totalorder %s9, 0
    %p83 = por %p81, %p82
    %p84 = scmp.ne.s32.totalorder %s76, %s78
    %p85 = scmp.eq.s32.totalorder %s14, 3
    %p86 = por %p84, %p85
    %p87 = scmp.ne.s32.totalorder %s78, %s79
    %p88 = scmp.eq.s32.totalorder %s14, 0
    %p89 = por %p87, %p88
    %p90 = scmp.ne.s32.totalorder %s78, %s79
    %p91 = scmp.eq.s32.totalorder %s15, 3
    %p92 = por %p90, %p91
    %p94 = scmp.ne.s32.totalorder %s79, %s93
    %p95 = scmp.eq.s32.totalorder %s15, 0
    %p96 = por %p94, %p95
    %s97 = ssub.s32 %s16, %s28
    %s98 = ssub.s32 %s17, %s24
    %s99 = sor.u32 %s97, %s98
    %p100 = scmp.eq.s32.totalorder %s99, 0
    %s102 = sadd.s32 %s101, 1
    %s103 = scalar_select %p100, %s101, %s102
    %p106 = pneg %p100
    %p107 = scmp.eq.s32.totalorder %s9, 3
    %p108 = por %p106, %p107
    %p109 = scmp.ne.s32.totalorder %s101, %s104
    %p110 = scmp.eq.s32.totalorder %s9, 0
    %p111 = por %p109, %p110
    %p112 = scmp.ne.s32.totalorder %s101, %s104
    %p113 = scmp.eq.s32.totalorder %s14, 3
    %p114 = por %p112, %p113
    %p115 = scmp.ne.s32.totalorder %s104, %s105
    %p116 = scmp.eq.s32.totalorder %s14, 0
    %p117 = por %p115, %p116
    %p118 = scmp.ne.s32.totalorder %s104, %s105
    %p119 = scmp.eq.s32.totalorder %s15, 3
    %p120 = por %p118, %p119
    %p122 = scmp.ne.s32.totalorder %s105, %s121
    %p123 = scmp.eq.s32.totalorder %s15, 0
    %p124 = por %p122, %p123
    %p125 = scmp.le.s32.totalorder 1, %s9
    %p126 = scmp.lt.s32.totalorder %s9, 5
    %p127 = pnand %p125, %p126
    %p128 = pneg %p127
    // Predicated region
    $region9: #{spade_resnet_block_forward.28} parent=5 // pred_check
      _
    $region10: #{spade_resnet_block_forward.28} parent=5 // pred_check_branch
      %130 = sbr.rel (%p127) target = $region12
    $region11: #{spade_resnet_block_forward.28} parent=5 // pred_region
      %s131 = ssub.s32 %s9, 1
      // Predicated region
      $region13: #{spade_resnet_block_forward.28} parent=11 // pred_check
        %p132 = pneg %p68
      $region14: #{spade_resnet_block_forward.28} parent=11 // pred_check_branch
        %134 = sbr.rel (%p132) target = $region16
      $region15: #{spade_resnet_block_forward.28} parent=11 // pred_region
        _
      $region16: #{spade_resnet_block_forward.28} parent=11 // pred_fallthru
        _
      // Predicated region
      $region17: #{spade_resnet_block_forward.28} parent=11 // pred_check
        %p135 = pneg %p89
      $region18: #{spade_resnet_block_forward.28} parent=11 // pred_check_branch
        %137 = sbr.rel (%p135) target = $region20
      $region19: #{spade_resnet_block_forward.28} parent=11 // pred_region
        _
      $region20: #{spade_resnet_block_forward.28} parent=11 // pred_fallthru
        _
    $region12: #{spade_resnet_block_forward.28} parent=5 // pred_fallthru
      _
    %p138 = scmp.lt.s32.totalorder %s9, 4
    // Predicated region
    $region21: #{spade_resnet_block_forward.28} parent=5 // pred_check
      %p139 = pneg %p138
    $region22: #{spade_resnet_block_forward.28} parent=5 // pred_check_branch
      %141 = sbr.rel (%p139) target = $region24
    $region23: #{spade_resnet_block_forward.28} parent=5 // pred_region
      // Predicated region
      $region25: #{spade_resnet_block_forward.28} parent=23 // pred_check
        %p142 = pneg %p41
      $region26: #{spade_resnet_block_forward.28} parent=23 // pred_check_branch
        %144 = sbr.rel (%p142) target = $region28
      $region27: #{spade_resnet_block_forward.28} parent=23 // pred_region
        %p145 = scmp.lt.s32.totalorder %s16, 1
        %s146 = scalar_select %p145, %s16, 1
        %s147 = smul.addr %s146, 54
        %s148 = smul.addr %s147, 8
        %s149 = scalar_lea.vmem %s0, %s148
      $region28: #{spade_resnet_block_forward.28} parent=23 // pred_fallthru
        _
    $region24: #{spade_resnet_block_forward.28} parent=5 // pred_fallthru
      _
    %p150 = scmp.le.s32.totalorder 1, %s9
    %p151 = scmp.lt.s32.totalorder %s9, 5
    %p152 = pnand %p150, %p151
    %p153 = pneg %p152
    // Predicated region
    $region29: #{spade_resnet_block_forward.28} parent=5 // pred_check
      _
    $region30: #{spade_resnet_block_forward.28} parent=5 // pred_check_branch
      %155 = sbr.rel (%p152) target = $region32
    $region31: #{spade_resnet_block_forward.28} parent=5 // pred_region
      %s156 = ssub.s32 %s9, 1
      %p157 = scmp.lt.s32.totalorder %s18, 1
      %s158 = scalar_select %p157, %s18, 1
      %s159 = smul.addr %s158, 54
      %s160 = smul.addr %s159, 8
      %s161 = scalar_lea.vmem %s0, %s160
      %p162 = pneg %p47
      %p163 = pneg %p44
      %p164 = pneg %p68
      %p165 = pneg %p65
      %p166 = pneg %p89
      %p167 = pneg %p86
      %p168 = pneg %p117
      %p169 = pneg %p114
      %s170 = smul.u32 8, %s19
      %p171 = scmp.lt.s32.totalorder %s18, 1
      %s172 = scalar_select %p171, %s18, 1
      %p173 = scmp.lt.s32.totalorder %s170, 15
      %s174 = scalar_select %p173, %s170, 15
      %s175 = smul.addr %s174, 2
      %s176 = smul.addr %s172, 32
      %s177 = sadd.s32 %s175, %s176
      %s178 = smul.addr %s177, 8
      %s179 = scalar_lea.vmem %s3, %s178
      %p180 = scmp.lt.s32.totalorder %s18, 1
      %s181 = scalar_select %p180, %s18, 1
      %s182 = smul.addr %s181, 54
      %s183 = smul.addr %s182, 8
      %s184 = scalar_lea.vmem %s0, %s183
      %s185 = smul.u32 8, %s19
      %p186 = scmp.lt.s32.totalorder %s18, 1
      %s187 = scalar_select %p186, %s18, 1
      %p188 = scmp.lt.s32.totalorder %s185, 15
      %s189 = scalar_select %p188, %s185, 15
      %s190 = smul.addr %s189, 2
      %s191 = smul.addr %s187, 32
      %s192 = sadd.s32 %s190, %s191
      %s193 = smul.addr %s192, 8
      %s194 = scalar_lea.vmem %s3, %s193
      %s195 = smul.u32 8, %s19
      %s197 = smul.u32 %s19, 8
      %s198 = smul.u32 %s197, 24
      %s199 = scalar_lea.vmem %s184, %s198
      %v200 = vld [vmem:[%s199] sm:$0xff]
      %v201 = vld [vmem:[%s199 + $0x8] sm:$0xff]
      %v202 = vld [vmem:[%s199 + $0x10] sm:$0x3]
      %v203 = vld [vmem:[%s199 + $0x18] sm:$0xff]
      %v204 = vld [vmem:[%s199 + $0x20] sm:$0xff]
      %v205 = vld [vmem:[%s199 + $0x28] sm:$0x3]
      %v206 = vld [vmem:[%s199 + $0x30] sm:$0xff]
      %v207 = vld [vmem:[%s199 + $0x38] sm:$0xff]
      %v208 = vld [vmem:[%s199 + $0x40] sm:$0x3]
      %v209 = vld [vmem:[%s199 + $0x48] sm:$0xff]
      %v210 = vld [vmem:[%s199 + $0x50] sm:$0xff]
      %v211 = vld [vmem:[%s199 + $0x58] sm:$0x3]
      %v212 = vld [vmem:[%s199 + $0x60] sm:$0xff]
      %v213 = vld [vmem:[%s199 + $0x68] sm:$0xff]
      %v214 = vld [vmem:[%s199 + $0x70] sm:$0x3]
      %v215 = vld [vmem:[%s199 + $0x78] sm:$0xff]
      %v216 = vld [vmem:[%s199 + $0x80] sm:$0xff]
      %v217 = vld [vmem:[%s199 + $0x88] sm:$0x3]
      %v218 = vld [vmem:[%s199 + $0x90] sm:$0xff]
      %v219 = vld [vmem:[%s199 + $0x98] sm:$0xff]
      %v220 = vld [vmem:[%s199 + $0xa0] sm:$0x3]
      %v221 = vld [vmem:[%s199 + $0xa8] sm:$0xff]
      %v222 = vld [vmem:[%s199 + $0xb0] sm:$0xff]
      %v223 = vld [vmem:[%s199 + $0xb8] sm:$0x3]
      %v224 = vld [vmem:[%s199 + $0xc0] sm:$0xff]
      %v225 = vld [vmem:[%s199 + $0xc8] sm:$0xff]
      %v226 = vld [vmem:[%s199 + $0xd0] sm:$0x3]
      %v227 = vld [vmem:[%s199 + $0xd8] sm:$0xff]
      %v228 = vld [vmem:[%s199 + $0xe0] sm:$0xff]
      %v229 = vld [vmem:[%s199 + $0xe8] sm:$0x3]
      %v230 = vpack.c.bf16 %v201, %v200
      %v231 = vpack.c.bf16 %v204, %v203
      %v232 = vpack.c.bf16 %v207, %v206
      %v233 = vpack.c.bf16 %v210, %v209
      %v234 = vpack.c.bf16 %v213, %v212
      %v235 = vpack.c.bf16 %v216, %v215
      %v236 = vpack.c.bf16 %v219, %v218
      %v237 = vpack.c.bf16 %v222, %v221
      %vm262 = vcmask 1046528
      %v263 = vrot.slane %v200, 1
      %v264 = vrot.slane %v201, 1
      %v265 = vsel %vm262, %v263, %v264
      %v266 = vrot.slane %v202, 1
      %v267 = vsel %vm262, %v264, %v266
      %v268 = vrot.slane %v203, 1
      %v269 = vrot.slane %v204, 1
      %v270 = vsel %vm262, %v268, %v269
      %v271 = vrot.slane %v205, 1
      %v272 = vsel %vm262, %v269, %v271
      %v273 = vrot.slane %v206, 1
      %v274 = vrot.slane %v207, 1
      %v275 = vsel %vm262, %v273, %v274
      %v276 = vrot.slane %v208, 1
      %v277 = vsel %vm262, %v274, %v276
      %v278 = vrot.slane %v209, 1
      %v279 = vrot.slane %v210, 1
      %v280 = vsel %vm262, %v278, %v279
      %v281 = vrot.slane %v211, 1
      %v282 = vsel %vm262, %v279, %v281
      %v283 = vrot.slane %v212, 1
      %v284 = vrot.slane %v213, 1
      %v285 = vsel %vm262, %v283, %v284
      %v286 = vrot.slane %v214, 1
      %v287 = vsel %vm262, %v284, %v286
      %v288 = vrot.slane %v215, 1
      %v289 = vrot.slane %v216, 1
      %v290 = vsel %vm262, %v288, %v289
      %v291 = vrot.slane %v217, 1
      %v292 = vsel %vm262, %v289, %v291
      %v293 = vrot.slane %v218, 1
      %v294 = vrot.slane %v219, 1
      %v295 = vsel %vm262, %v293, %v294
      %v296 = vrot.slane %v220, 1
      %v297 = vsel %vm262, %v294, %v296
      %v298 = vrot.slane %v221, 1
      %v299 = vrot.slane %v222, 1
      %v300 = vsel %vm262, %v298, %v299
      %v301 = vrot.slane %v223, 1
      %v302 = vsel %vm262, %v299, %v301
      %v319 = vpack.c.bf16 %v267, %v265
      %v320 = vpack.c.bf16 %v272, %v270
      %v321 = vpack.c.bf16 %v277, %v275
      %v322 = vpack.c.bf16 %v282, %v280
      %v323 = vpack.c.bf16 %v287, %v285
      %v324 = vpack.c.bf16 %v292, %v290
      %v325 = vpack.c.bf16 %v297, %v295
      %v326 = vpack.c.bf16 %v302, %v300
      %vm327 = vcmask 1045504
      %v328 = vrot.slane %v200, 2
      %v329 = vrot.slane %v201, 2
      %v330 = vsel %vm327, %v328, %v329
      %v331 = vrot.slane %v202, 2
      %v332 = vsel %vm327, %v329, %v331
      %v333 = vrot.slane %v203, 2
      %v334 = vrot.slane %v204, 2
      %v335 = vsel %vm327, %v333, %v334
      %v336 = vrot.slane %v205, 2
      %v337 = vsel %vm327, %v334, %v336
      %v338 = vrot.slane %v206, 2
      %v339 = vrot.slane %v207, 2
      %v340 = vsel %vm327, %v338, %v339
      %v341 = vrot.slane %v208, 2
      %v342 = vsel %vm327, %v339, %v341
      %v343 = vrot.slane %v209, 2
      %v344 = vrot.slane %v210, 2
      %v345 = vsel %vm327, %v343, %v344
      %v346 = vrot.slane %v211, 2
      %v347 = vsel %vm327, %v344, %v346
      %v348 = vrot.slane %v212, 2
      %v349 = vrot.slane %v213, 2
      %v350 = vsel %vm327, %v348, %v349
      %v351 = vrot.slane %v214, 2
      %v352 = vsel %vm327, %v349, %v351
      %v353 = vrot.slane %v215, 2
      %v354 = vrot.slane %v216, 2
      %v355 = vsel %vm327, %v353, %v354
      %v356 = vrot.slane %v217, 2
      %v357 = vsel %vm327, %v354, %v356
      %v358 = vrot.slane %v218, 2
      %v359 = vrot.slane %v219, 2
      %v360 = vsel %vm327, %v358, %v359
      %v361 = vrot.slane %v220, 2
      %v362 = vsel %vm327, %v359, %v361
      %v363 = vrot.slane %v221, 2
      %v364 = vrot.slane %v222, 2
      %v365 = vsel %vm327, %v363, %v364
      %v366 = vrot.slane %v223, 2
      %v367 = vsel %vm327, %v364, %v366
      %v384 = vpack.c.bf16 %v332, %v330
      %v385 = vpack.c.bf16 %v337, %v335
      %v386 = vpack.c.bf16 %v342, %v340
      %v387 = vpack.c.bf16 %v347, %v345
      %v388 = vpack.c.bf16 %v352, %v350
      %v389 = vpack.c.bf16 %v357, %v355
      %v390 = vpack.c.bf16 %v362, %v360
      %v391 = vpack.c.bf16 %v367, %v365
      %v392 = vpack.c.bf16 %v225, %v224
      %v396 = vrot.slane %v224, 1
      %v397 = vrot.slane %v225, 1
      %v398 = vsel %vm262, %v396, %v397
      %v399 = vrot.slane %v226, 1
      %v400 = vsel %vm262, %v397, %v399
      %v403 = vpack.c.bf16 %v400, %v398
      %v404 = vrot.slane %v224, 2
      %v405 = vrot.slane %v225, 2
      %v406 = vsel %vm327, %v404, %v405
      %v407 = vrot.slane %v226, 2
      %v408 = vsel %vm327, %v405, %v407
      %v411 = vpack.c.bf16 %v408, %v406
      %v412 = vpack.c.bf16 %v228, %v227
      %v416 = vrot.slane %v227, 1
      %v417 = vrot.slane %v228, 1
      %v418 = vsel %vm262, %v416, %v417
      %v419 = vrot.slane %v229, 1
      %v420 = vsel %vm262, %v417, %v419
      %v423 = vpack.c.bf16 %v420, %v418
      %v424 = vrot.slane %v227, 2
      %v425 = vrot.slane %v228, 2
      %v426 = vsel %vm327, %v424, %v425
      %v427 = vrot.slane %v229, 2
      %v428 = vsel %vm327, %v425, %v427
      %v431 = vpack.c.bf16 %v428, %v426
      %440 = vrot.lane.b32.xlu0 %v319, 64
      %v441 = vpop.permute.xlu0 %440
      %442 = vrot.lane.b32.xlu0 %v320, 64
      %v443 = vpop.permute.xlu0 %442
      %444 = vrot.lane.b32.xlu0 %v321, 64
      %v445 = vpop.permute.xlu0 %444
      %446 = vrot.lane.b32.xlu0 %v322, 64
      %v447 = vpop.permute.xlu0 %446
      %448 = vrot.lane.b32.xlu0 %v323, 64
      %v449 = vpop.permute.xlu0 %448
      %450 = vrot.lane.b32.xlu0 %v324, 64
      %v451 = vpop.permute.xlu0 %450
      %452 = vrot.lane.b32.xlu0 %v325, 64
      %v453 = vpop.permute.xlu0 %452
      %454 = vrot.lane.b32.xlu0 %v326, 64
      %v455 = vpop.permute.xlu0 %454
      %464 = vrot.lane.b32.xlu0 %v231, 64
      %v465 = vpop.permute.xlu0 %464
      %466 = vrot.lane.b32.xlu0 %v232, 64
      %v467 = vpop.permute.xlu0 %466
      %468 = vrot.lane.b32.xlu0 %v233, 64
      %v469 = vpop.permute.xlu0 %468
      %470 = vrot.lane.b32.xlu0 %v234, 64
      %v471 = vpop.permute.xlu0 %470
      %472 = vrot.lane.b32.xlu0 %v235, 64
      %v473 = vpop.permute.xlu0 %472
      %474 = vrot.lane.b32.xlu0 %v236, 64
      %v475 = vpop.permute.xlu0 %474
      %476 = vrot.lane.b32.xlu0 %v237, 64
      %v477 = vpop.permute.xlu0 %476
      %478 = vrot.lane.b32.xlu0 %v392, 64
      %v479 = vpop.permute.xlu0 %478
      %488 = vrot.lane.b32.xlu0 %v385, 64
      %v489 = vpop.permute.xlu0 %488
      %490 = vrot.lane.b32.xlu0 %v386, 64
      %v491 = vpop.permute.xlu0 %490
      %492 = vrot.lane.b32.xlu0 %v387, 64
      %v493 = vpop.permute.xlu0 %492
      %494 = vrot.lane.b32.xlu0 %v388, 64
      %v495 = vpop.permute.xlu0 %494
      %496 = vrot.lane.b32.xlu0 %v389, 64
      %v497 = vpop.permute.xlu0 %496
      %498 = vrot.lane.b32.xlu0 %v390, 64
      %v499 = vpop.permute.xlu0 %498
      %500 = vrot.lane.b32.xlu0 %v391, 64
      %v501 = vpop.permute.xlu0 %500
      %502 = vrot.lane.b32.xlu0 %v411, 64
      %v503 = vpop.permute.xlu0 %502
      %506 = vrot.lane.b32.xlu0 %v403, 64
      %v507 = vpop.permute.xlu0 %506
      %508 = vrot.lane.b32.xlu0 %v423, 64
      %v509 = vpop.permute.xlu0 %508
      %vm510 = vcmask 523264
      %v513 = vsel %vm510, %v230, %v441
      %v517 = vsel %vm510, %v231, %v443
      %v521 = vsel %vm510, %v232, %v445
      %v525 = vsel %vm510, %v233, %v447
      %v529 = vsel %vm510, %v234, %v449
      %v533 = vsel %vm510, %v235, %v451
      %v537 = vsel %vm510, %v236, %v453
      %v541 = vsel %vm510, %v237, %v455
      %v545 = vsel %vm510, %v384, %v465
      %v549 = vsel %vm510, %v385, %v467
      %v553 = vsel %vm510, %v386, %v469
      %v557 = vsel %vm510, %v387, %v471
      %v561 = vsel %vm510, %v388, %v473
      %v565 = vsel %vm510, %v389, %v475
      %v569 = vsel %vm510, %v390, %v477
      %v573 = vsel %vm510, %v391, %v479
      %v577 = vsel %vm510, %v320, %v489
      %v581 = vsel %vm510, %v321, %v491
      %v585 = vsel %vm510, %v322, %v493
      %v589 = vsel %vm510, %v323, %v495
      %v593 = vsel %vm510, %v324, %v497
      %v597 = vsel %vm510, %v325, %v499
      %v601 = vsel %vm510, %v326, %v501
      %v605 = vsel %vm510, %v403, %v503
      %v609 = vsel %vm510, %v392, %v507
      %v613 = vsel %vm510, %v412, %v509
      %v615 = vld [vmem:[%s1] sm:$0xf]
      %v616 = vld [vmem:[%s1 + $0x4] sm:$0xf]
      %v617 = vld [vmem:[%s1 + $0x8] sm:$0xf]
      %v618 = vld [vmem:[%s1 + $0xc] sm:$0xf]
      %v619 = vld [vmem:[%s1 + $0x10] sm:$0xf]
      %v620 = vld [vmem:[%s1 + $0x14] sm:$0xf]
      %v621 = vld [vmem:[%s1 + $0x18] sm:$0xf]
      %v622 = vld [vmem:[%s1 + $0x1c] sm:$0xf]
      %v623 = vld [vmem:[%s1 + $0x20] sm:$0xf]
      %v624 = vld [vmem:[%s1 + $0x24] sm:$0xf]
      %v625 = vld [vmem:[%s1 + $0x28] sm:$0xf]
      %v626 = vld [vmem:[%s1 + $0x2c] sm:$0xf]
      %v627 = vld [vmem:[%s1 + $0x30] sm:$0xf]
      %v628 = vld [vmem:[%s1 + $0x34] sm:$0xf]
      %v629 = vld [vmem:[%s1 + $0x38] sm:$0xf]
      %v630 = vld [vmem:[%s1 + $0x3c] sm:$0xf]
      %v631 = vld [vmem:[%s1 + $0x40] sm:$0xf]
      %v632 = vld [vmem:[%s1 + $0x44] sm:$0xf]
      %v633 = vld [vmem:[%s1 + $0x48] sm:$0xf]
      %v634 = vld [vmem:[%s1 + $0x4c] sm:$0xf]
      %v635 = vld [vmem:[%s1 + $0x50] sm:$0xf]
      %v636 = vld [vmem:[%s1 + $0x54] sm:$0xf]
      %v637 = vld [vmem:[%s1 + $0x58] sm:$0xf]
      %v638 = vld [vmem:[%s1 + $0x5c] sm:$0xf]
      %v639 = vld [vmem:[%s1 + $0x60] sm:$0xf]
      %v640 = vld [vmem:[%s1 + $0x64] sm:$0xf]
      %v641 = vld [vmem:[%s1 + $0x68] sm:$0xf]
      %v642 = vld [vmem:[%s1 + $0x6c] sm:$0xf]
      %v643 = vld [vmem:[%s1 + $0x70] sm:$0xf]
      %v644 = vld [vmem:[%s1 + $0x74] sm:$0xf]
      %v645 = vld [vmem:[%s1 + $0x78] sm:$0xf]
      %v646 = vld [vmem:[%s1 + $0x7c] sm:$0xf]
      %v647 = vld [vmem:[%s1 + $0x80] sm:$0xf]
      %v648 = vld [vmem:[%s1 + $0x84] sm:$0xf]
      %v649 = vld [vmem:[%s1 + $0x88] sm:$0xf]
      %v650 = vld [vmem:[%s1 + $0x8c] sm:$0xf]
      %v651 = vld [vmem:[%s1 + $0x90] sm:$0xf]
      %v652 = vld [vmem:[%s1 + $0x94] sm:$0xf]
      %v653 = vld [vmem:[%s1 + $0x98] sm:$0xf]
      %v654 = vld [vmem:[%s1 + $0x9c] sm:$0xf]
      %v655 = vld [vmem:[%s1 + $0xa0] sm:$0xf]
      %v656 = vld [vmem:[%s1 + $0xa4] sm:$0xf]
      %v657 = vld [vmem:[%s1 + $0xa8] sm:$0xf]
      %v658 = vld [vmem:[%s1 + $0xac] sm:$0xf]
      %v659 = vld [vmem:[%s1 + $0xb0] sm:$0xf]
      %v660 = vld [vmem:[%s1 + $0xb4] sm:$0xf]
      %v661 = vld [vmem:[%s1 + $0xb8] sm:$0xf]
      %v662 = vld [vmem:[%s1 + $0xbc] sm:$0xf]
      %v663 = vld [vmem:[%s1 + $0xc0] sm:$0xf]
      %v664 = vld [vmem:[%s1 + $0xc4] sm:$0xf]
      %v665 = vld [vmem:[%s1 + $0xc8] sm:$0xf]
      %v666 = vld [vmem:[%s1 + $0xcc] sm:$0xf]
      %v667 = vld [vmem:[%s1 + $0xd0] sm:$0xf]
      %v668 = vld [vmem:[%s1 + $0xd4] sm:$0xf]
      %v669 = vld [vmem:[%s1 + $0xd8] sm:$0xf]
      %v670 = vld [vmem:[%s1 + $0xdc] sm:$0xf]
      %v671 = vld [vmem:[%s1 + $0xe0] sm:$0xf]
      %v672 = vld [vmem:[%s1 + $0xe4] sm:$0xf]
      %v673 = vld [vmem:[%s1 + $0xe8] sm:$0xf]
      %v674 = vld [vmem:[%s1 + $0xec] sm:$0xf]
      %v675 = vld [vmem:[%s1 + $0xf0] sm:$0xf]
      %v676 = vld [vmem:[%s1 + $0xf4] sm:$0xf]
      %v677 = vld [vmem:[%s1 + $0xf8] sm:$0xf]
      %v678 = vld [vmem:[%s1 + $0xfc] sm:$0xf]
      %v679 = vld [vmem:[%s1 + $0x100] sm:$0xf]
      %v680 = vld [vmem:[%s1 + $0x104] sm:$0xf]
      %v681 = vld [vmem:[%s1 + $0x108] sm:$0xf]
      %v682 = vld [vmem:[%s1 + $0x10c] sm:$0xf]
      %v683 = vld [vmem:[%s1 + $0x110] sm:$0xf]
      %v684 = vld [vmem:[%s1 + $0x114] sm:$0xf]
      %v685 = vld [vmem:[%s1 + $0x118] sm:$0xf]
      %v686 = vld [vmem:[%s1 + $0x11c] sm:$0xf]
      %v687 = vld [vmem:[%s2] sm:$0x1]
      %v689 = vlaneseq
      %v690 = vshrl.u32 %v689, 7
      %v691 = vsub.s32 0, %v690
      %v692 = vrot.slane %v687, %v691
      %v766 = vunpack.c.l.b16 %v615
      %v767 = vunpack.c.l.b16 %v616
      %v768 = vunpack.c.l.b16 %v617
      %v769 = vunpack.c.l.b16 %v618
      %v770 = vunpack.c.l.b16 %v619
      %v771 = vunpack.c.l.b16 %v620
      %v772 = vunpack.c.l.b16 %v621
      %v773 = vunpack.c.l.b16 %v622
      %v774 = vunpack.c.l.b16 %v623
      %v775 = vunpack.c.l.b16 %v624
      %v776 = vunpack.c.l.b16 %v625
      %v777 = vunpack.c.l.b16 %v626
      %v778 = vunpack.c.l.b16 %v627
      %v779 = vunpack.c.l.b16 %v628
      %v780 = vunpack.c.l.b16 %v629
      %v781 = vunpack.c.l.b16 %v630
      %v782 = vunpack.c.l.b16 %v631
      %v783 = vunpack.c.l.b16 %v632
      %v784 = vunpack.c.l.b16 %v633
      %v785 = vunpack.c.l.b16 %v634
      %v786 = vunpack.c.l.b16 %v635
      %v787 = vunpack.c.l.b16 %v636
      %v788 = vunpack.c.l.b16 %v637
      %v789 = vunpack.c.l.b16 %v638
      %v790 = vunpack.c.l.b16 %v639
      %v791 = vunpack.c.l.b16 %v640
      %v792 = vunpack.c.l.b16 %v641
      %v793 = vunpack.c.l.b16 %v642
      %v794 = vunpack.c.l.b16 %v643
      %v795 = vunpack.c.l.b16 %v644
      %v796 = vunpack.c.l.b16 %v645
      %v797 = vunpack.c.l.b16 %v646
      %v798 = vunpack.c.l.b16 %v647
      %v799 = vunpack.c.l.b16 %v648
      %v800 = vunpack.c.l.b16 %v649
      %v801 = vunpack.c.l.b16 %v650
      %v802 = vunpack.c.l.b16 %v651
      %v803 = vunpack.c.l.b16 %v652
      %v804 = vunpack.c.l.b16 %v653
      %v805 = vunpack.c.l.b16 %v654
      %v806 = vunpack.c.l.b16 %v655
      %v807 = vunpack.c.l.b16 %v656
      %v808 = vunpack.c.l.b16 %v657
      %v809 = vunpack.c.l.b16 %v658
      %v810 = vunpack.c.l.b16 %v659
      %v811 = vunpack.c.l.b16 %v660
      %v812 = vunpack.c.l.b16 %v661
      %v813 = vunpack.c.l.b16 %v662
      %v814 = vunpack.c.l.b16 %v663
      %v815 = vunpack.c.l.b16 %v664
      %v816 = vunpack.c.l.b16 %v665
      %v817 = vunpack.c.l.b16 %v666
      %v818 = vunpack.c.l.b16 %v667
      %v819 = vunpack.c.l.b16 %v668
      %v820 = vunpack.c.l.b16 %v669
      %v821 = vunpack.c.l.b16 %v670
      %v822 = vunpack.c.l.b16 %v671
      %v823 = vunpack.c.l.b16 %v672
      %v824 = vunpack.c.l.b16 %v673
      %v825 = vunpack.c.l.b16 %v674
      %v826 = vunpack.c.l.b16 %v675
      %v827 = vunpack.c.l.b16 %v676
      %v828 = vunpack.c.l.b16 %v677
      %v829 = vunpack.c.l.b16 %v678
      %v830 = vunpack.c.l.b16 %v679
      %v831 = vunpack.c.l.b16 %v680
      %v832 = vunpack.c.l.b16 %v681
      %v833 = vunpack.c.l.b16 %v682
      %v834 = vunpack.c.l.b16 %v683
      %v835 = vunpack.c.l.b16 %v684
      %v836 = vunpack.c.l.b16 %v685
      %v837 = vunpack.c.l.b16 %v686
      %v838 = vpack.c.b16 %v767, %v766
      %v839 = vpack.c.b16 %v769, %v768
      %v840 = vpack.c.b16 %v771, %v770
      %v841 = vpack.c.b16 %v773, %v772
      %v842 = vpack.c.b16 %v775, %v774
      %v843 = vpack.c.b16 %v777, %v776
      %v844 = vpack.c.b16 %v779, %v778
      %v845 = vpack.c.b16 %v781, %v780
      %v846 = vpack.c.b16 %v783, %v782
      %v847 = vpack.c.b16 %v785, %v784
      %v848 = vpack.c.b16 %v787, %v786
      %v849 = vpack.c.b16 %v789, %v788
      %v850 = vpack.c.b16 %v791, %v790
      %v851 = vpack.c.b16 %v793, %v792
      %v852 = vpack.c.b16 %v795, %v794
      %v853 = vpack.c.b16 %v797, %v796
      %v854 = vpack.c.b16 %v799, %v798
      %v855 = vpack.c.b16 %v801, %v800
      %v856 = vpack.c.b16 %v803, %v802
      %v857 = vpack.c.b16 %v805, %v804
      %v858 = vpack.c.b16 %v807, %v806
      %v859 = vpack.c.b16 %v809, %v808
      %v860 = vpack.c.b16 %v811, %v810
      %v861 = vpack.c.b16 %v813, %v812
      %v862 = vpack.c.b16 %v815, %v814
      %v863 = vpack.c.b16 %v817, %v816
      %v864 = vpack.c.b16 %v819, %v818
      %v865 = vpack.c.b16 %v821, %v820
      %v866 = vpack.c.b16 %v823, %v822
      %v867 = vpack.c.b16 %v825, %v824
      %v868 = vpack.c.b16 %v827, %v826
      %v869 = vpack.c.b16 %v829, %v828
      %v870 = vpack.c.b16 %v831, %v830
      %v871 = vpack.c.b16 %v833, %v832
      %v872 = vpack.c.b16 %v835, %v834
      %v873 = vpack.c.b16 %v837, %v836
      %v910 = vsel %vm510, %v386, 0
      %v912 = vsel %vm510, %v387, 0
      %v914 = vsel %vm510, %v388, 0
      %v916 = vsel %vm510, %v389, 0
      %v918 = vsel %vm510, %v390, 0
      %v920 = vsel %vm510, %v391, 0
      %v923 = vsel %vm510, %v411, 0
      %v926 = vsel %vm510, %v431, 0
      %928 = vmatprep.subr.bf16.mxu0 0
      %929 = vmatpush1.bf16.msra.mxu0 %v838
      %930 = vmatprep.subr.bf16.mxu0 0
      %931 = vmatpush1.bf16.msra.mxu0 %v839
      %932 = vmatprep.subr.bf16.mxu0 0
      %933 = vmatpush1.bf16.msra.mxu0 %v840
      %934 = vmatprep.subr.bf16.mxu0 0
      %935 = vmatpush1.bf16.msra.mxu0 %v841
      %936 = vmatprep.subr.bf16.mxu0 0
      %937 = vmatpush1.bf16.msra.mxu0 %v842
      %938 = vmatprep.subr.bf16.mxu0 0
      %939 = vmatpush1.bf16.msra.mxu0 %v843
      %940 = vmatprep.subr.bf16.mxu0 0
      %941 = vmatpush1.bf16.msra.mxu0 %v844
      %942 = vmatprep.subr.bf16.mxu0 0
      %943 = vmatpush1.bf16.msra.mxu0 %v845
      %944 = vmatprep.subr.bf16.mxu0 0
      %945 = vmatpush1.bf16.msra.mxu0 %v846
      %946 = vmatprep.subr.bf16.mxu0 0
      %947 = vmatpush1.bf16.msra.mxu0 %v847
      %948 = vmatprep.subr.bf16.mxu0 0
      %949 = vmatpush1.bf16.msra.mxu0 %v848
      %950 = vmatprep.subr.bf16.mxu0 0
      %951 = vmatpush1.bf16.msra.mxu0 %v849
      %952 = vmatprep.subr.bf16.mxu0 0
      %953 = vmatpush1.bf16.msra.mxu0 %v850
      %954 = vmatprep.subr.bf16.mxu0 0
      %955 = vmatpush1.bf16.msra.mxu0 %v851
      %956 = vmatprep.subr.bf16.mxu0 0
      %957 = vmatpush1.bf16.msra.mxu0 %v852
      %958 = vmatprep.subr.bf16.mxu0 0
      %959 = vmatpush1.bf16.msra.mxu0 %v853
      %960 = vmatprep.mubr.bf16.mxu0 %v545
      %961 = vmatmul.mubr.bf16.gmra.mrb[0].mxu0 %v513
      %v962 = vpop.f32.mrb[0].mxu0
      %v963 = vadd.f32 %v692, %v962
      %v964 = vpop.f32.mrb[0].mxu0
      %v965 = vpop.f32.mrb[0].mxu0
      %v966 = vadd.f32 %v692, %v965
      %v967 = vpop.f32.mrb[0].mxu0
      %968 = vmatprep.mubr.bf16.mxu0 %v549
      %969 = vmatmul.mubr.bf16.gmra.mrb[0].mxu0 %v517
      %v970 = vpop.f32.mrb[0].mxu0
      %v971 = vadd.f32 %v692, %v970
      %v972 = vpop.f32.mrb[0].mxu0
      %v973 = vpop.f32.mrb[0].mxu0
      %v974 = vadd.f32 %v692, %v973
      %v975 = vpop.f32.mrb[0].mxu0
      %976 = vmatprep.mubr.bf16.mxu0 %v553
      %977 = vmatmul.mubr.bf16.gmra.mrb[0].mxu0 %v521
      %v978 = vpop.f32.mrb[0].mxu0
      %v979 = vadd.f32 %v692, %v978
      %v980 = vpop.f32.mrb[0].mxu0
      %v981 = vpop.f32.mrb[0].mxu0
      %v982 = vadd.f32 %v692, %v981
      %v983 = vpop.f32.mrb[0].mxu0
      %984 = vmatprep.mubr.bf16.mxu0 %v557
      %985 = vmatmul.mubr.bf16.gmra.mrb[0].mxu0 %v525
      %v986 = vpop.f32.mrb[0].mxu0
      %v987 = vadd.f32 %v692, %v986
      %v988 = vpop.f32.mrb[0].mxu0
      %v989 = vpop.f32.mrb[0].mxu0
      %v990 = vadd.f32 %v692, %v989
      %v991 = vpop.f32.mrb[0].mxu0
      %992 = vmatprep.mubr.bf16.mxu0 %v561
      %993 = vmatmul.mubr.bf16.gmra.mrb[0].mxu0 %v529
      %v994 = vpop.f32.mrb[0].mxu0
      %v995 = vadd.f32 %v692, %v994
      %v996 = vpop.f32.mrb[0].mxu0
      %v997 = vpop.f32.mrb[0].mxu0
      %v998 = vadd.f32 %v692, %v997
      %v999 = vpop.f32.mrb[0].mxu0
      %1000 = vmatprep.mubr.bf16.mxu0 %v565
      %1001 = vmatmul.mubr.bf16.gmra.mrb[0].mxu0 %v533
      %v1002 = vpop.f32.mrb[0].mxu0
      %v1003 = vadd.f32 %v692, %v1002
      %v1004 = vpop.f32.mrb[0].mxu0
      %v1005 = vpop.f32.mrb[0].mxu0
      %v1006 = vadd.f32 %v692, %v1005
      %v1007 = vpop.f32.mrb[0].mxu0
      %1008 = vmatprep.mubr.bf16.mxu0 %v569
      %1009 = vmatmul.mubr.bf16.gmra.mrb[0].mxu0 %v537
      %v1010 = vpop.f32.mrb[0].mxu0
      %v1011 = vadd.f32 %v692, %v1010
      %v1012 = vpop.f32.mrb[0].mxu0
      %v1013 = vpop.f32.mrb[0].mxu0
      %v1014 = vadd.f32 %v692, %v1013
      %v1015 = vpop.f32.mrb[0].mxu0
      %1016 = vmatprep.mubr.bf16.mxu0 %v573
      %1017 = vmatmul.mubr.bf16.gmra.mrb[0].mxu0 %v541
      %v1018 = vpop.f32.mrb[0].mxu0
      %v1019 = vadd.f32 %v692, %v1018
      %v1020 = vpop.f32.mrb[0].mxu0
      %v1021 = vpop.f32.mrb[0].mxu0
      %v1022 = vadd.f32 %v692, %v1021
      %v1023 = vpop.f32.mrb[0].mxu0
      %1024 = vdwg.mxu0
      %1025 = vmatprep.subr.bf16.mxu0 0
      %1026 = vmatpush1.bf16.msra.mxu0 %v854
      %1027 = vmatprep.subr.bf16.mxu0 0
      %1028 = vmatpush1.bf16.msra.mxu0 %v855
      %1029 = vmatprep.subr.bf16.mxu0 0
      %1030 = vmatpush1.bf16.msra.mxu0 %v856
      %1031 = vmatprep.subr.bf16.mxu0 0
      %1032 = vmatpush1.bf16.msra.mxu0 %v857
      %1033 = vmatprep.subr.bf16.mxu0 0
      %1034 = vmatpush1.bf16.msra.mxu0 %v858
      %1035 = vmatprep.subr.bf16.mxu0 0
      %1036 = vmatpush1.bf16.msra.mxu0 %v859
      %1037 = vmatprep.subr.bf16.mxu0 0
      %1038 = vmatpush1.bf16.msra.mxu0 %v860
      %1039 = vmatprep.subr.bf16.mxu0 0
      %1040 = vmatpush1.bf16.msra.mxu0 %v861
      %1041 = vmatprep.subr.bf16.mxu0 0
      %1042 = vmatpush1.bf16.msra.mxu0 %v862
      %1043 = vmatprep.subr.bf16.mxu0 0
      %1044 = vmatpush1.bf16.msra.mxu0 %v863
      %1045 = vmatprep.subr.bf16.mxu0 0
      %1046 = vmatpush1.bf16.msra.mxu0 %v864
      %1047 = vmatprep.subr.bf16.mxu0 0
      %1048 = vmatpush1.bf16.msra.mxu0 %v865
      %1049 = vmatprep.subr.bf16.mxu0 0
      %1050 = vmatpush1.bf16.msra.mxu0 %v866
      %1051 = vmatprep.subr.bf16.mxu0 0
      %1052 = vmatpush1.bf16.msra.mxu0 %v867
      %1053 = vmatprep.subr.bf16.mxu0 0
      %1054 = vmatpush1.bf16.msra.mxu0 %v868
      %1055 = vmatprep.subr.bf16.mxu0 0
      %1056 = vmatpush1.bf16.msra.mxu0 %v869
      %1057 = vmatprep.mubr.bf16.mxu0 %v521
      %1058 = vmatmul.mubr.bf16.gmra.mrb[0].mxu0 %v577
      %v1059 = vpop.f32.mrb[0].mxu0
      %v1060 = vadd.f32 %v963, %v1059
      %v1061 = vpop.f32.mrb[0].mxu0
      %v1062 = vpop.f32.mrb[0].mxu0
      %v1063 = vadd.f32 %v966, %v1062
      %v1064 = vpop.f32.mrb[0].mxu0
      %1065 = vmatprep.mubr.bf16.mxu0 %v525
      %1066 = vmatmul.mubr.bf16.gmra.mrb[0].mxu0 %v581
      %v1067 = vpop.f32.mrb[0].mxu0
      %v1068 = vadd.f32 %v971, %v1067
      %v1069 = vpop.f32.mrb[0].mxu0
      %v1070 = vpop.f32.mrb[0].mxu0
      %v1071 = vadd.f32 %v974, %v1070
      %v1072 = vpop.f32.mrb[0].mxu0
      %1073 = vmatprep.mubr.bf16.mxu0 %v529
      %1074 = vmatmul.mubr.bf16.gmra.mrb[0].mxu0 %v585
      %v1075 = vpop.f32.mrb[0].mxu0
      %v1076 = vadd.f32 %v979, %v1075
      %v1077 = vpop.f32.mrb[0].mxu0
      %v1078 = vpop.f32.mrb[0].mxu0
      %v1079 = vadd.f32 %v982, %v1078
      %v1080 = vpop.f32.mrb[0].mxu0
      %1081 = vmatprep.mubr.bf16.mxu0 %v533
      %1082 = vmatmul.mubr.bf16.gmra.mrb[0].mxu0 %v589
      %v1083 = vpop.f32.mrb[0].mxu0
      %v1084 = vadd.f32 %v987, %v1083
      %v1085 = vpop.f32.mrb[0].mxu0
      %v1086 = vpop.f32.mrb[0].mxu0
      %v1087 = vadd.f32 %v990, %v1086
      %v1088 = vpop.f32.mrb[0].mxu0
      %1089 = vmatprep.mubr.bf16.mxu0 %v537
      %1090 = vmatmul.mubr.bf16.gmra.mrb[0].mxu0 %v593
      %v1091 = vpop.f32.mrb[0].mxu0
      %v1092 = vadd.f32 %v995, %v1091
      %v1093 = vpop.f32.mrb[0].mxu0
      %v1094 = vpop.f32.mrb[0].mxu0
      %v1095 = vadd.f32 %v998, %v1094
      %v1096 = vpop.f32.mrb[0].mxu0
      %1097 = vmatprep.mubr.bf16.mxu0 %v541
      %1098 = vmatmul.mubr.bf16.gmra.mrb[0].mxu0 %v597
      %v1099 = vpop.f32.mrb[0].mxu0
      %v1100 = vadd.f32 %v1003, %v1099
      %v1101 = vpop.f32.mrb[0].mxu0
      %v1102 = vpop.f32.mrb[0].mxu0
      %v1103 = vadd.f32 %v1006, %v1102
      %v1104 = vpop.f32.mrb[0].mxu0
      %1105 = vmatprep.mubr.bf16.mxu0 %v609
      %1106 = vmatmul.mubr.bf16.gmra.mrb[0].mxu0 %v601
      %v1107 = vpop.f32.mrb[0].mxu0
      %v1108 = vadd.f32 %v1011, %v1107
      %v1109 = vpop.f32.mrb[0].mxu0
      %v1110 = vpop.f32.mrb[0].mxu0
      %v1111 = vadd.f32 %v1014, %v1110
      %v1112 = vpop.f32.mrb[0].mxu0
      %1113 = vmatprep.mubr.bf16.mxu0 %v613
      %1114 = vmatmul.mubr.bf16.gmra.mrb[0].mxu0 %v605
      %v1115 = vpop.f32.mrb[0].mxu0
      %v1116 = vadd.f32 %v1019, %v1115
      %v1117 = vpop.f32.mrb[0].mxu0
      %v1118 = vpop.f32.mrb[0].mxu0
      %v1119 = vadd.f32 %v1022, %v1118
      %v1120 = vpop.f32.mrb[0].mxu0
      %1121 = vdwg.mxu0
      %1122 = vmatprep.subr.bf16.mxu0 0
      %1123 = vmatpush1.bf16.msra.mxu0 %v870
      %1124 = vmatprep.subr.bf16.mxu0 0
      %1125 = vmatpush1.bf16.msra.mxu0 %v871
      %1126 = vmatprep.subr.bf16.mxu0 0
      %1127 = vmatpush1.bf16.msra.mxu0 %v872
      %1128 = vmatprep.subr.bf16.mxu0 0
      %1129 = vmatpush1.bf16.msra.mxu0 %v873
      %1130 = vmatprep.subr.bf16.mxu0 0
      %1131 = vmatpush1.bf16.msra.mxu0 0
      %1132 = vmatprep.subr.bf16.mxu0 0
      %1133 = vmatpush1.bf16.msra.mxu0 0
      %1134 = vmatprep.subr.bf16.mxu0 0
      %1135 = vmatpush1.bf16.msra.mxu0 0
      %1136 = vmatprep.subr.bf16.mxu0 0
      %1137 = vmatpush1.bf16.msra.mxu0 0
      %1138 = vmatprep.subr.bf16.mxu0 0
      %1139 = vmatpush1.bf16.msra.mxu0 0
      %1140 = vmatprep.subr.bf16.mxu0 0
      %1141 = vmatpush1.bf16.msra.mxu0 0
      %1142 = vmatprep.subr.bf16.mxu0 0
      %1143 = vmatpush1.bf16.msra.mxu0 0
      %1144 = vmatprep.subr.bf16.mxu0 0
      %1145 = vmatpush1.bf16.msra.mxu0 0
      %1146 = vmatprep.subr.bf16.mxu0 0
      %1147 = vmatpush1.bf16.msra.mxu0 0
      %1148 = vmatprep.subr.bf16.mxu0 0
      %1149 = vmatpush1.bf16.msra.mxu0 0
      %1150 = vmatprep.subr.bf16.mxu0 0
      %1151 = vmatpush1.bf16.msra.mxu0 0
      %1152 = vmatprep.subr.bf16.mxu0 0
      %1153 = vmatpush1.bf16.msra.mxu0 0
      %1154 = vmatprep.mubr.bf16.mxu0 0
      %1155 = vmatmul.mubr.bf16.gmra.mrb[0].mxu0 %v910
      %v1156 = vpop.f32.mrb[0].mxu0
      %v1157 = vadd.f32 %v1060, %v1156
      %v1158 = vpop.f32.mrb[0].mxu0
      %v1159 = vpop.f32.mrb[0].mxu0
      %v1160 = vadd.f32 %v1063, %v1159
      %v1161 = vpop.f32.mrb[0].mxu0
      %1162 = vmatprep.mubr.bf16.mxu0 0
      %1163 = vmatmul.mubr.bf16.gmra.mrb[0].mxu0 %v912
      %v1164 = vpop.f32.mrb[0].mxu0
      %v1165 = vadd.f32 %v1068, %v1164
      %v1166 = vpop.f32.mrb[0].mxu0
      %v1167 = vpop.f32.mrb[0].mxu0
      %v1168 = vadd.f32 %v1071, %v1167
      %v1169 = vpop.f32.mrb[0].mxu0
      %1170 = vmatprep.mubr.bf16.mxu0 0
      %1171 = vmatmul.mubr.bf16.gmra.mrb[0].mxu0 %v914
      %v1172 = vpop.f32.mrb[0].mxu0
      %v1173 = vadd.f32 %v1076, %v1172
      %v1174 = vpop.f32.mrb[0].mxu0
      %v1175 = vpop.f32.mrb[0].mxu0
      %v1176 = vadd.f32 %v1079, %v1175
      %v1177 = vpop.f32.mrb[0].mxu0
      %1178 = vmatprep.mubr.bf16.mxu0 0
      %1179 = vmatmul.mubr.bf16.gmra.mrb[0].mxu0 %v916
      %v1180 = vpop.f32.mrb[0].mxu0
      %v1181 = vadd.f32 %v1084, %v1180
      %v1182 = vpop.f32.mrb[0].mxu0
      %v1183 = vpop.f32.mrb[0].mxu0
      %v1184 = vadd.f32 %v1087, %v1183
      %v1185 = vpop.f32.mrb[0].mxu0
      %1186 = vmatprep.mubr.bf16.mxu0 0
      %1187 = vmatmul.mubr.bf16.gmra.mrb[0].mxu0 %v918
      %v1188 = vpop.f32.mrb[0].mxu0
      %v1189 = vadd.f32 %v1092, %v1188
      %v1190 = vpop.f32.mrb[0].mxu0
      %v1191 = vpop.f32.mrb[0].mxu0
      %v1192 = vadd.f32 %v1095, %v1191
      %v1193 = vpop.f32.mrb[0].mxu0
      %1194 = vmatprep.mubr.bf16.mxu0 0
      %1195 = vmatmul.mubr.bf16.gmra.mrb[0].mxu0 %v920
      %v1196 = vpop.f32.mrb[0].mxu0
      %v1197 = vadd.f32 %v1100, %v1196
      %v1198 = vpop.f32.mrb[0].mxu0
      %v1199 = vpop.f32.mrb[0].mxu0
      %v1200 = vadd.f32 %v1103, %v1199
      %v1201 = vpop.f32.mrb[0].mxu0
      %1202 = vmatprep.mubr.bf16.mxu0 0
      %1203 = vmatmul.mubr.bf16.gmra.mrb[0].mxu0 %v923
      %v1204 = vpop.f32.mrb[0].mxu0
      %v1205 = vadd.f32 %v1108, %v1204
      %v1206 = vpop.f32.mrb[0].mxu0
      %v1207 = vpop.f32.mrb[0].mxu0
      %v1208 = vadd.f32 %v1111, %v1207
      %v1209 = vpop.f32.mrb[0].mxu0
      %1210 = vmatprep.mubr.bf16.mxu0 0
      %1211 = vmatmul.mubr.bf16.gmra.mrb[0].mxu0 %v926
      %v1212 = vpop.f32.mrb[0].mxu0
      %v1213 = vadd.f32 %v1116, %v1212
      %v1214 = vpop.f32.mrb[0].mxu0
      %v1215 = vpop.f32.mrb[0].mxu0
      %v1216 = vadd.f32 %v1119, %v1215
      %v1217 = vpop.f32.mrb[0].mxu0
      %1218 = vdwg.mxu0
      %1219 = vst.msk [vmem:[%s194] sm:$0xff] %vm510, %v1157
      %1220 = vst.msk [vmem:[%s194 + $0x8] sm:$0xff] %vm510, %v1160
      %1221 = vst.msk [vmem:[%s194 + $0x10] sm:$0xff] %vm510, %v1165
      %1222 = vst.msk [vmem:[%s194 + $0x18] sm:$0xff] %vm510, %v1168
      %1223 = vst.msk [vmem:[%s194 + $0x20] sm:$0xff] %vm510, %v1173
      %1224 = vst.msk [vmem:[%s194 + $0x28] sm:$0xff] %vm510, %v1176
      %1225 = vst.msk [vmem:[%s194 + $0x30] sm:$0xff] %vm510, %v1181
      %1226 = vst.msk [vmem:[%s194 + $0x38] sm:$0xff] %vm510, %v1184
      %1227 = vst.msk [vmem:[%s194 + $0x40] sm:$0xff] %vm510, %v1189
      %1228 = vst.msk [vmem:[%s194 + $0x48] sm:$0xff] %vm510, %v1192
      %1229 = vst.msk [vmem:[%s194 + $0x50] sm:$0xff] %vm510, %v1197
      %1230 = vst.msk [vmem:[%s194 + $0x58] sm:$0xff] %vm510, %v1200
      %1231 = vst.msk [vmem:[%s194 + $0x60] sm:$0xff] %vm510, %v1205
      %1232 = vst.msk [vmem:[%s194 + $0x68] sm:$0xff] %vm510, %v1208
      %1233 = vst.msk [vmem:[%s194 + $0x70] sm:$0xff] %vm510, %v1213
      %1234 = vst.msk [vmem:[%s194 + $0x78] sm:$0xff] %vm510, %v1216
      %s1235 = smul.u32 8, %s19
      %p1236 = scmp.lt.s32.totalorder %s18, 1
      %s1237 = scalar_select %p1236, %s18, 1
      %p1238 = scmp.lt.s32.totalorder %s1235, 15
      %s1239 = scalar_select %p1238, %s1235, 15
      %s1240 = smul.addr %s1239, 2
      %s1241 = smul.addr %s1237, 32
      %s1242 = sadd.s32 %s1240, %s1241
      %s1243 = smul.addr %s1242, 8
      %s1244 = scalar_lea.vmem %s3, %s1243
      // Predicated region
      $region33: #{spade_resnet_block_forward.28} parent=31 // pred_check
        %p1245 = pneg %p114
      $region34: #{spade_resnet_block_forward.28} parent=31 // pred_check_branch
        %1247 = sbr.rel (%p1245) target = $region36
      $region35: #{spade_resnet_block_forward.28} parent=31 // pred_region
        %s1248 = smul.u32 8, %s19
      $region36: #{spade_resnet_block_forward.28} parent=31 // pred_fallthru
        _
    $region32: #{spade_resnet_block_forward.28} parent=5 // pred_fallthru
      _
    %p1249 = scmp.le.s32.totalorder 2, %s9
    // Predicated region
    $region37: #{spade_resnet_block_forward.28} parent=5 // pred_check
      %p1250 = pneg %p1249
    $region38: #{spade_resnet_block_forward.28} parent=5 // pred_check_branch
      %1252 = sbr.rel (%p1250) target = $region40
    $region39: #{spade_resnet_block_forward.28} parent=5 // pred_region
      %s1253 = ssub.s32 %s9, 2
      // Predicated region
      $region41: #{spade_resnet_block_forward.28} parent=39 // pred_check
        %p1254 = pneg %p120
      $region42: #{spade_resnet_block_forward.28} parent=39 // pred_check_branch
        %1256 = sbr.rel (%p1254) target = $region44
      $region43: #{spade_resnet_block_forward.28} parent=39 // pred_region
        %s1257 = smul.u32 8, %s21
        %p1258 = scmp.lt.s32.totalorder %s20, 1
        %s1259 = scalar_select %p1258, %s20, 1
        %p1260 = scmp.lt.s32.totalorder %s1257, 15
        %s1261 = scalar_select %p1260, %s1257, 15
        %s1262 = smul.addr %s1261, 2
        %s1263 = smul.addr %s1259, 32
        %s1264 = sadd.s32 %s1262, %s1263
        %s1265 = smul.addr %s1264, 8
        %s1266 = scalar_lea.vmem %s3, %s1265
      $region44: #{spade_resnet_block_forward.28} parent=39 // pred_fallthru
        _
    $region40: #{spade_resnet_block_forward.28} parent=5 // pred_fallthru
      _
  $region6: #{spade_resnet_block_forward.28} parent=0 // loop_footer
    %s13 = sadd.s32 1, %s9
  $region7: #{spade_resnet_block_forward.28} parent=0 // loop_footer_branch
    %8 = sbr.rel target = $region3
  $region8: #{spade_resnet_block_forward.28} parent=0 // loop_exit
    _

// kernel: spade_resnet_block_forward.22
$region0: #{spade_resnet_block_forward.22}
  #allocation0 [shape = 'u32[]', space=smem, size = 0x4, offset = 0x4, fixed_abs, tag = 'smem constant byte address 0x4 - core index']
  #allocation1 [shape = 'u32[144,128]{1,0:T(1,128)}', space=vmem, size = 0x12000, scoped, tag = 'internal scratch']
  %s0 = inlined_call_operand.vmem [shape: f32[512,64], index: 0, kind: input, shape index: {}]
  %s1 = inlined_call_operand.vmem [shape: bf16[64,128], index: 1, kind: input, shape index: {}]
  %s2 = inlined_call_operand.vmem [shape: f32[512,128], index: 2, kind: output, shape index: {}]
  %s3 = sld [smem:[#allocation0]]
  $region41: #{spade_resnet_block_forward.22} parent=0
    _
  %s5 = ssub.s32 1, %s3
  %s6 = scalar_select 0, %s5, %s3
  loop: start=0, step=1, limit=4
  $region2: #{spade_resnet_block_forward.22} parent=0 // loop_pre_header
    _
  $region3: #{spade_resnet_block_forward.22} parent=0 // loop_header
    %s8 = sphi 0, %s12
    %p9 = scmp.ge.s32.totalorder %s8, 4
    %s18 = sphi 0, %s20
    %s21 = sphi 0, %s18
    %s22 = sphi 0, %s21
    %s38 = sphi 0, %s22
    %s42 = sphi 0, %s42
    %s44 = sphi 0, %s42
    %s45 = sphi 0, %s44
    %s59 = sphi 0, %s45
    %s65 = sphi 0, %s67
    %s68 = sphi 0, %s65
    %s69 = sphi 0, %s68
    %s85 = sphi 0, %s69
  $region4: #{spade_resnet_block_forward.22} parent=0 // loop_header_branch
    %11 = sbr.rel (%p9) target = $region8
  $region5: #{spade_resnet_block_forward.22} parent=0 // loop_body
    %s13 = ssub.s32 %s8, 1
    %s14 = ssub.s32 %s8, 2
    %s15 = sadd.s32 %s8, 1
    %s16 = ssub.s32 %s8, %s15
    %p17 = scmp.eq.s32.totalorder %s16, 0
    %s19 = sadd.s32 %s18, 1
    %s20 = scalar_select %p17, %s18, %s19
    %p23 = pneg %p17
    %p24 = scmp.eq.s32.totalorder %s8, 1
    %p25 = por %p23, %p24
    %p26 = scmp.ne.s32.totalorder %s18, %s21
    %p27 = scmp.eq.s32.totalorder %s8, 0
    %p28 = por %p26, %p27
    %p29 = scmp.ne.s32.totalorder %s18, %s21
    %p30 = scmp.eq.s32.totalorder %s13, 1
    %p31 = por %p29, %p30
    %p32 = scmp.ne.s32.totalorder %s21, %s22
    %p33 = scmp.eq.s32.totalorder %s13, 0
    %p34 = por %p32, %p33
    %p35 = scmp.ne.s32.totalorder %s21, %s22
    %p36 = scmp.eq.s32.totalorder %s14, 1
    %p37 = por %p35, %p36
    %p39 = scmp.ne.s32.totalorder %s22, %s38
    %p40 = scmp.eq.s32.totalorder %s14, 0
    %p41 = por %p39, %p40
    %s43 = sadd.s32 %s42, 1
    %p46 = scmp.eq.s32.totalorder %s8, 1
    %p47 = scmp.ne.s32.totalorder %s42, %s44
    %p48 = scmp.eq.s32.totalorder %s8, 0
    %p49 = por %p47, %p48
    %p50 = scmp.ne.s32.totalorder %s42, %s44
    %p51 = scmp.eq.s32.totalorder %s13, 1
    %p52 = por %p50, %p51
    %p53 = scmp.ne.s32.totalorder %s44, %s45
    %p54 = scmp.eq.s32.totalorder %s13, 0
    %p55 = por %p53, %p54
    %p56 = scmp.ne.s32.totalorder %s44, %s45
    %p57 = scmp.eq.s32.totalorder %s14, 1
    %p58 = por %p56, %p57
    %p60 = scmp.ne.s32.totalorder %s45, %s59
    %p61 = scmp.eq.s32.totalorder %s14, 0
    %p62 = por %p60, %p61
    %s63 = ssub.s32 %s8, %s15
    %p64 = scmp.eq.s32.totalorder %s63, 0
    %s66 = sadd.s32 %s65, 1
    %s67 = scalar_select %p64, %s65, %s66
    %p70 = pneg %p64
    %p71 = scmp.eq.s32.totalorder %s8, 1
    %p72 = por %p70, %p71
    %p73 = scmp.ne.s32.totalorder %s65, %s68
    %p74 = scmp.eq.s32.totalorder %s8, 0
    %p75 = por %p73, %p74
    %p76 = scmp.ne.s32.totalorder %s65, %s68
    %p77 = scmp.eq.s32.totalorder %s13, 1
    %p78 = por %p76, %p77
    %p79 = scmp.ne.s32.totalorder %s68, %s69
    %p80 = scmp.eq.s32.totalorder %s13, 0
    %p81 = por %p79, %p80
    %p82 = scmp.ne.s32.totalorder %s68, %s69
    %p83 = scmp.eq.s32.totalorder %s14, 1
    %p84 = por %p82, %p83
    %p86 = scmp.ne.s32.totalorder %s69, %s85
    %p87 = scmp.eq.s32.totalorder %s14, 0
    %p88 = por %p86, %p87
    %p89 = scmp.le.s32.totalorder 1, %s8
    %p90 = scmp.lt.s32.totalorder %s8, 3
    %p91 = pnand %p89, %p90
    %p92 = pneg %p91
    // Predicated region
    $region9: #{spade_resnet_block_forward.22} parent=5 // pred_check
      _
    $region10: #{spade_resnet_block_forward.22} parent=5 // pred_check_branch
      %94 = sbr.rel (%p91) target = $region12
    $region11: #{spade_resnet_block_forward.22} parent=5 // pred_region
      %s95 = ssub.s32 %s8, 1
      // Predicated region
      $region13: #{spade_resnet_block_forward.22} parent=11 // pred_check
        %p96 = pneg %p55
      $region14: #{spade_resnet_block_forward.22} parent=11 // pred_check_branch
        %98 = sbr.rel (%p96) target = $region16
      $region15: #{spade_resnet_block_forward.22} parent=11 // pred_region
        _
      $region16: #{spade_resnet_block_forward.22} parent=11 // pred_fallthru
        _
    $region12: #{spade_resnet_block_forward.22} parent=5 // pred_fallthru
      _
    %p99 = scmp.lt.s32.totalorder %s8, 2
    // Predicated region
    $region17: #{spade_resnet_block_forward.22} parent=5 // pred_check
      %p100 = pneg %p99
    $region18: #{spade_resnet_block_forward.22} parent=5 // pred_check_branch
      %102 = sbr.rel (%p100) target = $region20
    $region19: #{spade_resnet_block_forward.22} parent=5 // pred_region
      // Predicated region
      $region21: #{spade_resnet_block_forward.22} parent=19 // pred_check
        %p103 = pneg %p28
      $region22: #{spade_resnet_block_forward.22} parent=19 // pred_check_branch
        %105 = sbr.rel (%p103) target = $region24
      $region23: #{spade_resnet_block_forward.22} parent=19 // pred_region
        %s106 = smul.u32 32, %s8
        %p107 = scmp.lt.s32.totalorder %s106, 63
        %s108 = scalar_select %p107, %s106, 63
        %s109 = smul.addr %s108, 8
        %s110 = scalar_lea.vmem %s0, %s109
        %s111 = smul.u32 32, %s8
      $region24: #{spade_resnet_block_forward.22} parent=19 // pred_fallthru
        _
    $region20: #{spade_resnet_block_forward.22} parent=5 // pred_fallthru
      _
    %p112 = scmp.le.s32.totalorder 1, %s8
    %p113 = scmp.lt.s32.totalorder %s8, 3
    %p114 = pnand %p112, %p113
    %p115 = pneg %p114
    // Predicated region
    $region25: #{spade_resnet_block_forward.22} parent=5 // pred_check
      _
    $region26: #{spade_resnet_block_forward.22} parent=5 // pred_check_branch
      %117 = sbr.rel (%p114) target = $region28
    $region27: #{spade_resnet_block_forward.22} parent=5 // pred_region
      %s118 = ssub.s32 %s8, 1
      %s119 = smul.u32 32, %s13
      %p120 = scmp.lt.s32.totalorder %s119, 63
      %s121 = scalar_select %p120, %s119, 63
      %s122 = smul.addr %s121, 8
      %s123 = scalar_lea.vmem %s0, %s122
      %p124 = pneg %p34
      %p125 = pneg %p31
      %p126 = pneg %p55
      %p127 = pneg %p52
      %p128 = pneg %p81
      %p129 = pneg %p78
      %s130 = smul.u32 32, %s13
      %p131 = scmp.lt.s32.totalorder %s130, 63
      %s132 = scalar_select %p131, %s130, 63
      %s133 = smul.addr %s132, 8
      %s134 = scalar_lea.vmem %s2, %s133
      %s135 = smul.u32 32, %s13
      %p136 = scmp.lt.s32.totalorder %s135, 63
      %s137 = scalar_select %p136, %s135, 63
      %s138 = smul.addr %s137, 8
      %s139 = scalar_lea.vmem %s0, %s138
      %s140 = smul.u32 32, %s13
      %s141 = smul.u32 32, %s13
      %p142 = scmp.lt.s32.totalorder %s141, 63
      %s143 = scalar_select %p142, %s141, 63
      %s144 = smul.addr %s143, 8
      %s145 = scalar_lea.vmem %s2, %s144
      %s146 = smul.u32 32, %s13
      %v148 = vld [vmem:[%s139] sm:$0xff]
      %v149 = vld [vmem:[%s139 + $0x8] sm:$0xff]
      %v150 = vld [vmem:[%s139 + $0x10] sm:$0xff]
      %v151 = vld [vmem:[%s139 + $0x18] sm:$0xff]
      %v152 = vld [vmem:[%s139 + $0x20] sm:$0xff]
      %v153 = vld [vmem:[%s139 + $0x28] sm:$0xff]
      %v154 = vld [vmem:[%s139 + $0x30] sm:$0xff]
      %v155 = vld [vmem:[%s139 + $0x38] sm:$0xff]
      %v156 = vld [vmem:[%s139 + $0x40] sm:$0xff]
      %v157 = vld [vmem:[%s139 + $0x48] sm:$0xff]
      %v158 = vld [vmem:[%s139 + $0x50] sm:$0xff]
      %v159 = vld [vmem:[%s139 + $0x58] sm:$0xff]
      %v160 = vld [vmem:[%s139 + $0x60] sm:$0xff]
      %v161 = vld [vmem:[%s139 + $0x68] sm:$0xff]
      %v162 = vld [vmem:[%s139 + $0x70] sm:$0xff]
      %v163 = vld [vmem:[%s139 + $0x78] sm:$0xff]
      %v164 = vld [vmem:[%s139 + $0x80] sm:$0xff]
      %v165 = vld [vmem:[%s139 + $0x88] sm:$0xff]
      %v166 = vld [vmem:[%s139 + $0x90] sm:$0xff]
      %v167 = vld [vmem:[%s139 + $0x98] sm:$0xff]
      %v168 = vld [vmem:[%s139 + $0xa0] sm:$0xff]
      %v169 = vld [vmem:[%s139 + $0xa8] sm:$0xff]
      %v170 = vld [vmem:[%s139 + $0xb0] sm:$0xff]
      %v171 = vld [vmem:[%s139 + $0xb8] sm:$0xff]
      %v172 = vld [vmem:[%s139 + $0xc0] sm:$0xff]
      %v173 = vld [vmem:[%s139 + $0xc8] sm:$0xff]
      %v174 = vld [vmem:[%s139 + $0xd0] sm:$0xff]
      %v175 = vld [vmem:[%s139 + $0xd8] sm:$0xff]
      %v176 = vld [vmem:[%s139 + $0xe0] sm:$0xff]
      %v177 = vld [vmem:[%s139 + $0xe8] sm:$0xff]
      %v178 = vld [vmem:[%s139 + $0xf0] sm:$0xff]
      %v179 = vld [vmem:[%s139 + $0xf8] sm:$0xff]
      %v180 = vpack.c.bf16 %v149, %v148
      %v181 = vpack.c.bf16 %v151, %v150
      %v182 = vpack.c.bf16 %v153, %v152
      %v183 = vpack.c.bf16 %v155, %v154
      %v184 = vpack.c.bf16 %v157, %v156
      %v185 = vpack.c.bf16 %v159, %v158
      %v186 = vpack.c.bf16 %v161, %v160
      %v187 = vpack.c.bf16 %v163, %v162
      %v188 = vpack.c.bf16 %v165, %v164
      %v189 = vpack.c.bf16 %v167, %v166
      %v190 = vpack.c.bf16 %v169, %v168
      %v191 = vpack.c.bf16 %v171, %v170
      %v192 = vpack.c.bf16 %v173, %v172
      %v193 = vpack.c.bf16 %v175, %v174
      %v194 = vpack.c.bf16 %v177, %v176
      %v195 = vpack.c.bf16 %v179, %v178
      %v196 = vld [vmem:[%s1] sm:$0xf]
      %v197 = vld [vmem:[%s1 + $0x4] sm:$0xf]
      %v198 = vld [vmem:[%s1 + $0x8] sm:$0xf]
      %v199 = vld [vmem:[%s1 + $0xc] sm:$0xf]
      %v200 = vld [vmem:[%s1 + $0x10] sm:$0xf]
      %v201 = vld [vmem:[%s1 + $0x14] sm:$0xf]
      %v202 = vld [vmem:[%s1 + $0x18] sm:$0xf]
      %v203 = vld [vmem:[%s1 + $0x1c] sm:$0xf]
      %v212 = vunpack.c.l.b16 %v196
      %v213 = vunpack.c.l.b16 %v197
      %v214 = vunpack.c.l.b16 %v198
      %v215 = vunpack.c.l.b16 %v199
      %v216 = vunpack.c.l.b16 %v200
      %v217 = vunpack.c.l.b16 %v201
      %v218 = vunpack.c.l.b16 %v202
      %v219 = vunpack.c.l.b16 %v203
      %v220 = vpack.c.b16 %v213, %v212
      %v221 = vpack.c.b16 %v215, %v214
      %v222 = vpack.c.b16 %v217, %v216
      %v223 = vpack.c.b16 %v219, %v218
      %vm228 = vcmask 523264
      %v230 = vsel %vm228, %v180, 0
      %v233 = vsel %vm228, %v181, 0
      %v236 = vsel %vm228, %v182, 0
      %v239 = vsel %vm228, %v183, 0
      %v242 = vsel %vm228, %v184, 0
      %v245 = vsel %vm228, %v185, 0
      %v248 = vsel %vm228, %v186, 0
      %v251 = vsel %vm228, %v187, 0
      %v254 = vsel %vm228, %v188, 0
      %v257 = vsel %vm228, %v189, 0
      %v260 = vsel %vm228, %v190, 0
      %v263 = vsel %vm228, %v191, 0
      %v266 = vsel %vm228, %v192, 0
      %v269 = vsel %vm228, %v193, 0
      %v272 = vsel %vm228, %v194, 0
      %v275 = vsel %vm228, %v195, 0
      %277 = vmatprep.subr.bf16.mxu0 0
      %278 = vmatpush1.bf16.msra.mxu0 %v220
      %279 = vmatprep.subr.bf16.mxu0 0
      %280 = vmatpush1.bf16.msra.mxu0 %v221
      %281 = vmatprep.subr.bf16.mxu0 0
      %282 = vmatpush1.bf16.msra.mxu0 %v222
      %283 = vmatprep.subr.bf16.mxu0 0
      %284 = vmatpush1.bf16.msra.mxu0 %v223
      %285 = vmatprep.subr.bf16.mxu0 0
      %286 = vmatpush1.bf16.msra.mxu0 0
      %287 = vmatprep.subr.bf16.mxu0 0
      %288 = vmatpush1.bf16.msra.mxu0 0
      %289 = vmatprep.subr.bf16.mxu0 0
      %290 = vmatpush1.bf16.msra.mxu0 0
      %291 = vmatprep.subr.bf16.mxu0 0
      %292 = vmatpush1.bf16.msra.mxu0 0
      %293 = vmatprep.subr.bf16.mxu0 0
      %294 = vmatpush1.bf16.msra.mxu0 0
      %295 = vmatprep.subr.bf16.mxu0 0
      %296 = vmatpush1.bf16.msra.mxu0 0
      %297 = vmatprep.subr.bf16.mxu0 0
      %298 = vmatpush1.bf16.msra.mxu0 0
      %299 = vmatprep.subr.bf16.mxu0 0
      %300 = vmatpush1.bf16.msra.mxu0 0
      %301 = vmatprep.subr.bf16.mxu0 0
      %302 = vmatpush1.bf16.msra.mxu0 0
      %303 = vmatprep.subr.bf16.mxu0 0
      %304 = vmatpush1.bf16.msra.mxu0 0
      %305 = vmatprep.subr.bf16.mxu0 0
      %306 = vmatpush1.bf16.msra.mxu0 0
      %307 = vmatprep.subr.bf16.mxu0 0
      %308 = vmatpush1.bf16.msra.mxu0 0
      %309 = vmatprep.mubr.bf16.mxu0 0
      %310 = vmatmul.mubr.bf16.gmra.mrb[0].mxu0 %v230
      %v311 = vpop.f32.mrb[0].mxu0
      %v312 = vadd.f32 0.0, %v311
      %v313 = vpop.f32.mrb[0].mxu0
      %v314 = vpop.f32.mrb[0].mxu0
      %v315 = vadd.f32 0.0, %v314
      %v316 = vpop.f32.mrb[0].mxu0
      %317 = vmatprep.mubr.bf16.mxu0 0
      %318 = vmatmul.mubr.bf16.gmra.mrb[0].mxu0 %v233
      %v319 = vpop.f32.mrb[0].mxu0
      %v320 = vadd.f32 0.0, %v319
      %v321 = vpop.f32.mrb[0].mxu0
      %v322 = vpop.f32.mrb[0].mxu0
      %v323 = vadd.f32 0.0, %v322
      %v324 = vpop.f32.mrb[0].mxu0
      %325 = vmatprep.mubr.bf16.mxu0 0
      %326 = vmatmul.mubr.bf16.gmra.mrb[0].mxu0 %v236
      %v327 = vpop.f32.mrb[0].mxu0
      %v328 = vadd.f32 0.0, %v327
      %v329 = vpop.f32.mrb[0].mxu0
      %v330 = vpop.f32.mrb[0].mxu0
      %v331 = vadd.f32 0.0, %v330
      %v332 = vpop.f32.mrb[0].mxu0
      %333 = vmatprep.mubr.bf16.mxu0 0
      %334 = vmatmul.mubr.bf16.gmra.mrb[0].mxu0 %v239
      %v335 = vpop.f32.mrb[0].mxu0
      %v336 = vadd.f32 0.0, %v335
      %v337 = vpop.f32.mrb[0].mxu0
      %v338 = vpop.f32.mrb[0].mxu0
      %v339 = vadd.f32 0.0, %v338
      %v340 = vpop.f32.mrb[0].mxu0
      %341 = vmatprep.mubr.bf16.mxu0 0
      %342 = vmatmul.mubr.bf16.gmra.mrb[0].mxu0 %v242
      %v343 = vpop.f32.mrb[0].mxu0
      %v344 = vadd.f32 0.0, %v343
      %v345 = vpop.f32.mrb[0].mxu0
      %v346 = vpop.f32.mrb[0].mxu0
      %v347 = vadd.f32 0.0, %v346
      %v348 = vpop.f32.mrb[0].mxu0
      %349 = vmatprep.mubr.bf16.mxu0 0
      %350 = vmatmul.mubr.bf16.gmra.mrb[0].mxu0 %v245
      %v351 = vpop.f32.mrb[0].mxu0
      %v352 = vadd.f32 0.0, %v351
      %v353 = vpop.f32.mrb[0].mxu0
      %v354 = vpop.f32.mrb[0].mxu0
      %v355 = vadd.f32 0.0, %v354
      %v356 = vpop.f32.mrb[0].mxu0
      %357 = vmatprep.mubr.bf16.mxu0 0
      %358 = vmatmul.mubr.bf16.gmra.mrb[0].mxu0 %v248
      %v359 = vpop.f32.mrb[0].mxu0
      %v360 = vadd.f32 0.0, %v359
      %v361 = vpop.f32.mrb[0].mxu0
      %v362 = vpop.f32.mrb[0].mxu0
      %v363 = vadd.f32 0.0, %v362
      %v364 = vpop.f32.mrb[0].mxu0
      %365 = vmatprep.mubr.bf16.mxu0 0
      %366 = vmatmul.mubr.bf16.gmra.mrb[0].mxu0 %v251
      %v367 = vpop.f32.mrb[0].mxu0
      %v368 = vadd.f32 0.0, %v367
      %v369 = vpop.f32.mrb[0].mxu0
      %v370 = vpop.f32.mrb[0].mxu0
      %v371 = vadd.f32 0.0, %v370
      %v372 = vpop.f32.mrb[0].mxu0
      %373 = vmatprep.mubr.bf16.mxu0 0
      %374 = vmatmul.mubr.bf16.gmra.mrb[0].mxu0 %v254
      %v375 = vpop.f32.mrb[0].mxu0
      %v376 = vadd.f32 0.0, %v375
      %v377 = vpop.f32.mrb[0].mxu0
      %v378 = vpop.f32.mrb[0].mxu0
      %v379 = vadd.f32 0.0, %v378
      %v380 = vpop.f32.mrb[0].mxu0
      %381 = vmatprep.mubr.bf16.mxu0 0
      %382 = vmatmul.mubr.bf16.gmra.mrb[0].mxu0 %v257
      %v383 = vpop.f32.mrb[0].mxu0
      %v384 = vadd.f32 0.0, %v383
      %v385 = vpop.f32.mrb[0].mxu0
      %v386 = vpop.f32.mrb[0].mxu0
      %v387 = vadd.f32 0.0, %v386
      %v388 = vpop.f32.mrb[0].mxu0
      %389 = vmatprep.mubr.bf16.mxu0 0
      %390 = vmatmul.mubr.bf16.gmra.mrb[0].mxu0 %v260
      %v391 = vpop.f32.mrb[0].mxu0
      %v392 = vadd.f32 0.0, %v391
      %v393 = vpop.f32.mrb[0].mxu0
      %v394 = vpop.f32.mrb[0].mxu0
      %v395 = vadd.f32 0.0, %v394
      %v396 = vpop.f32.mrb[0].mxu0
      %397 = vmatprep.mubr.bf16.mxu0 0
      %398 = vmatmul.mubr.bf16.gmra.mrb[0].mxu0 %v263
      %v399 = vpop.f32.mrb[0].mxu0
      %v400 = vadd.f32 0.0, %v399
      %v401 = vpop.f32.mrb[0].mxu0
      %v402 = vpop.f32.mrb[0].mxu0
      %v403 = vadd.f32 0.0, %v402
      %v404 = vpop.f32.mrb[0].mxu0
      %405 = vmatprep.mubr.bf16.mxu0 0
      %406 = vmatmul.mubr.bf16.gmra.mrb[0].mxu0 %v266
      %v407 = vpop.f32.mrb[0].mxu0
      %v408 = vadd.f32 0.0, %v407
      %v409 = vpop.f32.mrb[0].mxu0
      %v410 = vpop.f32.mrb[0].mxu0
      %v411 = vadd.f32 0.0, %v410
      %v412 = vpop.f32.mrb[0].mxu0
      %413 = vmatprep.mubr.bf16.mxu0 0
      %414 = vmatmul.mubr.bf16.gmra.mrb[0].mxu0 %v269
      %v415 = vpop.f32.mrb[0].mxu0
      %v416 = vadd.f32 0.0, %v415
      %v417 = vpop.f32.mrb[0].mxu0
      %v418 = vpop.f32.mrb[0].mxu0
      %v419 = vadd.f32 0.0, %v418
      %v420 = vpop.f32.mrb[0].mxu0
      %421 = vmatprep.mubr.bf16.mxu0 0
      %422 = vmatmul.mubr.bf16.gmra.mrb[0].mxu0 %v272
      %v423 = vpop.f32.mrb[0].mxu0
      %v424 = vadd.f32 0.0, %v423
      %v425 = vpop.f32.mrb[0].mxu0
      %v426 = vpop.f32.mrb[0].mxu0
      %v427 = vadd.f32 0.0, %v426
      %v428 = vpop.f32.mrb[0].mxu0
      %429 = vmatprep.mubr.bf16.mxu0 0
      %430 = vmatmul.mubr.bf16.gmra.mrb[0].mxu0 %v275
      %v431 = vpop.f32.mrb[0].mxu0
      %v432 = vadd.f32 0.0, %v431
      %v433 = vpop.f32.mrb[0].mxu0
      %v434 = vpop.f32.mrb[0].mxu0
      %v435 = vadd.f32 0.0, %v434
      %v436 = vpop.f32.mrb[0].mxu0
      %437 = vdwg.mxu0
      %438 = vst [vmem:[%s145] sm:$0xff] %v312
      %439 = vst [vmem:[%s145 + $0x8] sm:$0xff] %v315
      %440 = vst [vmem:[%s145 + $0x10] sm:$0xff] %v320
      %441 = vst [vmem:[%s145 + $0x18] sm:$0xff] %v323
      %442 = vst [vmem:[%s145 + $0x20] sm:$0xff] %v328
      %443 = vst [vmem:[%s145 + $0x28] sm:$0xff] %v331
      %444 = vst [vmem:[%s145 + $0x30] sm:$0xff] %v336
      %445 = vst [vmem:[%s145 + $0x38] sm:$0xff] %v339
      %446 = vst [vmem:[%s145 + $0x40] sm:$0xff] %v344
      %447 = vst [vmem:[%s145 + $0x48] sm:$0xff] %v347
      %448 = vst [vmem:[%s145 + $0x50] sm:$0xff] %v352
      %449 = vst [vmem:[%s145 + $0x58] sm:$0xff] %v355
      %450 = vst [vmem:[%s145 + $0x60] sm:$0xff] %v360
      %451 = vst [vmem:[%s145 + $0x68] sm:$0xff] %v363
      %452 = vst [vmem:[%s145 + $0x70] sm:$0xff] %v368
      %453 = vst [vmem:[%s145 + $0x78] sm:$0xff] %v371
      %454 = vst [vmem:[%s145 + $0x80] sm:$0xff] %v376
      %455 = vst [vmem:[%s145 + $0x88] sm:$0xff] %v379
      %456 = vst [vmem:[%s145 + $0x90] sm:$0xff] %v384
      %457 = vst [vmem:[%s145 + $0x98] sm:$0xff] %v387
      %458 = vst [vmem:[%s145 + $0xa0] sm:$0xff] %v392
      %459 = vst [vmem:[%s145 + $0xa8] sm:$0xff] %v395
      %460 = vst [vmem:[%s145 + $0xb0] sm:$0xff] %v400
      %461 = vst [vmem:[%s145 + $0xb8] sm:$0xff] %v403
      %462 = vst [vmem:[%s145 + $0xc0] sm:$0xff] %v408
      %463 = vst [vmem:[%s145 + $0xc8] sm:$0xff] %v411
      %464 = vst [vmem:[%s145 + $0xd0] sm:$0xff] %v416
      %465 = vst [vmem:[%s145 + $0xd8] sm:$0xff] %v419
      %466 = vst [vmem:[%s145 + $0xe0] sm:$0xff] %v424
      %467 = vst [vmem:[%s145 + $0xe8] sm:$0xff] %v427
      %468 = vst [vmem:[%s145 + $0xf0] sm:$0xff] %v432
      %469 = vst [vmem:[%s145 + $0xf8] sm:$0xff] %v435
      %s470 = smul.u32 32, %s13
      %p471 = scmp.lt.s32.totalorder %s470, 63
      %s472 = scalar_select %p471, %s470, 63
      %s473 = smul.addr %s472, 8
      %s474 = scalar_lea.vmem %s2, %s473
      // Predicated region
      $region29: #{spade_resnet_block_forward.22} parent=27 // pred_check
        %p475 = pneg %p78
      $region30: #{spade_resnet_block_forward.22} parent=27 // pred_check_branch
        %477 = sbr.rel (%p475) target = $region32
      $region31: #{spade_resnet_block_forward.22} parent=27 // pred_region
        %s478 = smul.u32 32, %s13
      $region32: #{spade_resnet_block_forward.22} parent=27 // pred_fallthru
        _
    $region28: #{spade_resnet_block_forward.22} parent=5 // pred_fallthru
      _
    %p479 = scmp.le.s32.totalorder 2, %s8
    // Predicated region
    $region33: #{spade_resnet_block_forward.22} parent=5 // pred_check
      %p480 = pneg %p479
    $region34: #{spade_resnet_block_forward.22} parent=5 // pred_check_branch
      %482 = sbr.rel (%p480) target = $region36
    $region35: #{spade_resnet_block_forward.22} parent=5 // pred_region
      %s483 = ssub.s32 %s8, 2
      // Predicated region
      $region37: #{spade_resnet_block_forward.22} parent=35 // pred_check
        %p484 = pneg %p84
      $region38: #{spade_resnet_block_forward.22} parent=35 // pred_check_branch
        %486 = sbr.rel (%p484) target = $region40
      $region39: #{spade_resnet_block_forward.22} parent=35 // pred_region
        %s487 = smul.u32 32, %s14
        %p488 = scmp.lt.s32.totalorder %s487, 63
        %s489 = scalar_select %p488, %s487, 63
        %s490 = smul.addr %s489, 8
        %s491 = scalar_lea.vmem %s2, %s490
      $region40: #{spade_resnet_block_forward.22} parent=35 // pred_fallthru
        _
    $region36: #{spade_resnet_block_forward.22} parent=5 // pred_fallthru
      _
  $region6: #{spade_resnet_block_forward.22} parent=0 // loop_footer
    %s12 = sadd.s32 1, %s8
  $region7: #{spade_resnet_block_forward.22} parent=0 // loop_footer_branch
    %7 = sbr.rel target = $region3
  $region8: #{spade_resnet_block_forward.22} parent=0 // loop_exit
    _

// kernel: spade_resnet_block_forward.34
$region0: #{spade_resnet_block_forward.34}
  #allocation0 [shape = 'u32[]', space=smem, size = 0x4, offset = 0x4, fixed_abs, tag = 'smem constant byte address 0x4 - core index']
  #allocation1 [shape = 'u32[144,128]{1,0:T(1,128)}', space=vmem, size = 0x12000, scoped, tag = 'internal scratch']
  %s0 = inlined_call_operand.vmem [shape: f32[2,18,18,64], index: 0, kind: input, shape index: {}]
  %s1 = inlined_call_operand.vmem [shape: bf16[576,128], index: 1, kind: input, shape index: {}]
  %s2 = inlined_call_operand.vmem [shape: f32[1,128], index: 2, kind: input, shape index: {}]
  %s3 = inlined_call_operand.vmem [shape: f32[2,16,16,128], index: 3, kind: input, shape index: {}]
  %s4 = inlined_call_operand.hbm [shape: f32[2,16,16,128], index: 4, kind: output, shape index: {}]
  %s5 = sld [smem:[#allocation0]]
  $region49: #{spade_resnet_block_forward.34} parent=0
    _
  %s7 = ssub.s32 1, %s5
  %s8 = scalar_select 0, %s7, %s5
  $region1: #{spade_resnet_block_forward.34} parent=0
    #allocation2 [shape = 'u8[131072]{0}', space=vmem, size = 0x20000, scoped, tag = 'output window, operand 0']
    #allocation3 [shape = 's32[2]{0}', space=sflag, size = 0x8, scoped, tag = 'scoped memory for spade_resnet_block_forward.34']
    %9 = vsyncpa [#allocation3], 0
    %s10 = scalar_lea.sflag [#allocation3], 1
    %11 = vsyncpa %s10, 0
    loop: start=0, step=1, limit=6
    $region2: #{spade_resnet_block_forward.34} parent=1 // loop_pre_header
      _
    $region3: #{spade_resnet_block_forward.34} parent=1 // loop_header
      %s13 = sphi 0, %s17
      %p14 = scmp.ge.s32.totalorder %s13, 6
      %s20 = sphi 0, %s32
      %s21 = sphi 0, %s28
      %s22 = sphi 0, %s20
      %s23 = sphi 0, %s21
      %s24 = sphi 0, %s22
      %s25 = sphi 0, %s23
      %s35 = sphi 0, %s37
      %s38 = sphi 0, %s35
      %s39 = sphi 0, %s38
      %s55 = sphi 0, %s39
      %s59 = sphi 0, %s59
      %s61 = sphi 0, %s59
      %s62 = sphi 0, %s61
      %s76 = sphi 0, %s62
      %s80 = sphi 0, %s80
      %s82 = sphi 0, %s80
      %s83 = sphi 0, %s82
      %s97 = sphi 0, %s83
      %s105 = sphi 0, %s107
      %s108 = sphi 0, %s105
      %s109 = sphi 0, %s108
      %s125 = sphi 0, %s109
      %s133 = sphi 0, %s135
      %s136 = sphi 0, %s133
      %s137 = sphi 0, %s136
      %s153 = sphi 0, %s137
    $region4: #{spade_resnet_block_forward.34} parent=1 // loop_header_branch
      %16 = sbr.rel (%p14) target = $region8
    $region5: #{spade_resnet_block_forward.34} parent=1 // loop_body
      %s18 = ssub.s32 %s13, 1
      %s19 = ssub.s32 %s13, 2
      %s26 = sadd.s32 1, %s21
      %p27 = scmp.ge.s32.totalorder %s26, 2
      %s28 = scalar_select %p27, 0, %s26
      %s29 = sadd.s32 1, %s20
      %s30 = scalar_select %p27, %s29, %s20
      %p31 = scmp.ge.s32.totalorder %s30, 2
      %s32 = scalar_select %p31, 0, %s30
      %s33 = ssub.s32 %s20, %s32
      %p34 = scmp.eq.s32.totalorder %s33, 0
      %s36 = sadd.s32 %s35, 1
      %s37 = scalar_select %p34, %s35, %s36
      %p40 = pneg %p34
      %p41 = scmp.eq.s32.totalorder %s13, 3
      %p42 = por %p40, %p41
      %p43 = scmp.ne.s32.totalorder %s35, %s38
      %p44 = scmp.eq.s32.totalorder %s13, 0
      %p45 = por %p43, %p44
      %p46 = scmp.ne.s32.totalorder %s35, %s38
      %p47 = scmp.eq.s32.totalorder %s18, 3
      %p48 = por %p46, %p47
      %p49 = scmp.ne.s32.totalorder %s38, %s39
      %p50 = scmp.eq.s32.totalorder %s18, 0
      %p51 = por %p49, %p50
      %p52 = scmp.ne.s32.totalorder %s38, %s39
      %p53 = scmp.eq.s32.totalorder %s19, 3
      %p54 = por %p52, %p53
      %p56 = scmp.ne.s32.totalorder %s39, %s55
      %p57 = scmp.eq.s32.totalorder %s19, 0
      %p58 = por %p56, %p57
      %s60 = sadd.s32 %s59, 1
      %p63 = scmp.eq.s32.totalorder %s13, 3
      %p64 = scmp.ne.s32.totalorder %s59, %s61
      %p65 = scmp.eq.s32.totalorder %s13, 0
      %p66 = por %p64, %p65
      %p67 = scmp.ne.s32.totalorder %s59, %s61
      %p68 = scmp.eq.s32.totalorder %s18, 3
      %p69 = por %p67, %p68
      %p70 = scmp.ne.s32.totalorder %s61, %s62
      %p71 = scmp.eq.s32.totalorder %s18, 0
      %p72 = por %p70, %p71
      %p73 = scmp.ne.s32.totalorder %s61, %s62
      %p74 = scmp.eq.s32.totalorder %s19, 3
      %p75 = por %p73, %p74
      %p77 = scmp.ne.s32.totalorder %s62, %s76
      %p78 = scmp.eq.s32.totalorder %s19, 0
      %p79 = por %p77, %p78
      %s81 = sadd.s32 %s80, 1
      %p84 = scmp.eq.s32.totalorder %s13, 3
      %p85 = scmp.ne.s32.totalorder %s80, %s82
      %p86 = scmp.eq.s32.totalorder %s13, 0
      %p87 = por %p85, %p86
      %p88 = scmp.ne.s32.totalorder %s80, %s82
      %p89 = scmp.eq.s32.totalorder %s18, 3
      %p90 = por %p88, %p89
      %p91 = scmp.ne.s32.totalorder %s82, %s83
      %p92 = scmp.eq.s32.totalorder %s18, 0
      %p93 = por %p91, %p92
      %p94 = scmp.ne.s32.totalorder %s82, %s83
      %p95 = scmp.eq.s32.totalorder %s19, 3
      %p96 = por %p94, %p95
      %p98 = scmp.ne.s32.totalorder %s83, %s97
      %p99 = scmp.eq.s32.totalorder %s19, 0
      %p100 = por %p98, %p99
      %s101 = ssub.s32 %s20, %s32
      %s102 = ssub.s32 %s21, %s28
      %s103 = sor.u32 %s101, %s102
      %p104 = scmp.eq.s32.totalorder %s103, 0
      %s106 = sadd.s32 %s105, 1
      %s107 = scalar_select %p104, %s105, %s106
      %p110 = pneg %p104
      %p111 = scmp.eq.s32.totalorder %s13, 3
      %p112 = por %p110, %p111
      %p113 = scmp.ne.s32.totalorder %s105, %s108
      %p114 = scmp.eq.s32.totalorder %s13, 0
      %p115 = por %p113, %p114
      %p116 = scmp.ne.s32.totalorder %s105, %s108
      %p117 = scmp.eq.s32.totalorder %s18, 3
      %p118 = por %p116, %p117
      %p119 = scmp.ne.s32.totalorder %s108, %s109
      %p120 = scmp.eq.s32.totalorder %s18, 0
      %p121 = por %p119, %p120
      %p122 = scmp.ne.s32.totalorder %s108, %s109
      %p123 = scmp.eq.s32.totalorder %s19, 3
      %p124 = por %p122, %p123
      %p126 = scmp.ne.s32.totalorder %s109, %s125
      %p127 = scmp.eq.s32.totalorder %s19, 0
      %p128 = por %p126, %p127
      %s129 = ssub.s32 %s20, %s32
      %s130 = ssub.s32 %s21, %s28
      %s131 = sor.u32 %s129, %s130
      %p132 = scmp.eq.s32.totalorder %s131, 0
      %s134 = sadd.s32 %s133, 1
      %s135 = scalar_select %p132, %s133, %s134
      %p138 = pneg %p132
      %p139 = scmp.eq.s32.totalorder %s13, 3
      %p140 = por %p138, %p139
      %p141 = scmp.ne.s32.totalorder %s133, %s136
      %p142 = scmp.eq.s32.totalorder %s13, 0
      %p143 = por %p141, %p142
      %p144 = scmp.ne.s32.totalorder %s133, %s136
      %p145 = scmp.eq.s32.totalorder %s18, 3
      %p146 = por %p144, %p145
      %p147 = scmp.ne.s32.totalorder %s136, %s137
      %p148 = scmp.eq.s32.totalorder %s18, 0
      %p149 = por %p147, %p148
      %p150 = scmp.ne.s32.totalorder %s136, %s137
      %p151 = scmp.eq.s32.totalorder %s19, 3
      %p152 = por %p150, %p151
      %p154 = scmp.ne.s32.totalorder %s137, %s153
      %p155 = scmp.eq.s32.totalorder %s19, 0
      %p156 = por %p154, %p155
      %p157 = scmp.le.s32.totalorder 1, %s13
      %p158 = scmp.lt.s32.totalorder %s13, 5
      %p159 = pnand %p157, %p158
      %p160 = pneg %p159
      // Predicated region
      $region9: #{spade_resnet_block_forward.34} parent=5 // pred_check
        _
      $region10: #{spade_resnet_block_forward.34} parent=5 // pred_check_branch
        %162 = sbr.rel (%p159) target = $region12
      $region11: #{spade_resnet_block_forward.34} parent=5 // pred_region
        %s163 = ssub.s32 %s13, 1
        // Predicated region
        $region13: #{spade_resnet_block_forward.34} parent=11 // pred_check
          %p164 = pneg %p72
        $region14: #{spade_resnet_block_forward.34} parent=11 // pred_check_branch
          %166 = sbr.rel (%p164) target = $region16
        $region15: #{spade_resnet_block_forward.34} parent=11 // pred_region
          _
        $region16: #{spade_resnet_block_forward.34} parent=11 // pred_fallthru
          _
        // Predicated region
        $region17: #{spade_resnet_block_forward.34} parent=11 // pred_check
          %p167 = pneg %p93
        $region18: #{spade_resnet_block_forward.34} parent=11 // pred_check_branch
          %169 = sbr.rel (%p167) target = $region20
        $region19: #{spade_resnet_block_forward.34} parent=11 // pred_region
          _
        $region20: #{spade_resnet_block_forward.34} parent=11 // pred_fallthru
          _
      $region12: #{spade_resnet_block_forward.34} parent=5 // pred_fallthru
        _
      %p170 = scmp.lt.s32.totalorder %s13, 4
      // Predicated region
      $region21: #{spade_resnet_block_forward.34} parent=5 // pred_check
        %p171 = pneg %p170
      $region22: #{spade_resnet_block_forward.34} parent=5 // pred_check_branch
        %173 = sbr.rel (%p171) target = $region24
      $region23: #{spade_resnet_block_forward.34} parent=5 // pred_region
        // Predicated region
        $region25: #{spade_resnet_block_forward.34} parent=23 // pred_check
          %p174 = pneg %p45
        $region26: #{spade_resnet_block_forward.34} parent=23 // pred_check_branch
          %176 = sbr.rel (%p174) target = $region28
        $region27: #{spade_resnet_block_forward.34} parent=23 // pred_region
          %p177 = scmp.lt.s32.totalorder %s20, 1
          %s178 = scalar_select %p177, %s20, 1
          %s179 = smul.addr %s178, 54
          %s180 = smul.addr %s179, 8
          %s181 = scalar_lea.vmem %s0, %s180
        $region28: #{spade_resnet_block_forward.34} parent=23 // pred_fallthru
          _
        // Predicated region
        $region29: #{spade_resnet_block_forward.34} parent=23 // pred_check
          %p182 = pneg %p115
        $region30: #{spade_resnet_block_forward.34} parent=23 // pred_check_branch
          %184 = sbr.rel (%p182) target = $region32
        $region31: #{spade_resnet_block_forward.34} parent=23 // pred_region
          %s185 = smul.u32 8, %s21
          %p186 = scmp.lt.s32.totalorder %s20, 1
          %s187 = scalar_select %p186, %s20, 1
          %p188 = scmp.lt.s32.totalorder %s185, 15
          %s189 = scalar_select %p188, %s185, 15
          %s190 = smul.addr %s189, 2
          %s191 = smul.addr %s187, 32
          %s192 = sadd.s32 %s190, %s191
          %s193 = smul.addr %s192, 8
          %s194 = scalar_lea.vmem %s3, %s193
          %s195 = smul.u32 8, %s21
        $region32: #{spade_resnet_block_forward.34} parent=23 // pred_fallthru
          _
      $region24: #{spade_resnet_block_forward.34} parent=5 // pred_fallthru
        _
      %p196 = scmp.le.s32.totalorder 1, %s13
      %p197 = scmp.lt.s32.totalorder %s13, 5
      %p198 = pnand %p196, %p197
      %p199 = pneg %p198
      // Predicated region
      $region33: #{spade_resnet_block_forward.34} parent=5 // pred_check
        _
      $region34: #{spade_resnet_block_forward.34} parent=5 // pred_check_branch
        %201 = sbr.rel (%p198) target = $region36
      $region35: #{spade_resnet_block_forward.34} parent=5 // pred_region
        %s202 = ssub.s32 %s13, 1
        %p203 = scmp.lt.s32.totalorder %s22, 1
        %s204 = scalar_select %p203, %s22, 1
        %s205 = smul.addr %s204, 54
        %s206 = smul.addr %s205, 8
        %s207 = scalar_lea.vmem %s0, %s206
        %p208 = pneg %p51
        %p209 = pneg %p48
        %p210 = pneg %p72
        %p211 = pneg %p69
        %p212 = pneg %p93
        %p213 = pneg %p90
        %s214 = smul.u32 8, %s23
        %p215 = scmp.lt.s32.totalorder %s22, 1
        %s216 = scalar_select %p215, %s22, 1
        %p217 = scmp.lt.s32.totalorder %s214, 15
        %s218 = scalar_select %p217, %s214, 15
        %s219 = smul.addr %s218, 2
        %s220 = smul.addr %s216, 32
        %s221 = sadd.s32 %s219, %s220
        %s222 = smul.addr %s221, 8
        %s223 = scalar_lea.vmem %s3, %s222
        %p224 = pneg %p121
        %p225 = pneg %p118
        %p226 = pneg %p149
        %p227 = pneg %p146
        %s228 = sand.u32 %s136, 1
        %s229 = scalar_lea.sflag [#allocation3], %s228
        %s230 = sand.u32 %s136, 1
        %s231 = smul.addr %s230, 128
        %s232 = scalar_lea.vmem [#allocation2], %s231
        %p233 = scmp.lt.s32.totalorder %s22, 1
        %s234 = scalar_select %p233, %s22, 1
        %s235 = smul.addr %s234, 54
        %s236 = smul.addr %s235, 8
        %s237 = scalar_lea.vmem %s0, %s236
        %s238 = smul.u32 8, %s23
        %p239 = scmp.lt.s32.totalorder %s22, 1
        %s240 = scalar_select %p239, %s22, 1
        %p241 = scmp.lt.s32.totalorder %s238, 15
        %s242 = scalar_select %p241, %s238, 15
        %s243 = smul.addr %s242, 2
        %s244 = smul.addr %s240, 32
        %s245 = sadd.s32 %s243, %s244
        %s246 = smul.addr %s245, 8
        %s247 = scalar_lea.vmem %s3, %s246
        %s248 = smul.u32 8, %s23
        %s249 = smul.u32 8, %s23
        %s251 = smul.u32 %s23, 8
        %s252 = smul.u32 %s251, 24
        %s253 = scalar_lea.vmem %s237, %s252
        %v254 = vld [vmem:[%s253] sm:$0xff]
        %v255 = vld [vmem:[%s253 + $0x8] sm:$0xff]
        %v256 = vld [vmem:[%s253 + $0x10] sm:$0x3]
        %v257 = vld [vmem:[%s253 + $0x18] sm:$0xff]
        %v258 = vld [vmem:[%s253 + $0x20] sm:$0xff]
        %v259 = vld [vmem:[%s253 + $0x28] sm:$0x3]
        %v260 = vld [vmem:[%s253 + $0x30] sm:$0xff]
        %v261 = vld [vmem:[%s253 + $0x38] sm:$0xff]
        %v262 = vld [vmem:[%s253 + $0x40] sm:$0x3]
        %v263 = vld [vmem:[%s253 + $0x48] sm:$0xff]
        %v264 = vld [vmem:[%s253 + $0x50] sm:$0xff]
        %v265 = vld [vmem:[%s253 + $0x58] sm:$0x3]
        %v266 = vld [vmem:[%s253 + $0x60] sm:$0xff]
        %v267 = vld [vmem:[%s253 + $0x68] sm:$0xff]
        %v268 = vld [vmem:[%s253 + $0x70] sm:$0x3]
        %v269 = vld [vmem:[%s253 + $0x78] sm:$0xff]
        %v270 = vld [vmem:[%s253 + $0x80] sm:$0xff]
        %v271 = vld [vmem:[%s253 + $0x88] sm:$0x3]
        %v272 = vld [vmem:[%s253 + $0x90] sm:$0xff]
        %v273 = vld [vmem:[%s253 + $0x98] sm:$0xff]
        %v274 = vld [vmem:[%s253 + $0xa0] sm:$0x3]
        %v275 = vld [vmem:[%s253 + $0xa8] sm:$0xff]
        %v276 = vld [vmem:[%s253 + $0xb0] sm:$0xff]
        %v277 = vld [vmem:[%s253 + $0xb8] sm:$0x3]
        %v278 = vld [vmem:[%s253 + $0xc0] sm:$0xff]
        %v279 = vld [vmem:[%s253 + $0xc8] sm:$0xff]
        %v280 = vld [vmem:[%s253 + $0xd0] sm:$0x3]
        %v281 = vld [vmem:[%s253 + $0xd8] sm:$0xff]
        %v282 = vld [vmem:[%s253 + $0xe0] sm:$0xff]
        %v283 = vld [vmem:[%s253 + $0xe8] sm:$0x3]
        %v284 = vpack.c.bf16 %v255, %v254
        %v285 = vpack.c.bf16 %v258, %v257
        %v286 = vpack.c.bf16 %v261, %v260
        %v287 = vpack.c.bf16 %v264, %v263
        %v288 = vpack.c.bf16 %v267, %v266
        %v289 = vpack.c.bf16 %v270, %v269
        %v290 = vpack.c.bf16 %v273, %v272
        %v291 = vpack.c.bf16 %v276, %v275
        %vm316 = vcmask 1046528
        %v317 = vrot.slane %v254, 1
        %v318 = vrot.slane %v255, 1
        %v319 = vsel %vm316, %v317, %v318
        %v320 = vrot.slane %v256, 1
        %v321 = vsel %vm316, %v318, %v320
        %v322 = vrot.slane %v257, 1
        %v323 = vrot.slane %v258, 1
        %v324 = vsel %vm316, %v322, %v323
        %v325 = vrot.slane %v259, 1
        %v326 = vsel %vm316, %v323, %v325
        %v327 = vrot.slane %v260, 1
        %v328 = vrot.slane %v261, 1
        %v329 = vsel %vm316, %v327, %v328
        %v330 = vrot.slane %v262, 1
        %v331 = vsel %vm316, %v328, %v330
        %v332 = vrot.slane %v263, 1
        %v333 = vrot.slane %v264, 1
        %v334 = vsel %vm316, %v332, %v333
        %v335 = vrot.slane %v265, 1
        %v336 = vsel %vm316, %v333, %v335
        %v337 = vrot.slane %v266, 1
        %v338 = vrot.slane %v267, 1
        %v339 = vsel %vm316, %v337, %v338
        %v340 = vrot.slane %v268, 1
        %v341 = vsel %vm316, %v338, %v340
        %v342 = vrot.slane %v269, 1
        %v343 = vrot.slane %v270, 1
        %v344 = vsel %vm316, %v342, %v343
        %v345 = vrot.slane %v271, 1
        %v346 = vsel %vm316, %v343, %v345
        %v347 = vrot.slane %v272, 1
        %v348 = vrot.slane %v273, 1
        %v349 = vsel %vm316, %v347, %v348
        %v350 = vrot.slane %v274, 1
        %v351 = vsel %vm316, %v348, %v350
        %v352 = vrot.slane %v275, 1
        %v353 = vrot.slane %v276, 1
        %v354 = vsel %vm316, %v352, %v353
        %v355 = vrot.slane %v277, 1
        %v356 = vsel %vm316, %v353, %v355
        %v373 = vpack.c.bf16 %v321, %v319
        %v374 = vpack.c.bf16 %v326, %v324
        %v375 = vpack.c.bf16 %v331, %v329
        %v376 = vpack.c.bf16 %v336, %v334
        %v377 = vpack.c.bf16 %v341, %v339
        %v378 = vpack.c.bf16 %v346, %v344
        %v379 = vpack.c.bf16 %v351, %v349
        %v380 = vpack.c.bf16 %v356, %v354
        %vm381 = vcmask 1045504
        %v382 = vrot.slane %v254, 2
        %v383 = vrot.slane %v255, 2
        %v384 = vsel %vm381, %v382, %v383
        %v385 = vrot.slane %v256, 2
        %v386 = vsel %vm381, %v383, %v385
        %v387 = vrot.slane %v257, 2
        %v388 = vrot.slane %v258, 2
        %v389 = vsel %vm381, %v387, %v388
        %v390 = vrot.slane %v259, 2
        %v391 = vsel %vm381, %v388, %v390
        %v392 = vrot.slane %v260, 2
        %v393 = vrot.slane %v261, 2
        %v394 = vsel %vm381, %v392, %v393
        %v395 = vrot.slane %v262, 2
        %v396 = vsel %vm381, %v393, %v395
        %v397 = vrot.slane %v263, 2
        %v398 = vrot.slane %v264, 2
        %v399 = vsel %vm381, %v397, %v398
        %v400 = vrot.slane %v265, 2
        %v401 = vsel %vm381, %v398, %v400
        %v402 = vrot.slane %v266, 2
        %v403 = vrot.slane %v267, 2
        %v404 = vsel %vm381, %v402, %v403
        %v405 = vrot.slane %v268, 2
        %v406 = vsel %vm381, %v403, %v405
        %v407 = vrot.slane %v269, 2
        %v408 = vrot.slane %v270, 2
        %v409 = vsel %vm381, %v407, %v408
        %v410 = vrot.slane %v271, 2
        %v411 = vsel %vm381, %v408, %v410
        %v412 = vrot.slane %v272, 2
        %v413 = vrot.slane %v273, 2
        %v414 = vsel %vm381, %v412, %v413
        %v415 = vrot.slane %v274, 2
        %v416 = vsel %vm381, %v413, %v415
        %v417 = vrot.slane %v275, 2
        %v418 = vrot.slane %v276, 2
        %v419 = vsel %vm381, %v417, %v418
        %v420 = vrot.slane %v277, 2
        %v421 = vsel %vm381, %v418, %v420
        %v438 = vpack.c.bf16 %v386, %v384
        %v439 = vpack.c.bf16 %v391, %v389
        %v440 = vpack.c.bf16 %v396, %v394
        %v441 = vpack.c.bf16 %v401, %v399
        %v442 = vpack.c.bf16 %v406, %v404
        %v443 = vpack.c.bf16 %v411, %v409
        %v444 = vpack.c.bf16 %v416, %v414
        %v445 = vpack.c.bf16 %v421, %v419
        %v446 = vpack.c.bf16 %v279, %v278
        %v450 = vrot.slane %v278, 1
        %v451 = vrot.slane %v279, 1
        %v452 = vsel %vm316, %v450, %v451
        %v453 = vrot.slane %v280, 1
        %v454 = vsel %vm316, %v451, %v453
        %v457 = vpack.c.bf16 %v454, %v452
        %v458 = vrot.slane %v278, 2
        %v459 = vrot.slane %v279, 2
        %v460 = vsel %vm381, %v458, %v459
        %v461 = vrot.slane %v280, 2
        %v462 = vsel %vm381, %v459, %v461
        %v465 = vpack.c.bf16 %v462, %v460
        %v466 = vpack.c.bf16 %v282, %v281
        %v470 = vrot.slane %v281, 1
        %v471 = vrot.slane %v282, 1
        %v472 = vsel %vm316, %v470, %v471
        %v473 = vrot.slane %v283, 1
        %v474 = vsel %vm316, %v471, %v473
        %v477 = vpack.c.bf16 %v474, %v472
        %v478 = vrot.slane %v281, 2
        %v479 = vrot.slane %v282, 2
        %v480 = vsel %vm381, %v478, %v479
        %v481 = vrot.slane %v283, 2
        %v482 = vsel %vm381, %v479, %v481
        %v485 = vpack.c.bf16 %v482, %v480
        %494 = vrot.lane.b32.xlu0 %v373, 64
        %v495 = vpop.permute.xlu0 %494
        %496 = vrot.lane.b32.xlu0 %v374, 64
        %v497 = vpop.permute.xlu0 %496
        %498 = vrot.lane.b32.xlu0 %v375, 64
        %v499 = vpop.permute.xlu0 %498
        %500 = vrot.lane.b32.xlu0 %v376, 64
        %v501 = vpop.permute.xlu0 %500
        %502 = vrot.lane.b32.xlu0 %v377, 64
        %v503 = vpop.permute.xlu0 %502
        %504 = vrot.lane.b32.xlu0 %v378, 64
        %v505 = vpop.permute.xlu0 %504
        %506 = vrot.lane.b32.xlu0 %v379, 64
        %v507 = vpop.permute.xlu0 %506
        %508 = vrot.lane.b32.xlu0 %v380, 64
        %v509 = vpop.permute.xlu0 %508
        %518 = vrot.lane.b32.xlu0 %v285, 64
        %v519 = vpop.permute.xlu0 %518
        %520 = vrot.lane.b32.xlu0 %v286, 64
        %v521 = vpop.permute.xlu0 %520
        %522 = vrot.lane.b32.xlu0 %v287, 64
        %v523 = vpop.permute.xlu0 %522
        %524 = vrot.lane.b32.xlu0 %v288, 64
        %v525 = vpop.permute.xlu0 %524
        %526 = vrot.lane.b32.xlu0 %v289, 64
        %v527 = vpop.permute.xlu0 %526
        %528 = vrot.lane.b32.xlu0 %v290, 64
        %v529 = vpop.permute.xlu0 %528
        %530 = vrot.lane.b32.xlu0 %v291, 64
        %v531 = vpop.permute.xlu0 %530
        %532 = vrot.lane.b32.xlu0 %v446, 64
        %v533 = vpop.permute.xlu0 %532
        %542 = vrot.lane.b32.xlu0 %v439, 64
        %v543 = vpop.permute.xlu0 %542
        %544 = vrot.lane.b32.xlu0 %v440, 64
        %v545 = vpop.permute.xlu0 %544
        %546 = vrot.lane.b32.xlu0 %v441, 64
        %v547 = vpop.permute.xlu0 %546
        %548 = vrot.lane.b32.xlu0 %v442, 64
        %v549 = vpop.permute.xlu0 %548
        %550 = vrot.lane.b32.xlu0 %v443, 64
        %v551 = vpop.permute.xlu0 %550
        %552 = vrot.lane.b32.xlu0 %v444, 64
        %v553 = vpop.permute.xlu0 %552
        %554 = vrot.lane.b32.xlu0 %v445, 64
        %v555 = vpop.permute.xlu0 %554
        %556 = vrot.lane.b32.xlu0 %v465, 64
        %v557 = vpop.permute.xlu0 %556
        %560 = vrot.lane.b32.xlu0 %v457, 64
        %v561 = vpop.permute.xlu0 %560
        %562 = vrot.lane.b32.xlu0 %v477, 64
        %v563 = vpop.permute.xlu0 %562
        %vm564 = vcmask 523264
        %v567 = vsel %vm564, %v284, %v495
        %v571 = vsel %vm564, %v285, %v497
        %v575 = vsel %vm564, %v286, %v499
        %v579 = vsel %vm564, %v287, %v501
        %v583 = vsel %vm564, %v288, %v503
        %v587 = vsel %vm564, %v289, %v505
        %v591 = vsel %vm564, %v290, %v507
        %v595 = vsel %vm564, %v291, %v509
        %v599 = vsel %vm564, %v438, %v519
        %v603 = vsel %vm564, %v439, %v521
        %v607 = vsel %vm564, %v440, %v523
        %v611 = vsel %vm564, %v441, %v525
        %v615 = vsel %vm564, %v442, %v527
        %v619 = vsel %vm564, %v443, %v529
        %v623 = vsel %vm564, %v444, %v531
        %v627 = vsel %vm564, %v445, %v533
        %v631 = vsel %vm564, %v374, %v543
        %v635 = vsel %vm564, %v375, %v545
        %v639 = vsel %vm564, %v376, %v547
        %v643 = vsel %vm564, %v377, %v549
        %v647 = vsel %vm564, %v378, %v551
        %v651 = vsel %vm564, %v379, %v553
        %v655 = vsel %vm564, %v380, %v555
        %v659 = vsel %vm564, %v457, %v557
        %v663 = vsel %vm564, %v446, %v561
        %v667 = vsel %vm564, %v466, %v563
        %v669 = vld [vmem:[%s1] sm:$0xf]
        %v670 = vld [vmem:[%s1 + $0x4] sm:$0xf]
        %v671 = vld [vmem:[%s1 + $0x8] sm:$0xf]
        %v672 = vld [vmem:[%s1 + $0xc] sm:$0xf]
        %v673 = vld [vmem:[%s1 + $0x10] sm:$0xf]
        %v674 = vld [vmem:[%s1 + $0x14] sm:$0xf]
        %v675 = vld [vmem:[%s1 + $0x18] sm:$0xf]
        %v676 = vld [vmem:[%s1 + $0x1c] sm:$0xf]
        %v677 = vld [vmem:[%s1 + $0x20] sm:$0xf]
        %v678 = vld [vmem:[%s1 + $0x24] sm:$0xf]
        %v679 = vld [vmem:[%s1 + $0x28] sm:$0xf]
        %v680 = vld [vmem:[%s1 + $0x2c] sm:$0xf]
        %v681 = vld [vmem:[%s1 + $0x30] sm:$0xf]
        %v682 = vld [vmem:[%s1 + $0x34] sm:$0xf]
        %v683 = vld [vmem:[%s1 + $0x38] sm:$0xf]
        %v684 = vld [vmem:[%s1 + $0x3c] sm:$0xf]
        %v685 = vld [vmem:[%s1 + $0x40] sm:$0xf]
        %v686 = vld [vmem:[%s1 + $0x44] sm:$0xf]
        %v687 = vld [vmem:[%s1 + $0x48] sm:$0xf]
        %v688 = vld [vmem:[%s1 + $0x4c] sm:$0xf]
        %v689 = vld [vmem:[%s1 + $0x50] sm:$0xf]
        %v690 = vld [vmem:[%s1 + $0x54] sm:$0xf]
        %v691 = vld [vmem:[%s1 + $0x58] sm:$0xf]
        %v692 = vld [vmem:[%s1 + $0x5c] sm:$0xf]
        %v693 = vld [vmem:[%s1 + $0x60] sm:$0xf]
        %v694 = vld [vmem:[%s1 + $0x64] sm:$0xf]
        %v695 = vld [vmem:[%s1 + $0x68] sm:$0xf]
        %v696 = vld [vmem:[%s1 + $0x6c] sm:$0xf]
        %v697 = vld [vmem:[%s1 + $0x70] sm:$0xf]
        %v698 = vld [vmem:[%s1 + $0x74] sm:$0xf]
        %v699 = vld [vmem:[%s1 + $0x78] sm:$0xf]
        %v700 = vld [vmem:[%s1 + $0x7c] sm:$0xf]
        %v701 = vld [vmem:[%s1 + $0x80] sm:$0xf]
        %v702 = vld [vmem:[%s1 + $0x84] sm:$0xf]
        %v703 = vld [vmem:[%s1 + $0x88] sm:$0xf]
        %v704 = vld [vmem:[%s1 + $0x8c] sm:$0xf]
        %v705 = vld [vmem:[%s1 + $0x90] sm:$0xf]
        %v706 = vld [vmem:[%s1 + $0x94] sm:$0xf]
        %v707 = vld [vmem:[%s1 + $0x98] sm:$0xf]
        %v708 = vld [vmem:[%s1 + $0x9c] sm:$0xf]
        %v709 = vld [vmem:[%s1 + $0xa0] sm:$0xf]
        %v710 = vld [vmem:[%s1 + $0xa4] sm:$0xf]
        %v711 = vld [vmem:[%s1 + $0xa8] sm:$0xf]
        %v712 = vld [vmem:[%s1 + $0xac] sm:$0xf]
        %v713 = vld [vmem:[%s1 + $0xb0] sm:$0xf]
        %v714 = vld [vmem:[%s1 + $0xb4] sm:$0xf]
        %v715 = vld [vmem:[%s1 + $0xb8] sm:$0xf]
        %v716 = vld [vmem:[%s1 + $0xbc] sm:$0xf]
        %v717 = vld [vmem:[%s1 + $0xc0] sm:$0xf]
        %v718 = vld [vmem:[%s1 + $0xc4] sm:$0xf]
        %v719 = vld [vmem:[%s1 + $0xc8] sm:$0xf]
        %v720 = vld [vmem:[%s1 + $0xcc] sm:$0xf]
        %v721 = vld [vmem:[%s1 + $0xd0] sm:$0xf]
        %v722 = vld [vmem:[%s1 + $0xd4] sm:$0xf]
        %v723 = vld [vmem:[%s1 + $0xd8] sm:$0xf]
        %v724 = vld [vmem:[%s1 + $0xdc] sm:$0xf]
        %v725 = vld [vmem:[%s1 + $0xe0] sm:$0xf]
        %v726 = vld [vmem:[%s1 + $0xe4] sm:$0xf]
        %v727 = vld [vmem:[%s1 + $0xe8] sm:$0xf]
        %v728 = vld [vmem:[%s1 + $0xec] sm:$0xf]
        %v729 = vld [vmem:[%s1 + $0xf0] sm:$0xf]
        %v730 = vld [vmem:[%s1 + $0xf4] sm:$0xf]
        %v731 = vld [vmem:[%s1 + $0xf8] sm:$0xf]
        %v732 = vld [vmem:[%s1 + $0xfc] sm:$0xf]
        %v733 = vld [vmem:[%s1 + $0x100] sm:$0xf]
        %v734 = vld [vmem:[%s1 + $0x104] sm:$0xf]
        %v735 = vld [vmem:[%s1 + $0x108] sm:$0xf]
        %v736 = vld [vmem:[%s1 + $0x10c] sm:$0xf]
        %v737 = vld [vmem:[%s1 + $0x110] sm:$0xf]
        %v738 = vld [vmem:[%s1 + $0x114] sm:$0xf]
        %v739 = vld [vmem:[%s1 + $0x118] sm:$0xf]
        %v740 = vld [vmem:[%s1 + $0x11c] sm:$0xf]
        %v741 = vld [vmem:[%s2] sm:$0x1]
        %v743 = vlaneseq
        %v744 = vshrl.u32 %v743, 7
        %v745 = vsub.s32 0, %v744
        %v746 = vrot.slane %v741, %v745
        %v820 = vunpack.c.l.b16 %v669
        %v821 = vunpack.c.l.b16 %v670
        %v822 = vunpack.c.l.b16 %v671
        %v823 = vunpack.c.l.b16 %v672
        %v824 = vunpack.c.l.b16 %v673
        %v825 = vunpack.c.l.b16 %v674
        %v826 = vunpack.c.l.b16 %v675
        %v827 = vunpack.c.l.b16 %v676
        %v828 = vunpack.c.l.b16 %v677
        %v829 = vunpack.c.l.b16 %v678
        %v830 = vunpack.c.l.b16 %v679
        %v831 = vunpack.c.l.b16 %v680
        %v832 = vunpack.c.l.b16 %v681
        %v833 = vunpack.c.l.b16 %v682
        %v834 = vunpack.c.l.b16 %v683
        %v835 = vunpack.c.l.b16 %v684
        %v836 = vunpack.c.l.b16 %v685
        %v837 = vunpack.c.l.b16 %v686
        %v838 = vunpack.c.l.b16 %v687
        %v839 = vunpack.c.l.b16 %v688
        %v840 = vunpack.c.l.b16 %v689
        %v841 = vunpack.c.l.b16 %v690
        %v842 = vunpack.c.l.b16 %v691
        %v843 = vunpack.c.l.b16 %v692
        %v844 = vunpack.c.l.b16 %v693
        %v845 = vunpack.c.l.b16 %v694
        %v846 = vunpack.c.l.b16 %v695
        %v847 = vunpack.c.l.b16 %v696
        %v848 = vunpack.c.l.b16 %v697
        %v849 = vunpack.c.l.b16 %v698
        %v850 = vunpack.c.l.b16 %v699
        %v851 = vunpack.c.l.b16 %v700
        %v852 = vunpack.c.l.b16 %v701
        %v853 = vunpack.c.l.b16 %v702
        %v854 = vunpack.c.l.b16 %v703
        %v855 = vunpack.c.l.b16 %v704
        %v856 = vunpack.c.l.b16 %v705
        %v857 = vunpack.c.l.b16 %v706
        %v858 = vunpack.c.l.b16 %v707
        %v859 = vunpack.c.l.b16 %v708
        %v860 = vunpack.c.l.b16 %v709
        %v861 = vunpack.c.l.b16 %v710
        %v862 = vunpack.c.l.b16 %v711
        %v863 = vunpack.c.l.b16 %v712
        %v864 = vunpack.c.l.b16 %v713
        %v865 = vunpack.c.l.b16 %v714
        %v866 = vunpack.c.l.b16 %v715
        %v867 = vunpack.c.l.b16 %v716
        %v868 = vunpack.c.l.b16 %v717
        %v869 = vunpack.c.l.b16 %v718
        %v870 = vunpack.c.l.b16 %v719
        %v871 = vunpack.c.l.b16 %v720
        %v872 = vunpack.c.l.b16 %v721
        %v873 = vunpack.c.l.b16 %v722
        %v874 = vunpack.c.l.b16 %v723
        %v875 = vunpack.c.l.b16 %v724
        %v876 = vunpack.c.l.b16 %v725
        %v877 = vunpack.c.l.b16 %v726
        %v878 = vunpack.c.l.b16 %v727
        %v879 = vunpack.c.l.b16 %v728
        %v880 = vunpack.c.l.b16 %v729
        %v881 = vunpack.c.l.b16 %v730
        %v882 = vunpack.c.l.b16 %v731
        %v883 = vunpack.c.l.b16 %v732
        %v884 = vunpack.c.l.b16 %v733
        %v885 = vunpack.c.l.b16 %v734
        %v886 = vunpack.c.l.b16 %v735
        %v887 = vunpack.c.l.b16 %v736
        %v888 = vunpack.c.l.b16 %v737
        %v889 = vunpack.c.l.b16 %v738
        %v890 = vunpack.c.l.b16 %v739
        %v891 = vunpack.c.l.b16 %v740
        %v892 = vpack.c.b16 %v821, %v820
        %v893 = vpack.c.b16 %v823, %v822
        %v894 = vpack.c.b16 %v825, %v824
        %v895 = vpack.c.b16 %v827, %v826
        %v896 = vpack.c.b16 %v829, %v828
        %v897 = vpack.c.b16 %v831, %v830
        %v898 = vpack.c.b16 %v833, %v832
        %v899 = vpack.c.b16 %v835, %v834
        %v900 = vpack.c.b16 %v837, %v836
        %v901 = vpack.c.b16 %v839, %v838
        %v902 = vpack.c.b16 %v841, %v840
        %v903 = vpack.c.b16 %v843, %v842
        %v904 = vpack.c.b16 %v845, %v844
        %v905 = vpack.c.b16 %v847, %v846
        %v906 = vpack.c.b16 %v849, %v848
        %v907 = vpack.c.b16 %v851, %v850
        %v908 = vpack.c.b16 %v853, %v852
        %v909 = vpack.c.b16 %v855, %v854
        %v910 = vpack.c.b16 %v857, %v856
        %v911 = vpack.c.b16 %v859, %v858
        %v912 = vpack.c.b16 %v861, %v860
        %v913 = vpack.c.b16 %v863, %v862
        %v914 = vpack.c.b16 %v865, %v864
        %v915 = vpack.c.b16 %v867, %v866
        %v916 = vpack.c.b16 %v869, %v868
        %v917 = vpack.c.b16 %v871, %v870
        %v918 = vpack.c.b16 %v873, %v872
        %v919 = vpack.c.b16 %v875, %v874
        %v920 = vpack.c.b16 %v877, %v876
        %v921 = vpack.c.b16 %v879, %v878
        %v922 = vpack.c.b16 %v881, %v880
        %v923 = vpack.c.b16 %v883, %v882
        %v924 = vpack.c.b16 %v885, %v884
        %v925 = vpack.c.b16 %v887, %v886
        %v926 = vpack.c.b16 %v889, %v888
        %v927 = vpack.c.b16 %v891, %v890
        %v964 = vsel %vm564, %v440, 0
        %v966 = vsel %vm564, %v441, 0
        %v968 = vsel %vm564, %v442, 0
        %v970 = vsel %vm564, %v443, 0
        %v972 = vsel %vm564, %v444, 0
        %v974 = vsel %vm564, %v445, 0
        %v977 = vsel %vm564, %v465, 0
        %v980 = vsel %vm564, %v485, 0
        %982 = vmatprep.subr.bf16.mxu0 0
        %983 = vmatpush1.bf16.msra.mxu0 %v892
        %984 = vmatprep.subr.bf16.mxu0 0
        %985 = vmatpush1.bf16.msra.mxu0 %v893
        %986 = vmatprep.subr.bf16.mxu0 0
        %987 = vmatpush1.bf16.msra.mxu0 %v894
        %988 = vmatprep.subr.bf16.mxu0 0
        %989 = vmatpush1.bf16.msra.mxu0 %v895
        %990 = vmatprep.subr.bf16.mxu0 0
        %991 = vmatpush1.bf16.msra.mxu0 %v896
        %992 = vmatprep.subr.bf16.mxu0 0
        %993 = vmatpush1.bf16.msra.mxu0 %v897
        %994 = vmatprep.subr.bf16.mxu0 0
        %995 = vmatpush1.bf16.msra.mxu0 %v898
        %996 = vmatprep.subr.bf16.mxu0 0
        %997 = vmatpush1.bf16.msra.mxu0 %v899
        %998 = vmatprep.subr.bf16.mxu0 0
        %999 = vmatpush1.bf16.msra.mxu0 %v900
        %1000 = vmatprep.subr.bf16.mxu0 0
        %1001 = vmatpush1.bf16.msra.mxu0 %v901
        %1002 = vmatprep.subr.bf16.mxu0 0
        %1003 = vmatpush1.bf16.msra.mxu0 %v902
        %1004 = vmatprep.subr.bf16.mxu0 0
        %1005 = vmatpush1.bf16.msra.mxu0 %v903
        %1006 = vmatprep.subr.bf16.mxu0 0
        %1007 = vmatpush1.bf16.msra.mxu0 %v904
        %1008 = vmatprep.subr.bf16.mxu0 0
        %1009 = vmatpush1.bf16.msra.mxu0 %v905
        %1010 = vmatprep.subr.bf16.mxu0 0
        %1011 = vmatpush1.bf16.msra.mxu0 %v906
        %1012 = vmatprep.subr.bf16.mxu0 0
        %1013 = vmatpush1.bf16.msra.mxu0 %v907
        %1014 = vmatprep.mubr.bf16.mxu0 %v599
        %1015 = vmatmul.mubr.bf16.gmra.mrb[0].mxu0 %v567
        %v1016 = vpop.f32.mrb[0].mxu0
        %v1017 = vadd.f32 %v746, %v1016
        %v1018 = vpop.f32.mrb[0].mxu0
        %v1019 = vpop.f32.mrb[0].mxu0
        %v1020 = vadd.f32 %v746, %v1019
        %v1021 = vpop.f32.mrb[0].mxu0
        %1022 = vmatprep.mubr.bf16.mxu0 %v603
        %1023 = vmatmul.mubr.bf16.gmra.mrb[0].mxu0 %v571
        %v1024 = vpop.f32.mrb[0].mxu0
        %v1025 = vadd.f32 %v746, %v1024
        %v1026 = vpop.f32.mrb[0].mxu0
        %v1027 = vpop.f32.mrb[0].mxu0
        %v1028 = vadd.f32 %v746, %v1027
        %v1029 = vpop.f32.mrb[0].mxu0
        %1030 = vmatprep.mubr.bf16.mxu0 %v607
        %1031 = vmatmul.mubr.bf16.gmra.mrb[0].mxu0 %v575
        %v1032 = vpop.f32.mrb[0].mxu0
        %v1033 = vadd.f32 %v746, %v1032
        %v1034 = vpop.f32.mrb[0].mxu0
        %v1035 = vpop.f32.mrb[0].mxu0
        %v1036 = vadd.f32 %v746, %v1035
        %v1037 = vpop.f32.mrb[0].mxu0
        %1038 = vmatprep.mubr.bf16.mxu0 %v611
        %1039 = vmatmul.mubr.bf16.gmra.mrb[0].mxu0 %v579
        %v1040 = vpop.f32.mrb[0].mxu0
        %v1041 = vadd.f32 %v746, %v1040
        %v1042 = vpop.f32.mrb[0].mxu0
        %v1043 = vpop.f32.mrb[0].mxu0
        %v1044 = vadd.f32 %v746, %v1043
        %v1045 = vpop.f32.mrb[0].mxu0
        %1046 = vmatprep.mubr.bf16.mxu0 %v615
        %1047 = vmatmul.mubr.bf16.gmra.mrb[0].mxu0 %v583
        %v1048 = vpop.f32.mrb[0].mxu0
        %v1049 = vadd.f32 %v746, %v1048
        %v1050 = vpop.f32.mrb[0].mxu0
        %v1051 = vpop.f32.mrb[0].mxu0
        %v1052 = vadd.f32 %v746, %v1051
        %v1053 = vpop.f32.mrb[0].mxu0
        %1054 = vmatprep.mubr.bf16.mxu0 %v619
        %1055 = vmatmul.mubr.bf16.gmra.mrb[0].mxu0 %v587
        %v1056 = vpop.f32.mrb[0].mxu0
        %v1057 = vadd.f32 %v746, %v1056
        %v1058 = vpop.f32.mrb[0].mxu0
        %v1059 = vpop.f32.mrb[0].mxu0
        %v1060 = vadd.f32 %v746, %v1059
        %v1061 = vpop.f32.mrb[0].mxu0
        %1062 = vmatprep.mubr.bf16.mxu0 %v623
        %1063 = vmatmul.mubr.bf16.gmra.mrb[0].mxu0 %v591
        %v1064 = vpop.f32.mrb[0].mxu0
        %v1065 = vadd.f32 %v746, %v1064
        %v1066 = vpop.f32.mrb[0].mxu0
        %v1067 = vpop.f32.mrb[0].mxu0
        %v1068 = vadd.f32 %v746, %v1067
        %v1069 = vpop.f32.mrb[0].mxu0
        %1070 = vmatprep.mubr.bf16.mxu0 %v627
        %1071 = vmatmul.mubr.bf16.gmra.mrb[0].mxu0 %v595
        %v1072 = vpop.f32.mrb[0].mxu0
        %v1073 = vadd.f32 %v746, %v1072
        %v1074 = vpop.f32.mrb[0].mxu0
        %v1075 = vpop.f32.mrb[0].mxu0
        %v1076 = vadd.f32 %v746, %v1075
        %v1077 = vpop.f32.mrb[0].mxu0
        %1078 = vdwg.mxu0
        %1079 = vmatprep.subr.bf16.mxu0 0
        %1080 = vmatpush1.bf16.msra.mxu0 %v908
        %1081 = vmatprep.subr.bf16.mxu0 0
        %1082 = vmatpush1.bf16.msra.mxu0 %v909
        %1083 = vmatprep.subr.bf16.mxu0 0
        %1084 = vmatpush1.bf16.msra.mxu0 %v910
        %1085 = vmatprep.subr.bf16.mxu0 0
        %1086 = vmatpush1.bf16.msra.mxu0 %v911
        %1087 = vmatprep.subr.bf16.mxu0 0
        %1088 = vmatpush1.bf16.msra.mxu0 %v912
        %1089 = vmatprep.subr.bf16.mxu0 0
        %1090 = vmatpush1.bf16.msra.mxu0 %v913
        %1091 = vmatprep.subr.bf16.mxu0 0
        %1092 = vmatpush1.bf16.msra.mxu0 %v914
        %1093 = vmatprep.subr.bf16.mxu0 0
        %1094 = vmatpush1.bf16.msra.mxu0 %v915
        %1095 = vmatprep.subr.bf16.mxu0 0
        %1096 = vmatpush1.bf16.msra.mxu0 %v916
        %1097 = vmatprep.subr.bf16.mxu0 0
        %1098 = vmatpush1.bf16.msra.mxu0 %v917
        %1099 = vmatprep.subr.bf16.mxu0 0
        %1100 = vmatpush1.bf16.msra.mxu0 %v918
        %1101 = vmatprep.subr.bf16.mxu0 0
        %1102 = vmatpush1.bf16.msra.mxu0 %v919
        %1103 = vmatprep.subr.bf16.mxu0 0
        %1104 = vmatpush1.bf16.msra.mxu0 %v920
        %1105 = vmatprep.subr.bf16.mxu0 0
        %1106 = vmatpush1.bf16.msra.mxu0 %v921
        %1107 = vmatprep.subr.bf16.mxu0 0
        %1108 = vmatpush1.bf16.msra.mxu0 %v922
        %1109 = vmatprep.subr.bf16.mxu0 0
        %1110 = vmatpush1.bf16.msra.mxu0 %v923
        %1111 = vmatprep.mubr.bf16.mxu0 %v575
        %1112 = vmatmul.mubr.bf16.gmra.mrb[0].mxu0 %v631
        %v1113 = vpop.f32.mrb[0].mxu0
        %v1114 = vadd.f32 %v1017, %v1113
        %v1115 = vpop.f32.mrb[0].mxu0
        %v1116 = vpop.f32.mrb[0].mxu0
        %v1117 = vadd.f32 %v1020, %v1116
        %v1118 = vpop.f32.mrb[0].mxu0
        %1119 = vmatprep.mubr.bf16.mxu0 %v579
        %1120 = vmatmul.mubr.bf16.gmra.mrb[0].mxu0 %v635
        %v1121 = vpop.f32.mrb[0].mxu0
        %v1122 = vadd.f32 %v1025, %v1121
        %v1123 = vpop.f32.mrb[0].mxu0
        %v1124 = vpop.f32.mrb[0].mxu0
        %v1125 = vadd.f32 %v1028, %v1124
        %v1126 = vpop.f32.mrb[0].mxu0
        %1127 = vmatprep.mubr.bf16.mxu0 %v583
        %1128 = vmatmul.mubr.bf16.gmra.mrb[0].mxu0 %v639
        %v1129 = vpop.f32.mrb[0].mxu0
        %v1130 = vadd.f32 %v1033, %v1129
        %v1131 = vpop.f32.mrb[0].mxu0
        %v1132 = vpop.f32.mrb[0].mxu0
        %v1133 = vadd.f32 %v1036, %v1132
        %v1134 = vpop.f32.mrb[0].mxu0
        %1135 = vmatprep.mubr.bf16.mxu0 %v587
        %1136 = vmatmul.mubr.bf16.gmra.mrb[0].mxu0 %v643
        %v1137 = vpop.f32.mrb[0].mxu0
        %v1138 = vadd.f32 %v1041, %v1137
        %v1139 = vpop.f32.mrb[0].mxu0
        %v1140 = vpop.f32.mrb[0].mxu0
        %v1141 = vadd.f32 %v1044, %v1140
        %v1142 = vpop.f32.mrb[0].mxu0
        %1143 = vmatprep.mubr.bf16.mxu0 %v591
        %1144 = vmatmul.mubr.bf16.gmra.mrb[0].mxu0 %v647
        %v1145 = vpop.f32.mrb[0].mxu0
        %v1146 = vadd.f32 %v1049, %v1145
        %v1147 = vpop.f32.mrb[0].mxu0
        %v1148 = vpop.f32.mrb[0].mxu0
        %v1149 = vadd.f32 %v1052, %v1148
        %v1150 = vpop.f32.mrb[0].mxu0
        %1151 = vmatprep.mubr.bf16.mxu0 %v595
        %1152 = vmatmul.mubr.bf16.gmra.mrb[0].mxu0 %v651
        %v1153 = vpop.f32.mrb[0].mxu0
        %v1154 = vadd.f32 %v1057, %v1153
        %v1155 = vpop.f32.mrb[0].mxu0
        %v1156 = vpop.f32.mrb[0].mxu0
        %v1157 = vadd.f32 %v1060, %v1156
        %v1158 = vpop.f32.mrb[0].mxu0
        %1159 = vmatprep.mubr.bf16.mxu0 %v663
        %1160 = vmatmul.mubr.bf16.gmra.mrb[0].mxu0 %v655
        %v1161 = vpop.f32.mrb[0].mxu0
        %v1162 = vadd.f32 %v1065, %v1161
        %v1163 = vpop.f32.mrb[0].mxu0
        %v1164 = vpop.f32.mrb[0].mxu0
        %v1165 = vadd.f32 %v1068, %v1164
        %v1166 = vpop.f32.mrb[0].mxu0
        %1167 = vmatprep.mubr.bf16.mxu0 %v667
        %1168 = vmatmul.mubr.bf16.gmra.mrb[0].mxu0 %v659
        %v1169 = vpop.f32.mrb[0].mxu0
        %v1170 = vadd.f32 %v1073, %v1169
        %v1171 = vpop.f32.mrb[0].mxu0
        %v1172 = vpop.f32.mrb[0].mxu0
        %v1173 = vadd.f32 %v1076, %v1172
        %v1174 = vpop.f32.mrb[0].mxu0
        %1175 = vdwg.mxu0
        %1176 = vmatprep.subr.bf16.mxu0 0
        %1177 = vmatpush1.bf16.msra.mxu0 %v924
        %1178 = vmatprep.subr.bf16.mxu0 0
        %1179 = vmatpush1.bf16.msra.mxu0 %v925
        %1180 = vmatprep.subr.bf16.mxu0 0
        %1181 = vmatpush1.bf16.msra.mxu0 %v926
        %1182 = vmatprep.subr.bf16.mxu0 0
        %1183 = vmatpush1.bf16.msra.mxu0 %v927
        %1184 = vmatprep.subr.bf16.mxu0 0
        %1185 = vmatpush1.bf16.msra.mxu0 0
        %1186 = vmatprep.subr.bf16.mxu0 0
        %1187 = vmatpush1.bf16.msra.mxu0 0
        %1188 = vmatprep.subr.bf16.mxu0 0
        %1189 = vmatpush1.bf16.msra.mxu0 0
        %1190 = vmatprep.subr.bf16.mxu0 0
        %1191 = vmatpush1.bf16.msra.mxu0 0
        %1192 = vmatprep.subr.bf16.mxu0 0
        %1193 = vmatpush1.bf16.msra.mxu0 0
        %1194 = vmatprep.subr.bf16.mxu0 0
        %1195 = vmatpush1.bf16.msra.mxu0 0
        %1196 = vmatprep.subr.bf16.mxu0 0
        %1197 = vmatpush1.bf16.msra.mxu0 0
        %1198 = vmatprep.subr.bf16.mxu0 0
        %1199 = vmatpush1.bf16.msra.mxu0 0
        %1200 = vmatprep.subr.bf16.mxu0 0
        %1201 = vmatpush1.bf16.msra.mxu0 0
        %1202 = vmatprep.subr.bf16.mxu0 0
        %1203 = vmatpush1.bf16.msra.mxu0 0
        %1204 = vmatprep.subr.bf16.mxu0 0
        %1205 = vmatpush1.bf16.msra.mxu0 0
        %1206 = vmatprep.subr.bf16.mxu0 0
        %1207 = vmatpush1.bf16.msra.mxu0 0
        %1208 = vmatprep.mubr.bf16.mxu0 0
        %1209 = vmatmul.mubr.bf16.gmra.mrb[0].mxu0 %v964
        %v1210 = vpop.f32.mrb[0].mxu0
        %v1211 = vadd.f32 %v1114, %v1210
        %v1212 = vpop.f32.mrb[0].mxu0
        %v1213 = vpop.f32.mrb[0].mxu0
        %v1214 = vadd.f32 %v1117, %v1213
        %v1215 = vpop.f32.mrb[0].mxu0
        %1216 = vmatprep.mubr.bf16.mxu0 0
        %1217 = vmatmul.mubr.bf16.gmra.mrb[0].mxu0 %v966
        %v1218 = vpop.f32.mrb[0].mxu0
        %v1219 = vadd.f32 %v1122, %v1218
        %v1220 = vpop.f32.mrb[0].mxu0
        %v1221 = vpop.f32.mrb[0].mxu0
        %v1222 = vadd.f32 %v1125, %v1221
        %v1223 = vpop.f32.mrb[0].mxu0
        %1224 = vmatprep.mubr.bf16.mxu0 0
        %1225 = vmatmul.mubr.bf16.gmra.mrb[0].mxu0 %v968
        %v1226 = vpop.f32.mrb[0].mxu0
        %v1227 = vadd.f32 %v1130, %v1226
        %v1228 = vpop.f32.mrb[0].mxu0
        %v1229 = vpop.f32.mrb[0].mxu0
        %v1230 = vadd.f32 %v1133, %v1229
        %v1231 = vpop.f32.mrb[0].mxu0
        %1232 = vmatprep.mubr.bf16.mxu0 0
        %1233 = vmatmul.mubr.bf16.gmra.mrb[0].mxu0 %v970
        %v1234 = vpop.f32.mrb[0].mxu0
        %v1235 = vadd.f32 %v1138, %v1234
        %v1236 = vpop.f32.mrb[0].mxu0
        %v1237 = vpop.f32.mrb[0].mxu0
        %v1238 = vadd.f32 %v1141, %v1237
        %v1239 = vpop.f32.mrb[0].mxu0
        %1240 = vmatprep.mubr.bf16.mxu0 0
        %1241 = vmatmul.mubr.bf16.gmra.mrb[0].mxu0 %v972
        %v1242 = vpop.f32.mrb[0].mxu0
        %v1243 = vadd.f32 %v1146, %v1242
        %v1244 = vpop.f32.mrb[0].mxu0
        %v1245 = vpop.f32.mrb[0].mxu0
        %v1246 = vadd.f32 %v1149, %v1245
        %v1247 = vpop.f32.mrb[0].mxu0
        %1248 = vmatprep.mubr.bf16.mxu0 0
        %1249 = vmatmul.mubr.bf16.gmra.mrb[0].mxu0 %v974
        %v1250 = vpop.f32.mrb[0].mxu0
        %v1251 = vadd.f32 %v1154, %v1250
        %v1252 = vpop.f32.mrb[0].mxu0
        %v1253 = vpop.f32.mrb[0].mxu0
        %v1254 = vadd.f32 %v1157, %v1253
        %v1255 = vpop.f32.mrb[0].mxu0
        %1256 = vmatprep.mubr.bf16.mxu0 0
        %1257 = vmatmul.mubr.bf16.gmra.mrb[0].mxu0 %v977
        %v1258 = vpop.f32.mrb[0].mxu0
        %v1259 = vadd.f32 %v1162, %v1258
        %v1260 = vpop.f32.mrb[0].mxu0
        %v1261 = vpop.f32.mrb[0].mxu0
        %v1262 = vadd.f32 %v1165, %v1261
        %v1263 = vpop.f32.mrb[0].mxu0
        %1264 = vmatprep.mubr.bf16.mxu0 0
        %1265 = vmatmul.mubr.bf16.gmra.mrb[0].mxu0 %v980
        %v1266 = vpop.f32.mrb[0].mxu0
        %v1267 = vadd.f32 %v1170, %v1266
        %v1268 = vpop.f32.mrb[0].mxu0
        %v1269 = vpop.f32.mrb[0].mxu0
        %v1270 = vadd.f32 %v1173, %v1269
        %v1271 = vpop.f32.mrb[0].mxu0
        %1272 = vdwg.mxu0
        %v1273 = vld [vmem:[%s247] sm:$0xff]
        %v1274 = vld [vmem:[%s247 + $0x8] sm:$0xff]
        %v1275 = vld [vmem:[%s247 + $0x10] sm:$0xff]
        %v1276 = vld [vmem:[%s247 + $0x18] sm:$0xff]
        %v1277 = vld [vmem:[%s247 + $0x20] sm:$0xff]
        %v1278 = vld [vmem:[%s247 + $0x28] sm:$0xff]
        %v1279 = vld [vmem:[%s247 + $0x30] sm:$0xff]
        %v1280 = vld [vmem:[%s247 + $0x38] sm:$0xff]
        %v1281 = vld [vmem:[%s247 + $0x40] sm:$0xff]
        %v1282 = vld [vmem:[%s247 + $0x48] sm:$0xff]
        %v1283 = vld [vmem:[%s247 + $0x50] sm:$0xff]
        %v1284 = vld [vmem:[%s247 + $0x58] sm:$0xff]
        %v1285 = vld [vmem:[%s247 + $0x60] sm:$0xff]
        %v1286 = vld [vmem:[%s247 + $0x68] sm:$0xff]
        %v1287 = vld [vmem:[%s247 + $0x70] sm:$0xff]
        %v1288 = vld [vmem:[%s247 + $0x78] sm:$0xff]
        %v1289 = vadd.f32 %v1211, %v1273
        %v1290 = vadd.f32 %v1214, %v1274
        %v1291 = vadd.f32 %v1219, %v1275
        %v1292 = vadd.f32 %v1222, %v1276
        %v1293 = vadd.f32 %v1227, %v1277
        %v1294 = vadd.f32 %v1230, %v1278
        %v1295 = vadd.f32 %v1235, %v1279
        %v1296 = vadd.f32 %v1238, %v1280
        %v1297 = vadd.f32 %v1243, %v1281
        %v1298 = vadd.f32 %v1246, %v1282
        %v1299 = vadd.f32 %v1251, %v1283
        %v1300 = vadd.f32 %v1254, %v1284
        %v1301 = vadd.f32 %v1259, %v1285
        %v1302 = vadd.f32 %v1262, %v1286
        %v1303 = vadd.f32 %v1267, %v1287
        %v1304 = vadd.f32 %v1270, %v1288
        %1305 = vst [vmem:[%s232] sm:$0xff] %v1289
        %1306 = vst [vmem:[%s232 + $0x8] sm:$0xff] %v1290
        %1307 = vst [vmem:[%s232 + $0x10] sm:$0xff] %v1291
        %1308 = vst [vmem:[%s232 + $0x18] sm:$0xff] %v1292
        %1309 = vst [vmem:[%s232 + $0x20] sm:$0xff] %v1293
        %1310 = vst [vmem:[%s232 + $0x28] sm:$0xff] %v1294
        %1311 = vst [vmem:[%s232 + $0x30] sm:$0xff] %v1295
        %1312 = vst [vmem:[%s232 + $0x38] sm:$0xff] %v1296
        %1313 = vst [vmem:[%s232 + $0x40] sm:$0xff] %v1297
        %1314 = vst [vmem:[%s232 + $0x48] sm:$0xff] %v1298
        %1315 = vst [vmem:[%s232 + $0x50] sm:$0xff] %v1299
        %1316 = vst [vmem:[%s232 + $0x58] sm:$0xff] %v1300
        %1317 = vst [vmem:[%s232 + $0x60] sm:$0xff] %v1301
        %1318 = vst [vmem:[%s232 + $0x68] sm:$0xff] %v1302
        %1319 = vst [vmem:[%s232 + $0x70] sm:$0xff] %v1303
        %1320 = vst [vmem:[%s232 + $0x78] sm:$0xff] %v1304
        %s1321 = sand.u32 %s136, 1
        %s1322 = scalar_lea.sflag [#allocation3], %s1321
        %s1323 = sand.u32 %s136, 1
        %s1324 = smul.addr %s1323, 128
        %s1325 = scalar_lea.vmem [#allocation2], %s1324
        // Predicated region
        $region37: #{spade_resnet_block_forward.34} parent=35 // pred_check
          %p1326 = pneg %p146
        $region38: #{spade_resnet_block_forward.34} parent=35 // pred_check_branch
          %1328 = sbr.rel (%p1326) target = $region40
        $region39: #{spade_resnet_block_forward.34} parent=35 // pred_region
          %s1329 = smul.u32 8, %s23
          %s1331 = ssub.s32 2048, 2048
          %1332 = vsyncadd %s1322, %s1331
          %s1333 = smul.addr %s1329, 2
          %s1334 = smul.addr %s22, 32
          %s1335 = sadd.s32 %s1333, %s1334
          %s1336 = smul.addr %s1335, 128
          %s1337 = scalar_lea.hbm %s4, %s1336
          %s1338 = sshll.u32 %s1325, 4
          %s1339 = int_to_ptr.vmem [resolvable:$true] %s1338
          %1344 = dma.vmem_to_hbm [thread:$0]  %s1339, 2048, %s1337, %s1322, 128, 128, 8
        $region40: #{spade_resnet_block_forward.34} parent=35 // pred_fallthru
          _
      $region36: #{spade_resnet_block_forward.34} parent=5 // pred_fallthru
        _
      %p1345 = scmp.le.s32.totalorder 2, %s13
      // Predicated region
      $region41: #{spade_resnet_block_forward.34} parent=5 // pred_check
        %p1346 = pneg %p1345
      $region42: #{spade_resnet_block_forward.34} parent=5 // pred_check_branch
        %1348 = sbr.rel (%p1346) target = $region44
      $region43: #{spade_resnet_block_forward.34} parent=5 // pred_region
        %s1349 = ssub.s32 %s13, 2
        // Predicated region
        $region45: #{spade_resnet_block_forward.34} parent=43 // pred_check
          %p1350 = pneg %p152
        $region46: #{spade_resnet_block_forward.34} parent=43 // pred_check_branch
          %1352 = sbr.rel (%p1350) target = $region48
        $region47: #{spade_resnet_block_forward.34} parent=43 // pred_region
          %s1353 = sand.u32 %s137, 1
          %s1354 = scalar_lea.sflag [#allocation3], %s1353
          %s1355 = sand.u32 %s137, 1
          %s1356 = smul.addr %s1355, 128
          %s1357 = scalar_lea.vmem [#allocation2], %s1356
          %1358 = dma.done %s1354, 2048
        $region48: #{spade_resnet_block_forward.34} parent=43 // pred_fallthru
          _
      $region44: #{spade_resnet_block_forward.34} parent=5 // pred_fallthru
        _
    $region6: #{spade_resnet_block_forward.34} parent=1 // loop_footer
      %s17 = sadd.s32 1, %s13
    $region7: #{spade_resnet_block_forward.34} parent=1 // loop_footer_branch
      %12 = sbr.rel target = $region3
    $region8: #{spade_resnet_block_forward.34} parent=1 // loop_exit
      _
    %1359 = vsyncpa [#allocation3], 1
    %s1360 = scalar_lea.sflag [#allocation3], 1
    %1361 = vsyncpa %s1360, 1

</llo_original>
